<compile_context>
chip_gen: v7x
topology: tpu7x:2x2x1
jax: 0.10.0
libtpu: 0.0.40
codegen_flags: <defaults>
</compile_context>

<pallas_src>
import functools
import math

import jax
import jax.numpy as jnp
from jax import lax
from jax.experimental import pallas as pl
from jax.experimental.pallas import tpu as pltpu


# ------------------------------ small helpers ----------------------------------
def _mm(x, w, compute_dtype):
    return jnp.dot(x.astype(compute_dtype), w.astype(compute_dtype),
                   preferred_element_type=jnp.float32)


def _row_mask(lens_ref, t0, tile_t):
    """(tile_t, 1) f32 mask: 1 where 0 <= original_time_index < x_lengths[b]."""
    b = pl.program_id(0)
    length = lens_ref[b]
    t = t0 + lax.broadcasted_iota(jnp.int32, (tile_t, 1), 0)
    return jnp.logical_and(t >= 0, t < length).astype(jnp.float32)


def _cp(sem, vmem_limit_bytes):
    if vmem_limit_bytes is None:
        return pltpu.CompilerParams(dimension_semantics=sem)
    return pltpu.CompilerParams(dimension_semantics=sem,
                                vmem_limit_bytes=vmem_limit_bytes)


# ------------------------------ Pallas kernels ----------------------------------
def _pre_kernel(lens_ref, x_ref, w_ref, b_ref, o_ref, *, lead, compute_dtype):
    """1x1 conv (channel matmul) + bias, * mask.  Grid covers the padded tiles,
    so the halo region of the output is written as zeros (mask==0 there)."""
    tile_t = o_ref.shape[0]
    j = pl.program_id(1)
    mask = _row_mask(lens_ref, j * tile_t - lead, tile_t)
    y = _mm(x_ref[...], w_ref[...], compute_dtype) + b_ref[...]
    o_ref[...] = (y * mask).astype(o_ref.dtype)


def _wn_layer_kernel(lens_ref, x_pad_ref, *rest, dil, lead, K, first, compute_dtype):
    """One fused WaveNet layer (not the last one).

    x_pad_ref : (Tpad, H) per-batch resident, zero halo along time
    skip_in   : (tile_t, H) f32 running skip accumulator tile (absent if first)
    w_in      : (K, H, 2H) combined tanh|sigmoid dilated-conv weight
    w_rs      : (H, 2H)    combined res|skip 1x1 weight
    outputs   : x_out (tile_t, H) masked residual update (aliased into x_pad's
                buffer -> halo stays zero), skip_out (tile_t, H) f32.
    """
    if first:
        w_in_ref, b_in_ref, w_rs_ref, b_rs_ref, x_out_ref, skip_out_ref = rest
        skip_in_ref = None
    else:
        (skip_in_ref, w_in_ref, b_in_ref, w_rs_ref, b_rs_ref,
         x_out_ref, skip_out_ref) = rest

    tile_t, H = x_out_ref.shape
    pad = (K - 1) // 2 * dil
    base = pl.multiple_of(pl.program_id(1) * tile_t + lead, tile_t)

    # Dilated conv as K accumulated MXU matmuls over shifted time slices.
    acc = jnp.zeros((tile_t, 2 * H), jnp.float32) + b_in_ref[...]
    for k in range(K):
        xk = x_pad_ref[pl.ds(base + (k * dil - pad), tile_t), :]
        acc = acc + _mm(xk, w_in_ref[k], compute_dtype)

    acts = jnp.tanh(acc[:, :H]) * jax.nn.sigmoid(acc[:, H:])      # gated (f32)

    rs = _mm(acts, w_rs_ref[...], compute_dtype) + b_rs_ref[...]   # (tile_t, 2H)
    mask = _row_mask(lens_ref, pl.program_id(1) * tile_t, tile_t)

    x_cur = x_pad_ref[pl.ds(base, tile_t), :].astype(jnp.float32)
    x_out_ref[...] = ((x_cur + rs[:, :H]) * mask).astype(x_out_ref.dtype)

    skip_new = rs[:, H:]
    if first:
        skip_out_ref[...] = skip_new.astype(skip_out_ref.dtype)
    else:
        skip_out_ref[...] = (skip_in_ref[...].astype(jnp.float32)
                             + skip_new).astype(skip_out_ref.dtype)


def _wn_last_kernel(lens_ref, x_pad_ref, *rest, dil, lead, K, first, compute_dtype):
    """Last WN layer fused with the proj 1x1 conv and the sampling step."""
    if first:
        (eps_ref, w_in_ref, b_in_ref, w_skip_ref, b_skip_ref,
         w_p_ref, b_p_ref, z_ref, m_ref, logs_ref) = rest
        skip_in_ref = None
    else:
        (skip_in_ref, eps_ref, w_in_ref, b_in_ref, w_skip_ref, b_skip_ref,
         w_p_ref, b_p_ref, z_ref, m_ref, logs_ref) = rest

    H = w_skip_ref.shape[0]
    tile_t, Cout = z_ref.shape
    pad = (K - 1) // 2 * dil
    base = pl.multiple_of(pl.program_id(1) * tile_t + lead, tile_t)

    acc = jnp.zeros((tile_t, 2 * H), jnp.float32) + b_in_ref[...]
    for k in range(K):
        xk = x_pad_ref[pl.ds(base + (k * dil - pad), tile_t), :]
        acc = acc + _mm(xk, w_in_ref[k], compute_dtype)
    acts = jnp.tanh(acc[:, :H]) * jax.nn.sigmoid(acc[:, H:])

    skip_total = _mm(acts, w_skip_ref[...], compute_dtype) + b_skip_ref[...]
    if not first:
        skip_total = skip_in_ref[...].astype(jnp.float32) + skip_total

    mask = _row_mask(lens_ref, pl.program_id(1) * tile_t, tile_t)
    hm = skip_total * mask
    stats = _mm(hm, w_p_ref[...], compute_dtype) + b_p_ref[...]    # (tile_t, 2*Cout)
    m = stats[:, :Cout] * mask
    logs = stats[:, Cout:] * mask
    z = (m + eps_ref[...].astype(jnp.float32) * jnp.exp(logs)) * mask

    z_ref[...] = z.astype(z_ref.dtype)
    m_ref[...] = m.astype(m_ref.dtype)
    logs_ref[...] = logs.astype(logs_ref.dtype)


# ------------------------------ kernel wrappers ----------------------------------
def _pre_conv(lens, x, w, b, *, lead, tile_t, out_dtype, compute_dtype, vmem_limit_bytes):
    B, Tpad, Cin = x.shape
    H = w.shape[1]
    grid = (B, Tpad // tile_t)
    return pl.pallas_call(
        functools.partial(_pre_kernel, lead=lead, compute_dtype=compute_dtype),
        out_shape=jax.ShapeDtypeStruct((B, Tpad, H), out_dtype),
        grid_spec=pltpu.PrefetchScalarGridSpec(
            num_scalar_prefetch=0, grid=grid,
            in_specs=[
                pl.BlockSpec(memory_space=pltpu.MemorySpace.SMEM),      # x_lengths
                pl.BlockSpec((None, tile_t, Cin), lambda b, i: (b, i, 0)),
                pl.BlockSpec((Cin, H), lambda b, i: (0, 0)),
                pl.BlockSpec((1, H), lambda b, i: (0, 0)),
            ],
            out_specs=pl.BlockSpec((None, tile_t, H), lambda b, i: (b, i, 0)),
        ),
        compiler_params=_cp(("parallel", "parallel"), vmem_limit_bytes),
    )(lens, x, w, b)


def _wn_layer(lens, x_pad, skip, lp, *, dil, lead, K, Tp, tile_t,
              compute_dtype, vmem_limit_bytes):
    B, Tpad, H = x_pad.shape
    grid = (B, Tp // tile_t)
    first = skip is None
    interior0 = lead // tile_t

    in_specs = [pl.BlockSpec(memory_space=pltpu.MemorySpace.SMEM),          # x_lengths
                pl.BlockSpec((None, Tpad, H), lambda b, i: (b, 0, 0))]      # resident x_pad
    args = [lens, x_pad]
    if not first:
        in_specs.append(pl.BlockSpec((None, tile_t, H), lambda b, i: (b, i, 0)))
        args.append(skip)
    in_specs += [
        pl.BlockSpec((K, H, 2 * H), lambda b, i: (0, 0, 0)),
        pl.BlockSpec((1, 2 * H), lambda b, i: (0, 0)),
        pl.BlockSpec((H, 2 * H), lambda b, i: (0, 0)),
        pl.BlockSpec((1, 2 * H), lambda b, i: (0, 0)),
    ]
    args += [lp["w_in"], lp["b_in"], lp["w_rs"], lp["b_rs"]]

    out_specs = (
        pl.BlockSpec((None, tile_t, H), lambda b, i: (b, i + interior0, 0)),  # x_out (interior)
        pl.BlockSpec((None, tile_t, H), lambda b, i: (b, i, 0)),              # skip_out
    )
    out_shape = (jax.ShapeDtypeStruct((B, Tpad, H), x_pad.dtype),
                 jax.ShapeDtypeStruct((B, Tp, H), jnp.float32))
    # x_pad -> x_out alias keeps the zero halo; skip_in -> skip_out accumulates in place.
    io_alias = {1: 0} if first else {1: 0, 2: 1}

    # Time axis must be "arbitrary": the aliased interior writes land in the same
    # HBM buffer the resident x_pad block is fetched from, so only the batch axis
    # may be split across cores.
    x_out, skip_out = pl.pallas_call(
        functools.partial(_wn_layer_kernel, dil=dil, lead=lead, K=K, first=first,
                          compute_dtype=compute_dtype),
        out_shape=out_shape,
        grid_spec=pltpu.PrefetchScalarGridSpec(
            num_scalar_prefetch=0, grid=grid,
            in_specs=in_specs, out_specs=out_specs),
        compiler_params=_cp(("parallel", "arbitrary"), vmem_limit_bytes),
        input_output_aliases=io_alias,
    )(*args)
    return x_out, skip_out


def _wn_last(lens, x_pad, skip, eps, lp, proj_w, proj_b, *, dil, lead, K, Tp, tile_t,
             Cout, out_dtype, compute_dtype, vmem_limit_bytes):
    B, Tpad, H = x_pad.shape
    grid = (B, Tp // tile_t)
    first = skip is None

    in_specs = [pl.BlockSpec(memory_space=pltpu.MemorySpace.SMEM),
                pl.BlockSpec((None, Tpad, H), lambda b, i: (b, 0, 0))]
    args = [lens, x_pad]
    if not first:
        in_specs.append(pl.BlockSpec((None, tile_t, H), lambda b, i: (b, i, 0)))
        args.append(skip)
    in_specs += [
        pl.BlockSpec((None, tile_t, Cout), lambda b, i: (b, i, 0)),   # eps
        pl.BlockSpec((K, H, 2 * H), lambda b, i: (0, 0, 0)),
        pl.BlockSpec((1, 2 * H), lambda b, i: (0, 0)),
        pl.BlockSpec((H, H), lambda b, i: (0, 0)),
        pl.BlockSpec((1, H), lambda b, i: (0, 0)),
        pl.BlockSpec((H, 2 * Cout), lambda b, i: (0, 0)),
        pl.BlockSpec((1, 2 * Cout), lambda b, i: (0, 0)),
    ]
    args += [eps, lp["w_in"], lp["b_in"], lp["w_skip"], lp["b_skip"], proj_w, proj_b]

    blk = pl.BlockSpec((None, tile_t, Cout), lambda b, i: (b, i, 0))
    out_shape = tuple(jax.ShapeDtypeStruct((B, Tp, Cout), out_dtype) for _ in range(3))

    return pl.pallas_call(
        functools.partial(_wn_last_kernel, dil=dil, lead=lead, K=K, first=first,
                          compute_dtype=compute_dtype),
        out_shape=out_shape,
        grid_spec=pltpu.PrefetchScalarGridSpec(
            num_scalar_prefetch=0, grid=grid,
            in_specs=in_specs, out_specs=(blk, blk, blk)),
        compiler_params=_cp(("parallel", "parallel"), vmem_limit_bytes),
    )(*args)


# ------------------------------ forward pass -------------------------------------
def posterior_encoder_forward(x, x_lengths, eps, params, *, cfg, tile_t=128,
                              compute_dtype=jnp.float32, act_dtype=jnp.float32,
                              vmem_limit_bytes=None):
    """x: (B, in_channels, T); x_lengths: (B,) int32; eps: (B, out_channels, T).

    Returns (z, m, logs, x_mask) in torch layout:
      z, m, logs: (B, out_channels, T);  x_mask: (B, 1, T).

    tile_t: 128 default (fills the v5e MXU); use 256 on v6e/v7x for long T.
    compute_dtype/act_dtype may be bf16 for production (keep skip/gating in f32,
    which this kernel does via f32 MXU accumulation).
    """
    # TODO(synk): g-conditioning (gin_channels > 0, cond_layer) is not wired; g=None path only.
    B, Cin, T = x.shape
    H = cfg["hidden_channels"]
    Cout = cfg["out_channels"]
    K = cfg["kernel_size"]
    dr = cfg["dilation_rate"]
    n_layers = cfg["n_layers"]
    assert tile_t % 8 == 0

    Tp = pl.cdiv(T, tile_t) * tile_t
    pad_max = (K - 1) // 2 * dr ** (n_layers - 1)
    lead = (pl.cdiv(pad_max, tile_t) * tile_t) if pad_max > 0 else 0
    Tpad = Tp + 2 * lead

    lens = x_lengths.astype(jnp.int32)

    # Single up-front pad of the (small) input; activations are never re-padded.
    xt = jnp.transpose(x, (0, 2, 1)).astype(act_dtype)              # (B, T, Cin)
    xt = jnp.pad(xt, ((0, 0), (lead, Tpad - lead - T), (0, 0)))
    epst = jnp.transpose(eps, (0, 2, 1)).astype(jnp.float32)        # (B, T, Cout)
    epst = jnp.pad(epst, ((0, 0), (0, Tp - T), (0, 0)))

    h = _pre_conv(lens, xt, params["pre_w"], params["pre_b"],
                  lead=lead, tile_t=tile_t, out_dtype=act_dtype,
                  compute_dtype=compute_dtype, vmem_limit_bytes=vmem_limit_bytes)

    skip = None
    for li in range(n_layers - 1):
        h, skip = _wn_layer(lens, h, skip, params["wn"][li],
                            dil=dr ** li, lead=lead, K=K, Tp=Tp, tile_t=tile_t,
                            compute_dtype=compute_dtype,
                            vmem_limit_bytes=vmem_limit_bytes)

    z, m, logs = _wn_last(lens, h, skip, epst, params["wn"][n_layers - 1],
                          params["proj_w"], params["proj_b"],
                          dil=dr ** (n_layers - 1), lead=lead, K=K, Tp=Tp,
                          tile_t=tile_t, Cout=Cout, out_dtype=x.dtype,
                          compute_dtype=compute_dtype,
                          vmem_limit_bytes=vmem_limit_bytes)

    def to_nct(a):                                   # drop alignment pad, torch layout
        return jnp.transpose(a[:, :T, :], (0, 2, 1))

    x_mask = (jnp.arange(T, dtype=jnp.int32)[None, :] <
              x_lengths[:, None]).astype(x.dtype)[:, None, :]       # (B, 1, T)
    return to_nct(z), to_nct(m), to_nct(logs), x_mask


# ------------------------------ parameters ---------------------------------------
def init_torch_params(key, cfg):
    """Deterministic PyTorch Conv1d-style init (uniform +-1/sqrt(fan_in)), torch layout."""
    Cin, H, Cout = cfg["in_channels"], cfg["hidden_channels"], cfg["out_channels"]
    K, n_layers = cfg["kernel_size"], cfg["n_layers"]

    def conv_init(k, cout, cin, ksize):
        kw, kb = jax.random.split(k)
        bound = 1.0 / math.sqrt(cin * ksize)
        w = jax.random.uniform(kw, (cout, cin, ksize), jnp.float32, -bound, bound)
        b = jax.random.uniform(kb, (cout,), jnp.float32, -bound, bound)
        return {"w": w, "b": b}

    keys = jax.random.split(key, 2 + 2 * n_layers)
    p = {"pre": conv_init(keys[0], H, Cin, 1),
         "proj": conv_init(keys[1], 2 * Cout, H, 1),
         "in_layers": [], "res_skip": []}
    for i in range(n_layers):
        p["in_layers"].append(conv_init(keys[2 + 2 * i], 2 * H, H, K))
        rs = 2 * H if i < n_layers - 1 else H
        p["res_skip"].append(conv_init(keys[3 + 2 * i], rs, H, 1))
    return p


def prepare_params(tp, cfg, *, param_dtype=jnp.float32):
    """Torch-layout weights -> kernel layout.  Weights stay COMBINED (2H / 2*Cout
    wide) so each layer does one wide MXU matmul per tap; biases stay f32."""
    H, Cout, n_layers = cfg["hidden_channels"], cfg["out_channels"], cfg["n_layers"]
    kp = {"pre_w": jnp.transpose(tp["pre"]["w"][:, :, 0]).astype(param_dtype),  # (Cin, H)
          "pre_b": tp["pre"]["b"][None, :].astype(jnp.float32),
          "wn": []}
    for i in range(n_layers):
        w = jnp.transpose(tp["in_layers"][i]["w"], (2, 1, 0)).astype(param_dtype)  # (K, H, 2H)
        b = tp["in_layers"][i]["b"][None, :].astype(jnp.float32)                   # (1, 2H)
        rw = jnp.transpose(tp["res_skip"][i]["w"][:, :, 0]).astype(param_dtype)
        rb = tp["res_skip"][i]["b"][None, :].astype(jnp.float32)
        if i < n_layers - 1:
            kp["wn"].append({"w_in": w, "b_in": b, "w_rs": rw, "b_rs": rb})         # rw: (H, 2H)
        else:
            kp["wn"].append({"w_in": w, "b_in": b, "w_skip": rw, "b_skip": rb})     # rw: (H, H)
    kp["proj_w"] = jnp.transpose(tp["proj"]["w"][:, :, 0]).astype(param_dtype)      # (H, 2*Cout)
    kp["proj_b"] = tp["proj"]["b"][None, :].astype(jnp.float32)
    return kp


# ------------------------- pure-JAX reference (XLA conv) ---------------------------
def _conv1d_ref(x, w, b, *, dilation=1, padding=0):
    y = lax.conv_general_dilated(
        x[:, :, :, None], w[:, :, :, None],
        window_strides=(1, 1), padding=((padding, padding), (0, 0)),
        rhs_dilation=(dilation, 1),
        dimension_numbers=("NCHW", "OIHW", "NCHW"))[:, :, :, 0]
    return y + b[None, :, None]


def _ref_forward(x, x_lengths, eps, tp, cfg):
    B, Cin, T = x.shape
    H, Cout = cfg["hidden_channels"], cfg["out_channels"]
    K, dr, n_layers = cfg["kernel_size"], cfg["dilation_rate"], cfg["n_layers"]
    mask = (jnp.arange(T)[None, :] < x_lengths[:, None]).astype(x.dtype)[:, None, :]
    h = _conv1d_ref(x, tp["pre"]["w"], tp["pre"]["b"]) * mask
    output = jnp.zeros_like(h)
    for i in range(n_layers):
        dil = dr ** i
        pad = (K * dil - dil) // 2
        x_in = _conv1d_ref(h, tp["in_layers"][i]["w"], tp["in_layers"][i]["b"],
                           dilation=dil, padding=pad)
        acts = jnp.tanh(x_in[:, :H]) * jax.nn.sigmoid(x_in[:, H:])
        rs = _conv1d_ref(acts, tp["res_skip"][i]["w"], tp["res_skip"][i]["b"])
        if i < n_layers - 1:
            h = (h + rs[:, :H]) * mask
            output = output + rs[:, H:]
        else:
            output = output + rs
    xo = output * mask
    stats = _conv1d_ref(xo, tp["proj"]["w"], tp["proj"]["b"]) * mask
    m, logs = stats[:, :Cout], stats[:, Cout:]
    z = (m + eps * jnp.exp(logs)) * mask
    return z, m, logs, mask


# ----------------------------------- demo -----------------------------------------
if __name__ == "__main__":
    cfg = dict(in_channels=8, out_channels=16, hidden_channels=32,
               kernel_size=5, dilation_rate=2, n_layers=4, gin_channels=0)
    B, T = 2, 50                          # T not a multiple of the tile -> exercises padding

    key = jax.random.PRNGKey(0)
    kx, ke, kp = jax.random.split(key, 3)
    x = jax.random.normal(kx, (B, cfg["in_channels"], T), jnp.float32)
    x_lengths = jnp.array([T, 37], dtype=jnp.int32)
    eps = jax.random.normal(ke, (B, cfg["out_channels"], T), jnp.float32)

    tparams = init_torch_params(kp, cfg)
    kparams = prepare_params(tparams, cfg)

    fwd = jax.jit(functools.partial(posterior_encoder_forward, cfg=cfg))
    z, m, logs, x_mask = fwd(x, x_lengths, eps, kparams)
    jax.block_until_ready((z, m, logs, x_mask))

    rz, rm, rlogs, rmask = _ref_forward(x, x_lengths, eps, tparams, cfg)
    for name, a, r in [("z", z, rz), ("m", m, rm), ("logs", logs, rlogs),
                       ("x_mask", x_mask, rmask)]:
        assert a.shape == r.shape, (name, a.shape, r.shape)
        err = float(jnp.max(jnp.abs(a - r)))
        assert err < 2e-2, (name, err)

    print("KERNEL_OK")
</pallas_src>

<mosaic_0001>
module attributes {stable_mosaic.version = 11 : i64} {
  func.func @_wn_layer_kernel(%arg0: i32, %arg1: i32, %arg2: memref<2xi32, #tpu.memory_space<smem>>, %arg3: memref<1x384x32xf32, #tpu.memory_space<vmem>>, %arg4: memref<5x32x64xf32, #tpu.memory_space<vmem>>, %arg5: memref<1x64xf32, #tpu.memory_space<vmem>>, %arg6: memref<32x64xf32, #tpu.memory_space<vmem>>, %arg7: memref<1x64xf32, #tpu.memory_space<vmem>>, %arg8: memref<1x128x32xf32, #tpu.memory_space<vmem>>, %arg9: memref<1x128x32xf32, #tpu.memory_space<vmem>>) attributes {dimension_semantics = [#tpu.dimension_semantics<parallel>, #tpu.dimension_semantics<arbitrary>], iteration_bounds = array<i64: 2, 1>, scalar_prefetch = 0 : i64, scratch_operands = 0 : i64, tpu.core_type = #tpu.core_type<tc>, window_params = [{transform_indices = @transform_0, window_bounds = array<i64: 2>}, {transform_indices = @transform_1, window_bounds = array<i64: 1, 384, 32>}, {pipeline_mode = #tpu.pipeline_mode<synchronous>, transform_indices = @transform_2, window_bounds = array<i64: 5, 32, 64>}, {pipeline_mode = #tpu.pipeline_mode<synchronous>, transform_indices = @transform_3, window_bounds = array<i64: 1, 64>}, {pipeline_mode = #tpu.pipeline_mode<synchronous>, transform_indices = @transform_4, window_bounds = array<i64: 32, 64>}, {pipeline_mode = #tpu.pipeline_mode<synchronous>, transform_indices = @transform_5, window_bounds = array<i64: 1, 64>}, {transform_indices = @transform_6, window_bounds = array<i64: 1, 128, 32>}, {transform_indices = @transform_7, window_bounds = array<i64: 1, 128, 32>}]} {
    %c128_i32 = arith.constant 128 : i32
    %0 = arith.muli %arg1, %c128_i32 : i32
    %c128_i32_0 = arith.constant 128 : i32
    %1 = arith.addi %0, %c128_i32_0 : i32
    %2 = tpu.assume_multiple %1, 128 : i32
    %cst = arith.constant 0.000000e+00 : f32
    %3 = vector.broadcast %cst : f32 to vector<128x64xf32>
    %c0 = arith.constant 0 : index
    %c0_1 = arith.constant 0 : index
    %4 = vector.load %arg5[%c0, %c0_1] : memref<1x64xf32, #tpu.memory_space<vmem>>, vector<1x64xf32>
    %5 = vector.broadcast %4 : vector<1x64xf32> to vector<128x64xf32>
    %6 = arith.addf %3, %5 : vector<128x64xf32>
    %c-2_i32 = arith.constant -2 : i32
    %7 = arith.addi %2, %c-2_i32 : i32
    %c0_2 = arith.constant 0 : index
    %8 = arith.index_cast %7 : i32 to index
    %c0_3 = arith.constant 0 : index
    %9 = vector.load %arg3[%c0_2, %8, %c0_3] : memref<1x384x32xf32, #tpu.memory_space<vmem>>, vector<1x128x32xf32>
    %10 = vector.shape_cast %9 : vector<1x128x32xf32> to vector<128x32xf32>
    %c0_4 = arith.constant 0 : index
    %c0_5 = arith.constant 0 : index
    %c0_6 = arith.constant 0 : index
    %11 = vector.load %arg4[%c0_4, %c0_5, %c0_6] : memref<5x32x64xf32, #tpu.memory_space<vmem>>, vector<1x32x64xf32>
    %12 = vector.shape_cast %11 : vector<1x32x64xf32> to vector<32x64xf32>
    %cst_7 = arith.constant dense<0.000000e+00> : vector<128x64xf32>
    %13 = tpu.matmul %10, %12, %cst_7 {dimension_numbers = #tpu.dot_dimension_numbers<[1], [0], [0], [1], [0, 0, 1, 1], [], []>} : vector<128x32xf32>, vector<32x64xf32>, vector<128x64xf32> -> vector<128x64xf32>
    %14 = arith.addf %6, %13 : vector<128x64xf32>
    %c-1_i32 = arith.constant -1 : i32
    %15 = arith.addi %2, %c-1_i32 : i32
    %c0_8 = arith.constant 0 : index
    %16 = arith.index_cast %15 : i32 to index
    %c0_9 = arith.constant 0 : index
    %17 = vector.load %arg3[%c0_8, %16, %c0_9] : memref<1x384x32xf32, #tpu.memory_space<vmem>>, vector<1x128x32xf32>
    %18 = vector.shape_cast %17 : vector<1x128x32xf32> to vector<128x32xf32>
    %c1 = arith.constant 1 : index
    %c0_10 = arith.constant 0 : index
    %c0_11 = arith.constant 0 : index
    %19 = vector.load %arg4[%c1, %c0_10, %c0_11] : memref<5x32x64xf32, #tpu.memory_space<vmem>>, vector<1x32x64xf32>
    %20 = vector.shape_cast %19 : vector<1x32x64xf32> to vector<32x64xf32>
    %cst_12 = arith.constant dense<0.000000e+00> : vector<128x64xf32>
    %21 = tpu.matmul %18, %20, %cst_12 {dimension_numbers = #tpu.dot_dimension_numbers<[1], [0], [0], [1], [0, 0, 1, 1], [], []>} : vector<128x32xf32>, vector<32x64xf32>, vector<128x64xf32> -> vector<128x64xf32>
    %22 = arith.addf %14, %21 : vector<128x64xf32>
    %c0_i32 = arith.constant 0 : i32
    %23 = arith.addi %2, %c0_i32 : i32
    %c0_13 = arith.constant 0 : index
    %24 = arith.index_cast %23 : i32 to index
    %c0_14 = arith.constant 0 : index
    %25 = vector.load %arg3[%c0_13, %24, %c0_14] : memref<1x384x32xf32, #tpu.memory_space<vmem>>, vector<1x128x32xf32>
    %26 = vector.shape_cast %25 : vector<1x128x32xf32> to vector<128x32xf32>
    %c2 = arith.constant 2 : index
    %c0_15 = arith.constant 0 : index
    %c0_16 = arith.constant 0 : index
    %27 = vector.load %arg4[%c2, %c0_15, %c0_16] : memref<5x32x64xf32, #tpu.memory_space<vmem>>, vector<1x32x64xf32>
    %28 = vector.shape_cast %27 : vector<1x32x64xf32> to vector<32x64xf32>
    %cst_17 = arith.constant dense<0.000000e+00> : vector<128x64xf32>
    %29 = tpu.matmul %26, %28, %cst_17 {dimension_numbers = #tpu.dot_dimension_numbers<[1], [0], [0], [1], [0, 0, 1, 1], [], []>} : vector<128x32xf32>, vector<32x64xf32>, vector<128x64xf32> -> vector<128x64xf32>
    %30 = arith.addf %22, %29 : vector<128x64xf32>
    %c1_i32 = arith.constant 1 : i32
    %31 = arith.addi %2, %c1_i32 : i32
    %c0_18 = arith.constant 0 : index
    %32 = arith.index_cast %31 : i32 to index
    %c0_19 = arith.constant 0 : index
    %33 = vector.load %arg3[%c0_18, %32, %c0_19] : memref<1x384x32xf32, #tpu.memory_space<vmem>>, vector<1x128x32xf32>
    %34 = vector.shape_cast %33 : vector<1x128x32xf32> to vector<128x32xf32>
    %c3 = arith.constant 3 : index
    %c0_20 = arith.constant 0 : index
    %c0_21 = arith.constant 0 : index
    %35 = vector.load %arg4[%c3, %c0_20, %c0_21] : memref<5x32x64xf32, #tpu.memory_space<vmem>>, vector<1x32x64xf32>
    %36 = vector.shape_cast %35 : vector<1x32x64xf32> to vector<32x64xf32>
    %cst_22 = arith.constant dense<0.000000e+00> : vector<128x64xf32>
    %37 = tpu.matmul %34, %36, %cst_22 {dimension_numbers = #tpu.dot_dimension_numbers<[1], [0], [0], [1], [0, 0, 1, 1], [], []>} : vector<128x32xf32>, vector<32x64xf32>, vector<128x64xf32> -> vector<128x64xf32>
    %38 = arith.addf %30, %37 : vector<128x64xf32>
    %c2_i32 = arith.constant 2 : i32
    %39 = arith.addi %2, %c2_i32 : i32
    %c0_23 = arith.constant 0 : index
    %40 = arith.index_cast %39 : i32 to index
    %c0_24 = arith.constant 0 : index
    %41 = vector.load %arg3[%c0_23, %40, %c0_24] : memref<1x384x32xf32, #tpu.memory_space<vmem>>, vector<1x128x32xf32>
    %42 = vector.shape_cast %41 : vector<1x128x32xf32> to vector<128x32xf32>
    %c4 = arith.constant 4 : index
    %c0_25 = arith.constant 0 : index
    %c0_26 = arith.constant 0 : index
    %43 = vector.load %arg4[%c4, %c0_25, %c0_26] : memref<5x32x64xf32, #tpu.memory_space<vmem>>, vector<1x32x64xf32>
    %44 = vector.shape_cast %43 : vector<1x32x64xf32> to vector<32x64xf32>
    %cst_27 = arith.constant dense<0.000000e+00> : vector<128x64xf32>
    %45 = tpu.matmul %42, %44, %cst_27 {dimension_numbers = #tpu.dot_dimension_numbers<[1], [0], [0], [1], [0, 0, 1, 1], [], []>} : vector<128x32xf32>, vector<32x64xf32>, vector<128x64xf32> -> vector<128x64xf32>
    %46 = arith.addf %38, %45 : vector<128x64xf32>
    %47 = vector.extract_strided_slice %46 {offsets = [0, 0], sizes = [128, 32], strides = [1, 1]} : vector<128x64xf32> to vector<128x32xf32>
    %48 = math.tanh %47 : vector<128x32xf32>
    %49 = vector.extract_strided_slice %46 {offsets = [0, 32], sizes = [128, 32], strides = [1, 1]} : vector<128x64xf32> to vector<128x32xf32>
    %50 = arith.negf %49 : vector<128x32xf32>
    %51 = math.exp %50 : vector<128x32xf32>
    %cst_28 = arith.constant 1.000000e+00 : f32
    %52 = vector.broadcast %cst_28 : f32 to vector<128x32xf32>
    %53 = arith.addf %52, %51 : vector<128x32xf32>
    %54 = arith.divf %52, %53 : vector<128x32xf32>
    %55 = arith.mulf %48, %54 : vector<128x32xf32>
    %c0_29 = arith.constant 0 : index
    %c0_30 = arith.constant 0 : index
    %56 = vector.load %arg6[%c0_29, %c0_30] : memref<32x64xf32, #tpu.memory_space<vmem>>, vector<32x64xf32>
    %cst_31 = arith.constant dense<0.000000e+00> : vector<128x64xf32>
    %57 = tpu.matmul %55, %56, %cst_31 {dimension_numbers = #tpu.dot_dimension_numbers<[1], [0], [0], [1], [0, 0, 1, 1], [], []>} : vector<128x32xf32>, vector<32x64xf32>, vector<128x64xf32> -> vector<128x64xf32>
    %c0_32 = arith.constant 0 : index
    %c0_33 = arith.constant 0 : index
    %58 = vector.load %arg7[%c0_32, %c0_33] : memref<1x64xf32, #tpu.memory_space<vmem>>, vector<1x64xf32>
    %59 = vector.broadcast %58 : vector<1x64xf32> to vector<128x64xf32>
    %60 = arith.addf %57, %59 : vector<128x64xf32>
    %c128_i32_34 = arith.constant 128 : i32
    %61 = arith.muli %arg1, %c128_i32_34 : i32
    %62 = arith.index_cast %arg0 : i32 to index
    %63 = memref.load %arg2[%62] : memref<2xi32, #tpu.memory_space<smem>>
    %64 = tpu.iota {dimensions = array<i32: 0>} : vector<128x1xi32>
    %65 = vector.broadcast %61 : i32 to vector<128x1xi32>
    %66 = arith.addi %65, %64 : vector<128x1xi32>
    %c0_i32_35 = arith.constant 0 : i32
    %67 = vector.broadcast %c0_i32_35 : i32 to vector<128x1xi32>
    %68 = arith.cmpi sge, %66, %67 : vector<128x1xi32>
    %69 = vector.broadcast %63 : i32 to vector<128x1xi32>
    %70 = arith.cmpi slt, %66, %69 : vector<128x1xi32>
    %71 = arith.andi %68, %70 : vector<128x1xi1>
    %72 = arith.extui %71 : vector<128x1xi1> to vector<128x1xi32>
    %73 = arith.sitofp %72 : vector<128x1xi32> to vector<128x1xf32>
    %c0_36 = arith.constant 0 : index
    %74 = arith.index_cast %2 : i32 to index
    %c0_37 = arith.constant 0 : index
    %75 = vector.load %arg3[%c0_36, %74, %c0_37] : memref<1x384x32xf32, #tpu.memory_space<vmem>>, vector<1x128x32xf32>
    %76 = vector.shape_cast %75 : vector<1x128x32xf32> to vector<128x32xf32>
    %77 = vector.extract_strided_slice %60 {offsets = [0, 0], sizes = [128, 32], strides = [1, 1]} : vector<128x64xf32> to vector<128x32xf32>
    %78 = arith.addf %76, %77 : vector<128x32xf32>
    %79 = vector.broadcast %73 : vector<128x1xf32> to vector<128x32xf32>
    %80 = arith.mulf %78, %79 : vector<128x32xf32>
    %c0_38 = arith.constant 0 : index
    %c0_39 = arith.constant 0 : index
    %c0_40 = arith.constant 0 : index
    %81 = vector.load %arg8[%c0_38, %c0_39, %c0_40] : memref<1x128x32xf32, #tpu.memory_space<vmem>>, vector<1x128x32xf32>
    %82 = vector.shape_cast %81 : vector<1x128x32xf32> to vector<128x32xf32>
    %83 = vector.shape_cast %80 : vector<128x32xf32> to vector<1x128x32xf32>
    tpu.vector_store %arg8[%c0_38, %c0_39, %c0_40], %83 {strides = array<i32>} : memref<1x128x32xf32, #tpu.memory_space<vmem>>, vector<1x128x32xf32>,
    %84 = vector.extract_strided_slice %60 {offsets = [0, 32], sizes = [128, 32], strides = [1, 1]} : vector<128x64xf32> to vector<128x32xf32>
    %c0_41 = arith.constant 0 : index
    %c0_42 = arith.constant 0 : index
    %c0_43 = arith.constant 0 : index
    %85 = vector.load %arg9[%c0_41, %c0_42, %c0_43] : memref<1x128x32xf32, #tpu.memory_space<vmem>>, vector<1x128x32xf32>
    %86 = vector.shape_cast %85 : vector<1x128x32xf32> to vector<128x32xf32>
    %87 = vector.shape_cast %84 : vector<128x32xf32> to vector<1x128x32xf32>
    tpu.vector_store %arg9[%c0_41, %c0_42, %c0_43], %87 {strides = array<i32>} : memref<1x128x32xf32, #tpu.memory_space<vmem>>, vector<1x128x32xf32>,
    return
  }
  func.func @transform_0(%arg0: i32, %arg1: i32) -> i32 {
    %c0_i32 = arith.constant 0 : i32
    %c0_i32_0 = arith.constant 0 : i32
    return %c0_i32 : i32
  }
  func.func @transform_1(%arg0: i32, %arg1: i32) -> (i32, i32, i32) {
    %c0_i32 = arith.constant 0 : i32
    %c0_i32_0 = arith.constant 0 : i32
    %c0_i32_1 = arith.constant 0 : i32
    return %arg0, %c0_i32, %c0_i32_0 : i32, i32, i32
  }
  func.func @transform_2(%arg0: i32, %arg1: i32) -> (i32, i32, i32) {
    %c0_i32 = arith.constant 0 : i32
    %c0_i32_0 = arith.constant 0 : i32
    %c0_i32_1 = arith.constant 0 : i32
    %c0_i32_2 = arith.constant 0 : i32
    return %c0_i32, %c0_i32_0, %c0_i32_1 : i32, i32, i32
  }
  func.func @transform_3(%arg0: i32, %arg1: i32) -> (i32, i32) {
    %c0_i32 = arith.constant 0 : i32
    %c0_i32_0 = arith.constant 0 : i32
    %c0_i32_1 = arith.constant 0 : i32
    return %c0_i32, %c0_i32_0 : i32, i32
  }
  func.func @transform_4(%arg0: i32, %arg1: i32) -> (i32, i32) {
    %c0_i32 = arith.constant 0 : i32
    %c0_i32_0 = arith.constant 0 : i32
    %c0_i32_1 = arith.constant 0 : i32
    return %c0_i32, %c0_i32_0 : i32, i32
  }
  func.func @transform_5(%arg0: i32, %arg1: i32) -> (i32, i32) {
    %c0_i32 = arith.constant 0 : i32
    %c0_i32_0 = arith.constant 0 : i32
    %c0_i32_1 = arith.constant 0 : i32
    return %c0_i32, %c0_i32_0 : i32, i32
  }
  func.func @transform_6(%arg0: i32, %arg1: i32) -> (i32, i32, i32) {
    %c1_i32 = arith.constant 1 : i32
    %0 = arith.addi %arg1, %c1_i32 : i32
    %c0_i32 = arith.constant 0 : i32
    %c0_i32_0 = arith.constant 0 : i32
    return %arg0, %0, %c0_i32 : i32, i32, i32
  }
  func.func @transform_7(%arg0: i32, %arg1: i32) -> (i32, i32, i32) {
    %c0_i32 = arith.constant 0 : i32
    %c0_i32_0 = arith.constant 0 : i32
    return %arg0, %arg1, %c0_i32 : i32, i32, i32
  }
}

module attributes {stable_mosaic.version = 11 : i64} {
  func.func @_pre_kernel(%arg0: i32, %arg1: i32, %arg2: memref<2xi32, #tpu.memory_space<smem>>, %arg3: memref<1x128x8xf32, #tpu.memory_space<vmem>>, %arg4: memref<8x32xf32, #tpu.memory_space<vmem>>, %arg5: memref<1x32xf32, #tpu.memory_space<vmem>>, %arg6: memref<1x128x32xf32, #tpu.memory_space<vmem>>) attributes {dimension_semantics = [#tpu.dimension_semantics<parallel>, #tpu.dimension_semantics<parallel>], iteration_bounds = array<i64: 2, 3>, scalar_prefetch = 0 : i64, scratch_operands = 0 : i64, tpu.core_type = #tpu.core_type<tc>, window_params = [{transform_indices = @transform_0, window_bounds = array<i64: 2>}, {transform_indices = @transform_1, window_bounds = array<i64: 1, 128, 8>}, {pipeline_mode = #tpu.pipeline_mode<synchronous>, transform_indices = @transform_2, window_bounds = array<i64: 8, 32>}, {pipeline_mode = #tpu.pipeline_mode<synchronous>, transform_indices = @transform_3, window_bounds = array<i64: 1, 32>}, {transform_indices = @transform_4, window_bounds = array<i64: 1, 128, 32>}]} {
    %c128_i32 = arith.constant 128 : i32
    %0 = arith.muli %arg1, %c128_i32 : i32
    %c128_i32_0 = arith.constant 128 : i32
    %1 = arith.subi %0, %c128_i32_0 : i32
    %2 = arith.index_cast %arg0 : i32 to index
    %3 = memref.load %arg2[%2] : memref<2xi32, #tpu.memory_space<smem>>
    %4 = tpu.iota {dimensions = array<i32: 0>} : vector<128x1xi32>
    %5 = vector.broadcast %1 : i32 to vector<128x1xi32>
    %6 = arith.addi %5, %4 : vector<128x1xi32>
    %c0_i32 = arith.constant 0 : i32
    %7 = vector.broadcast %c0_i32 : i32 to vector<128x1xi32>
    %8 = arith.cmpi sge, %6, %7 : vector<128x1xi32>
    %9 = vector.broadcast %3 : i32 to vector<128x1xi32>
    %10 = arith.cmpi slt, %6, %9 : vector<128x1xi32>
    %11 = arith.andi %8, %10 : vector<128x1xi1>
    %12 = arith.extui %11 : vector<128x1xi1> to vector<128x1xi32>
    %13 = arith.sitofp %12 : vector<128x1xi32> to vector<128x1xf32>
    %c0 = arith.constant 0 : index
    %c0_1 = arith.constant 0 : index
    %c0_2 = arith.constant 0 : index
    %14 = vector.load %arg3[%c0, %c0_1, %c0_2] : memref<1x128x8xf32, #tpu.memory_space<vmem>>, vector<1x128x8xf32>
    %15 = vector.shape_cast %14 : vector<1x128x8xf32> to vector<128x8xf32>
    %c0_3 = arith.constant 0 : index
    %c0_4 = arith.constant 0 : index
    %16 = vector.load %arg4[%c0_3, %c0_4] : memref<8x32xf32, #tpu.memory_space<vmem>>, vector<8x32xf32>
    %cst = arith.constant dense<0.000000e+00> : vector<128x32xf32>
    %17 = tpu.matmul %15, %16, %cst {dimension_numbers = #tpu.dot_dimension_numbers<[1], [0], [0], [1], [0, 0, 1, 1], [], []>} : vector<128x8xf32>, vector<8x32xf32>, vector<128x32xf32> -> vector<128x32xf32>
    %c0_5 = arith.constant 0 : index
    %c0_6 = arith.constant 0 : index
    %18 = vector.load %arg5[%c0_5, %c0_6] : memref<1x32xf32, #tpu.memory_space<vmem>>, vector<1x32xf32>
    %19 = vector.broadcast %18 : vector<1x32xf32> to vector<128x32xf32>
    %20 = arith.addf %17, %19 : vector<128x32xf32>
    %21 = vector.broadcast %13 : vector<128x1xf32> to vector<128x32xf32>
    %22 = arith.mulf %20, %21 : vector<128x32xf32>
    %c0_7 = arith.constant 0 : index
    %c0_8 = arith.constant 0 : index
    %c0_9 = arith.constant 0 : index
    %23 = vector.load %arg6[%c0_7, %c0_8, %c0_9] : memref<1x128x32xf32, #tpu.memory_space<vmem>>, vector<1x128x32xf32>
    %24 = vector.shape_cast %23 : vector<1x128x32xf32> to vector<128x32xf32>
    %25 = vector.shape_cast %22 : vector<128x32xf32> to vector<1x128x32xf32>
    tpu.vector_store %arg6[%c0_7, %c0_8, %c0_9], %25 {strides = array<i32>} : memref<1x128x32xf32, #tpu.memory_space<vmem>>, vector<1x128x32xf32>,
    return
  }
  func.func @transform_0(%arg0: i32, %arg1: i32) -> i32 {
    %c0_i32 = arith.constant 0 : i32
    %c0_i32_0 = arith.constant 0 : i32
    return %c0_i32 : i32
  }
  func.func @transform_1(%arg0: i32, %arg1: i32) -> (i32, i32, i32) {
    %c0_i32 = arith.constant 0 : i32
    %c0_i32_0 = arith.constant 0 : i32
    return %arg0, %arg1, %c0_i32 : i32, i32, i32
  }
  func.func @transform_2(%arg0: i32, %arg1: i32) -> (i32, i32) {
    %c0_i32 = arith.constant 0 : i32
    %c0_i32_0 = arith.constant 0 : i32
    %c0_i32_1 = arith.constant 0 : i32
    return %c0_i32, %c0_i32_0 : i32, i32
  }
  func.func @transform_3(%arg0: i32, %arg1: i32) -> (i32, i32) {
    %c0_i32 = arith.constant 0 : i32
    %c0_i32_0 = arith.constant 0 : i32
    %c0_i32_1 = arith.constant 0 : i32
    return %c0_i32, %c0_i32_0 : i32, i32
  }
  func.func @transform_4(%arg0: i32, %arg1: i32) -> (i32, i32, i32) {
    %c0_i32 = arith.constant 0 : i32
    %c0_i32_0 = arith.constant 0 : i32
    return %arg0, %arg1, %c0_i32 : i32, i32, i32
  }
}

module attributes {stable_mosaic.version = 11 : i64} {
  func.func @_wn_layer_kernel(%arg0: i32, %arg1: i32, %arg2: memref<2xi32, #tpu.memory_space<smem>>, %arg3: memref<1x384x32xf32, #tpu.memory_space<vmem>>, %arg4: memref<1x128x32xf32, #tpu.memory_space<vmem>>, %arg5: memref<5x32x64xf32, #tpu.memory_space<vmem>>, %arg6: memref<1x64xf32, #tpu.memory_space<vmem>>, %arg7: memref<32x64xf32, #tpu.memory_space<vmem>>, %arg8: memref<1x64xf32, #tpu.memory_space<vmem>>, %arg9: memref<1x128x32xf32, #tpu.memory_space<vmem>>, %arg10: memref<1x128x32xf32, #tpu.memory_space<vmem>>) attributes {dimension_semantics = [#tpu.dimension_semantics<parallel>, #tpu.dimension_semantics<arbitrary>], iteration_bounds = array<i64: 2, 1>, scalar_prefetch = 0 : i64, scratch_operands = 0 : i64, tpu.core_type = #tpu.core_type<tc>, window_params = [{transform_indices = @transform_0, window_bounds = array<i64: 2>}, {transform_indices = @transform_1, window_bounds = array<i64: 1, 384, 32>}, {transform_indices = @transform_2, window_bounds = array<i64: 1, 128, 32>}, {pipeline_mode = #tpu.pipeline_mode<synchronous>, transform_indices = @transform_3, window_bounds = array<i64: 5, 32, 64>}, {pipeline_mode = #tpu.pipeline_mode<synchronous>, transform_indices = @transform_4, window_bounds = array<i64: 1, 64>}, {pipeline_mode = #tpu.pipeline_mode<synchronous>, transform_indices = @transform_5, window_bounds = array<i64: 32, 64>}, {pipeline_mode = #tpu.pipeline_mode<synchronous>, transform_indices = @transform_6, window_bounds = array<i64: 1, 64>}, {transform_indices = @transform_7, window_bounds = array<i64: 1, 128, 32>}, {transform_indices = @transform_8, window_bounds = array<i64: 1, 128, 32>}]} {
    %c128_i32 = arith.constant 128 : i32
    %0 = arith.muli %arg1, %c128_i32 : i32
    %c128_i32_0 = arith.constant 128 : i32
    %1 = arith.addi %0, %c128_i32_0 : i32
    %2 = tpu.assume_multiple %1, 128 : i32
    %cst = arith.constant 0.000000e+00 : f32
    %3 = vector.broadcast %cst : f32 to vector<128x64xf32>
    %c0 = arith.constant 0 : index
    %c0_1 = arith.constant 0 : index
    %4 = vector.load %arg6[%c0, %c0_1] : memref<1x64xf32, #tpu.memory_space<vmem>>, vector<1x64xf32>
    %5 = vector.broadcast %4 : vector<1x64xf32> to vector<128x64xf32>
    %6 = arith.addf %3, %5 : vector<128x64xf32>
    %c-4_i32 = arith.constant -4 : i32
    %7 = arith.addi %2, %c-4_i32 : i32
    %c0_2 = arith.constant 0 : index
    %8 = arith.index_cast %7 : i32 to index
    %c0_3 = arith.constant 0 : index
    %9 = vector.load %arg3[%c0_2, %8, %c0_3] : memref<1x384x32xf32, #tpu.memory_space<vmem>>, vector<1x128x32xf32>
    %10 = vector.shape_cast %9 : vector<1x128x32xf32> to vector<128x32xf32>
    %c0_4 = arith.constant 0 : index
    %c0_5 = arith.constant 0 : index
    %c0_6 = arith.constant 0 : index
    %11 = vector.load %arg5[%c0_4, %c0_5, %c0_6] : memref<5x32x64xf32, #tpu.memory_space<vmem>>, vector<1x32x64xf32>
    %12 = vector.shape_cast %11 : vector<1x32x64xf32> to vector<32x64xf32>
    %cst_7 = arith.constant dense<0.000000e+00> : vector<128x64xf32>
    %13 = tpu.matmul %10, %12, %cst_7 {dimension_numbers = #tpu.dot_dimension_numbers<[1], [0], [0], [1], [0, 0, 1, 1], [], []>} : vector<128x32xf32>, vector<32x64xf32>, vector<128x64xf32> -> vector<128x64xf32>
    %14 = arith.addf %6, %13 : vector<128x64xf32>
    %c-2_i32 = arith.constant -2 : i32
    %15 = arith.addi %2, %c-2_i32 : i32
    %c0_8 = arith.constant 0 : index
    %16 = arith.index_cast %15 : i32 to index
    %c0_9 = arith.constant 0 : index
    %17 = vector.load %arg3[%c0_8, %16, %c0_9] : memref<1x384x32xf32, #tpu.memory_space<vmem>>, vector<1x128x32xf32>
    %18 = vector.shape_cast %17 : vector<1x128x32xf32> to vector<128x32xf32>
    %c1 = arith.constant 1 : index
    %c0_10 = arith.constant 0 : index
    %c0_11 = arith.constant 0 : index
    %19 = vector.load %arg5[%c1, %c0_10, %c0_11] : memref<5x32x64xf32, #tpu.memory_space<vmem>>, vector<1x32x64xf32>
    %20 = vector.shape_cast %19 : vector<1x32x64xf32> to vector<32x64xf32>
    %cst_12 = arith.constant dense<0.000000e+00> : vector<128x64xf32>
    %21 = tpu.matmul %18, %20, %cst_12 {dimension_numbers = #tpu.dot_dimension_numbers<[1], [0], [0], [1], [0, 0, 1, 1], [], []>} : vector<128x32xf32>, vector<32x64xf32>, vector<128x64xf32> -> vector<128x64xf32>
    %22 = arith.addf %14, %21 : vector<128x64xf32>
    %c0_i32 = arith.constant 0 : i32
    %23 = arith.addi %2, %c0_i32 : i32
    %c0_13 = arith.constant 0 : index
    %24 = arith.index_cast %23 : i32 to index
    %c0_14 = arith.constant 0 : index
    %25 = vector.load %arg3[%c0_13, %24, %c0_14] : memref<1x384x32xf32, #tpu.memory_space<vmem>>, vector<1x128x32xf32>
    %26 = vector.shape_cast %25 : vector<1x128x32xf32> to vector<128x32xf32>
    %c2 = arith.constant 2 : index
    %c0_15 = arith.constant 0 : index
    %c0_16 = arith.constant 0 : index
    %27 = vector.load %arg5[%c2, %c0_15, %c0_16] : memref<5x32x64xf32, #tpu.memory_space<vmem>>, vector<1x32x64xf32>
    %28 = vector.shape_cast %27 : vector<1x32x64xf32> to vector<32x64xf32>
    %cst_17 = arith.constant dense<0.000000e+00> : vector<128x64xf32>
    %29 = tpu.matmul %26, %28, %cst_17 {dimension_numbers = #tpu.dot_dimension_numbers<[1], [0], [0], [1], [0, 0, 1, 1], [], []>} : vector<128x32xf32>, vector<32x64xf32>, vector<128x64xf32> -> vector<128x64xf32>
    %30 = arith.addf %22, %29 : vector<128x64xf32>
    %c2_i32 = arith.constant 2 : i32
    %31 = arith.addi %2, %c2_i32 : i32
    %c0_18 = arith.constant 0 : index
    %32 = arith.index_cast %31 : i32 to index
    %c0_19 = arith.constant 0 : index
    %33 = vector.load %arg3[%c0_18, %32, %c0_19] : memref<1x384x32xf32, #tpu.memory_space<vmem>>, vector<1x128x32xf32>
    %34 = vector.shape_cast %33 : vector<1x128x32xf32> to vector<128x32xf32>
    %c3 = arith.constant 3 : index
    %c0_20 = arith.constant 0 : index
    %c0_21 = arith.constant 0 : index
    %35 = vector.load %arg5[%c3, %c0_20, %c0_21] : memref<5x32x64xf32, #tpu.memory_space<vmem>>, vector<1x32x64xf32>
    %36 = vector.shape_cast %35 : vector<1x32x64xf32> to vector<32x64xf32>
    %cst_22 = arith.constant dense<0.000000e+00> : vector<128x64xf32>
    %37 = tpu.matmul %34, %36, %cst_22 {dimension_numbers = #tpu.dot_dimension_numbers<[1], [0], [0], [1], [0, 0, 1, 1], [], []>} : vector<128x32xf32>, vector<32x64xf32>, vector<128x64xf32> -> vector<128x64xf32>
    %38 = arith.addf %30, %37 : vector<128x64xf32>
    %c4_i32 = arith.constant 4 : i32
    %39 = arith.addi %2, %c4_i32 : i32
    %c0_23 = arith.constant 0 : index
    %40 = arith.index_cast %39 : i32 to index
    %c0_24 = arith.constant 0 : index
    %41 = vector.load %arg3[%c0_23, %40, %c0_24] : memref<1x384x32xf32, #tpu.memory_space<vmem>>, vector<1x128x32xf32>
    %42 = vector.shape_cast %41 : vector<1x128x32xf32> to vector<128x32xf32>
    %c4 = arith.constant 4 : index
    %c0_25 = arith.constant 0 : index
    %c0_26 = arith.constant 0 : index
    %43 = vector.load %arg5[%c4, %c0_25, %c0_26] : memref<5x32x64xf32, #tpu.memory_space<vmem>>, vector<1x32x64xf32>
    %44 = vector.shape_cast %43 : vector<1x32x64xf32> to vector<32x64xf32>
    %cst_27 = arith.constant dense<0.000000e+00> : vector<128x64xf32>
    %45 = tpu.matmul %42, %44, %cst_27 {dimension_numbers = #tpu.dot_dimension_numbers<[1], [0], [0], [1], [0, 0, 1, 1], [], []>} : vector<128x32xf32>, vector<32x64xf32>, vector<128x64xf32> -> vector<128x64xf32>
    %46 = arith.addf %38, %45 : vector<128x64xf32>
    %47 = vector.extract_strided_slice %46 {offsets = [0, 0], sizes = [128, 32], strides = [1, 1]} : vector<128x64xf32> to vector<128x32xf32>
    %48 = math.tanh %47 : vector<128x32xf32>
    %49 = vector.extract_strided_slice %46 {offsets = [0, 32], sizes = [128, 32], strides = [1, 1]} : vector<128x64xf32> to vector<128x32xf32>
    %50 = arith.negf %49 : vector<128x32xf32>
    %51 = math.exp %50 : vector<128x32xf32>
    %cst_28 = arith.constant 1.000000e+00 : f32
    %52 = vector.broadcast %cst_28 : f32 to vector<128x32xf32>
    %53 = arith.addf %52, %51 : vector<128x32xf32>
    %54 = arith.divf %52, %53 : vector<128x32xf32>
    %55 = arith.mulf %48, %54 : vector<128x32xf32>
    %c0_29 = arith.constant 0 : index
    %c0_30 = arith.constant 0 : index
    %56 = vector.load %arg7[%c0_29, %c0_30] : memref<32x64xf32, #tpu.memory_space<vmem>>, vector<32x64xf32>
    %cst_31 = arith.constant dense<0.000000e+00> : vector<128x64xf32>
    %57 = tpu.matmul %55, %56, %cst_31 {dimension_numbers = #tpu.dot_dimension_numbers<[1], [0], [0], [1], [0, 0, 1, 1], [], []>} : vector<128x32xf32>, vector<32x64xf32>, vector<128x64xf32> -> vector<128x64xf32>
    %c0_32 = arith.constant 0 : index
    %c0_33 = arith.constant 0 : index
    %58 = vector.load %arg8[%c0_32, %c0_33] : memref<1x64xf32, #tpu.memory_space<vmem>>, vector<1x64xf32>
    %59 = vector.broadcast %58 : vector<1x64xf32> to vector<128x64xf32>
    %60 = arith.addf %57, %59 : vector<128x64xf32>
    %c128_i32_34 = arith.constant 128 : i32
    %61 = arith.muli %arg1, %c128_i32_34 : i32
    %62 = arith.index_cast %arg0 : i32 to index
    %63 = memref.load %arg2[%62] : memref<2xi32, #tpu.memory_space<smem>>
    %64 = tpu.iota {dimensions = array<i32: 0>} : vector<128x1xi32>
    %65 = vector.broadcast %61 : i32 to vector<128x1xi32>
    %66 = arith.addi %65, %64 : vector<128x1xi32>
    %c0_i32_35 = arith.constant 0 : i32
    %67 = vector.broadcast %c0_i32_35 : i32 to vector<128x1xi32>
    %68 = arith.cmpi sge, %66, %67 : vector<128x1xi32>
    %69 = vector.broadcast %63 : i32 to vector<128x1xi32>
    %70 = arith.cmpi slt, %66, %69 : vector<128x1xi32>
    %71 = arith.andi %68, %70 : vector<128x1xi1>
    %72 = arith.extui %71 : vector<128x1xi1> to vector<128x1xi32>
    %73 = arith.sitofp %72 : vector<128x1xi32> to vector<128x1xf32>
    %c0_36 = arith.constant 0 : index
    %74 = arith.index_cast %2 : i32 to index
    %c0_37 = arith.constant 0 : index
    %75 = vector.load %arg3[%c0_36, %74, %c0_37] : memref<1x384x32xf32, #tpu.memory_space<vmem>>, vector<1x128x32xf32>
    %76 = vector.shape_cast %75 : vector<1x128x32xf32> to vector<128x32xf32>
    %77 = vector.extract_strided_slice %60 {offsets = [0, 0], sizes = [128, 32], strides = [1, 1]} : vector<128x64xf32> to vector<128x32xf32>
    %78 = arith.addf %76, %77 : vector<128x32xf32>
    %79 = vector.broadcast %73 : vector<128x1xf32> to vector<128x32xf32>
    %80 = arith.mulf %78, %79 : vector<128x32xf32>
    %c0_38 = arith.constant 0 : index
    %c0_39 = arith.constant 0 : index
    %c0_40 = arith.constant 0 : index
    %81 = vector.load %arg9[%c0_38, %c0_39, %c0_40] : memref<1x128x32xf32, #tpu.memory_space<vmem>>, vector<1x128x32xf32>
    %82 = vector.shape_cast %81 : vector<1x128x32xf32> to vector<128x32xf32>
    %83 = vector.shape_cast %80 : vector<128x32xf32> to vector<1x128x32xf32>
    tpu.vector_store %arg9[%c0_38, %c0_39, %c0_40], %83 {strides = array<i32>} : memref<1x128x32xf32, #tpu.memory_space<vmem>>, vector<1x128x32xf32>,
    %84 = vector.extract_strided_slice %60 {offsets = [0, 32], sizes = [128, 32], strides = [1, 1]} : vector<128x64xf32> to vector<128x32xf32>
    %c0_41 = arith.constant 0 : index
    %c0_42 = arith.constant 0 : index
    %c0_43 = arith.constant 0 : index
    %85 = vector.load %arg4[%c0_41, %c0_42, %c0_43] : memref<1x128x32xf32, #tpu.memory_space<vmem>>, vector<1x128x32xf32>
    %86 = vector.shape_cast %85 : vector<1x128x32xf32> to vector<128x32xf32>
    %87 = arith.addf %86, %84 : vector<128x32xf32>
    %c0_44 = arith.constant 0 : index
    %c0_45 = arith.constant 0 : index
    %c0_46 = arith.constant 0 : index
    %88 = vector.load %arg10[%c0_44, %c0_45, %c0_46] : memref<1x128x32xf32, #tpu.memory_space<vmem>>, vector<1x128x32xf32>
    %89 = vector.shape_cast %88 : vector<1x128x32xf32> to vector<128x32xf32>
    %90 = vector.shape_cast %87 : vector<128x32xf32> to vector<1x128x32xf32>
    tpu.vector_store %arg10[%c0_44, %c0_45, %c0_46], %90 {strides = array<i32>} : memref<1x128x32xf32, #tpu.memory_space<vmem>>, vector<1x128x32xf32>,
    return
  }
  func.func @transform_0(%arg0: i32, %arg1: i32) -> i32 {
    %c0_i32 = arith.constant 0 : i32
    %c0_i32_0 = arith.constant 0 : i32
    return %c0_i32 : i32
  }
  func.func @transform_1(%arg0: i32, %arg1: i32) -> (i32, i32, i32) {
    %c0_i32 = arith.constant 0 : i32
    %c0_i32_0 = arith.constant 0 : i32
    %c0_i32_1 = arith.constant 0 : i32
    return %arg0, %c0_i32, %c0_i32_0 : i32, i32, i32
  }
  func.func @transform_2(%arg0: i32, %arg1: i32) -> (i32, i32, i32) {
    %c0_i32 = arith.constant 0 : i32
    %c0_i32_0 = arith.constant 0 : i32
    return %arg0, %arg1, %c0_i32 : i32, i32, i32
  }
  func.func @transform_3(%arg0: i32, %arg1: i32) -> (i32, i32, i32) {
    %c0_i32 = arith.constant 0 : i32
    %c0_i32_0 = arith.constant 0 : i32
    %c0_i32_1 = arith.constant 0 : i32
    %c0_i32_2 = arith.constant 0 : i32
    return %c0_i32, %c0_i32_0, %c0_i32_1 : i32, i32, i32
  }
  func.func @transform_4(%arg0: i32, %arg1: i32) -> (i32, i32) {
    %c0_i32 = arith.constant 0 : i32
    %c0_i32_0 = arith.constant 0 : i32
    %c0_i32_1 = arith.constant 0 : i32
    return %c0_i32, %c0_i32_0 : i32, i32
  }
  func.func @transform_5(%arg0: i32, %arg1: i32) -> (i32, i32) {
    %c0_i32 = arith.constant 0 : i32
    %c0_i32_0 = arith.constant 0 : i32
    %c0_i32_1 = arith.constant 0 : i32
    return %c0_i32, %c0_i32_0 : i32, i32
  }
  func.func @transform_6(%arg0: i32, %arg1: i32) -> (i32, i32) {
    %c0_i32 = arith.constant 0 : i32
    %c0_i32_0 = arith.constant 0 : i32
    %c0_i32_1 = arith.constant 0 : i32
    return %c0_i32, %c0_i32_0 : i32, i32
  }
  func.func @transform_7(%arg0: i32, %arg1: i32) -> (i32, i32, i32) {
    %c1_i32 = arith.constant 1 : i32
    %0 = arith.addi %arg1, %c1_i32 : i32
    %c0_i32 = arith.constant 0 : i32
    %c0_i32_0 = arith.constant 0 : i32
    return %arg0, %0, %c0_i32 : i32, i32, i32
  }
  func.func @transform_8(%arg0: i32, %arg1: i32) -> (i32, i32, i32) {
    %c0_i32 = arith.constant 0 : i32
    %c0_i32_0 = arith.constant 0 : i32
    return %arg0, %arg1, %c0_i32 : i32, i32, i32
  }
}

module attributes {stable_mosaic.version = 11 : i64} {
  func.func @_wn_layer_kernel(%arg0: i32, %arg1: i32, %arg2: memref<2xi32, #tpu.memory_space<smem>>, %arg3: memref<1x384x32xf32, #tpu.memory_space<vmem>>, %arg4: memref<1x128x32xf32, #tpu.memory_space<vmem>>, %arg5: memref<5x32x64xf32, #tpu.memory_space<vmem>>, %arg6: memref<1x64xf32, #tpu.memory_space<vmem>>, %arg7: memref<32x64xf32, #tpu.memory_space<vmem>>, %arg8: memref<1x64xf32, #tpu.memory_space<vmem>>, %arg9: memref<1x128x32xf32, #tpu.memory_space<vmem>>, %arg10: memref<1x128x32xf32, #tpu.memory_space<vmem>>) attributes {dimension_semantics = [#tpu.dimension_semantics<parallel>, #tpu.dimension_semantics<arbitrary>], iteration_bounds = array<i64: 2, 1>, scalar_prefetch = 0 : i64, scratch_operands = 0 : i64, tpu.core_type = #tpu.core_type<tc>, window_params = [{transform_indices = @transform_0, window_bounds = array<i64: 2>}, {transform_indices = @transform_1, window_bounds = array<i64: 1, 384, 32>}, {transform_indices = @transform_2, window_bounds = array<i64: 1, 128, 32>}, {pipeline_mode = #tpu.pipeline_mode<synchronous>, transform_indices = @transform_3, window_bounds = array<i64: 5, 32, 64>}, {pipeline_mode = #tpu.pipeline_mode<synchronous>, transform_indices = @transform_4, window_bounds = array<i64: 1, 64>}, {pipeline_mode = #tpu.pipeline_mode<synchronous>, transform_indices = @transform_5, window_bounds = array<i64: 32, 64>}, {pipeline_mode = #tpu.pipeline_mode<synchronous>, transform_indices = @transform_6, window_bounds = array<i64: 1, 64>}, {transform_indices = @transform_7, window_bounds = array<i64: 1, 128, 32>}, {transform_indices = @transform_8, window_bounds = array<i64: 1, 128, 32>}]} {
    %c128_i32 = arith.constant 128 : i32
    %0 = arith.muli %arg1, %c128_i32 : i32
    %c128_i32_0 = arith.constant 128 : i32
    %1 = arith.addi %0, %c128_i32_0 : i32
    %2 = tpu.assume_multiple %1, 128 : i32
    %cst = arith.constant 0.000000e+00 : f32
    %3 = vector.broadcast %cst : f32 to vector<128x64xf32>
    %c0 = arith.constant 0 : index
    %c0_1 = arith.constant 0 : index
    %4 = vector.load %arg6[%c0, %c0_1] : memref<1x64xf32, #tpu.memory_space<vmem>>, vector<1x64xf32>
    %5 = vector.broadcast %4 : vector<1x64xf32> to vector<128x64xf32>
    %6 = arith.addf %3, %5 : vector<128x64xf32>
    %c-8_i32 = arith.constant -8 : i32
    %7 = arith.addi %2, %c-8_i32 : i32
    %c0_2 = arith.constant 0 : index
    %8 = arith.index_cast %7 : i32 to index
    %c0_3 = arith.constant 0 : index
    %9 = vector.load %arg3[%c0_2, %8, %c0_3] : memref<1x384x32xf32, #tpu.memory_space<vmem>>, vector<1x128x32xf32>
    %10 = vector.shape_cast %9 : vector<1x128x32xf32> to vector<128x32xf32>
    %c0_4 = arith.constant 0 : index
    %c0_5 = arith.constant 0 : index
    %c0_6 = arith.constant 0 : index
    %11 = vector.load %arg5[%c0_4, %c0_5, %c0_6] : memref<5x32x64xf32, #tpu.memory_space<vmem>>, vector<1x32x64xf32>
    %12 = vector.shape_cast %11 : vector<1x32x64xf32> to vector<32x64xf32>
    %cst_7 = arith.constant dense<0.000000e+00> : vector<128x64xf32>
    %13 = tpu.matmul %10, %12, %cst_7 {dimension_numbers = #tpu.dot_dimension_numbers<[1], [0], [0], [1], [0, 0, 1, 1], [], []>} : vector<128x32xf32>, vector<32x64xf32>, vector<128x64xf32> -> vector<128x64xf32>
    %14 = arith.addf %6, %13 : vector<128x64xf32>
    %c-4_i32 = arith.constant -4 : i32
    %15 = arith.addi %2, %c-4_i32 : i32
    %c0_8 = arith.constant 0 : index
    %16 = arith.index_cast %15 : i32 to index
    %c0_9 = arith.constant 0 : index
    %17 = vector.load %arg3[%c0_8, %16, %c0_9] : memref<1x384x32xf32, #tpu.memory_space<vmem>>, vector<1x128x32xf32>
    %18 = vector.shape_cast %17 : vector<1x128x32xf32> to vector<128x32xf32>
    %c1 = arith.constant 1 : index
    %c0_10 = arith.constant 0 : index
    %c0_11 = arith.constant 0 : index
    %19 = vector.load %arg5[%c1, %c0_10, %c0_11] : memref<5x32x64xf32, #tpu.memory_space<vmem>>, vector<1x32x64xf32>
    %20 = vector.shape_cast %19 : vector<1x32x64xf32> to vector<32x64xf32>
    %cst_12 = arith.constant dense<0.000000e+00> : vector<128x64xf32>
    %21 = tpu.matmul %18, %20, %cst_12 {dimension_numbers = #tpu.dot_dimension_numbers<[1], [0], [0], [1], [0, 0, 1, 1], [], []>} : vector<128x32xf32>, vector<32x64xf32>, vector<128x64xf32> -> vector<128x64xf32>
    %22 = arith.addf %14, %21 : vector<128x64xf32>
    %c0_i32 = arith.constant 0 : i32
    %23 = arith.addi %2, %c0_i32 : i32
    %c0_13 = arith.constant 0 : index
    %24 = arith.index_cast %23 : i32 to index
    %c0_14 = arith.constant 0 : index
    %25 = vector.load %arg3[%c0_13, %24, %c0_14] : memref<1x384x32xf32, #tpu.memory_space<vmem>>, vector<1x128x32xf32>
    %26 = vector.shape_cast %25 : vector<1x128x32xf32> to vector<128x32xf32>
    %c2 = arith.constant 2 : index
    %c0_15 = arith.constant 0 : index
    %c0_16 = arith.constant 0 : index
    %27 = vector.load %arg5[%c2, %c0_15, %c0_16] : memref<5x32x64xf32, #tpu.memory_space<vmem>>, vector<1x32x64xf32>
    %28 = vector.shape_cast %27 : vector<1x32x64xf32> to vector<32x64xf32>
    %cst_17 = arith.constant dense<0.000000e+00> : vector<128x64xf32>
    %29 = tpu.matmul %26, %28, %cst_17 {dimension_numbers = #tpu.dot_dimension_numbers<[1], [0], [0], [1], [0, 0, 1, 1], [], []>} : vector<128x32xf32>, vector<32x64xf32>, vector<128x64xf32> -> vector<128x64xf32>
    %30 = arith.addf %22, %29 : vector<128x64xf32>
    %c4_i32 = arith.constant 4 : i32
    %31 = arith.addi %2, %c4_i32 : i32
    %c0_18 = arith.constant 0 : index
    %32 = arith.index_cast %31 : i32 to index
    %c0_19 = arith.constant 0 : index
    %33 = vector.load %arg3[%c0_18, %32, %c0_19] : memref<1x384x32xf32, #tpu.memory_space<vmem>>, vector<1x128x32xf32>
    %34 = vector.shape_cast %33 : vector<1x128x32xf32> to vector<128x32xf32>
    %c3 = arith.constant 3 : index
    %c0_20 = arith.constant 0 : index
    %c0_21 = arith.constant 0 : index
    %35 = vector.load %arg5[%c3, %c0_20, %c0_21] : memref<5x32x64xf32, #tpu.memory_space<vmem>>, vector<1x32x64xf32>
    %36 = vector.shape_cast %35 : vector<1x32x64xf32> to vector<32x64xf32>
    %cst_22 = arith.constant dense<0.000000e+00> : vector<128x64xf32>
    %37 = tpu.matmul %34, %36, %cst_22 {dimension_numbers = #tpu.dot_dimension_numbers<[1], [0], [0], [1], [0, 0, 1, 1], [], []>} : vector<128x32xf32>, vector<32x64xf32>, vector<128x64xf32> -> vector<128x64xf32>
    %38 = arith.addf %30, %37 : vector<128x64xf32>
    %c8_i32 = arith.constant 8 : i32
    %39 = arith.addi %2, %c8_i32 : i32
    %c0_23 = arith.constant 0 : index
    %40 = arith.index_cast %39 : i32 to index
    %c0_24 = arith.constant 0 : index
    %41 = vector.load %arg3[%c0_23, %40, %c0_24] : memref<1x384x32xf32, #tpu.memory_space<vmem>>, vector<1x128x32xf32>
    %42 = vector.shape_cast %41 : vector<1x128x32xf32> to vector<128x32xf32>
    %c4 = arith.constant 4 : index
    %c0_25 = arith.constant 0 : index
    %c0_26 = arith.constant 0 : index
    %43 = vector.load %arg5[%c4, %c0_25, %c0_26] : memref<5x32x64xf32, #tpu.memory_space<vmem>>, vector<1x32x64xf32>
    %44 = vector.shape_cast %43 : vector<1x32x64xf32> to vector<32x64xf32>
    %cst_27 = arith.constant dense<0.000000e+00> : vector<128x64xf32>
    %45 = tpu.matmul %42, %44, %cst_27 {dimension_numbers = #tpu.dot_dimension_numbers<[1], [0], [0], [1], [0, 0, 1, 1], [], []>} : vector<128x32xf32>, vector<32x64xf32>, vector<128x64xf32> -> vector<128x64xf32>
    %46 = arith.addf %38, %45 : vector<128x64xf32>
    %47 = vector.extract_strided_slice %46 {offsets = [0, 0], sizes = [128, 32], strides = [1, 1]} : vector<128x64xf32> to vector<128x32xf32>
    %48 = math.tanh %47 : vector<128x32xf32>
    %49 = vector.extract_strided_slice %46 {offsets = [0, 32], sizes = [128, 32], strides = [1, 1]} : vector<128x64xf32> to vector<128x32xf32>
    %50 = arith.negf %49 : vector<128x32xf32>
    %51 = math.exp %50 : vector<128x32xf32>
    %cst_28 = arith.constant 1.000000e+00 : f32
    %52 = vector.broadcast %cst_28 : f32 to vector<128x32xf32>
    %53 = arith.addf %52, %51 : vector<128x32xf32>
    %54 = arith.divf %52, %53 : vector<128x32xf32>
    %55 = arith.mulf %48, %54 : vector<128x32xf32>
    %c0_29 = arith.constant 0 : index
    %c0_30 = arith.constant 0 : index
    %56 = vector.load %arg7[%c0_29, %c0_30] : memref<32x64xf32, #tpu.memory_space<vmem>>, vector<32x64xf32>
    %cst_31 = arith.constant dense<0.000000e+00> : vector<128x64xf32>
    %57 = tpu.matmul %55, %56, %cst_31 {dimension_numbers = #tpu.dot_dimension_numbers<[1], [0], [0], [1], [0, 0, 1, 1], [], []>} : vector<128x32xf32>, vector<32x64xf32>, vector<128x64xf32> -> vector<128x64xf32>
    %c0_32 = arith.constant 0 : index
    %c0_33 = arith.constant 0 : index
    %58 = vector.load %arg8[%c0_32, %c0_33] : memref<1x64xf32, #tpu.memory_space<vmem>>, vector<1x64xf32>
    %59 = vector.broadcast %58 : vector<1x64xf32> to vector<128x64xf32>
    %60 = arith.addf %57, %59 : vector<128x64xf32>
    %c128_i32_34 = arith.constant 128 : i32
    %61 = arith.muli %arg1, %c128_i32_34 : i32
    %62 = arith.index_cast %arg0 : i32 to index
    %63 = memref.load %arg2[%62] : memref<2xi32, #tpu.memory_space<smem>>
    %64 = tpu.iota {dimensions = array<i32: 0>} : vector<128x1xi32>
    %65 = vector.broadcast %61 : i32 to vector<128x1xi32>
    %66 = arith.addi %65, %64 : vector<128x1xi32>
    %c0_i32_35 = arith.constant 0 : i32
    %67 = vector.broadcast %c0_i32_35 : i32 to vector<128x1xi32>
    %68 = arith.cmpi sge, %66, %67 : vector<128x1xi32>
    %69 = vector.broadcast %63 : i32 to vector<128x1xi32>
    %70 = arith.cmpi slt, %66, %69 : vector<128x1xi32>
    %71 = arith.andi %68, %70 : vector<128x1xi1>
    %72 = arith.extui %71 : vector<128x1xi1> to vector<128x1xi32>
    %73 = arith.sitofp %72 : vector<128x1xi32> to vector<128x1xf32>
    %c0_36 = arith.constant 0 : index
    %74 = arith.index_cast %2 : i32 to index
    %c0_37 = arith.constant 0 : index
    %75 = vector.load %arg3[%c0_36, %74, %c0_37] : memref<1x384x32xf32, #tpu.memory_space<vmem>>, vector<1x128x32xf32>
    %76 = vector.shape_cast %75 : vector<1x128x32xf32> to vector<128x32xf32>
    %77 = vector.extract_strided_slice %60 {offsets = [0, 0], sizes = [128, 32], strides = [1, 1]} : vector<128x64xf32> to vector<128x32xf32>
    %78 = arith.addf %76, %77 : vector<128x32xf32>
    %79 = vector.broadcast %73 : vector<128x1xf32> to vector<128x32xf32>
    %80 = arith.mulf %78, %79 : vector<128x32xf32>
    %c0_38 = arith.constant 0 : index
    %c0_39 = arith.constant 0 : index
    %c0_40 = arith.constant 0 : index
    %81 = vector.load %arg9[%c0_38, %c0_39, %c0_40] : memref<1x128x32xf32, #tpu.memory_space<vmem>>, vector<1x128x32xf32>
    %82 = vector.shape_cast %81 : vector<1x128x32xf32> to vector<128x32xf32>
    %83 = vector.shape_cast %80 : vector<128x32xf32> to vector<1x128x32xf32>
    tpu.vector_store %arg9[%c0_38, %c0_39, %c0_40], %83 {strides = array<i32>} : memref<1x128x32xf32, #tpu.memory_space<vmem>>, vector<1x128x32xf32>,
    %84 = vector.extract_strided_slice %60 {offsets = [0, 32], sizes = [128, 32], strides = [1, 1]} : vector<128x64xf32> to vector<128x32xf32>
    %c0_41 = arith.constant 0 : index
    %c0_42 = arith.constant 0 : index
    %c0_43 = arith.constant 0 : index
    %85 = vector.load %arg4[%c0_41, %c0_42, %c0_43] : memref<1x128x32xf32, #tpu.memory_space<vmem>>, vector<1x128x32xf32>
    %86 = vector.shape_cast %85 : vector<1x128x32xf32> to vector<128x32xf32>
    %87 = arith.addf %86, %84 : vector<128x32xf32>
    %c0_44 = arith.constant 0 : index
    %c0_45 = arith.constant 0 : index
    %c0_46 = arith.constant 0 : index
    %88 = vector.load %arg10[%c0_44, %c0_45, %c0_46] : memref<1x128x32xf32, #tpu.memory_space<vmem>>, vector<1x128x32xf32>
    %89 = vector.shape_cast %88 : vector<1x128x32xf32> to vector<128x32xf32>
    %90 = vector.shape_cast %87 : vector<128x32xf32> to vector<1x128x32xf32>
    tpu.vector_store %arg10[%c0_44, %c0_45, %c0_46], %90 {strides = array<i32>} : memref<1x128x32xf32, #tpu.memory_space<vmem>>, vector<1x128x32xf32>,
    return
  }
  func.func @transform_0(%arg0: i32, %arg1: i32) -> i32 {
    %c0_i32 = arith.constant 0 : i32
    %c0_i32_0 = arith.constant 0 : i32
    return %c0_i32 : i32
  }
  func.func @transform_1(%arg0: i32, %arg1: i32) -> (i32, i32, i32) {
    %c0_i32 = arith.constant 0 : i32
    %c0_i32_0 = arith.constant 0 : i32
    %c0_i32_1 = arith.constant 0 : i32
    return %arg0, %c0_i32, %c0_i32_0 : i32, i32, i32
  }
  func.func @transform_2(%arg0: i32, %arg1: i32) -> (i32, i32, i32) {
    %c0_i32 = arith.constant 0 : i32
    %c0_i32_0 = arith.constant 0 : i32
    return %arg0, %arg1, %c0_i32 : i32, i32, i32
  }
  func.func @transform_3(%arg0: i32, %arg1: i32) -> (i32, i32, i32) {
    %c0_i32 = arith.constant 0 : i32
    %c0_i32_0 = arith.constant 0 : i32
    %c0_i32_1 = arith.constant 0 : i32
    %c0_i32_2 = arith.constant 0 : i32
    return %c0_i32, %c0_i32_0, %c0_i32_1 : i32, i32, i32
  }
  func.func @transform_4(%arg0: i32, %arg1: i32) -> (i32, i32) {
    %c0_i32 = arith.constant 0 : i32
    %c0_i32_0 = arith.constant 0 : i32
    %c0_i32_1 = arith.constant 0 : i32
    return %c0_i32, %c0_i32_0 : i32, i32
  }
  func.func @transform_5(%arg0: i32, %arg1: i32) -> (i32, i32) {
    %c0_i32 = arith.constant 0 : i32
    %c0_i32_0 = arith.constant 0 : i32
    %c0_i32_1 = arith.constant 0 : i32
    return %c0_i32, %c0_i32_0 : i32, i32
  }
  func.func @transform_6(%arg0: i32, %arg1: i32) -> (i32, i32) {
    %c0_i32 = arith.constant 0 : i32
    %c0_i32_0 = arith.constant 0 : i32
    %c0_i32_1 = arith.constant 0 : i32
    return %c0_i32, %c0_i32_0 : i32, i32
  }
  func.func @transform_7(%arg0: i32, %arg1: i32) -> (i32, i32, i32) {
    %c1_i32 = arith.constant 1 : i32
    %0 = arith.addi %arg1, %c1_i32 : i32
    %c0_i32 = arith.constant 0 : i32
    %c0_i32_0 = arith.constant 0 : i32
    return %arg0, %0, %c0_i32 : i32, i32, i32
  }
  func.func @transform_8(%arg0: i32, %arg1: i32) -> (i32, i32, i32) {
    %c0_i32 = arith.constant 0 : i32
    %c0_i32_0 = arith.constant 0 : i32
    return %arg0, %arg1, %c0_i32 : i32, i32, i32
  }
}

module attributes {stable_mosaic.version = 11 : i64} {
  func.func @_wn_last_kernel(%arg0: i32, %arg1: i32, %arg2: memref<2xi32, #tpu.memory_space<smem>>, %arg3: memref<1x384x32xf32, #tpu.memory_space<vmem>>, %arg4: memref<1x128x32xf32, #tpu.memory_space<vmem>>, %arg5: memref<1x128x16xf32, #tpu.memory_space<vmem>>, %arg6: memref<5x32x64xf32, #tpu.memory_space<vmem>>, %arg7: memref<1x64xf32, #tpu.memory_space<vmem>>, %arg8: memref<32x32xf32, #tpu.memory_space<vmem>>, %arg9: memref<1x32xf32, #tpu.memory_space<vmem>>, %arg10: memref<32x32xf32, #tpu.memory_space<vmem>>, %arg11: memref<1x32xf32, #tpu.memory_space<vmem>>, %arg12: memref<1x128x16xf32, #tpu.memory_space<vmem>>, %arg13: memref<1x128x16xf32, #tpu.memory_space<vmem>>, %arg14: memref<1x128x16xf32, #tpu.memory_space<vmem>>) attributes {dimension_semantics = [#tpu.dimension_semantics<parallel>, #tpu.dimension_semantics<parallel>], iteration_bounds = array<i64: 2, 1>, scalar_prefetch = 0 : i64, scratch_operands = 0 : i64, tpu.core_type = #tpu.core_type<tc>, window_params = [{transform_indices = @transform_0, window_bounds = array<i64: 2>}, {transform_indices = @transform_1, window_bounds = array<i64: 1, 384, 32>}, {transform_indices = @transform_2, window_bounds = array<i64: 1, 128, 32>}, {transform_indices = @transform_3, window_bounds = array<i64: 1, 128, 16>}, {pipeline_mode = #tpu.pipeline_mode<synchronous>, transform_indices = @transform_4, window_bounds = array<i64: 5, 32, 64>}, {pipeline_mode = #tpu.pipeline_mode<synchronous>, transform_indices = @transform_5, window_bounds = array<i64: 1, 64>}, {pipeline_mode = #tpu.pipeline_mode<synchronous>, transform_indices = @transform_6, window_bounds = array<i64: 32, 32>}, {pipeline_mode = #tpu.pipeline_mode<synchronous>, transform_indices = @transform_7, window_bounds = array<i64: 1, 32>}, {pipeline_mode = #tpu.pipeline_mode<synchronous>, transform_indices = @transform_8, window_bounds = array<i64: 32, 32>}, {pipeline_mode = #tpu.pipeline_mode<synchronous>, transform_indices = @transform_9, window_bounds = array<i64: 1, 32>}, {transform_indices = @transform_10, window_bounds = array<i64: 1, 128, 16>}, {transform_indices = @transform_11, window_bounds = array<i64: 1, 128, 16>}, {transform_indices = @transform_12, window_bounds = array<i64: 1, 128, 16>}]} {
    %c128_i32 = arith.constant 128 : i32
    %0 = arith.muli %arg1, %c128_i32 : i32
    %c128_i32_0 = arith.constant 128 : i32
    %1 = arith.addi %0, %c128_i32_0 : i32
    %2 = tpu.assume_multiple %1, 128 : i32
    %cst = arith.constant 0.000000e+00 : f32
    %3 = vector.broadcast %cst : f32 to vector<128x64xf32>
    %c0 = arith.constant 0 : index
    %c0_1 = arith.constant 0 : index
    %4 = vector.load %arg7[%c0, %c0_1] : memref<1x64xf32, #tpu.memory_space<vmem>>, vector<1x64xf32>
    %5 = vector.broadcast %4 : vector<1x64xf32> to vector<128x64xf32>
    %6 = arith.addf %3, %5 : vector<128x64xf32>
    %c-16_i32 = arith.constant -16 : i32
    %7 = arith.addi %2, %c-16_i32 : i32
    %c0_2 = arith.constant 0 : index
    %8 = arith.index_cast %7 : i32 to index
    %c0_3 = arith.constant 0 : index
    %9 = vector.load %arg3[%c0_2, %8, %c0_3] : memref<1x384x32xf32, #tpu.memory_space<vmem>>, vector<1x128x32xf32>
    %10 = vector.shape_cast %9 : vector<1x128x32xf32> to vector<128x32xf32>
    %c0_4 = arith.constant 0 : index
    %c0_5 = arith.constant 0 : index
    %c0_6 = arith.constant 0 : index
    %11 = vector.load %arg6[%c0_4, %c0_5, %c0_6] : memref<5x32x64xf32, #tpu.memory_space<vmem>>, vector<1x32x64xf32>
    %12 = vector.shape_cast %11 : vector<1x32x64xf32> to vector<32x64xf32>
    %cst_7 = arith.constant dense<0.000000e+00> : vector<128x64xf32>
    %13 = tpu.matmul %10, %12, %cst_7 {dimension_numbers = #tpu.dot_dimension_numbers<[1], [0], [0], [1], [0, 0, 1, 1], [], []>} : vector<128x32xf32>, vector<32x64xf32>, vector<128x64xf32> -> vector<128x64xf32>
    %14 = arith.addf %6, %13 : vector<128x64xf32>
    %c-8_i32 = arith.constant -8 : i32
    %15 = arith.addi %2, %c-8_i32 : i32
    %c0_8 = arith.constant 0 : index
    %16 = arith.index_cast %15 : i32 to index
    %c0_9 = arith.constant 0 : index
    %17 = vector.load %arg3[%c0_8, %16, %c0_9] : memref<1x384x32xf32, #tpu.memory_space<vmem>>, vector<1x128x32xf32>
    %18 = vector.shape_cast %17 : vector<1x128x32xf32> to vector<128x32xf32>
    %c1 = arith.constant 1 : index
    %c0_10 = arith.constant 0 : index
    %c0_11 = arith.constant 0 : index
    %19 = vector.load %arg6[%c1, %c0_10, %c0_11] : memref<5x32x64xf32, #tpu.memory_space<vmem>>, vector<1x32x64xf32>
    %20 = vector.shape_cast %19 : vector<1x32x64xf32> to vector<32x64xf32>
    %cst_12 = arith.constant dense<0.000000e+00> : vector<128x64xf32>
    %21 = tpu.matmul %18, %20, %cst_12 {dimension_numbers = #tpu.dot_dimension_numbers<[1], [0], [0], [1], [0, 0, 1, 1], [], []>} : vector<128x32xf32>, vector<32x64xf32>, vector<128x64xf32> -> vector<128x64xf32>
    %22 = arith.addf %14, %21 : vector<128x64xf32>
    %c0_i32 = arith.constant 0 : i32
    %23 = arith.addi %2, %c0_i32 : i32
    %c0_13 = arith.constant 0 : index
    %24 = arith.index_cast %23 : i32 to index
    %c0_14 = arith.constant 0 : index
    %25 = vector.load %arg3[%c0_13, %24, %c0_14] : memref<1x384x32xf32, #tpu.memory_space<vmem>>, vector<1x128x32xf32>
    %26 = vector.shape_cast %25 : vector<1x128x32xf32> to vector<128x32xf32>
    %c2 = arith.constant 2 : index
    %c0_15 = arith.constant 0 : index
    %c0_16 = arith.constant 0 : index
    %27 = vector.load %arg6[%c2, %c0_15, %c0_16] : memref<5x32x64xf32, #tpu.memory_space<vmem>>, vector<1x32x64xf32>
    %28 = vector.shape_cast %27 : vector<1x32x64xf32> to vector<32x64xf32>
    %cst_17 = arith.constant dense<0.000000e+00> : vector<128x64xf32>
    %29 = tpu.matmul %26, %28, %cst_17 {dimension_numbers = #tpu.dot_dimension_numbers<[1], [0], [0], [1], [0, 0, 1, 1], [], []>} : vector<128x32xf32>, vector<32x64xf32>, vector<128x64xf32> -> vector<128x64xf32>
    %30 = arith.addf %22, %29 : vector<128x64xf32>
    %c8_i32 = arith.constant 8 : i32
    %31 = arith.addi %2, %c8_i32 : i32
    %c0_18 = arith.constant 0 : index
    %32 = arith.index_cast %31 : i32 to index
    %c0_19 = arith.constant 0 : index
    %33 = vector.load %arg3[%c0_18, %32, %c0_19] : memref<1x384x32xf32, #tpu.memory_space<vmem>>, vector<1x128x32xf32>
    %34 = vector.shape_cast %33 : vector<1x128x32xf32> to vector<128x32xf32>
    %c3 = arith.constant 3 : index
    %c0_20 = arith.constant 0 : index
    %c0_21 = arith.constant 0 : index
    %35 = vector.load %arg6[%c3, %c0_20, %c0_21] : memref<5x32x64xf32, #tpu.memory_space<vmem>>, vector<1x32x64xf32>
    %36 = vector.shape_cast %35 : vector<1x32x64xf32> to vector<32x64xf32>
    %cst_22 = arith.constant dense<0.000000e+00> : vector<128x64xf32>
    %37 = tpu.matmul %34, %36, %cst_22 {dimension_numbers = #tpu.dot_dimension_numbers<[1], [0], [0], [1], [0, 0, 1, 1], [], []>} : vector<128x32xf32>, vector<32x64xf32>, vector<128x64xf32> -> vector<128x64xf32>
    %38 = arith.addf %30, %37 : vector<128x64xf32>
    %c16_i32 = arith.constant 16 : i32
    %39 = arith.addi %2, %c16_i32 : i32
    %c0_23 = arith.constant 0 : index
    %40 = arith.index_cast %39 : i32 to index
    %c0_24 = arith.constant 0 : index
    %41 = vector.load %arg3[%c0_23, %40, %c0_24] : memref<1x384x32xf32, #tpu.memory_space<vmem>>, vector<1x128x32xf32>
    %42 = vector.shape_cast %41 : vector<1x128x32xf32> to vector<128x32xf32>
    %c4 = arith.constant 4 : index
    %c0_25 = arith.constant 0 : index
    %c0_26 = arith.constant 0 : index
    %43 = vector.load %arg6[%c4, %c0_25, %c0_26] : memref<5x32x64xf32, #tpu.memory_space<vmem>>, vector<1x32x64xf32>
    %44 = vector.shape_cast %43 : vector<1x32x64xf32> to vector<32x64xf32>
    %cst_27 = arith.constant dense<0.000000e+00> : vector<128x64xf32>
    %45 = tpu.matmul %42, %44, %cst_27 {dimension_numbers = #tpu.dot_dimension_numbers<[1], [0], [0], [1], [0, 0, 1, 1], [], []>} : vector<128x32xf32>, vector<32x64xf32>, vector<128x64xf32> -> vector<128x64xf32>
    %46 = arith.addf %38, %45 : vector<128x64xf32>
    %47 = vector.extract_strided_slice %46 {offsets = [0, 0], sizes = [128, 32], strides = [1, 1]} : vector<128x64xf32> to vector<128x32xf32>
    %48 = math.tanh %47 : vector<128x32xf32>
    %49 = vector.extract_strided_slice %46 {offsets = [0, 32], sizes = [128, 32], strides = [1, 1]} : vector<128x64xf32> to vector<128x32xf32>
    %50 = arith.negf %49 : vector<128x32xf32>
    %51 = math.exp %50 : vector<128x32xf32>
    %cst_28 = arith.constant 1.000000e+00 : f32
    %52 = vector.broadcast %cst_28 : f32 to vector<128x32xf32>
    %53 = arith.addf %52, %51 : vector<128x32xf32>
    %54 = arith.divf %52, %53 : vector<128x32xf32>
    %55 = arith.mulf %48, %54 : vector<128x32xf32>
    %c0_29 = arith.constant 0 : index
    %c0_30 = arith.constant 0 : index
    %56 = vector.load %arg8[%c0_29, %c0_30] : memref<32x32xf32, #tpu.memory_space<vmem>>, vector<32x32xf32>
    %cst_31 = arith.constant dense<0.000000e+00> : vector<128x32xf32>
    %57 = tpu.matmul %55, %56, %cst_31 {dimension_numbers = #tpu.dot_dimension_numbers<[1], [0], [0], [1], [0, 0, 1, 1], [], []>} : vector<128x32xf32>, vector<32x32xf32>, vector<128x32xf32> -> vector<128x32xf32>
    %c0_32 = arith.constant 0 : index
    %c0_33 = arith.constant 0 : index
    %58 = vector.load %arg9[%c0_32, %c0_33] : memref<1x32xf32, #tpu.memory_space<vmem>>, vector<1x32xf32>
    %59 = vector.broadcast %58 : vector<1x32xf32> to vector<128x32xf32>
    %60 = arith.addf %57, %59 : vector<128x32xf32>
    %c0_34 = arith.constant 0 : index
    %c0_35 = arith.constant 0 : index
    %c0_36 = arith.constant 0 : index
    %61 = vector.load %arg4[%c0_34, %c0_35, %c0_36] : memref<1x128x32xf32, #tpu.memory_space<vmem>>, vector<1x128x32xf32>
    %62 = vector.shape_cast %61 : vector<1x128x32xf32> to vector<128x32xf32>
    %63 = arith.addf %62, %60 : vector<128x32xf32>
    %c128_i32_37 = arith.constant 128 : i32
    %64 = arith.muli %arg1, %c128_i32_37 : i32
    %65 = arith.index_cast %arg0 : i32 to index
    %66 = memref.load %arg2[%65] : memref<2xi32, #tpu.memory_space<smem>>
    %67 = tpu.iota {dimensions = array<i32: 0>} : vector<128x1xi32>
    %68 = vector.broadcast %64 : i32 to vector<128x1xi32>
    %69 = arith.addi %68, %67 : vector<128x1xi32>
    %c0_i32_38 = arith.constant 0 : i32
    %70 = vector.broadcast %c0_i32_38 : i32 to vector<128x1xi32>
    %71 = arith.cmpi sge, %69, %70 : vector<128x1xi32>
    %72 = vector.broadcast %66 : i32 to vector<128x1xi32>
    %73 = arith.cmpi slt, %69, %72 : vector<128x1xi32>
    %74 = arith.andi %71, %73 : vector<128x1xi1>
    %75 = arith.extui %74 : vector<128x1xi1> to vector<128x1xi32>
    %76 = arith.sitofp %75 : vector<128x1xi32> to vector<128x1xf32>
    %77 = vector.broadcast %76 : vector<128x1xf32> to vector<128x32xf32>
    %78 = arith.mulf %63, %77 : vector<128x32xf32>
    %c0_39 = arith.constant 0 : index
    %c0_40 = arith.constant 0 : index
    %79 = vector.load %arg10[%c0_39, %c0_40] : memref<32x32xf32, #tpu.memory_space<vmem>>, vector<32x32xf32>
    %cst_41 = arith.constant dense<0.000000e+00> : vector<128x32xf32>
    %80 = tpu.matmul %78, %79, %cst_41 {dimension_numbers = #tpu.dot_dimension_numbers<[1], [0], [0], [1], [0, 0, 1, 1], [], []>} : vector<128x32xf32>, vector<32x32xf32>, vector<128x32xf32> -> vector<128x32xf32>
    %c0_42 = arith.constant 0 : index
    %c0_43 = arith.constant 0 : index
    %81 = vector.load %arg11[%c0_42, %c0_43] : memref<1x32xf32, #tpu.memory_space<vmem>>, vector<1x32xf32>
    %82 = vector.broadcast %81 : vector<1x32xf32> to vector<128x32xf32>
    %83 = arith.addf %80, %82 : vector<128x32xf32>
    %84 = vector.extract_strided_slice %83 {offsets = [0, 0], sizes = [128, 16], strides = [1, 1]} : vector<128x32xf32> to vector<128x16xf32>
    %85 = vector.broadcast %76 : vector<128x1xf32> to vector<128x16xf32>
    %86 = arith.mulf %84, %85 : vector<128x16xf32>
    %87 = vector.extract_strided_slice %83 {offsets = [0, 16], sizes = [128, 16], strides = [1, 1]} : vector<128x32xf32> to vector<128x16xf32>
    %88 = vector.broadcast %76 : vector<128x1xf32> to vector<128x16xf32>
    %89 = arith.mulf %87, %88 : vector<128x16xf32>
    %c0_44 = arith.constant 0 : index
    %c0_45 = arith.constant 0 : index
    %c0_46 = arith.constant 0 : index
    %90 = vector.load %arg5[%c0_44, %c0_45, %c0_46] : memref<1x128x16xf32, #tpu.memory_space<vmem>>, vector<1x128x16xf32>
    %91 = vector.shape_cast %90 : vector<1x128x16xf32> to vector<128x16xf32>
    %92 = math.exp %89 : vector<128x16xf32>
    %93 = arith.mulf %91, %92 : vector<128x16xf32>
    %94 = arith.addf %86, %93 : vector<128x16xf32>
    %95 = vector.broadcast %76 : vector<128x1xf32> to vector<128x16xf32>
    %96 = arith.mulf %94, %95 : vector<128x16xf32>
    %c0_47 = arith.constant 0 : index
    %c0_48 = arith.constant 0 : index
    %c0_49 = arith.constant 0 : index
    %97 = vector.load %arg12[%c0_47, %c0_48, %c0_49] : memref<1x128x16xf32, #tpu.memory_space<vmem>>, vector<1x128x16xf32>
    %98 = vector.shape_cast %97 : vector<1x128x16xf32> to vector<128x16xf32>
    %99 = vector.shape_cast %96 : vector<128x16xf32> to vector<1x128x16xf32>
    tpu.vector_store %arg12[%c0_47, %c0_48, %c0_49], %99 {strides = array<i32>} : memref<1x128x16xf32, #tpu.memory_space<vmem>>, vector<1x128x16xf32>,
    %c0_50 = arith.constant 0 : index
    %c0_51 = arith.constant 0 : index
    %c0_52 = arith.constant 0 : index
    %100 = vector.load %arg13[%c0_50, %c0_51, %c0_52] : memref<1x128x16xf32, #tpu.memory_space<vmem>>, vector<1x128x16xf32>
    %101 = vector.shape_cast %100 : vector<1x128x16xf32> to vector<128x16xf32>
    %102 = vector.shape_cast %86 : vector<128x16xf32> to vector<1x128x16xf32>
    tpu.vector_store %arg13[%c0_50, %c0_51, %c0_52], %102 {strides = array<i32>} : memref<1x128x16xf32, #tpu.memory_space<vmem>>, vector<1x128x16xf32>,
    %c0_53 = arith.constant 0 : index
    %c0_54 = arith.constant 0 : index
    %c0_55 = arith.constant 0 : index
    %103 = vector.load %arg14[%c0_53, %c0_54, %c0_55] : memref<1x128x16xf32, #tpu.memory_space<vmem>>, vector<1x128x16xf32>
    %104 = vector.shape_cast %103 : vector<1x128x16xf32> to vector<128x16xf32>
    %105 = vector.shape_cast %89 : vector<128x16xf32> to vector<1x128x16xf32>
    tpu.vector_store %arg14[%c0_53, %c0_54, %c0_55], %105 {strides = array<i32>} : memref<1x128x16xf32, #tpu.memory_space<vmem>>, vector<1x128x16xf32>,
    return
  }
  func.func @transform_0(%arg0: i32, %arg1: i32) -> i32 {
    %c0_i32 = arith.constant 0 : i32
    %c0_i32_0 = arith.constant 0 : i32
    return %c0_i32 : i32
  }
  func.func @transform_1(%arg0: i32, %arg1: i32) -> (i32, i32, i32) {
    %c0_i32 = arith.constant 0 : i32
    %c0_i32_0 = arith.constant 0 : i32
    %c0_i32_1 = arith.constant 0 : i32
    return %arg0, %c0_i32, %c0_i32_0 : i32, i32, i32
  }
  func.func @transform_2(%arg0: i32, %arg1: i32) -> (i32, i32, i32) {
    %c0_i32 = arith.constant 0 : i32
    %c0_i32_0 = arith.constant 0 : i32
    return %arg0, %arg1, %c0_i32 : i32, i32, i32
  }
  func.func @transform_3(%arg0: i32, %arg1: i32) -> (i32, i32, i32) {
    %c0_i32 = arith.constant 0 : i32
    %c0_i32_0 = arith.constant 0 : i32
    return %arg0, %arg1, %c0_i32 : i32, i32, i32
  }
  func.func @transform_4(%arg0: i32, %arg1: i32) -> (i32, i32, i32) {
    %c0_i32 = arith.constant 0 : i32
    %c0_i32_0 = arith.constant 0 : i32
    %c0_i32_1 = arith.constant 0 : i32
    %c0_i32_2 = arith.constant 0 : i32
    return %c0_i32, %c0_i32_0, %c0_i32_1 : i32, i32, i32
  }
  func.func @transform_5(%arg0: i32, %arg1: i32) -> (i32, i32) {
    %c0_i32 = arith.constant 0 : i32
    %c0_i32_0 = arith.constant 0 : i32
    %c0_i32_1 = arith.constant 0 : i32
    return %c0_i32, %c0_i32_0 : i32, i32
  }
  func.func @transform_6(%arg0: i32, %arg1: i32) -> (i32, i32) {
    %c0_i32 = arith.constant 0 : i32
    %c0_i32_0 = arith.constant 0 : i32
    %c0_i32_1 = arith.constant 0 : i32
    return %c0_i32, %c0_i32_0 : i32, i32
  }
  func.func @transform_7(%arg0: i32, %arg1: i32) -> (i32, i32) {
    %c0_i32 = arith.constant 0 : i32
    %c0_i32_0 = arith.constant 0 : i32
    %c0_i32_1 = arith.constant 0 : i32
    return %c0_i32, %c0_i32_0 : i32, i32
  }
  func.func @transform_8(%arg0: i32, %arg1: i32) -> (i32, i32) {
    %c0_i32 = arith.constant 0 : i32
    %c0_i32_0 = arith.constant 0 : i32
    %c0_i32_1 = arith.constant 0 : i32
    return %c0_i32, %c0_i32_0 : i32, i32
  }
  func.func @transform_9(%arg0: i32, %arg1: i32) -> (i32, i32) {
    %c0_i32 = arith.constant 0 : i32
    %c0_i32_0 = arith.constant 0 : i32
    %c0_i32_1 = arith.constant 0 : i32
    return %c0_i32, %c0_i32_0 : i32, i32
  }
  func.func @transform_10(%arg0: i32, %arg1: i32) -> (i32, i32, i32) {
    %c0_i32 = arith.constant 0 : i32
    %c0_i32_0 = arith.constant 0 : i32
    return %arg0, %arg1, %c0_i32 : i32, i32, i32
  }
  func.func @transform_11(%arg0: i32, %arg1: i32) -> (i32, i32, i32) {
    %c0_i32 = arith.constant 0 : i32
    %c0_i32_0 = arith.constant 0 : i32
    return %arg0, %arg1, %c0_i32 : i32, i32, i32
  }
  func.func @transform_12(%arg0: i32, %arg1: i32) -> (i32, i32, i32) {
    %c0_i32 = arith.constant 0 : i32
    %c0_i32_0 = arith.constant 0 : i32
    return %arg0, %arg1, %c0_i32 : i32, i32, i32
  }
}

</mosaic_0001>

<llo_original>
// kernel: posterior_encoder_forward.5
$region0: #{posterior_encoder_forward.5}
  #allocation0 [shape = 'u32[]', space=smem, size = 0x4, offset = 0x4, fixed_abs, tag = 'smem constant byte address 0x4 - core index']
  #allocation1 [shape = 'u32[144,128]{1,0:T(1,128)}', space=vmem, size = 0x12000, scoped, tag = 'internal scratch']
  %s0 = inlined_call_operand.vmem [shape: s32[2], index: 0, kind: input, shape index: {}]
  %s1 = inlined_call_operand.vmem [shape: f32[2,384,8], index: 1, kind: input, shape index: {}]
  %s2 = inlined_call_operand.vmem [shape: f32[8,32], index: 2, kind: input, shape index: {}]
  %s3 = inlined_call_operand.vmem [shape: f32[1,32], index: 3, kind: input, shape index: {}]
  %s4 = inlined_call_operand.vmem [shape: f32[2,384,32], index: 4, kind: output, shape index: {}]
  %s5 = sld [smem:[#allocation0]]
  $region53: #{posterior_encoder_forward.5} parent=0
    _
  %s7 = ssub.s32 1, %s5
  %s8 = scalar_select 0, %s7, %s5
  $region1: #{posterior_encoder_forward.5} parent=0
    #allocation2 [shape = 'u8[512]{0}', space=smem, size = 0x200, scoped, tag = 'input window, operand 0, single buffered']
    #allocation3 [shape = 's32[2]{0}', space=sflag, size = 0x8, scoped, tag = 'scoped memory for posterior_encoder_forward.5']
    %9 = vsyncpa [#allocation3], 0
    loop: start=0, step=1, limit=8
    $region2: #{posterior_encoder_forward.5} parent=1 // loop_pre_header
      _
    $region3: #{posterior_encoder_forward.5} parent=1 // loop_header
      %s11 = sphi 0, %s15
      %p12 = scmp.ge.s32.totalorder %s11, 8
      %s18 = sphi 0, %s30
      %s19 = sphi 0, %s26
      %s20 = sphi 0, %s18
      %s21 = sphi 0, %s19
      %s22 = sphi 0, %s20
      %s23 = sphi 0, %s21
      %s31 = sphi 0, %s31
      %s33 = sphi 0, %s31
      %s34 = sphi 0, %s33
      %s48 = sphi 0, %s34
      %s56 = sphi 0, %s58
      %s59 = sphi 0, %s56
      %s60 = sphi 0, %s59
      %s76 = sphi 0, %s60
      %s80 = sphi 0, %s80
      %s82 = sphi 0, %s80
      %s83 = sphi 0, %s82
      %s97 = sphi 0, %s83
      %s101 = sphi 0, %s101
      %s103 = sphi 0, %s101
      %s104 = sphi 0, %s103
      %s118 = sphi 0, %s104
      %s126 = sphi 0, %s128
      %s129 = sphi 0, %s126
      %s130 = sphi 0, %s129
      %s146 = sphi 0, %s130
    $region4: #{posterior_encoder_forward.5} parent=1 // loop_header_branch
      %14 = sbr.rel (%p12) target = $region8
    $region5: #{posterior_encoder_forward.5} parent=1 // loop_body
      %s16 = ssub.s32 %s11, 1
      %s17 = ssub.s32 %s11, 2
      %s24 = sadd.s32 1, %s19
      %p25 = scmp.ge.s32.totalorder %s24, 3
      %s26 = scalar_select %p25, 0, %s24
      %s27 = sadd.s32 1, %s18
      %s28 = scalar_select %p25, %s27, %s18
      %p29 = scmp.ge.s32.totalorder %s28, 2
      %s30 = scalar_select %p29, 0, %s28
      %s32 = sadd.s32 %s31, 1
      %p35 = scmp.eq.s32.totalorder %s11, 5
      %p36 = scmp.ne.s32.totalorder %s31, %s33
      %p37 = scmp.eq.s32.totalorder %s11, 0
      %p38 = por %p36, %p37
      %p39 = scmp.ne.s32.totalorder %s31, %s33
      %p40 = scmp.eq.s32.totalorder %s16, 5
      %p41 = por %p39, %p40
      %p42 = scmp.ne.s32.totalorder %s33, %s34
      %p43 = scmp.eq.s32.totalorder %s16, 0
      %p44 = por %p42, %p43
      %p45 = scmp.ne.s32.totalorder %s33, %s34
      %p46 = scmp.eq.s32.totalorder %s17, 5
      %p47 = por %p45, %p46
      %p49 = scmp.ne.s32.totalorder %s34, %s48
      %p50 = scmp.eq.s32.totalorder %s17, 0
      %p51 = por %p49, %p50
      %s52 = ssub.s32 %s18, %s30
      %s53 = ssub.s32 %s19, %s26
      %s54 = sor.u32 %s52, %s53
      %p55 = scmp.eq.s32.totalorder %s54, 0
      %s57 = sadd.s32 %s56, 1
      %s58 = scalar_select %p55, %s56, %s57
      %p61 = pneg %p55
      %p62 = scmp.eq.s32.totalorder %s11, 5
      %p63 = por %p61, %p62
      %p64 = scmp.ne.s32.totalorder %s56, %s59
      %p65 = scmp.eq.s32.totalorder %s11, 0
      %p66 = por %p64, %p65
      %p67 = scmp.ne.s32.totalorder %s56, %s59
      %p68 = scmp.eq.s32.totalorder %s16, 5
      %p69 = por %p67, %p68
      %p70 = scmp.ne.s32.totalorder %s59, %s60
      %p71 = scmp.eq.s32.totalorder %s16, 0
      %p72 = por %p70, %p71
      %p73 = scmp.ne.s32.totalorder %s59, %s60
      %p74 = scmp.eq.s32.totalorder %s17, 5
      %p75 = por %p73, %p74
      %p77 = scmp.ne.s32.totalorder %s60, %s76
      %p78 = scmp.eq.s32.totalorder %s17, 0
      %p79 = por %p77, %p78
      %s81 = sadd.s32 %s80, 1
      %p84 = scmp.eq.s32.totalorder %s11, 5
      %p85 = scmp.ne.s32.totalorder %s80, %s82
      %p86 = scmp.eq.s32.totalorder %s11, 0
      %p87 = por %p85, %p86
      %p88 = scmp.ne.s32.totalorder %s80, %s82
      %p89 = scmp.eq.s32.totalorder %s16, 5
      %p90 = por %p88, %p89
      %p91 = scmp.ne.s32.totalorder %s82, %s83
      %p92 = scmp.eq.s32.totalorder %s16, 0
      %p93 = por %p91, %p92
      %p94 = scmp.ne.s32.totalorder %s82, %s83
      %p95 = scmp.eq.s32.totalorder %s17, 5
      %p96 = por %p94, %p95
      %p98 = scmp.ne.s32.totalorder %s83, %s97
      %p99 = scmp.eq.s32.totalorder %s17, 0
      %p100 = por %p98, %p99
      %s102 = sadd.s32 %s101, 1
      %p105 = scmp.eq.s32.totalorder %s11, 5
      %p106 = scmp.ne.s32.totalorder %s101, %s103
      %p107 = scmp.eq.s32.totalorder %s11, 0
      %p108 = por %p106, %p107
      %p109 = scmp.ne.s32.totalorder %s101, %s103
      %p110 = scmp.eq.s32.totalorder %s16, 5
      %p111 = por %p109, %p110
      %p112 = scmp.ne.s32.totalorder %s103, %s104
      %p113 = scmp.eq.s32.totalorder %s16, 0
      %p114 = por %p112, %p113
      %p115 = scmp.ne.s32.totalorder %s103, %s104
      %p116 = scmp.eq.s32.totalorder %s17, 5
      %p117 = por %p115, %p116
      %p119 = scmp.ne.s32.totalorder %s104, %s118
      %p120 = scmp.eq.s32.totalorder %s17, 0
      %p121 = por %p119, %p120
      %s122 = ssub.s32 %s18, %s30
      %s123 = ssub.s32 %s19, %s26
      %s124 = sor.u32 %s122, %s123
      %p125 = scmp.eq.s32.totalorder %s124, 0
      %s127 = sadd.s32 %s126, 1
      %s128 = scalar_select %p125, %s126, %s127
      %p131 = pneg %p125
      %p132 = scmp.eq.s32.totalorder %s11, 5
      %p133 = por %p131, %p132
      %p134 = scmp.ne.s32.totalorder %s126, %s129
      %p135 = scmp.eq.s32.totalorder %s11, 0
      %p136 = por %p134, %p135
      %p137 = scmp.ne.s32.totalorder %s126, %s129
      %p138 = scmp.eq.s32.totalorder %s16, 5
      %p139 = por %p137, %p138
      %p140 = scmp.ne.s32.totalorder %s129, %s130
      %p141 = scmp.eq.s32.totalorder %s16, 0
      %p142 = por %p140, %p141
      %p143 = scmp.ne.s32.totalorder %s129, %s130
      %p144 = scmp.eq.s32.totalorder %s17, 5
      %p145 = por %p143, %p144
      %p147 = scmp.ne.s32.totalorder %s130, %s146
      %p148 = scmp.eq.s32.totalorder %s17, 0
      %p149 = por %p147, %p148
      %p150 = scmp.le.s32.totalorder 1, %s11
      %p151 = scmp.lt.s32.totalorder %s11, 7
      %p152 = pnand %p150, %p151
      %p153 = pneg %p152
      // Predicated region
      $region9: #{posterior_encoder_forward.5} parent=5 // pred_check
        _
      $region10: #{posterior_encoder_forward.5} parent=5 // pred_check_branch
        %155 = sbr.rel (%p152) target = $region12
      $region11: #{posterior_encoder_forward.5} parent=5 // pred_region
        %s156 = ssub.s32 %s11, 1
        // Predicated region
        $region13: #{posterior_encoder_forward.5} parent=11 // pred_check
          %p157 = pneg %p44
        $region14: #{posterior_encoder_forward.5} parent=11 // pred_check_branch
          %159 = sbr.rel (%p157) target = $region16
        $region15: #{posterior_encoder_forward.5} parent=11 // pred_region
          %s161 = ssub.s32 16, 16
          %162 = vsyncadd [#allocation3], %s161
          %s164 = sshll.u32 %s0, 4
          %s165 = int_to_ptr.vmem [resolvable:$true] %s164
          %167 = dma.vmem_to_smem %s165, 16, [#allocation2], [#allocation3]
        $region16: #{posterior_encoder_forward.5} parent=11 // pred_fallthru
          _
        // Predicated region
        $region17: #{posterior_encoder_forward.5} parent=11 // pred_check
          %p168 = pneg %p93
        $region18: #{posterior_encoder_forward.5} parent=11 // pred_check_branch
          %170 = sbr.rel (%p168) target = $region20
        $region19: #{posterior_encoder_forward.5} parent=11 // pred_region
          _
        $region20: #{posterior_encoder_forward.5} parent=11 // pred_fallthru
          _
        // Predicated region
        $region21: #{posterior_encoder_forward.5} parent=11 // pred_check
          %p171 = pneg %p114
        $region22: #{posterior_encoder_forward.5} parent=11 // pred_check_branch
          %173 = sbr.rel (%p171) target = $region24
        $region23: #{posterior_encoder_forward.5} parent=11 // pred_region
          _
        $region24: #{posterior_encoder_forward.5} parent=11 // pred_fallthru
          _
      $region12: #{posterior_encoder_forward.5} parent=5 // pred_fallthru
        _
      %p174 = scmp.lt.s32.totalorder %s11, 6
      // Predicated region
      $region25: #{posterior_encoder_forward.5} parent=5 // pred_check
        %p175 = pneg %p174
      $region26: #{posterior_encoder_forward.5} parent=5 // pred_check_branch
        %177 = sbr.rel (%p175) target = $region28
      $region27: #{posterior_encoder_forward.5} parent=5 // pred_region
        // Predicated region
        $region29: #{posterior_encoder_forward.5} parent=27 // pred_check
          %p178 = pneg %p66
        $region30: #{posterior_encoder_forward.5} parent=27 // pred_check_branch
          %180 = sbr.rel (%p178) target = $region32
        $region31: #{posterior_encoder_forward.5} parent=27 // pred_region
          %s181 = smul.u32 16, %s19
          %p182 = scmp.lt.s32.totalorder %s18, 1
          %s183 = scalar_select %p182, %s18, 1
          %p184 = scmp.lt.s32.totalorder %s181, 47
          %s185 = scalar_select %p184, %s181, 47
          %s186 = smul.addr %s183, 48
          %s187 = sadd.s32 %s185, %s186
          %s188 = smul.addr %s187, 8
          %s189 = scalar_lea.vmem %s1, %s188
          %s190 = smul.u32 16, %s19
        $region32: #{posterior_encoder_forward.5} parent=27 // pred_fallthru
          _
      $region28: #{posterior_encoder_forward.5} parent=5 // pred_fallthru
        _
      %p191 = scmp.le.s32.totalorder 1, %s11
      %p192 = scmp.lt.s32.totalorder %s11, 7
      %p193 = pnand %p191, %p192
      %p194 = pneg %p193
      // Predicated region
      $region33: #{posterior_encoder_forward.5} parent=5 // pred_check
        _
      $region34: #{posterior_encoder_forward.5} parent=5 // pred_check_branch
        %196 = sbr.rel (%p193) target = $region36
      $region35: #{posterior_encoder_forward.5} parent=5 // pred_region
        %s197 = ssub.s32 %s11, 1
        // Predicated region
        $region37: #{posterior_encoder_forward.5} parent=35 // pred_check
          %p198 = pneg %p44
        $region38: #{posterior_encoder_forward.5} parent=35 // pred_check_branch
          %200 = sbr.rel (%p198) target = $region40
        $region39: #{posterior_encoder_forward.5} parent=35 // pred_region
          %201 = dma.done [#allocation3], 16
        $region40: #{posterior_encoder_forward.5} parent=35 // pred_fallthru
          _
        %202 = sfence
        %p203 = pneg %p44
        %p204 = pneg %p41
        %s205 = smul.u32 16, %s21
        %p206 = scmp.lt.s32.totalorder %s20, 1
        %s207 = scalar_select %p206, %s20, 1
        %p208 = scmp.lt.s32.totalorder %s205, 47
        %s209 = scalar_select %p208, %s205, 47
        %s210 = smul.addr %s207, 48
        %s211 = sadd.s32 %s209, %s210
        %s212 = smul.addr %s211, 8
        %s213 = scalar_lea.vmem %s1, %s212
        %p214 = pneg %p72
        %p215 = pneg %p69
        %p216 = pneg %p93
        %p217 = pneg %p90
        %p218 = pneg %p114
        %p219 = pneg %p111
        %p220 = pneg %p142
        %p221 = pneg %p139
        %s222 = smul.u32 16, %s21
        %p223 = scmp.lt.s32.totalorder %s20, 1
        %s224 = scalar_select %p223, %s20, 1
        %p225 = scmp.lt.s32.totalorder %s222, 47
        %s226 = scalar_select %p225, %s222, 47
        %s227 = smul.addr %s224, 48
        %s228 = sadd.s32 %s226, %s227
        %s229 = smul.addr %s228, 8
        %s230 = scalar_lea.vmem %s4, %s229
        %s231 = smul.u32 16, %s21
        %p232 = scmp.lt.s32.totalorder %s20, 1
        %s233 = scalar_select %p232, %s20, 1
        %p234 = scmp.lt.s32.totalorder %s231, 47
        %s235 = scalar_select %p234, %s231, 47
        %s236 = smul.addr %s233, 48
        %s237 = sadd.s32 %s235, %s236
        %s238 = smul.addr %s237, 8
        %s239 = scalar_lea.vmem %s1, %s238
        %s240 = smul.u32 16, %s21
        %s241 = smul.u32 16, %s21
        %p242 = scmp.lt.s32.totalorder %s20, 1
        %s243 = scalar_select %p242, %s20, 1
        %p244 = scmp.lt.s32.totalorder %s241, 47
        %s245 = scalar_select %p244, %s241, 47
        %s246 = smul.addr %s243, 48
        %s247 = sadd.s32 %s245, %s246
        %s248 = smul.addr %s247, 8
        %s249 = scalar_lea.vmem %s4, %s248
        %s250 = smul.u32 16, %s21
        %s251 = smul.u32 %s21, 128
        %s252 = ssub.s32 %s251, 128
        %s253 = sld [smem:[#allocation2 + %s20]]
        %v254 = vlaneseq
        %v255 = vshrl.u32 %v254, 7
        %v256 = vadd.s32 %v255, 8
        %v257 = vadd.s32 %v255, 16
        %v258 = vadd.s32 %v255, 24
        %v259 = vadd.s32 %v255, 32
        %v260 = vadd.s32 %v255, 40
        %v261 = vadd.s32 %v255, 48
        %v262 = vadd.s32 %v255, 56
        %v263 = vadd.s32 %v255, 64
        %v264 = vadd.s32 %v255, 72
        %v265 = vadd.s32 %v255, 80
        %v266 = vadd.s32 %v255, 88
        %v267 = vadd.s32 %v255, 96
        %v268 = vadd.s32 %v255, 104
        %v269 = vadd.s32 %v255, 112
        %v270 = vadd.s32 %v255, 120
        %v271 = vstv %s252
        %v272 = vadd.s32 %v271, %v255
        %v273 = vadd.s32 %v271, %v256
        %v274 = vadd.s32 %v271, %v257
        %v275 = vadd.s32 %v271, %v258
        %v276 = vadd.s32 %v271, %v259
        %v277 = vadd.s32 %v271, %v260
        %v278 = vadd.s32 %v271, %v261
        %v279 = vadd.s32 %v271, %v262
        %v280 = vadd.s32 %v271, %v263
        %v281 = vadd.s32 %v271, %v264
        %v282 = vadd.s32 %v271, %v265
        %v283 = vadd.s32 %v271, %v266
        %v284 = vadd.s32 %v271, %v267
        %v285 = vadd.s32 %v271, %v268
        %v286 = vadd.s32 %v271, %v269
        %v287 = vadd.s32 %v271, %v270
        %vm288 = vcmp.ge.s32.totalorder %v272, 0
        %vm289 = vcmp.ge.s32.totalorder %v273, 0
        %vm290 = vcmp.ge.s32.totalorder %v274, 0
        %vm291 = vcmp.ge.s32.totalorder %v275, 0
        %vm292 = vcmp.ge.s32.totalorder %v276, 0
        %vm293 = vcmp.ge.s32.totalorder %v277, 0
        %vm294 = vcmp.ge.s32.totalorder %v278, 0
        %vm295 = vcmp.ge.s32.totalorder %v279, 0
        %vm296 = vcmp.ge.s32.totalorder %v280, 0
        %vm297 = vcmp.ge.s32.totalorder %v281, 0
        %vm298 = vcmp.ge.s32.totalorder %v282, 0
        %vm299 = vcmp.ge.s32.totalorder %v283, 0
        %vm300 = vcmp.ge.s32.totalorder %v284, 0
        %vm301 = vcmp.ge.s32.totalorder %v285, 0
        %vm302 = vcmp.ge.s32.totalorder %v286, 0
        %vm303 = vcmp.ge.s32.totalorder %v287, 0
        %v304 = vstv %s253
        %vm305 = vcmp.lt.s32.totalorder %v272, %v304
        %vm306 = vcmp.lt.s32.totalorder %v273, %v304
        %vm307 = vcmp.lt.s32.totalorder %v274, %v304
        %vm308 = vcmp.lt.s32.totalorder %v275, %v304
        %vm309 = vcmp.lt.s32.totalorder %v276, %v304
        %vm310 = vcmp.lt.s32.totalorder %v277, %v304
        %vm311 = vcmp.lt.s32.totalorder %v278, %v304
        %vm312 = vcmp.lt.s32.totalorder %v279, %v304
        %vm313 = vcmp.lt.s32.totalorder %v280, %v304
        %vm314 = vcmp.lt.s32.totalorder %v281, %v304
        %vm315 = vcmp.lt.s32.totalorder %v282, %v304
        %vm316 = vcmp.lt.s32.totalorder %v283, %v304
        %vm317 = vcmp.lt.s32.totalorder %v284, %v304
        %vm318 = vcmp.lt.s32.totalorder %v285, %v304
        %vm319 = vcmp.lt.s32.totalorder %v286, %v304
        %vm320 = vcmp.lt.s32.totalorder %v287, %v304
        %vm321 = vmand %vm288, %vm305
        %vm322 = vmand %vm289, %vm306
        %vm323 = vmand %vm290, %vm307
        %vm324 = vmand %vm291, %vm308
        %vm325 = vmand %vm292, %vm309
        %vm326 = vmand %vm293, %vm310
        %vm327 = vmand %vm294, %vm311
        %vm328 = vmand %vm295, %vm312
        %vm329 = vmand %vm296, %vm313
        %vm330 = vmand %vm297, %vm314
        %vm331 = vmand %vm298, %vm315
        %vm332 = vmand %vm299, %vm316
        %vm333 = vmand %vm300, %vm317
        %vm334 = vmand %vm301, %vm318
        %vm335 = vmand %vm302, %vm319
        %vm336 = vmand %vm303, %vm320
        %v337 = vsel %vm321, 1, 0
        %v338 = vsel %vm322, 1, 0
        %v339 = vsel %vm323, 1, 0
        %v340 = vsel %vm324, 1, 0
        %v341 = vsel %vm325, 1, 0
        %v342 = vsel %vm326, 1, 0
        %v343 = vsel %vm327, 1, 0
        %v344 = vsel %vm328, 1, 0
        %v345 = vsel %vm329, 1, 0
        %v346 = vsel %vm330, 1, 0
        %v347 = vsel %vm331, 1, 0
        %v348 = vsel %vm332, 1, 0
        %v349 = vsel %vm333, 1, 0
        %v350 = vsel %vm334, 1, 0
        %v351 = vsel %vm335, 1, 0
        %v352 = vsel %vm336, 1, 0
        %v353 = vcvt.s32.f32 %v337
        %v354 = vcvt.s32.f32 %v338
        %v355 = vcvt.s32.f32 %v339
        %v356 = vcvt.s32.f32 %v340
        %v357 = vcvt.s32.f32 %v341
        %v358 = vcvt.s32.f32 %v342
        %v359 = vcvt.s32.f32 %v343
        %v360 = vcvt.s32.f32 %v344
        %v361 = vcvt.s32.f32 %v345
        %v362 = vcvt.s32.f32 %v346
        %v363 = vcvt.s32.f32 %v347
        %v364 = vcvt.s32.f32 %v348
        %v365 = vcvt.s32.f32 %v349
        %v366 = vcvt.s32.f32 %v350
        %v367 = vcvt.s32.f32 %v351
        %v368 = vcvt.s32.f32 %v352
        %v369 = vld [vmem:[%s239] sm:$0xff]
        %v370 = vld [vmem:[%s239 + $0x8] sm:$0xff]
        %v371 = vld [vmem:[%s239 + $0x10] sm:$0xff]
        %v372 = vld [vmem:[%s239 + $0x18] sm:$0xff]
        %v373 = vld [vmem:[%s239 + $0x20] sm:$0xff]
        %v374 = vld [vmem:[%s239 + $0x28] sm:$0xff]
        %v375 = vld [vmem:[%s239 + $0x30] sm:$0xff]
        %v376 = vld [vmem:[%s239 + $0x38] sm:$0xff]
        %v377 = vld [vmem:[%s239 + $0x40] sm:$0xff]
        %v378 = vld [vmem:[%s239 + $0x48] sm:$0xff]
        %v379 = vld [vmem:[%s239 + $0x50] sm:$0xff]
        %v380 = vld [vmem:[%s239 + $0x58] sm:$0xff]
        %v381 = vld [vmem:[%s239 + $0x60] sm:$0xff]
        %v382 = vld [vmem:[%s239 + $0x68] sm:$0xff]
        %v383 = vld [vmem:[%s239 + $0x70] sm:$0xff]
        %v384 = vld [vmem:[%s239 + $0x78] sm:$0xff]
        %v385 = vld [vmem:[%s2] sm:$0xff]
        %v386 = vld [vmem:[%s3] sm:$0x1]
        %v388 = vlaneseq
        %v389 = vshrl.u32 %v388, 7
        %v390 = vsub.s32 0, %v389
        %v391 = vrot.slane %v386, %v390
        %vm393 = vcmask 64512
        %v395 = vsel %vm393, %v369, 0
        %v398 = vsel %vm393, %v370, 0
        %v401 = vsel %vm393, %v371, 0
        %v404 = vsel %vm393, %v372, 0
        %v407 = vsel %vm393, %v373, 0
        %v410 = vsel %vm393, %v374, 0
        %v413 = vsel %vm393, %v375, 0
        %v416 = vsel %vm393, %v376, 0
        %v419 = vsel %vm393, %v377, 0
        %v422 = vsel %vm393, %v378, 0
        %v425 = vsel %vm393, %v379, 0
        %v428 = vsel %vm393, %v380, 0
        %v431 = vsel %vm393, %v381, 0
        %v434 = vsel %vm393, %v382, 0
        %v437 = vsel %vm393, %v383, 0
        %v440 = vsel %vm393, %v384, 0
        %442 = vmatprep.subr.mxu0 0.0
        %443 = vmatpush1.msra.mxu0 %v385
        %444 = vmatprep.subr.mxu0 0.0
        %445 = vmatpush1.msra.mxu0 0.0
        %446 = vmatprep.subr.mxu0 0.0
        %447 = vmatpush1.msra.mxu0 0.0
        %448 = vmatprep.subr.mxu0 0.0
        %449 = vmatpush1.msra.mxu0 0.0
        %450 = vmatprep.subr.mxu0 0.0
        %451 = vmatpush1.msra.mxu0 0.0
        %452 = vmatprep.subr.mxu0 0.0
        %453 = vmatpush1.msra.mxu0 0.0
        %454 = vmatprep.subr.mxu0 0.0
        %455 = vmatpush1.msra.mxu0 0.0
        %456 = vmatprep.subr.mxu0 0.0
        %457 = vmatpush1.msra.mxu0 0.0
        %458 = vmatprep.subr.mxu0 0.0
        %459 = vmatpush1.msra.mxu0 0.0
        %460 = vmatprep.subr.mxu0 0.0
        %461 = vmatpush1.msra.mxu0 0.0
        %462 = vmatprep.subr.mxu0 0.0
        %463 = vmatpush1.msra.mxu0 0.0
        %464 = vmatprep.subr.mxu0 0.0
        %465 = vmatpush1.msra.mxu0 0.0
        %466 = vmatprep.subr.mxu0 0.0
        %467 = vmatpush1.msra.mxu0 0.0
        %468 = vmatprep.subr.mxu0 0.0
        %469 = vmatpush1.msra.mxu0 0.0
        %470 = vmatprep.subr.mxu0 0.0
        %471 = vmatpush1.msra.mxu0 0.0
        %472 = vmatprep.subr.mxu0 0.0
        %473 = vmatpush1.msra.mxu0 0.0
        %474 = vmatprep.subr.mxu0 0.0
        %475 = vmatpush1.msra.mxu0 0.0
        %476 = vmatprep.subr.mxu0 0.0
        %477 = vmatpush1.msra.mxu0 0.0
        %478 = vmatprep.subr.mxu0 0.0
        %479 = vmatpush1.msra.mxu0 0.0
        %480 = vmatprep.subr.mxu0 0.0
        %481 = vmatpush1.msra.mxu0 0.0
        %482 = vmatprep.subr.mxu0 0.0
        %483 = vmatpush1.msra.mxu0 0.0
        %484 = vmatprep.subr.mxu0 0.0
        %485 = vmatpush1.msra.mxu0 0.0
        %486 = vmatprep.subr.mxu0 0.0
        %487 = vmatpush1.msra.mxu0 0.0
        %488 = vmatprep.subr.mxu0 0.0
        %489 = vmatpush1.msra.mxu0 0.0
        %490 = vmatprep.subr.mxu0 0.0
        %491 = vmatpush1.msra.mxu0 0.0
        %492 = vmatprep.subr.mxu0 0.0
        %493 = vmatpush1.msra.mxu0 0.0
        %494 = vmatprep.subr.mxu0 0.0
        %495 = vmatpush1.msra.mxu0 0.0
        %496 = vmatprep.subr.mxu0 0.0
        %497 = vmatpush1.msra.mxu0 0.0
        %498 = vmatprep.subr.mxu0 0.0
        %499 = vmatpush1.msra.mxu0 0.0
        %500 = vmatprep.subr.mxu0 0.0
        %501 = vmatpush1.msra.mxu0 0.0
        %502 = vmatprep.subr.mxu0 0.0
        %503 = vmatpush1.msra.mxu0 0.0
        %504 = vmatprep.subr.mxu0 0.0
        %505 = vmatpush1.msra.mxu0 0.0
        %506 = vmatprep.mubr.f32.mxu0 0.0
        %507 = vmatmul.mubr.f32.gmra.mrb[0].mxu0 %v395
        %v508 = vpop.f32.mrb[0].mxu0
        %v509 = vadd.f32 %v391, %v508
        %v510 = vpop.f32.mrb[0].mxu0
        %511 = vmatprep.mubr.f32.mxu0 0.0
        %512 = vmatmul.mubr.f32.gmra.mrb[0].mxu0 %v398
        %v513 = vpop.f32.mrb[0].mxu0
        %v514 = vadd.f32 %v391, %v513
        %v515 = vpop.f32.mrb[0].mxu0
        %516 = vmatprep.mubr.f32.mxu0 0.0
        %517 = vmatmul.mubr.f32.gmra.mrb[0].mxu0 %v401
        %v518 = vpop.f32.mrb[0].mxu0
        %v519 = vadd.f32 %v391, %v518
        %v520 = vpop.f32.mrb[0].mxu0
        %521 = vmatprep.mubr.f32.mxu0 0.0
        %522 = vmatmul.mubr.f32.gmra.mrb[0].mxu0 %v404
        %v523 = vpop.f32.mrb[0].mxu0
        %v524 = vadd.f32 %v391, %v523
        %v525 = vpop.f32.mrb[0].mxu0
        %526 = vmatprep.mubr.f32.mxu0 0.0
        %527 = vmatmul.mubr.f32.gmra.mrb[0].mxu0 %v407
        %v528 = vpop.f32.mrb[0].mxu0
        %v529 = vadd.f32 %v391, %v528
        %v530 = vpop.f32.mrb[0].mxu0
        %531 = vmatprep.mubr.f32.mxu0 0.0
        %532 = vmatmul.mubr.f32.gmra.mrb[0].mxu0 %v410
        %v533 = vpop.f32.mrb[0].mxu0
        %v534 = vadd.f32 %v391, %v533
        %v535 = vpop.f32.mrb[0].mxu0
        %536 = vmatprep.mubr.f32.mxu0 0.0
        %537 = vmatmul.mubr.f32.gmra.mrb[0].mxu0 %v413
        %v538 = vpop.f32.mrb[0].mxu0
        %v539 = vadd.f32 %v391, %v538
        %v540 = vpop.f32.mrb[0].mxu0
        %541 = vmatprep.mubr.f32.mxu0 0.0
        %542 = vmatmul.mubr.f32.gmra.mrb[0].mxu0 %v416
        %v543 = vpop.f32.mrb[0].mxu0
        %v544 = vadd.f32 %v391, %v543
        %v545 = vpop.f32.mrb[0].mxu0
        %546 = vmatprep.mubr.f32.mxu0 0.0
        %547 = vmatmul.mubr.f32.gmra.mrb[0].mxu0 %v419
        %v548 = vpop.f32.mrb[0].mxu0
        %v549 = vadd.f32 %v391, %v548
        %v550 = vpop.f32.mrb[0].mxu0
        %551 = vmatprep.mubr.f32.mxu0 0.0
        %552 = vmatmul.mubr.f32.gmra.mrb[0].mxu0 %v422
        %v553 = vpop.f32.mrb[0].mxu0
        %v554 = vadd.f32 %v391, %v553
        %v555 = vpop.f32.mrb[0].mxu0
        %556 = vmatprep.mubr.f32.mxu0 0.0
        %557 = vmatmul.mubr.f32.gmra.mrb[0].mxu0 %v425
        %v558 = vpop.f32.mrb[0].mxu0
        %v559 = vadd.f32 %v391, %v558
        %v560 = vpop.f32.mrb[0].mxu0
        %561 = vmatprep.mubr.f32.mxu0 0.0
        %562 = vmatmul.mubr.f32.gmra.mrb[0].mxu0 %v428
        %v563 = vpop.f32.mrb[0].mxu0
        %v564 = vadd.f32 %v391, %v563
        %v565 = vpop.f32.mrb[0].mxu0
        %566 = vmatprep.mubr.f32.mxu0 0.0
        %567 = vmatmul.mubr.f32.gmra.mrb[0].mxu0 %v431
        %v568 = vpop.f32.mrb[0].mxu0
        %v569 = vadd.f32 %v391, %v568
        %v570 = vpop.f32.mrb[0].mxu0
        %571 = vmatprep.mubr.f32.mxu0 0.0
        %572 = vmatmul.mubr.f32.gmra.mrb[0].mxu0 %v434
        %v573 = vpop.f32.mrb[0].mxu0
        %v574 = vadd.f32 %v391, %v573
        %v575 = vpop.f32.mrb[0].mxu0
        %576 = vmatprep.mubr.f32.mxu0 0.0
        %577 = vmatmul.mubr.f32.gmra.mrb[0].mxu0 %v437
        %v578 = vpop.f32.mrb[0].mxu0
        %v579 = vadd.f32 %v391, %v578
        %v580 = vpop.f32.mrb[0].mxu0
        %581 = vmatprep.mubr.f32.mxu0 0.0
        %582 = vmatmul.mubr.f32.gmra.mrb[0].mxu0 %v440
        %v583 = vpop.f32.mrb[0].mxu0
        %v584 = vadd.f32 %v391, %v583
        %v585 = vpop.f32.mrb[0].mxu0
        %586 = vdwg.mxu0
        %v587 = vmul.f32 %v509, %v353
        %v588 = vmul.f32 %v514, %v354
        %v589 = vmul.f32 %v519, %v355
        %v590 = vmul.f32 %v524, %v356
        %v591 = vmul.f32 %v529, %v357
        %v592 = vmul.f32 %v534, %v358
        %v593 = vmul.f32 %v539, %v359
        %v594 = vmul.f32 %v544, %v360
        %v595 = vmul.f32 %v549, %v361
        %v596 = vmul.f32 %v554, %v362
        %v597 = vmul.f32 %v559, %v363
        %v598 = vmul.f32 %v564, %v364
        %v599 = vmul.f32 %v569, %v365
        %v600 = vmul.f32 %v574, %v366
        %v601 = vmul.f32 %v579, %v367
        %v602 = vmul.f32 %v584, %v368
        %vm603 = vcmask 261120
        %604 = vst.msk [vmem:[%s249] sm:$0xff] %vm603, %v587
        %605 = vst.msk [vmem:[%s249 + $0x8] sm:$0xff] %vm603, %v588
        %606 = vst.msk [vmem:[%s249 + $0x10] sm:$0xff] %vm603, %v589
        %607 = vst.msk [vmem:[%s249 + $0x18] sm:$0xff] %vm603, %v590
        %608 = vst.msk [vmem:[%s249 + $0x20] sm:$0xff] %vm603, %v591
        %609 = vst.msk [vmem:[%s249 + $0x28] sm:$0xff] %vm603, %v592
        %610 = vst.msk [vmem:[%s249 + $0x30] sm:$0xff] %vm603, %v593
        %611 = vst.msk [vmem:[%s249 + $0x38] sm:$0xff] %vm603, %v594
        %612 = vst.msk [vmem:[%s249 + $0x40] sm:$0xff] %vm603, %v595
        %613 = vst.msk [vmem:[%s249 + $0x48] sm:$0xff] %vm603, %v596
        %614 = vst.msk [vmem:[%s249 + $0x50] sm:$0xff] %vm603, %v597
        %615 = vst.msk [vmem:[%s249 + $0x58] sm:$0xff] %vm603, %v598
        %616 = vst.msk [vmem:[%s249 + $0x60] sm:$0xff] %vm603, %v599
        %617 = vst.msk [vmem:[%s249 + $0x68] sm:$0xff] %vm603, %v600
        %618 = vst.msk [vmem:[%s249 + $0x70] sm:$0xff] %vm603, %v601
        %619 = vst.msk [vmem:[%s249 + $0x78] sm:$0xff] %vm603, %v602
        %s620 = smul.u32 16, %s21
        %p621 = scmp.lt.s32.totalorder %s20, 1
        %s622 = scalar_select %p621, %s20, 1
        %p623 = scmp.lt.s32.totalorder %s620, 47
        %s624 = scalar_select %p623, %s620, 47
        %s625 = smul.addr %s622, 48
        %s626 = sadd.s32 %s624, %s625
        %s627 = smul.addr %s626, 8
        %s628 = scalar_lea.vmem %s4, %s627
        // Predicated region
        $region41: #{posterior_encoder_forward.5} parent=35 // pred_check
          %p629 = pneg %p139
        $region42: #{posterior_encoder_forward.5} parent=35 // pred_check_branch
          %631 = sbr.rel (%p629) target = $region44
        $region43: #{posterior_encoder_forward.5} parent=35 // pred_region
          %s632 = smul.u32 16, %s21
        $region44: #{posterior_encoder_forward.5} parent=35 // pred_fallthru
          _
      $region36: #{posterior_encoder_forward.5} parent=5 // pred_fallthru
        _
      %p633 = scmp.le.s32.totalorder 2, %s11
      // Predicated region
      $region45: #{posterior_encoder_forward.5} parent=5 // pred_check
        %p634 = pneg %p633
      $region46: #{posterior_encoder_forward.5} parent=5 // pred_check_branch
        %636 = sbr.rel (%p634) target = $region48
      $region47: #{posterior_encoder_forward.5} parent=5 // pred_region
        %s637 = ssub.s32 %s11, 2
        // Predicated region
        $region49: #{posterior_encoder_forward.5} parent=47 // pred_check
          %p638 = pneg %p145
        $region50: #{posterior_encoder_forward.5} parent=47 // pred_check_branch
          %640 = sbr.rel (%p638) target = $region52
        $region51: #{posterior_encoder_forward.5} parent=47 // pred_region
          %s641 = smul.u32 16, %s23
          %p642 = scmp.lt.s32.totalorder %s22, 1
          %s643 = scalar_select %p642, %s22, 1
          %p644 = scmp.lt.s32.totalorder %s641, 47
          %s645 = scalar_select %p644, %s641, 47
          %s646 = smul.addr %s643, 48
          %s647 = sadd.s32 %s645, %s646
          %s648 = smul.addr %s647, 8
          %s649 = scalar_lea.vmem %s4, %s648
        $region52: #{posterior_encoder_forward.5} parent=47 // pred_fallthru
          _
      $region48: #{posterior_encoder_forward.5} parent=5 // pred_fallthru
        _
    $region6: #{posterior_encoder_forward.5} parent=1 // loop_footer
      %s15 = sadd.s32 1, %s11
    $region7: #{posterior_encoder_forward.5} parent=1 // loop_footer_branch
      %10 = sbr.rel target = $region3
    $region8: #{posterior_encoder_forward.5} parent=1 // loop_exit
      _
    %650 = vsyncpa [#allocation3], 1
    %s651 = scalar_lea.sflag [#allocation3], 1
    %652 = vsyncpa %s651, 1

// kernel: posterior_encoder_forward.6
$region0: #{posterior_encoder_forward.6}
  #allocation0 [shape = 'u32[]', space=smem, size = 0x4, offset = 0x4, fixed_abs, tag = 'smem constant byte address 0x4 - core index']
  #allocation1 [shape = 'u32[144,128]{1,0:T(1,128)}', space=vmem, size = 0x12000, scoped, tag = 'internal scratch']
  %s0 = inlined_call_operand.vmem [shape: s32[2], index: 0, kind: input, shape index: {}]
  %s1 = inlined_call_operand.vmem [shape: f32[2,384,32], index: 1, kind: input, shape index: {}, may-alias: {1,6}]
  %s2 = inlined_call_operand.vmem [shape: f32[5,32,64], index: 2, kind: input, shape index: {}]
  %s3 = inlined_call_operand.vmem [shape: f32[1,64], index: 3, kind: input, shape index: {}]
  %s4 = inlined_call_operand.vmem [shape: f32[32,64], index: 4, kind: input, shape index: {}]
  %s5 = inlined_call_operand.vmem [shape: f32[1,64], index: 5, kind: input, shape index: {}]
  %s6 = inlined_call_operand.vmem [shape: f32[2,384,32], index: 6, kind: output, shape index: {0}, may-alias: {1,6}]
  %s7 = inlined_call_operand.vmem [shape: f32[2,128,32], index: 7, kind: output, shape index: {1}]
  %8 = xla_tuple %s6, %s7
  %s9 = sld [smem:[#allocation0]]
  $region69: #{posterior_encoder_forward.6} parent=0
    _
  %s11 = ssub.s32 1, %s9
  %s12 = scalar_select 0, %s11, %s9
  $region1: #{posterior_encoder_forward.6} parent=0
    #allocation2 [shape = 'u8[512]{0}', space=smem, size = 0x200, scoped, tag = 'input window, operand 0, single buffered']
    #allocation3 [shape = 's32[2]{0}', space=sflag, size = 0x8, scoped, tag = 'scoped memory for posterior_encoder_forward.6']
    %13 = vsyncpa [#allocation3], 0
    loop: start=0, step=1, limit=4
    $region2: #{posterior_encoder_forward.6} parent=1 // loop_pre_header
      _
    $region3: #{posterior_encoder_forward.6} parent=1 // loop_header
      %s15 = sphi 0, %s19
      %p16 = scmp.ge.s32.totalorder %s15, 4
      %s22 = sphi 0, %s34
      %s23 = sphi 0, %s30
      %s24 = sphi 0, %s22
      %s25 = sphi 0, %s23
      %s26 = sphi 0, %s24
      %s27 = sphi 0, %s25
      %s35 = sphi 0, %s35
      %s37 = sphi 0, %s35
      %s38 = sphi 0, %s37
      %s52 = sphi 0, %s38
      %s58 = sphi 0, %s60
      %s61 = sphi 0, %s58
      %s62 = sphi 0, %s61
      %s78 = sphi 0, %s62
      %s82 = sphi 0, %s82
      %s84 = sphi 0, %s82
      %s85 = sphi 0, %s84
      %s99 = sphi 0, %s85
      %s103 = sphi 0, %s103
      %s105 = sphi 0, %s103
      %s106 = sphi 0, %s105
      %s120 = sphi 0, %s106
      %s124 = sphi 0, %s124
      %s126 = sphi 0, %s124
      %s127 = sphi 0, %s126
      %s141 = sphi 0, %s127
      %s145 = sphi 0, %s145
      %s147 = sphi 0, %s145
      %s148 = sphi 0, %s147
      %s162 = sphi 0, %s148
      %s172 = sphi 0, %s174
      %s175 = sphi 0, %s172
      %s176 = sphi 0, %s175
      %s192 = sphi 0, %s176
      %s200 = sphi 0, %s202
      %s203 = sphi 0, %s200
      %s204 = sphi 0, %s203
      %s220 = sphi 0, %s204
    $region4: #{posterior_encoder_forward.6} parent=1 // loop_header_branch
      %18 = sbr.rel (%p16) target = $region8
    $region5: #{posterior_encoder_forward.6} parent=1 // loop_body
      %s20 = ssub.s32 %s15, 1
      %s21 = ssub.s32 %s15, 2
      %s28 = sadd.s32 1, %s23
      %p29 = scmp.ge.s32.totalorder %s28, 1
      %s30 = scalar_select %p29, 0, %s28
      %s31 = sadd.s32 1, %s22
      %s32 = scalar_select %p29, %s31, %s22
      %p33 = scmp.ge.s32.totalorder %s32, 2
      %s34 = scalar_select %p33, 0, %s32
      %s36 = sadd.s32 %s35, 1
      %p39 = scmp.eq.s32.totalorder %s15, 1
      %p40 = scmp.ne.s32.totalorder %s35, %s37
      %p41 = scmp.eq.s32.totalorder %s15, 0
      %p42 = por %p40, %p41
      %p43 = scmp.ne.s32.totalorder %s35, %s37
      %p44 = scmp.eq.s32.totalorder %s20, 1
      %p45 = por %p43, %p44
      %p46 = scmp.ne.s32.totalorder %s37, %s38
      %p47 = scmp.eq.s32.totalorder %s20, 0
      %p48 = por %p46, %p47
      %p49 = scmp.ne.s32.totalorder %s37, %s38
      %p50 = scmp.eq.s32.totalorder %s21, 1
      %p51 = por %p49, %p50
      %p53 = scmp.ne.s32.totalorder %s38, %s52
      %p54 = scmp.eq.s32.totalorder %s21, 0
      %p55 = por %p53, %p54
      %s56 = ssub.s32 %s22, %s34
      %p57 = scmp.eq.s32.totalorder %s56, 0
      %s59 = sadd.s32 %s58, 1
      %s60 = scalar_select %p57, %s58, %s59
      %p63 = pneg %p57
      %p64 = scmp.eq.s32.totalorder %s15, 1
      %p65 = por %p63, %p64
      %p66 = scmp.ne.s32.totalorder %s58, %s61
      %p67 = scmp.eq.s32.totalorder %s15, 0
      %p68 = por %p66, %p67
      %p69 = scmp.ne.s32.totalorder %s58, %s61
      %p70 = scmp.eq.s32.totalorder %s20, 1
      %p71 = por %p69, %p70
      %p72 = scmp.ne.s32.totalorder %s61, %s62
      %p73 = scmp.eq.s32.totalorder %s20, 0
      %p74 = por %p72, %p73
      %p75 = scmp.ne.s32.totalorder %s61, %s62
      %p76 = scmp.eq.s32.totalorder %s21, 1
      %p77 = por %p75, %p76
      %p79 = scmp.ne.s32.totalorder %s62, %s78
      %p80 = scmp.eq.s32.totalorder %s21, 0
      %p81 = por %p79, %p80
      %s83 = sadd.s32 %s82, 1
      %p86 = scmp.eq.s32.totalorder %s15, 1
      %p87 = scmp.ne.s32.totalorder %s82, %s84
      %p88 = scmp.eq.s32.totalorder %s15, 0
      %p89 = por %p87, %p88
      %p90 = scmp.ne.s32.totalorder %s82, %s84
      %p91 = scmp.eq.s32.totalorder %s20, 1
      %p92 = por %p90, %p91
      %p93 = scmp.ne.s32.totalorder %s84, %s85
      %p94 = scmp.eq.s32.totalorder %s20, 0
      %p95 = por %p93, %p94
      %p96 = scmp.ne.s32.totalorder %s84, %s85
      %p97 = scmp.eq.s32.totalorder %s21, 1
      %p98 = por %p96, %p97
      %p100 = scmp.ne.s32.totalorder %s85, %s99
      %p101 = scmp.eq.s32.totalorder %s21, 0
      %p102 = por %p100, %p101
      %s104 = sadd.s32 %s103, 1
      %p107 = scmp.eq.s32.totalorder %s15, 1
      %p108 = scmp.ne.s32.totalorder %s103, %s105
      %p109 = scmp.eq.s32.totalorder %s15, 0
      %p110 = por %p108, %p109
      %p111 = scmp.ne.s32.totalorder %s103, %s105
      %p112 = scmp.eq.s32.totalorder %s20, 1
      %p113 = por %p111, %p112
      %p114 = scmp.ne.s32.totalorder %s105, %s106
      %p115 = scmp.eq.s32.totalorder %s20, 0
      %p116 = por %p114, %p115
      %p117 = scmp.ne.s32.totalorder %s105, %s106
      %p118 = scmp.eq.s32.totalorder %s21, 1
      %p119 = por %p117, %p118
      %p121 = scmp.ne.s32.totalorder %s106, %s120
      %p122 = scmp.eq.s32.totalorder %s21, 0
      %p123 = por %p121, %p122
      %s125 = sadd.s32 %s124, 1
      %p128 = scmp.eq.s32.totalorder %s15, 1
      %p129 = scmp.ne.s32.totalorder %s124, %s126
      %p130 = scmp.eq.s32.totalorder %s15, 0
      %p131 = por %p129, %p130
      %p132 = scmp.ne.s32.totalorder %s124, %s126
      %p133 = scmp.eq.s32.totalorder %s20, 1
      %p134 = por %p132, %p133
      %p135 = scmp.ne.s32.totalorder %s126, %s127
      %p136 = scmp.eq.s32.totalorder %s20, 0
      %p137 = por %p135, %p136
      %p138 = scmp.ne.s32.totalorder %s126, %s127
      %p139 = scmp.eq.s32.totalorder %s21, 1
      %p140 = por %p138, %p139
      %p142 = scmp.ne.s32.totalorder %s127, %s141
      %p143 = scmp.eq.s32.totalorder %s21, 0
      %p144 = por %p142, %p143
      %s146 = sadd.s32 %s145, 1
      %p149 = scmp.eq.s32.totalorder %s15, 1
      %p150 = scmp.ne.s32.totalorder %s145, %s147
      %p151 = scmp.eq.s32.totalorder %s15, 0
      %p152 = por %p150, %p151
      %p153 = scmp.ne.s32.totalorder %s145, %s147
      %p154 = scmp.eq.s32.totalorder %s20, 1
      %p155 = por %p153, %p154
      %p156 = scmp.ne.s32.totalorder %s147, %s148
      %p157 = scmp.eq.s32.totalorder %s20, 0
      %p158 = por %p156, %p157
      %p159 = scmp.ne.s32.totalorder %s147, %s148
      %p160 = scmp.eq.s32.totalorder %s21, 1
      %p161 = por %p159, %p160
      %p163 = scmp.ne.s32.totalorder %s148, %s162
      %p164 = scmp.eq.s32.totalorder %s21, 0
      %p165 = por %p163, %p164
      %s166 = sadd.s32 %s23, 1
      %s167 = sadd.s32 %s30, 1
      %s168 = ssub.s32 %s22, %s34
      %s169 = ssub.s32 %s166, %s167
      %s170 = sor.u32 %s168, %s169
      %p171 = scmp.eq.s32.totalorder %s170, 0
      %s173 = sadd.s32 %s172, 1
      %s174 = scalar_select %p171, %s172, %s173
      %p177 = pneg %p171
      %p178 = scmp.eq.s32.totalorder %s15, 1
      %p179 = por %p177, %p178
      %p180 = scmp.ne.s32.totalorder %s172, %s175
      %p181 = scmp.eq.s32.totalorder %s15, 0
      %p182 = por %p180, %p181
      %p183 = scmp.ne.s32.totalorder %s172, %s175
      %p184 = scmp.eq.s32.totalorder %s20, 1
      %p185 = por %p183, %p184
      %p186 = scmp.ne.s32.totalorder %s175, %s176
      %p187 = scmp.eq.s32.totalorder %s20, 0
      %p188 = por %p186, %p187
      %p189 = scmp.ne.s32.totalorder %s175, %s176
      %p190 = scmp.eq.s32.totalorder %s21, 1
      %p191 = por %p189, %p190
      %p193 = scmp.ne.s32.totalorder %s176, %s192
      %p194 = scmp.eq.s32.totalorder %s21, 0
      %p195 = por %p193, %p194
      %s196 = ssub.s32 %s22, %s34
      %s197 = ssub.s32 %s23, %s30
      %s198 = sor.u32 %s196, %s197
      %p199 = scmp.eq.s32.totalorder %s198, 0
      %s201 = sadd.s32 %s200, 1
      %s202 = scalar_select %p199, %s200, %s201
      %p205 = pneg %p199
      %p206 = scmp.eq.s32.totalorder %s15, 1
      %p207 = por %p205, %p206
      %p208 = scmp.ne.s32.totalorder %s200, %s203
      %p209 = scmp.eq.s32.totalorder %s15, 0
      %p210 = por %p208, %p209
      %p211 = scmp.ne.s32.totalorder %s200, %s203
      %p212 = scmp.eq.s32.totalorder %s20, 1
      %p213 = por %p211, %p212
      %p214 = scmp.ne.s32.totalorder %s203, %s204
      %p215 = scmp.eq.s32.totalorder %s20, 0
      %p216 = por %p214, %p215
      %p217 = scmp.ne.s32.totalorder %s203, %s204
      %p218 = scmp.eq.s32.totalorder %s21, 1
      %p219 = por %p217, %p218
      %p221 = scmp.ne.s32.totalorder %s204, %s220
      %p222 = scmp.eq.s32.totalorder %s21, 0
      %p223 = por %p221, %p222
      %p224 = scmp.le.s32.totalorder 1, %s15
      %p225 = scmp.lt.s32.totalorder %s15, 3
      %p226 = pnand %p224, %p225
      %p227 = pneg %p226
      // Predicated region
      $region9: #{posterior_encoder_forward.6} parent=5 // pred_check
        _
      $region10: #{posterior_encoder_forward.6} parent=5 // pred_check_branch
        %229 = sbr.rel (%p226) target = $region12
      $region11: #{posterior_encoder_forward.6} parent=5 // pred_region
        %s230 = ssub.s32 %s15, 1
        // Predicated region
        $region13: #{posterior_encoder_forward.6} parent=11 // pred_check
          %p231 = pneg %p48
        $region14: #{posterior_encoder_forward.6} parent=11 // pred_check_branch
          %233 = sbr.rel (%p231) target = $region16
        $region15: #{posterior_encoder_forward.6} parent=11 // pred_region
          %s235 = ssub.s32 16, 16
          %236 = vsyncadd [#allocation3], %s235
          %s238 = sshll.u32 %s0, 4
          %s239 = int_to_ptr.vmem [resolvable:$true] %s238
          %241 = dma.vmem_to_smem %s239, 16, [#allocation2], [#allocation3]
        $region16: #{posterior_encoder_forward.6} parent=11 // pred_fallthru
          _
        // Predicated region
        $region17: #{posterior_encoder_forward.6} parent=11 // pred_check
          %p242 = pneg %p95
        $region18: #{posterior_encoder_forward.6} parent=11 // pred_check_branch
          %244 = sbr.rel (%p242) target = $region20
        $region19: #{posterior_encoder_forward.6} parent=11 // pred_region
          _
        $region20: #{posterior_encoder_forward.6} parent=11 // pred_fallthru
          _
        // Predicated region
        $region21: #{posterior_encoder_forward.6} parent=11 // pred_check
          %p245 = pneg %p116
        $region22: #{posterior_encoder_forward.6} parent=11 // pred_check_branch
          %247 = sbr.rel (%p245) target = $region24
        $region23: #{posterior_encoder_forward.6} parent=11 // pred_region
          _
        $region24: #{posterior_encoder_forward.6} parent=11 // pred_fallthru
          _
        // Predicated region
        $region25: #{posterior_encoder_forward.6} parent=11 // pred_check
          %p248 = pneg %p137
        $region26: #{posterior_encoder_forward.6} parent=11 // pred_check_branch
          %250 = sbr.rel (%p248) target = $region28
        $region27: #{posterior_encoder_forward.6} parent=11 // pred_region
          _
        $region28: #{posterior_encoder_forward.6} parent=11 // pred_fallthru
          _
        // Predicated region
        $region29: #{posterior_encoder_forward.6} parent=11 // pred_check
          %p251 = pneg %p158
        $region30: #{posterior_encoder_forward.6} parent=11 // pred_check_branch
          %253 = sbr.rel (%p251) target = $region32
        $region31: #{posterior_encoder_forward.6} parent=11 // pred_region
          _
        $region32: #{posterior_encoder_forward.6} parent=11 // pred_fallthru
          _
      $region12: #{posterior_encoder_forward.6} parent=5 // pred_fallthru
        _
      %p254 = scmp.lt.s32.totalorder %s15, 2
      // Predicated region
      $region33: #{posterior_encoder_forward.6} parent=5 // pred_check
        %p255 = pneg %p254
      $region34: #{posterior_encoder_forward.6} parent=5 // pred_check_branch
        %257 = sbr.rel (%p255) target = $region36
      $region35: #{posterior_encoder_forward.6} parent=5 // pred_region
        // Predicated region
        $region37: #{posterior_encoder_forward.6} parent=35 // pred_check
          %p258 = pneg %p68
        $region38: #{posterior_encoder_forward.6} parent=35 // pred_check_branch
          %260 = sbr.rel (%p258) target = $region40
        $region39: #{posterior_encoder_forward.6} parent=35 // pred_region
          %p261 = scmp.lt.s32.totalorder %s22, 1
          %s262 = scalar_select %p261, %s22, 1
          %s263 = smul.addr %s262, 48
          %s264 = smul.addr %s263, 8
          %s265 = scalar_lea.vmem %s1, %s264
        $region40: #{posterior_encoder_forward.6} parent=35 // pred_fallthru
          _
      $region36: #{posterior_encoder_forward.6} parent=5 // pred_fallthru
        _
      %p266 = scmp.le.s32.totalorder 1, %s15
      %p267 = scmp.lt.s32.totalorder %s15, 3
      %p268 = pnand %p266, %p267
      %p269 = pneg %p268
      // Predicated region
      $region41: #{posterior_encoder_forward.6} parent=5 // pred_check
        _
      $region42: #{posterior_encoder_forward.6} parent=5 // pred_check_branch
        %271 = sbr.rel (%p268) target = $region44
      $region43: #{posterior_encoder_forward.6} parent=5 // pred_region
        %s272 = ssub.s32 %s15, 1
        // Predicated region
        $region45: #{posterior_encoder_forward.6} parent=43 // pred_check
          %p273 = pneg %p48
        $region46: #{posterior_encoder_forward.6} parent=43 // pred_check_branch
          %275 = sbr.rel (%p273) target = $region48
        $region47: #{posterior_encoder_forward.6} parent=43 // pred_region
          %276 = dma.done [#allocation3], 16
        $region48: #{posterior_encoder_forward.6} parent=43 // pred_fallthru
          _
        %277 = sfence
        %p278 = pneg %p48
        %p279 = pneg %p45
        %p280 = scmp.lt.s32.totalorder %s24, 1
        %s281 = scalar_select %p280, %s24, 1
        %s282 = smul.addr %s281, 48
        %s283 = smul.addr %s282, 8
        %s284 = scalar_lea.vmem %s1, %s283
        %p285 = pneg %p74
        %p286 = pneg %p71
        %p287 = pneg %p95
        %p288 = pneg %p92
        %p289 = pneg %p116
        %p290 = pneg %p113
        %p291 = pneg %p137
        %p292 = pneg %p134
        %p293 = pneg %p158
        %p294 = pneg %p155
        %p295 = pneg %p188
        %p296 = pneg %p185
        %s297 = sadd.s32 %s25, 1
        %s298 = smul.u32 16, %s297
        %p299 = scmp.lt.s32.totalorder %s24, 1
        %s300 = scalar_select %p299, %s24, 1
        %p301 = scmp.lt.s32.totalorder %s298, 47
        %s302 = scalar_select %p301, %s298, 47
        %s303 = smul.addr %s300, 48
        %s304 = sadd.s32 %s302, %s303
        %s305 = smul.addr %s304, 8
        %s306 = scalar_lea.vmem %s6, %s305
        %p307 = pneg %p216
        %p308 = pneg %p213
        %s309 = smul.u32 16, %s25
        %p310 = scmp.lt.s32.totalorder %s24, 1
        %s311 = scalar_select %p310, %s24, 1
        %p312 = scmp.lt.s32.totalorder %s309, 15
        %s313 = scalar_select %p312, %s309, 15
        %s314 = smul.addr %s311, 16
        %s315 = sadd.s32 %s313, %s314
        %s316 = smul.addr %s315, 8
        %s317 = scalar_lea.vmem %s7, %s316
        %p318 = scmp.lt.s32.totalorder %s24, 1
        %s319 = scalar_select %p318, %s24, 1
        %s320 = smul.addr %s319, 48
        %s321 = smul.addr %s320, 8
        %s322 = scalar_lea.vmem %s1, %s321
        %s323 = sadd.s32 %s25, 1
        %s324 = smul.u32 16, %s323
        %p325 = scmp.lt.s32.totalorder %s24, 1
        %s326 = scalar_select %p325, %s24, 1
        %p327 = scmp.lt.s32.totalorder %s324, 47
        %s328 = scalar_select %p327, %s324, 47
        %s329 = smul.addr %s326, 48
        %s330 = sadd.s32 %s328, %s329
        %s331 = smul.addr %s330, 8
        %s332 = scalar_lea.vmem %s6, %s331
        %s333 = sadd.s32 %s25, 1
        %s334 = smul.u32 16, %s333
        %s335 = smul.u32 16, %s25
        %p336 = scmp.lt.s32.totalorder %s24, 1
        %s337 = scalar_select %p336, %s24, 1
        %p338 = scmp.lt.s32.totalorder %s335, 15
        %s339 = scalar_select %p338, %s335, 15
        %s340 = smul.addr %s337, 16
        %s341 = sadd.s32 %s339, %s340
        %s342 = smul.addr %s341, 8
        %s343 = scalar_lea.vmem %s7, %s342
        %s344 = smul.u32 16, %s25
        %s345 = smul.u32 %s25, 128
        %s346 = sadd.s32 %s345, 128
        %v347 = vld [vmem:[%s3] sm:$0x1]
        %v349 = vlaneseq
        %v350 = vshrl.u32 %v349, 7
        %v351 = vsub.s32 0, %v350
        %v352 = vrot.slane %v347, %v351
        %v354 = vadd.f32 %v352, 0.0
        %s355 = sadd.s32 %s346, 4294967294
        %s356 = scalar_lea.vmem %s322, %s355
        %v357 = vld [vmem:[%s356] sm:$0xff]
        %v358 = vld [vmem:[%s356 + $0x8] sm:$0xff]
        %v359 = vld [vmem:[%s356 + $0x10] sm:$0xff]
        %v360 = vld [vmem:[%s356 + $0x18] sm:$0xff]
        %v361 = vld [vmem:[%s356 + $0x20] sm:$0xff]
        %v362 = vld [vmem:[%s356 + $0x28] sm:$0xff]
        %v363 = vld [vmem:[%s356 + $0x30] sm:$0xff]
        %v364 = vld [vmem:[%s356 + $0x38] sm:$0xff]
        %v365 = vld [vmem:[%s356 + $0x40] sm:$0xff]
        %v366 = vld [vmem:[%s356 + $0x48] sm:$0xff]
        %v367 = vld [vmem:[%s356 + $0x50] sm:$0xff]
        %v368 = vld [vmem:[%s356 + $0x58] sm:$0xff]
        %v369 = vld [vmem:[%s356 + $0x60] sm:$0xff]
        %v370 = vld [vmem:[%s356 + $0x68] sm:$0xff]
        %v371 = vld [vmem:[%s356 + $0x70] sm:$0xff]
        %v372 = vld [vmem:[%s356 + $0x78] sm:$0xff]
        %v373 = vld [vmem:[%s2] sm:$0xff]
        %v374 = vld [vmem:[%s2 + $0x8] sm:$0xff]
        %v375 = vld [vmem:[%s2 + $0x10] sm:$0xff]
        %v376 = vld [vmem:[%s2 + $0x18] sm:$0xff]
        %vm377 = vcmask 261120
        %v379 = vsel %vm377, %v357, 0
        %v382 = vsel %vm377, %v358, 0
        %v385 = vsel %vm377, %v359, 0
        %v388 = vsel %vm377, %v360, 0
        %v391 = vsel %vm377, %v361, 0
        %v394 = vsel %vm377, %v362, 0
        %v397 = vsel %vm377, %v363, 0
        %v400 = vsel %vm377, %v364, 0
        %v403 = vsel %vm377, %v365, 0
        %v406 = vsel %vm377, %v366, 0
        %v409 = vsel %vm377, %v367, 0
        %v412 = vsel %vm377, %v368, 0
        %v415 = vsel %vm377, %v369, 0
        %v418 = vsel %vm377, %v370, 0
        %v421 = vsel %vm377, %v371, 0
        %v424 = vsel %vm377, %v372, 0
        %426 = vmatprep.subr.mxu0 0.0
        %427 = vmatpush1.msra.mxu0 %v373
        %428 = vmatprep.subr.mxu0 0.0
        %429 = vmatpush1.msra.mxu0 %v374
        %430 = vmatprep.subr.mxu0 0.0
        %431 = vmatpush1.msra.mxu0 %v375
        %432 = vmatprep.subr.mxu0 0.0
        %433 = vmatpush1.msra.mxu0 %v376
        %434 = vmatprep.subr.mxu0 0.0
        %435 = vmatpush1.msra.mxu0 0.0
        %436 = vmatprep.subr.mxu0 0.0
        %437 = vmatpush1.msra.mxu0 0.0
        %438 = vmatprep.subr.mxu0 0.0
        %439 = vmatpush1.msra.mxu0 0.0
        %440 = vmatprep.subr.mxu0 0.0
        %441 = vmatpush1.msra.mxu0 0.0
        %442 = vmatprep.subr.mxu0 0.0
        %443 = vmatpush1.msra.mxu0 0.0
        %444 = vmatprep.subr.mxu0 0.0
        %445 = vmatpush1.msra.mxu0 0.0
        %446 = vmatprep.subr.mxu0 0.0
        %447 = vmatpush1.msra.mxu0 0.0
        %448 = vmatprep.subr.mxu0 0.0
        %449 = vmatpush1.msra.mxu0 0.0
        %450 = vmatprep.subr.mxu0 0.0
        %451 = vmatpush1.msra.mxu0 0.0
        %452 = vmatprep.subr.mxu0 0.0
        %453 = vmatpush1.msra.mxu0 0.0
        %454 = vmatprep.subr.mxu0 0.0
        %455 = vmatpush1.msra.mxu0 0.0
        %456 = vmatprep.subr.mxu0 0.0
        %457 = vmatpush1.msra.mxu0 0.0
        %458 = vmatprep.subr.mxu0 0.0
        %459 = vmatpush1.msra.mxu0 0.0
        %460 = vmatprep.subr.mxu0 0.0
        %461 = vmatpush1.msra.mxu0 0.0
        %462 = vmatprep.subr.mxu0 0.0
        %463 = vmatpush1.msra.mxu0 0.0
        %464 = vmatprep.subr.mxu0 0.0
        %465 = vmatpush1.msra.mxu0 0.0
        %466 = vmatprep.subr.mxu0 0.0
        %467 = vmatpush1.msra.mxu0 0.0
        %468 = vmatprep.subr.mxu0 0.0
        %469 = vmatpush1.msra.mxu0 0.0
        %470 = vmatprep.subr.mxu0 0.0
        %471 = vmatpush1.msra.mxu0 0.0
        %472 = vmatprep.subr.mxu0 0.0
        %473 = vmatpush1.msra.mxu0 0.0
        %474 = vmatprep.subr.mxu0 0.0
        %475 = vmatpush1.msra.mxu0 0.0
        %476 = vmatprep.subr.mxu0 0.0
        %477 = vmatpush1.msra.mxu0 0.0
        %478 = vmatprep.subr.mxu0 0.0
        %479 = vmatpush1.msra.mxu0 0.0
        %480 = vmatprep.subr.mxu0 0.0
        %481 = vmatpush1.msra.mxu0 0.0
        %482 = vmatprep.subr.mxu0 0.0
        %483 = vmatpush1.msra.mxu0 0.0
        %484 = vmatprep.subr.mxu0 0.0
        %485 = vmatpush1.msra.mxu0 0.0
        %486 = vmatprep.subr.mxu0 0.0
        %487 = vmatpush1.msra.mxu0 0.0
        %488 = vmatprep.subr.mxu0 0.0
        %489 = vmatpush1.msra.mxu0 0.0
        %490 = vmatprep.mubr.f32.mxu0 0.0
        %491 = vmatmul.mubr.f32.gmra.mrb[0].mxu0 %v379
        %v492 = vpop.f32.mrb[0].mxu0
        %v493 = vadd.f32 0.0, %v492
        %v494 = vpop.f32.mrb[0].mxu0
        %495 = vmatprep.mubr.f32.mxu0 0.0
        %496 = vmatmul.mubr.f32.gmra.mrb[0].mxu0 %v382
        %v497 = vpop.f32.mrb[0].mxu0
        %v498 = vadd.f32 0.0, %v497
        %v499 = vpop.f32.mrb[0].mxu0
        %500 = vmatprep.mubr.f32.mxu0 0.0
        %501 = vmatmul.mubr.f32.gmra.mrb[0].mxu0 %v385
        %v502 = vpop.f32.mrb[0].mxu0
        %v503 = vadd.f32 0.0, %v502
        %v504 = vpop.f32.mrb[0].mxu0
        %505 = vmatprep.mubr.f32.mxu0 0.0
        %506 = vmatmul.mubr.f32.gmra.mrb[0].mxu0 %v388
        %v507 = vpop.f32.mrb[0].mxu0
        %v508 = vadd.f32 0.0, %v507
        %v509 = vpop.f32.mrb[0].mxu0
        %510 = vmatprep.mubr.f32.mxu0 0.0
        %511 = vmatmul.mubr.f32.gmra.mrb[0].mxu0 %v391
        %v512 = vpop.f32.mrb[0].mxu0
        %v513 = vadd.f32 0.0, %v512
        %v514 = vpop.f32.mrb[0].mxu0
        %515 = vmatprep.mubr.f32.mxu0 0.0
        %516 = vmatmul.mubr.f32.gmra.mrb[0].mxu0 %v394
        %v517 = vpop.f32.mrb[0].mxu0
        %v518 = vadd.f32 0.0, %v517
        %v519 = vpop.f32.mrb[0].mxu0
        %520 = vmatprep.mubr.f32.mxu0 0.0
        %521 = vmatmul.mubr.f32.gmra.mrb[0].mxu0 %v397
        %v522 = vpop.f32.mrb[0].mxu0
        %v523 = vadd.f32 0.0, %v522
        %v524 = vpop.f32.mrb[0].mxu0
        %525 = vmatprep.mubr.f32.mxu0 0.0
        %526 = vmatmul.mubr.f32.gmra.mrb[0].mxu0 %v400
        %v527 = vpop.f32.mrb[0].mxu0
        %v528 = vadd.f32 0.0, %v527
        %v529 = vpop.f32.mrb[0].mxu0
        %530 = vmatprep.mubr.f32.mxu0 0.0
        %531 = vmatmul.mubr.f32.gmra.mrb[0].mxu0 %v403
        %v532 = vpop.f32.mrb[0].mxu0
        %v533 = vadd.f32 0.0, %v532
        %v534 = vpop.f32.mrb[0].mxu0
        %535 = vmatprep.mubr.f32.mxu0 0.0
        %536 = vmatmul.mubr.f32.gmra.mrb[0].mxu0 %v406
        %v537 = vpop.f32.mrb[0].mxu0
        %v538 = vadd.f32 0.0, %v537
        %v539 = vpop.f32.mrb[0].mxu0
        %540 = vmatprep.mubr.f32.mxu0 0.0
        %541 = vmatmul.mubr.f32.gmra.mrb[0].mxu0 %v409
        %v542 = vpop.f32.mrb[0].mxu0
        %v543 = vadd.f32 0.0, %v542
        %v544 = vpop.f32.mrb[0].mxu0
        %545 = vmatprep.mubr.f32.mxu0 0.0
        %546 = vmatmul.mubr.f32.gmra.mrb[0].mxu0 %v412
        %v547 = vpop.f32.mrb[0].mxu0
        %v548 = vadd.f32 0.0, %v547
        %v549 = vpop.f32.mrb[0].mxu0
        %550 = vmatprep.mubr.f32.mxu0 0.0
        %551 = vmatmul.mubr.f32.gmra.mrb[0].mxu0 %v415
        %v552 = vpop.f32.mrb[0].mxu0
        %v553 = vadd.f32 0.0, %v552
        %v554 = vpop.f32.mrb[0].mxu0
        %555 = vmatprep.mubr.f32.mxu0 0.0
        %556 = vmatmul.mubr.f32.gmra.mrb[0].mxu0 %v418
        %v557 = vpop.f32.mrb[0].mxu0
        %v558 = vadd.f32 0.0, %v557
        %v559 = vpop.f32.mrb[0].mxu0
        %560 = vmatprep.mubr.f32.mxu0 0.0
        %561 = vmatmul.mubr.f32.gmra.mrb[0].mxu0 %v421
        %v562 = vpop.f32.mrb[0].mxu0
        %v563 = vadd.f32 0.0, %v562
        %v564 = vpop.f32.mrb[0].mxu0
        %565 = vmatprep.mubr.f32.mxu0 0.0
        %566 = vmatmul.mubr.f32.gmra.mrb[0].mxu0 %v424
        %v567 = vpop.f32.mrb[0].mxu0
        %v568 = vadd.f32 0.0, %v567
        %v569 = vpop.f32.mrb[0].mxu0
        %570 = vdwg.mxu0
        %v571 = vadd.f32 %v354, %v493
        %v572 = vadd.f32 %v354, %v498
        %v573 = vadd.f32 %v354, %v503
        %v574 = vadd.f32 %v354, %v508
        %v575 = vadd.f32 %v354, %v513
        %v576 = vadd.f32 %v354, %v518
        %v577 = vadd.f32 %v354, %v523
        %v578 = vadd.f32 %v354, %v528
        %v579 = vadd.f32 %v354, %v533
        %v580 = vadd.f32 %v354, %v538
        %v581 = vadd.f32 %v354, %v543
        %v582 = vadd.f32 %v354, %v548
        %v583 = vadd.f32 %v354, %v553
        %v584 = vadd.f32 %v354, %v558
        %v585 = vadd.f32 %v354, %v563
        %v586 = vadd.f32 %v354, %v568
        %s587 = sadd.s32 %s346, 4294967295
        %s588 = scalar_lea.vmem %s322, %s587
        %v589 = vld [vmem:[%s588] sm:$0xff]
        %v590 = vld [vmem:[%s588 + $0x8] sm:$0xff]
        %v591 = vld [vmem:[%s588 + $0x10] sm:$0xff]
        %v592 = vld [vmem:[%s588 + $0x18] sm:$0xff]
        %v593 = vld [vmem:[%s588 + $0x20] sm:$0xff]
        %v594 = vld [vmem:[%s588 + $0x28] sm:$0xff]
        %v595 = vld [vmem:[%s588 + $0x30] sm:$0xff]
        %v596 = vld [vmem:[%s588 + $0x38] sm:$0xff]
        %v597 = vld [vmem:[%s588 + $0x40] sm:$0xff]
        %v598 = vld [vmem:[%s588 + $0x48] sm:$0xff]
        %v599 = vld [vmem:[%s588 + $0x50] sm:$0xff]
        %v600 = vld [vmem:[%s588 + $0x58] sm:$0xff]
        %v601 = vld [vmem:[%s588 + $0x60] sm:$0xff]
        %v602 = vld [vmem:[%s588 + $0x68] sm:$0xff]
        %v603 = vld [vmem:[%s588 + $0x70] sm:$0xff]
        %v604 = vld [vmem:[%s588 + $0x78] sm:$0xff]
        %s605 = scalar_lea.vmem %s2, 32
        %v606 = vld [vmem:[%s605] sm:$0xff]
        %v607 = vld [vmem:[%s605 + $0x8] sm:$0xff]
        %v608 = vld [vmem:[%s605 + $0x10] sm:$0xff]
        %v609 = vld [vmem:[%s605 + $0x18] sm:$0xff]
        %v611 = vsel %vm377, %v589, 0
        %v614 = vsel %vm377, %v590, 0
        %v617 = vsel %vm377, %v591, 0
        %v620 = vsel %vm377, %v592, 0
        %v623 = vsel %vm377, %v593, 0
        %v626 = vsel %vm377, %v594, 0
        %v629 = vsel %vm377, %v595, 0
        %v632 = vsel %vm377, %v596, 0
        %v635 = vsel %vm377, %v597, 0
        %v638 = vsel %vm377, %v598, 0
        %v641 = vsel %vm377, %v599, 0
        %v644 = vsel %vm377, %v600, 0
        %v647 = vsel %vm377, %v601, 0
        %v650 = vsel %vm377, %v602, 0
        %v653 = vsel %vm377, %v603, 0
        %v656 = vsel %vm377, %v604, 0
        %658 = vmatprep.subr.mxu0 0.0
        %659 = vmatpush1.msra.mxu0 %v606
        %660 = vmatprep.subr.mxu0 0.0
        %661 = vmatpush1.msra.mxu0 %v607
        %662 = vmatprep.subr.mxu0 0.0
        %663 = vmatpush1.msra.mxu0 %v608
        %664 = vmatprep.subr.mxu0 0.0
        %665 = vmatpush1.msra.mxu0 %v609
        %666 = vmatprep.subr.mxu0 0.0
        %667 = vmatpush1.msra.mxu0 0.0
        %668 = vmatprep.subr.mxu0 0.0
        %669 = vmatpush1.msra.mxu0 0.0
        %670 = vmatprep.subr.mxu0 0.0
        %671 = vmatpush1.msra.mxu0 0.0
        %672 = vmatprep.subr.mxu0 0.0
        %673 = vmatpush1.msra.mxu0 0.0
        %674 = vmatprep.subr.mxu0 0.0
        %675 = vmatpush1.msra.mxu0 0.0
        %676 = vmatprep.subr.mxu0 0.0
        %677 = vmatpush1.msra.mxu0 0.0
        %678 = vmatprep.subr.mxu0 0.0
        %679 = vmatpush1.msra.mxu0 0.0
        %680 = vmatprep.subr.mxu0 0.0
        %681 = vmatpush1.msra.mxu0 0.0
        %682 = vmatprep.subr.mxu0 0.0
        %683 = vmatpush1.msra.mxu0 0.0
        %684 = vmatprep.subr.mxu0 0.0
        %685 = vmatpush1.msra.mxu0 0.0
        %686 = vmatprep.subr.mxu0 0.0
        %687 = vmatpush1.msra.mxu0 0.0
        %688 = vmatprep.subr.mxu0 0.0
        %689 = vmatpush1.msra.mxu0 0.0
        %690 = vmatprep.subr.mxu0 0.0
        %691 = vmatpush1.msra.mxu0 0.0
        %692 = vmatprep.subr.mxu0 0.0
        %693 = vmatpush1.msra.mxu0 0.0
        %694 = vmatprep.subr.mxu0 0.0
        %695 = vmatpush1.msra.mxu0 0.0
        %696 = vmatprep.subr.mxu0 0.0
        %697 = vmatpush1.msra.mxu0 0.0
        %698 = vmatprep.subr.mxu0 0.0
        %699 = vmatpush1.msra.mxu0 0.0
        %700 = vmatprep.subr.mxu0 0.0
        %701 = vmatpush1.msra.mxu0 0.0
        %702 = vmatprep.subr.mxu0 0.0
        %703 = vmatpush1.msra.mxu0 0.0
        %704 = vmatprep.subr.mxu0 0.0
        %705 = vmatpush1.msra.mxu0 0.0
        %706 = vmatprep.subr.mxu0 0.0
        %707 = vmatpush1.msra.mxu0 0.0
        %708 = vmatprep.subr.mxu0 0.0
        %709 = vmatpush1.msra.mxu0 0.0
        %710 = vmatprep.subr.mxu0 0.0
        %711 = vmatpush1.msra.mxu0 0.0
        %712 = vmatprep.subr.mxu0 0.0
        %713 = vmatpush1.msra.mxu0 0.0
        %714 = vmatprep.subr.mxu0 0.0
        %715 = vmatpush1.msra.mxu0 0.0
        %716 = vmatprep.subr.mxu0 0.0
        %717 = vmatpush1.msra.mxu0 0.0
        %718 = vmatprep.subr.mxu0 0.0
        %719 = vmatpush1.msra.mxu0 0.0
        %720 = vmatprep.subr.mxu0 0.0
        %721 = vmatpush1.msra.mxu0 0.0
        %722 = vmatprep.mubr.f32.mxu0 0.0
        %723 = vmatmul.mubr.f32.gmra.mrb[0].mxu0 %v611
        %v724 = vpop.f32.mrb[0].mxu0
        %v725 = vadd.f32 0.0, %v724
        %v726 = vpop.f32.mrb[0].mxu0
        %727 = vmatprep.mubr.f32.mxu0 0.0
        %728 = vmatmul.mubr.f32.gmra.mrb[0].mxu0 %v614
        %v729 = vpop.f32.mrb[0].mxu0
        %v730 = vadd.f32 0.0, %v729
        %v731 = vpop.f32.mrb[0].mxu0
        %732 = vmatprep.mubr.f32.mxu0 0.0
        %733 = vmatmul.mubr.f32.gmra.mrb[0].mxu0 %v617
        %v734 = vpop.f32.mrb[0].mxu0
        %v735 = vadd.f32 0.0, %v734
        %v736 = vpop.f32.mrb[0].mxu0
        %737 = vmatprep.mubr.f32.mxu0 0.0
        %738 = vmatmul.mubr.f32.gmra.mrb[0].mxu0 %v620
        %v739 = vpop.f32.mrb[0].mxu0
        %v740 = vadd.f32 0.0, %v739
        %v741 = vpop.f32.mrb[0].mxu0
        %742 = vmatprep.mubr.f32.mxu0 0.0
        %743 = vmatmul.mubr.f32.gmra.mrb[0].mxu0 %v623
        %v744 = vpop.f32.mrb[0].mxu0
        %v745 = vadd.f32 0.0, %v744
        %v746 = vpop.f32.mrb[0].mxu0
        %747 = vmatprep.mubr.f32.mxu0 0.0
        %748 = vmatmul.mubr.f32.gmra.mrb[0].mxu0 %v626
        %v749 = vpop.f32.mrb[0].mxu0
        %v750 = vadd.f32 0.0, %v749
        %v751 = vpop.f32.mrb[0].mxu0
        %752 = vmatprep.mubr.f32.mxu0 0.0
        %753 = vmatmul.mubr.f32.gmra.mrb[0].mxu0 %v629
        %v754 = vpop.f32.mrb[0].mxu0
        %v755 = vadd.f32 0.0, %v754
        %v756 = vpop.f32.mrb[0].mxu0
        %757 = vmatprep.mubr.f32.mxu0 0.0
        %758 = vmatmul.mubr.f32.gmra.mrb[0].mxu0 %v632
        %v759 = vpop.f32.mrb[0].mxu0
        %v760 = vadd.f32 0.0, %v759
        %v761 = vpop.f32.mrb[0].mxu0
        %762 = vmatprep.mubr.f32.mxu0 0.0
        %763 = vmatmul.mubr.f32.gmra.mrb[0].mxu0 %v635
        %v764 = vpop.f32.mrb[0].mxu0
        %v765 = vadd.f32 0.0, %v764
        %v766 = vpop.f32.mrb[0].mxu0
        %767 = vmatprep.mubr.f32.mxu0 0.0
        %768 = vmatmul.mubr.f32.gmra.mrb[0].mxu0 %v638
        %v769 = vpop.f32.mrb[0].mxu0
        %v770 = vadd.f32 0.0, %v769
        %v771 = vpop.f32.mrb[0].mxu0
        %772 = vmatprep.mubr.f32.mxu0 0.0
        %773 = vmatmul.mubr.f32.gmra.mrb[0].mxu0 %v641
        %v774 = vpop.f32.mrb[0].mxu0
        %v775 = vadd.f32 0.0, %v774
        %v776 = vpop.f32.mrb[0].mxu0
        %777 = vmatprep.mubr.f32.mxu0 0.0
        %778 = vmatmul.mubr.f32.gmra.mrb[0].mxu0 %v644
        %v779 = vpop.f32.mrb[0].mxu0
        %v780 = vadd.f32 0.0, %v779
        %v781 = vpop.f32.mrb[0].mxu0
        %782 = vmatprep.mubr.f32.mxu0 0.0
        %783 = vmatmul.mubr.f32.gmra.mrb[0].mxu0 %v647
        %v784 = vpop.f32.mrb[0].mxu0
        %v785 = vadd.f32 0.0, %v784
        %v786 = vpop.f32.mrb[0].mxu0
        %787 = vmatprep.mubr.f32.mxu0 0.0
        %788 = vmatmul.mubr.f32.gmra.mrb[0].mxu0 %v650
        %v789 = vpop.f32.mrb[0].mxu0
        %v790 = vadd.f32 0.0, %v789
        %v791 = vpop.f32.mrb[0].mxu0
        %792 = vmatprep.mubr.f32.mxu0 0.0
        %793 = vmatmul.mubr.f32.gmra.mrb[0].mxu0 %v653
        %v794 = vpop.f32.mrb[0].mxu0
        %v795 = vadd.f32 0.0, %v794
        %v796 = vpop.f32.mrb[0].mxu0
        %797 = vmatprep.mubr.f32.mxu0 0.0
        %798 = vmatmul.mubr.f32.gmra.mrb[0].mxu0 %v656
        %v799 = vpop.f32.mrb[0].mxu0
        %v800 = vadd.f32 0.0, %v799
        %v801 = vpop.f32.mrb[0].mxu0
        %802 = vdwg.mxu0
        %v803 = vadd.f32 %v571, %v725
        %v804 = vadd.f32 %v572, %v730
        %v805 = vadd.f32 %v573, %v735
        %v806 = vadd.f32 %v574, %v740
        %v807 = vadd.f32 %v575, %v745
        %v808 = vadd.f32 %v576, %v750
        %v809 = vadd.f32 %v577, %v755
        %v810 = vadd.f32 %v578, %v760
        %v811 = vadd.f32 %v579, %v765
        %v812 = vadd.f32 %v580, %v770
        %v813 = vadd.f32 %v581, %v775
        %v814 = vadd.f32 %v582, %v780
        %v815 = vadd.f32 %v583, %v785
        %v816 = vadd.f32 %v584, %v790
        %v817 = vadd.f32 %v585, %v795
        %v818 = vadd.f32 %v586, %v800
        %s819 = scalar_lea.vmem %s322, %s346
        %v820 = vld [vmem:[%s819] sm:$0xff]
        %v821 = vld [vmem:[%s819 + $0x8] sm:$0xff]
        %v822 = vld [vmem:[%s819 + $0x10] sm:$0xff]
        %v823 = vld [vmem:[%s819 + $0x18] sm:$0xff]
        %v824 = vld [vmem:[%s819 + $0x20] sm:$0xff]
        %v825 = vld [vmem:[%s819 + $0x28] sm:$0xff]
        %v826 = vld [vmem:[%s819 + $0x30] sm:$0xff]
        %v827 = vld [vmem:[%s819 + $0x38] sm:$0xff]
        %v828 = vld [vmem:[%s819 + $0x40] sm:$0xff]
        %v829 = vld [vmem:[%s819 + $0x48] sm:$0xff]
        %v830 = vld [vmem:[%s819 + $0x50] sm:$0xff]
        %v831 = vld [vmem:[%s819 + $0x58] sm:$0xff]
        %v832 = vld [vmem:[%s819 + $0x60] sm:$0xff]
        %v833 = vld [vmem:[%s819 + $0x68] sm:$0xff]
        %v834 = vld [vmem:[%s819 + $0x70] sm:$0xff]
        %v835 = vld [vmem:[%s819 + $0x78] sm:$0xff]
        %s836 = scalar_lea.vmem %s2, 64
        %v837 = vld [vmem:[%s836] sm:$0xff]
        %v838 = vld [vmem:[%s836 + $0x8] sm:$0xff]
        %v839 = vld [vmem:[%s836 + $0x10] sm:$0xff]
        %v840 = vld [vmem:[%s836 + $0x18] sm:$0xff]
        %v842 = vsel %vm377, %v820, 0
        %v845 = vsel %vm377, %v821, 0
        %v848 = vsel %vm377, %v822, 0
        %v851 = vsel %vm377, %v823, 0
        %v854 = vsel %vm377, %v824, 0
        %v857 = vsel %vm377, %v825, 0
        %v860 = vsel %vm377, %v826, 0
        %v863 = vsel %vm377, %v827, 0
        %v866 = vsel %vm377, %v828, 0
        %v869 = vsel %vm377, %v829, 0
        %v872 = vsel %vm377, %v830, 0
        %v875 = vsel %vm377, %v831, 0
        %v878 = vsel %vm377, %v832, 0
        %v881 = vsel %vm377, %v833, 0
        %v884 = vsel %vm377, %v834, 0
        %v887 = vsel %vm377, %v835, 0
        %889 = vmatprep.subr.mxu0 0.0
        %890 = vmatpush1.msra.mxu0 %v837
        %891 = vmatprep.subr.mxu0 0.0
        %892 = vmatpush1.msra.mxu0 %v838
        %893 = vmatprep.subr.mxu0 0.0
        %894 = vmatpush1.msra.mxu0 %v839
        %895 = vmatprep.subr.mxu0 0.0
        %896 = vmatpush1.msra.mxu0 %v840
        %897 = vmatprep.subr.mxu0 0.0
        %898 = vmatpush1.msra.mxu0 0.0
        %899 = vmatprep.subr.mxu0 0.0
        %900 = vmatpush1.msra.mxu0 0.0
        %901 = vmatprep.subr.mxu0 0.0
        %902 = vmatpush1.msra.mxu0 0.0
        %903 = vmatprep.subr.mxu0 0.0
        %904 = vmatpush1.msra.mxu0 0.0
        %905 = vmatprep.subr.mxu0 0.0
        %906 = vmatpush1.msra.mxu0 0.0
        %907 = vmatprep.subr.mxu0 0.0
        %908 = vmatpush1.msra.mxu0 0.0
        %909 = vmatprep.subr.mxu0 0.0
        %910 = vmatpush1.msra.mxu0 0.0
        %911 = vmatprep.subr.mxu0 0.0
        %912 = vmatpush1.msra.mxu0 0.0
        %913 = vmatprep.subr.mxu0 0.0
        %914 = vmatpush1.msra.mxu0 0.0
        %915 = vmatprep.subr.mxu0 0.0
        %916 = vmatpush1.msra.mxu0 0.0
        %917 = vmatprep.subr.mxu0 0.0
        %918 = vmatpush1.msra.mxu0 0.0
        %919 = vmatprep.subr.mxu0 0.0
        %920 = vmatpush1.msra.mxu0 0.0
        %921 = vmatprep.subr.mxu0 0.0
        %922 = vmatpush1.msra.mxu0 0.0
        %923 = vmatprep.subr.mxu0 0.0
        %924 = vmatpush1.msra.mxu0 0.0
        %925 = vmatprep.subr.mxu0 0.0
        %926 = vmatpush1.msra.mxu0 0.0
        %927 = vmatprep.subr.mxu0 0.0
        %928 = vmatpush1.msra.mxu0 0.0
        %929 = vmatprep.subr.mxu0 0.0
        %930 = vmatpush1.msra.mxu0 0.0
        %931 = vmatprep.subr.mxu0 0.0
        %932 = vmatpush1.msra.mxu0 0.0
        %933 = vmatprep.subr.mxu0 0.0
        %934 = vmatpush1.msra.mxu0 0.0
        %935 = vmatprep.subr.mxu0 0.0
        %936 = vmatpush1.msra.mxu0 0.0
        %937 = vmatprep.subr.mxu0 0.0
        %938 = vmatpush1.msra.mxu0 0.0
        %939 = vmatprep.subr.mxu0 0.0
        %940 = vmatpush1.msra.mxu0 0.0
        %941 = vmatprep.subr.mxu0 0.0
        %942 = vmatpush1.msra.mxu0 0.0
        %943 = vmatprep.subr.mxu0 0.0
        %944 = vmatpush1.msra.mxu0 0.0
        %945 = vmatprep.subr.mxu0 0.0
        %946 = vmatpush1.msra.mxu0 0.0
        %947 = vmatprep.subr.mxu0 0.0
        %948 = vmatpush1.msra.mxu0 0.0
        %949 = vmatprep.subr.mxu0 0.0
        %950 = vmatpush1.msra.mxu0 0.0
        %951 = vmatprep.subr.mxu0 0.0
        %952 = vmatpush1.msra.mxu0 0.0
        %953 = vmatprep.mubr.f32.mxu0 0.0
        %954 = vmatmul.mubr.f32.gmra.mrb[0].mxu0 %v842
        %v955 = vpop.f32.mrb[0].mxu0
        %v956 = vadd.f32 0.0, %v955
        %v957 = vpop.f32.mrb[0].mxu0
        %958 = vmatprep.mubr.f32.mxu0 0.0
        %959 = vmatmul.mubr.f32.gmra.mrb[0].mxu0 %v845
        %v960 = vpop.f32.mrb[0].mxu0
        %v961 = vadd.f32 0.0, %v960
        %v962 = vpop.f32.mrb[0].mxu0
        %963 = vmatprep.mubr.f32.mxu0 0.0
        %964 = vmatmul.mubr.f32.gmra.mrb[0].mxu0 %v848
        %v965 = vpop.f32.mrb[0].mxu0
        %v966 = vadd.f32 0.0, %v965
        %v967 = vpop.f32.mrb[0].mxu0
        %968 = vmatprep.mubr.f32.mxu0 0.0
        %969 = vmatmul.mubr.f32.gmra.mrb[0].mxu0 %v851
        %v970 = vpop.f32.mrb[0].mxu0
        %v971 = vadd.f32 0.0, %v970
        %v972 = vpop.f32.mrb[0].mxu0
        %973 = vmatprep.mubr.f32.mxu0 0.0
        %974 = vmatmul.mubr.f32.gmra.mrb[0].mxu0 %v854
        %v975 = vpop.f32.mrb[0].mxu0
        %v976 = vadd.f32 0.0, %v975
        %v977 = vpop.f32.mrb[0].mxu0
        %978 = vmatprep.mubr.f32.mxu0 0.0
        %979 = vmatmul.mubr.f32.gmra.mrb[0].mxu0 %v857
        %v980 = vpop.f32.mrb[0].mxu0
        %v981 = vadd.f32 0.0, %v980
        %v982 = vpop.f32.mrb[0].mxu0
        %983 = vmatprep.mubr.f32.mxu0 0.0
        %984 = vmatmul.mubr.f32.gmra.mrb[0].mxu0 %v860
        %v985 = vpop.f32.mrb[0].mxu0
        %v986 = vadd.f32 0.0, %v985
        %v987 = vpop.f32.mrb[0].mxu0
        %988 = vmatprep.mubr.f32.mxu0 0.0
        %989 = vmatmul.mubr.f32.gmra.mrb[0].mxu0 %v863
        %v990 = vpop.f32.mrb[0].mxu0
        %v991 = vadd.f32 0.0, %v990
        %v992 = vpop.f32.mrb[0].mxu0
        %993 = vmatprep.mubr.f32.mxu0 0.0
        %994 = vmatmul.mubr.f32.gmra.mrb[0].mxu0 %v866
        %v995 = vpop.f32.mrb[0].mxu0
        %v996 = vadd.f32 0.0, %v995
        %v997 = vpop.f32.mrb[0].mxu0
        %998 = vmatprep.mubr.f32.mxu0 0.0
        %999 = vmatmul.mubr.f32.gmra.mrb[0].mxu0 %v869
        %v1000 = vpop.f32.mrb[0].mxu0
        %v1001 = vadd.f32 0.0, %v1000
        %v1002 = vpop.f32.mrb[0].mxu0
        %1003 = vmatprep.mubr.f32.mxu0 0.0
        %1004 = vmatmul.mubr.f32.gmra.mrb[0].mxu0 %v872
        %v1005 = vpop.f32.mrb[0].mxu0
        %v1006 = vadd.f32 0.0, %v1005
        %v1007 = vpop.f32.mrb[0].mxu0
        %1008 = vmatprep.mubr.f32.mxu0 0.0
        %1009 = vmatmul.mubr.f32.gmra.mrb[0].mxu0 %v875
        %v1010 = vpop.f32.mrb[0].mxu0
        %v1011 = vadd.f32 0.0, %v1010
        %v1012 = vpop.f32.mrb[0].mxu0
        %1013 = vmatprep.mubr.f32.mxu0 0.0
        %1014 = vmatmul.mubr.f32.gmra.mrb[0].mxu0 %v878
        %v1015 = vpop.f32.mrb[0].mxu0
        %v1016 = vadd.f32 0.0, %v1015
        %v1017 = vpop.f32.mrb[0].mxu0
        %1018 = vmatprep.mubr.f32.mxu0 0.0
        %1019 = vmatmul.mubr.f32.gmra.mrb[0].mxu0 %v881
        %v1020 = vpop.f32.mrb[0].mxu0
        %v1021 = vadd.f32 0.0, %v1020
        %v1022 = vpop.f32.mrb[0].mxu0
        %1023 = vmatprep.mubr.f32.mxu0 0.0
        %1024 = vmatmul.mubr.f32.gmra.mrb[0].mxu0 %v884
        %v1025 = vpop.f32.mrb[0].mxu0
        %v1026 = vadd.f32 0.0, %v1025
        %v1027 = vpop.f32.mrb[0].mxu0
        %1028 = vmatprep.mubr.f32.mxu0 0.0
        %1029 = vmatmul.mubr.f32.gmra.mrb[0].mxu0 %v887
        %v1030 = vpop.f32.mrb[0].mxu0
        %v1031 = vadd.f32 0.0, %v1030
        %v1032 = vpop.f32.mrb[0].mxu0
        %1033 = vdwg.mxu0
        %v1034 = vadd.f32 %v803, %v956
        %v1035 = vadd.f32 %v804, %v961
        %v1036 = vadd.f32 %v805, %v966
        %v1037 = vadd.f32 %v806, %v971
        %v1038 = vadd.f32 %v807, %v976
        %v1039 = vadd.f32 %v808, %v981
        %v1040 = vadd.f32 %v809, %v986
        %v1041 = vadd.f32 %v810, %v991
        %v1042 = vadd.f32 %v811, %v996
        %v1043 = vadd.f32 %v812, %v1001
        %v1044 = vadd.f32 %v813, %v1006
        %v1045 = vadd.f32 %v814, %v1011
        %v1046 = vadd.f32 %v815, %v1016
        %v1047 = vadd.f32 %v816, %v1021
        %v1048 = vadd.f32 %v817, %v1026
        %v1049 = vadd.f32 %v818, %v1031
        %s1050 = sadd.s32 %s346, 1
        %s1051 = scalar_lea.vmem %s322, %s1050
        %v1052 = vld [vmem:[%s1051] sm:$0xff]
        %v1053 = vld [vmem:[%s1051 + $0x8] sm:$0xff]
        %v1054 = vld [vmem:[%s1051 + $0x10] sm:$0xff]
        %v1055 = vld [vmem:[%s1051 + $0x18] sm:$0xff]
        %v1056 = vld [vmem:[%s1051 + $0x20] sm:$0xff]
        %v1057 = vld [vmem:[%s1051 + $0x28] sm:$0xff]
        %v1058 = vld [vmem:[%s1051 + $0x30] sm:$0xff]
        %v1059 = vld [vmem:[%s1051 + $0x38] sm:$0xff]
        %v1060 = vld [vmem:[%s1051 + $0x40] sm:$0xff]
        %v1061 = vld [vmem:[%s1051 + $0x48] sm:$0xff]
        %v1062 = vld [vmem:[%s1051 + $0x50] sm:$0xff]
        %v1063 = vld [vmem:[%s1051 + $0x58] sm:$0xff]
        %v1064 = vld [vmem:[%s1051 + $0x60] sm:$0xff]
        %v1065 = vld [vmem:[%s1051 + $0x68] sm:$0xff]
        %v1066 = vld [vmem:[%s1051 + $0x70] sm:$0xff]
        %v1067 = vld [vmem:[%s1051 + $0x78] sm:$0xff]
        %s1068 = scalar_lea.vmem %s2, 96
        %v1069 = vld [vmem:[%s1068] sm:$0xff]
        %v1070 = vld [vmem:[%s1068 + $0x8] sm:$0xff]
        %v1071 = vld [vmem:[%s1068 + $0x10] sm:$0xff]
        %v1072 = vld [vmem:[%s1068 + $0x18] sm:$0xff]
        %v1074 = vsel %vm377, %v1052, 0
        %v1077 = vsel %vm377, %v1053, 0
        %v1080 = vsel %vm377, %v1054, 0
        %v1083 = vsel %vm377, %v1055, 0
        %v1086 = vsel %vm377, %v1056, 0
        %v1089 = vsel %vm377, %v1057, 0
        %v1092 = vsel %vm377, %v1058, 0
        %v1095 = vsel %vm377, %v1059, 0
        %v1098 = vsel %vm377, %v1060, 0
        %v1101 = vsel %vm377, %v1061, 0
        %v1104 = vsel %vm377, %v1062, 0
        %v1107 = vsel %vm377, %v1063, 0
        %v1110 = vsel %vm377, %v1064, 0
        %v1113 = vsel %vm377, %v1065, 0
        %v1116 = vsel %vm377, %v1066, 0
        %v1119 = vsel %vm377, %v1067, 0
        %1121 = vmatprep.subr.mxu0 0.0
        %1122 = vmatpush1.msra.mxu0 %v1069
        %1123 = vmatprep.subr.mxu0 0.0
        %1124 = vmatpush1.msra.mxu0 %v1070
        %1125 = vmatprep.subr.mxu0 0.0
        %1126 = vmatpush1.msra.mxu0 %v1071
        %1127 = vmatprep.subr.mxu0 0.0
        %1128 = vmatpush1.msra.mxu0 %v1072
        %1129 = vmatprep.subr.mxu0 0.0
        %1130 = vmatpush1.msra.mxu0 0.0
        %1131 = vmatprep.subr.mxu0 0.0
        %1132 = vmatpush1.msra.mxu0 0.0
        %1133 = vmatprep.subr.mxu0 0.0
        %1134 = vmatpush1.msra.mxu0 0.0
        %1135 = vmatprep.subr.mxu0 0.0
        %1136 = vmatpush1.msra.mxu0 0.0
        %1137 = vmatprep.subr.mxu0 0.0
        %1138 = vmatpush1.msra.mxu0 0.0
        %1139 = vmatprep.subr.mxu0 0.0
        %1140 = vmatpush1.msra.mxu0 0.0
        %1141 = vmatprep.subr.mxu0 0.0
        %1142 = vmatpush1.msra.mxu0 0.0
        %1143 = vmatprep.subr.mxu0 0.0
        %1144 = vmatpush1.msra.mxu0 0.0
        %1145 = vmatprep.subr.mxu0 0.0
        %1146 = vmatpush1.msra.mxu0 0.0
        %1147 = vmatprep.subr.mxu0 0.0
        %1148 = vmatpush1.msra.mxu0 0.0
        %1149 = vmatprep.subr.mxu0 0.0
        %1150 = vmatpush1.msra.mxu0 0.0
        %1151 = vmatprep.subr.mxu0 0.0
        %1152 = vmatpush1.msra.mxu0 0.0
        %1153 = vmatprep.subr.mxu0 0.0
        %1154 = vmatpush1.msra.mxu0 0.0
        %1155 = vmatprep.subr.mxu0 0.0
        %1156 = vmatpush1.msra.mxu0 0.0
        %1157 = vmatprep.subr.mxu0 0.0
        %1158 = vmatpush1.msra.mxu0 0.0
        %1159 = vmatprep.subr.mxu0 0.0
        %1160 = vmatpush1.msra.mxu0 0.0
        %1161 = vmatprep.subr.mxu0 0.0
        %1162 = vmatpush1.msra.mxu0 0.0
        %1163 = vmatprep.subr.mxu0 0.0
        %1164 = vmatpush1.msra.mxu0 0.0
        %1165 = vmatprep.subr.mxu0 0.0
        %1166 = vmatpush1.msra.mxu0 0.0
        %1167 = vmatprep.subr.mxu0 0.0
        %1168 = vmatpush1.msra.mxu0 0.0
        %1169 = vmatprep.subr.mxu0 0.0
        %1170 = vmatpush1.msra.mxu0 0.0
        %1171 = vmatprep.subr.mxu0 0.0
        %1172 = vmatpush1.msra.mxu0 0.0
        %1173 = vmatprep.subr.mxu0 0.0
        %1174 = vmatpush1.msra.mxu0 0.0
        %1175 = vmatprep.subr.mxu0 0.0
        %1176 = vmatpush1.msra.mxu0 0.0
        %1177 = vmatprep.subr.mxu0 0.0
        %1178 = vmatpush1.msra.mxu0 0.0
        %1179 = vmatprep.subr.mxu0 0.0
        %1180 = vmatpush1.msra.mxu0 0.0
        %1181 = vmatprep.subr.mxu0 0.0
        %1182 = vmatpush1.msra.mxu0 0.0
        %1183 = vmatprep.subr.mxu0 0.0
        %1184 = vmatpush1.msra.mxu0 0.0
        %1185 = vmatprep.mubr.f32.mxu0 0.0
        %1186 = vmatmul.mubr.f32.gmra.mrb[0].mxu0 %v1074
        %v1187 = vpop.f32.mrb[0].mxu0
        %v1188 = vadd.f32 0.0, %v1187
        %v1189 = vpop.f32.mrb[0].mxu0
        %1190 = vmatprep.mubr.f32.mxu0 0.0
        %1191 = vmatmul.mubr.f32.gmra.mrb[0].mxu0 %v1077
        %v1192 = vpop.f32.mrb[0].mxu0
        %v1193 = vadd.f32 0.0, %v1192
        %v1194 = vpop.f32.mrb[0].mxu0
        %1195 = vmatprep.mubr.f32.mxu0 0.0
        %1196 = vmatmul.mubr.f32.gmra.mrb[0].mxu0 %v1080
        %v1197 = vpop.f32.mrb[0].mxu0
        %v1198 = vadd.f32 0.0, %v1197
        %v1199 = vpop.f32.mrb[0].mxu0
        %1200 = vmatprep.mubr.f32.mxu0 0.0
        %1201 = vmatmul.mubr.f32.gmra.mrb[0].mxu0 %v1083
        %v1202 = vpop.f32.mrb[0].mxu0
        %v1203 = vadd.f32 0.0, %v1202
        %v1204 = vpop.f32.mrb[0].mxu0
        %1205 = vmatprep.mubr.f32.mxu0 0.0
        %1206 = vmatmul.mubr.f32.gmra.mrb[0].mxu0 %v1086
        %v1207 = vpop.f32.mrb[0].mxu0
        %v1208 = vadd.f32 0.0, %v1207
        %v1209 = vpop.f32.mrb[0].mxu0
        %1210 = vmatprep.mubr.f32.mxu0 0.0
        %1211 = vmatmul.mubr.f32.gmra.mrb[0].mxu0 %v1089
        %v1212 = vpop.f32.mrb[0].mxu0
        %v1213 = vadd.f32 0.0, %v1212
        %v1214 = vpop.f32.mrb[0].mxu0
        %1215 = vmatprep.mubr.f32.mxu0 0.0
        %1216 = vmatmul.mubr.f32.gmra.mrb[0].mxu0 %v1092
        %v1217 = vpop.f32.mrb[0].mxu0
        %v1218 = vadd.f32 0.0, %v1217
        %v1219 = vpop.f32.mrb[0].mxu0
        %1220 = vmatprep.mubr.f32.mxu0 0.0
        %1221 = vmatmul.mubr.f32.gmra.mrb[0].mxu0 %v1095
        %v1222 = vpop.f32.mrb[0].mxu0
        %v1223 = vadd.f32 0.0, %v1222
        %v1224 = vpop.f32.mrb[0].mxu0
        %1225 = vmatprep.mubr.f32.mxu0 0.0
        %1226 = vmatmul.mubr.f32.gmra.mrb[0].mxu0 %v1098
        %v1227 = vpop.f32.mrb[0].mxu0
        %v1228 = vadd.f32 0.0, %v1227
        %v1229 = vpop.f32.mrb[0].mxu0
        %1230 = vmatprep.mubr.f32.mxu0 0.0
        %1231 = vmatmul.mubr.f32.gmra.mrb[0].mxu0 %v1101
        %v1232 = vpop.f32.mrb[0].mxu0
        %v1233 = vadd.f32 0.0, %v1232
        %v1234 = vpop.f32.mrb[0].mxu0
        %1235 = vmatprep.mubr.f32.mxu0 0.0
        %1236 = vmatmul.mubr.f32.gmra.mrb[0].mxu0 %v1104
        %v1237 = vpop.f32.mrb[0].mxu0
        %v1238 = vadd.f32 0.0, %v1237
        %v1239 = vpop.f32.mrb[0].mxu0
        %1240 = vmatprep.mubr.f32.mxu0 0.0
        %1241 = vmatmul.mubr.f32.gmra.mrb[0].mxu0 %v1107
        %v1242 = vpop.f32.mrb[0].mxu0
        %v1243 = vadd.f32 0.0, %v1242
        %v1244 = vpop.f32.mrb[0].mxu0
        %1245 = vmatprep.mubr.f32.mxu0 0.0
        %1246 = vmatmul.mubr.f32.gmra.mrb[0].mxu0 %v1110
        %v1247 = vpop.f32.mrb[0].mxu0
        %v1248 = vadd.f32 0.0, %v1247
        %v1249 = vpop.f32.mrb[0].mxu0
        %1250 = vmatprep.mubr.f32.mxu0 0.0
        %1251 = vmatmul.mubr.f32.gmra.mrb[0].mxu0 %v1113
        %v1252 = vpop.f32.mrb[0].mxu0
        %v1253 = vadd.f32 0.0, %v1252
        %v1254 = vpop.f32.mrb[0].mxu0
        %1255 = vmatprep.mubr.f32.mxu0 0.0
        %1256 = vmatmul.mubr.f32.gmra.mrb[0].mxu0 %v1116
        %v1257 = vpop.f32.mrb[0].mxu0
        %v1258 = vadd.f32 0.0, %v1257
        %v1259 = vpop.f32.mrb[0].mxu0
        %1260 = vmatprep.mubr.f32.mxu0 0.0
        %1261 = vmatmul.mubr.f32.gmra.mrb[0].mxu0 %v1119
        %v1262 = vpop.f32.mrb[0].mxu0
        %v1263 = vadd.f32 0.0, %v1262
        %v1264 = vpop.f32.mrb[0].mxu0
        %1265 = vdwg.mxu0
        %v1266 = vadd.f32 %v1034, %v1188
        %v1267 = vadd.f32 %v1035, %v1193
        %v1268 = vadd.f32 %v1036, %v1198
        %v1269 = vadd.f32 %v1037, %v1203
        %v1270 = vadd.f32 %v1038, %v1208
        %v1271 = vadd.f32 %v1039, %v1213
        %v1272 = vadd.f32 %v1040, %v1218
        %v1273 = vadd.f32 %v1041, %v1223
        %v1274 = vadd.f32 %v1042, %v1228
        %v1275 = vadd.f32 %v1043, %v1233
        %v1276 = vadd.f32 %v1044, %v1238
        %v1277 = vadd.f32 %v1045, %v1243
        %v1278 = vadd.f32 %v1046, %v1248
        %v1279 = vadd.f32 %v1047, %v1253
        %v1280 = vadd.f32 %v1048, %v1258
        %v1281 = vadd.f32 %v1049, %v1263
        %s1282 = sadd.s32 %s346, 2
        %s1283 = scalar_lea.vmem %s322, %s1282
        %v1284 = vld [vmem:[%s1283] sm:$0xff]
        %v1285 = vld [vmem:[%s1283 + $0x8] sm:$0xff]
        %v1286 = vld [vmem:[%s1283 + $0x10] sm:$0xff]
        %v1287 = vld [vmem:[%s1283 + $0x18] sm:$0xff]
        %v1288 = vld [vmem:[%s1283 + $0x20] sm:$0xff]
        %v1289 = vld [vmem:[%s1283 + $0x28] sm:$0xff]
        %v1290 = vld [vmem:[%s1283 + $0x30] sm:$0xff]
        %v1291 = vld [vmem:[%s1283 + $0x38] sm:$0xff]
        %v1292 = vld [vmem:[%s1283 + $0x40] sm:$0xff]
        %v1293 = vld [vmem:[%s1283 + $0x48] sm:$0xff]
        %v1294 = vld [vmem:[%s1283 + $0x50] sm:$0xff]
        %v1295 = vld [vmem:[%s1283 + $0x58] sm:$0xff]
        %v1296 = vld [vmem:[%s1283 + $0x60] sm:$0xff]
        %v1297 = vld [vmem:[%s1283 + $0x68] sm:$0xff]
        %v1298 = vld [vmem:[%s1283 + $0x70] sm:$0xff]
        %v1299 = vld [vmem:[%s1283 + $0x78] sm:$0xff]
        %s1300 = scalar_lea.vmem %s2, 128
        %v1301 = vld [vmem:[%s1300] sm:$0xff]
        %v1302 = vld [vmem:[%s1300 + $0x8] sm:$0xff]
        %v1303 = vld [vmem:[%s1300 + $0x10] sm:$0xff]
        %v1304 = vld [vmem:[%s1300 + $0x18] sm:$0xff]
        %v1306 = vsel %vm377, %v1284, 0
        %v1309 = vsel %vm377, %v1285, 0
        %v1312 = vsel %vm377, %v1286, 0
        %v1315 = vsel %vm377, %v1287, 0
        %v1318 = vsel %vm377, %v1288, 0
        %v1321 = vsel %vm377, %v1289, 0
        %v1324 = vsel %vm377, %v1290, 0
        %v1327 = vsel %vm377, %v1291, 0
        %v1330 = vsel %vm377, %v1292, 0
        %v1333 = vsel %vm377, %v1293, 0
        %v1336 = vsel %vm377, %v1294, 0
        %v1339 = vsel %vm377, %v1295, 0
        %v1342 = vsel %vm377, %v1296, 0
        %v1345 = vsel %vm377, %v1297, 0
        %v1348 = vsel %vm377, %v1298, 0
        %v1351 = vsel %vm377, %v1299, 0
        %1353 = vmatprep.subr.mxu0 0.0
        %1354 = vmatpush1.msra.mxu0 %v1301
        %1355 = vmatprep.subr.mxu0 0.0
        %1356 = vmatpush1.msra.mxu0 %v1302
        %1357 = vmatprep.subr.mxu0 0.0
        %1358 = vmatpush1.msra.mxu0 %v1303
        %1359 = vmatprep.subr.mxu0 0.0
        %1360 = vmatpush1.msra.mxu0 %v1304
        %1361 = vmatprep.subr.mxu0 0.0
        %1362 = vmatpush1.msra.mxu0 0.0
        %1363 = vmatprep.subr.mxu0 0.0
        %1364 = vmatpush1.msra.mxu0 0.0
        %1365 = vmatprep.subr.mxu0 0.0
        %1366 = vmatpush1.msra.mxu0 0.0
        %1367 = vmatprep.subr.mxu0 0.0
        %1368 = vmatpush1.msra.mxu0 0.0
        %1369 = vmatprep.subr.mxu0 0.0
        %1370 = vmatpush1.msra.mxu0 0.0
        %1371 = vmatprep.subr.mxu0 0.0
        %1372 = vmatpush1.msra.mxu0 0.0
        %1373 = vmatprep.subr.mxu0 0.0
        %1374 = vmatpush1.msra.mxu0 0.0
        %1375 = vmatprep.subr.mxu0 0.0
        %1376 = vmatpush1.msra.mxu0 0.0
        %1377 = vmatprep.subr.mxu0 0.0
        %1378 = vmatpush1.msra.mxu0 0.0
        %1379 = vmatprep.subr.mxu0 0.0
        %1380 = vmatpush1.msra.mxu0 0.0
        %1381 = vmatprep.subr.mxu0 0.0
        %1382 = vmatpush1.msra.mxu0 0.0
        %1383 = vmatprep.subr.mxu0 0.0
        %1384 = vmatpush1.msra.mxu0 0.0
        %1385 = vmatprep.subr.mxu0 0.0
        %1386 = vmatpush1.msra.mxu0 0.0
        %1387 = vmatprep.subr.mxu0 0.0
        %1388 = vmatpush1.msra.mxu0 0.0
        %1389 = vmatprep.subr.mxu0 0.0
        %1390 = vmatpush1.msra.mxu0 0.0
        %1391 = vmatprep.subr.mxu0 0.0
        %1392 = vmatpush1.msra.mxu0 0.0
        %1393 = vmatprep.subr.mxu0 0.0
        %1394 = vmatpush1.msra.mxu0 0.0
        %1395 = vmatprep.subr.mxu0 0.0
        %1396 = vmatpush1.msra.mxu0 0.0
        %1397 = vmatprep.subr.mxu0 0.0
        %1398 = vmatpush1.msra.mxu0 0.0
        %1399 = vmatprep.subr.mxu0 0.0
        %1400 = vmatpush1.msra.mxu0 0.0
        %1401 = vmatprep.subr.mxu0 0.0
        %1402 = vmatpush1.msra.mxu0 0.0
        %1403 = vmatprep.subr.mxu0 0.0
        %1404 = vmatpush1.msra.mxu0 0.0
        %1405 = vmatprep.subr.mxu0 0.0
        %1406 = vmatpush1.msra.mxu0 0.0
        %1407 = vmatprep.subr.mxu0 0.0
        %1408 = vmatpush1.msra.mxu0 0.0
        %1409 = vmatprep.subr.mxu0 0.0
        %1410 = vmatpush1.msra.mxu0 0.0
        %1411 = vmatprep.subr.mxu0 0.0
        %1412 = vmatpush1.msra.mxu0 0.0
        %1413 = vmatprep.subr.mxu0 0.0
        %1414 = vmatpush1.msra.mxu0 0.0
        %1415 = vmatprep.subr.mxu0 0.0
        %1416 = vmatpush1.msra.mxu0 0.0
        %1417 = vmatprep.mubr.f32.mxu0 0.0
        %1418 = vmatmul.mubr.f32.gmra.mrb[0].mxu0 %v1306
        %v1419 = vpop.f32.mrb[0].mxu0
        %v1420 = vadd.f32 0.0, %v1419
        %v1421 = vpop.f32.mrb[0].mxu0
        %1422 = vmatprep.mubr.f32.mxu0 0.0
        %1423 = vmatmul.mubr.f32.gmra.mrb[0].mxu0 %v1309
        %v1424 = vpop.f32.mrb[0].mxu0
        %v1425 = vadd.f32 0.0, %v1424
        %v1426 = vpop.f32.mrb[0].mxu0
        %1427 = vmatprep.mubr.f32.mxu0 0.0
        %1428 = vmatmul.mubr.f32.gmra.mrb[0].mxu0 %v1312
        %v1429 = vpop.f32.mrb[0].mxu0
        %v1430 = vadd.f32 0.0, %v1429
        %v1431 = vpop.f32.mrb[0].mxu0
        %1432 = vmatprep.mubr.f32.mxu0 0.0
        %1433 = vmatmul.mubr.f32.gmra.mrb[0].mxu0 %v1315
        %v1434 = vpop.f32.mrb[0].mxu0
        %v1435 = vadd.f32 0.0, %v1434
        %v1436 = vpop.f32.mrb[0].mxu0
        %1437 = vmatprep.mubr.f32.mxu0 0.0
        %1438 = vmatmul.mubr.f32.gmra.mrb[0].mxu0 %v1318
        %v1439 = vpop.f32.mrb[0].mxu0
        %v1440 = vadd.f32 0.0, %v1439
        %v1441 = vpop.f32.mrb[0].mxu0
        %1442 = vmatprep.mubr.f32.mxu0 0.0
        %1443 = vmatmul.mubr.f32.gmra.mrb[0].mxu0 %v1321
        %v1444 = vpop.f32.mrb[0].mxu0
        %v1445 = vadd.f32 0.0, %v1444
        %v1446 = vpop.f32.mrb[0].mxu0
        %1447 = vmatprep.mubr.f32.mxu0 0.0
        %1448 = vmatmul.mubr.f32.gmra.mrb[0].mxu0 %v1324
        %v1449 = vpop.f32.mrb[0].mxu0
        %v1450 = vadd.f32 0.0, %v1449
        %v1451 = vpop.f32.mrb[0].mxu0
        %1452 = vmatprep.mubr.f32.mxu0 0.0
        %1453 = vmatmul.mubr.f32.gmra.mrb[0].mxu0 %v1327
        %v1454 = vpop.f32.mrb[0].mxu0
        %v1455 = vadd.f32 0.0, %v1454
        %v1456 = vpop.f32.mrb[0].mxu0
        %1457 = vmatprep.mubr.f32.mxu0 0.0
        %1458 = vmatmul.mubr.f32.gmra.mrb[0].mxu0 %v1330
        %v1459 = vpop.f32.mrb[0].mxu0
        %v1460 = vadd.f32 0.0, %v1459
        %v1461 = vpop.f32.mrb[0].mxu0
        %1462 = vmatprep.mubr.f32.mxu0 0.0
        %1463 = vmatmul.mubr.f32.gmra.mrb[0].mxu0 %v1333
        %v1464 = vpop.f32.mrb[0].mxu0
        %v1465 = vadd.f32 0.0, %v1464
        %v1466 = vpop.f32.mrb[0].mxu0
        %1467 = vmatprep.mubr.f32.mxu0 0.0
        %1468 = vmatmul.mubr.f32.gmra.mrb[0].mxu0 %v1336
        %v1469 = vpop.f32.mrb[0].mxu0
        %v1470 = vadd.f32 0.0, %v1469
        %v1471 = vpop.f32.mrb[0].mxu0
        %1472 = vmatprep.mubr.f32.mxu0 0.0
        %1473 = vmatmul.mubr.f32.gmra.mrb[0].mxu0 %v1339
        %v1474 = vpop.f32.mrb[0].mxu0
        %v1475 = vadd.f32 0.0, %v1474
        %v1476 = vpop.f32.mrb[0].mxu0
        %1477 = vmatprep.mubr.f32.mxu0 0.0
        %1478 = vmatmul.mubr.f32.gmra.mrb[0].mxu0 %v1342
        %v1479 = vpop.f32.mrb[0].mxu0
        %v1480 = vadd.f32 0.0, %v1479
        %v1481 = vpop.f32.mrb[0].mxu0
        %1482 = vmatprep.mubr.f32.mxu0 0.0
        %1483 = vmatmul.mubr.f32.gmra.mrb[0].mxu0 %v1345
        %v1484 = vpop.f32.mrb[0].mxu0
        %v1485 = vadd.f32 0.0, %v1484
        %v1486 = vpop.f32.mrb[0].mxu0
        %1487 = vmatprep.mubr.f32.mxu0 0.0
        %1488 = vmatmul.mubr.f32.gmra.mrb[0].mxu0 %v1348
        %v1489 = vpop.f32.mrb[0].mxu0
        %v1490 = vadd.f32 0.0, %v1489
        %v1491 = vpop.f32.mrb[0].mxu0
        %1492 = vmatprep.mubr.f32.mxu0 0.0
        %1493 = vmatmul.mubr.f32.gmra.mrb[0].mxu0 %v1351
        %v1494 = vpop.f32.mrb[0].mxu0
        %v1495 = vadd.f32 0.0, %v1494
        %v1496 = vpop.f32.mrb[0].mxu0
        %1497 = vdwg.mxu0
        %v1498 = vadd.f32 %v1266, %v1420
        %v1499 = vadd.f32 %v1267, %v1425
        %v1500 = vadd.f32 %v1268, %v1430
        %v1501 = vadd.f32 %v1269, %v1435
        %v1502 = vadd.f32 %v1270, %v1440
        %v1503 = vadd.f32 %v1271, %v1445
        %v1504 = vadd.f32 %v1272, %v1450
        %v1505 = vadd.f32 %v1273, %v1455
        %v1506 = vadd.f32 %v1274, %v1460
        %v1507 = vadd.f32 %v1275, %v1465
        %v1508 = vadd.f32 %v1276, %v1470
        %v1509 = vadd.f32 %v1277, %v1475
        %v1510 = vadd.f32 %v1278, %v1480
        %v1511 = vadd.f32 %v1279, %v1485
        %v1512 = vadd.f32 %v1280, %v1490
        %v1513 = vadd.f32 %v1281, %v1495
        %v1514 = vtanh.pop %v1498
        %v1515 = vtanh.pop %v1499
        %v1516 = vtanh.pop %v1500
        %v1517 = vtanh.pop %v1501
        %v1518 = vtanh.pop %v1502
        %v1519 = vtanh.pop %v1503
        %v1520 = vtanh.pop %v1504
        %v1521 = vtanh.pop %v1505
        %v1522 = vtanh.pop %v1506
        %v1523 = vtanh.pop %v1507
        %v1524 = vtanh.pop %v1508
        %v1525 = vtanh.pop %v1509
        %v1526 = vtanh.pop %v1510
        %v1527 = vtanh.pop %v1511
        %v1528 = vtanh.pop %v1512
        %v1529 = vtanh.pop %v1513
        %v1530 = vxor.u32 %v1498, 2147483648
        %v1531 = vxor.u32 %v1499, 2147483648
        %v1532 = vxor.u32 %v1500, 2147483648
        %v1533 = vxor.u32 %v1501, 2147483648
        %v1534 = vxor.u32 %v1502, 2147483648
        %v1535 = vxor.u32 %v1503, 2147483648
        %v1536 = vxor.u32 %v1504, 2147483648
        %v1537 = vxor.u32 %v1505, 2147483648
        %v1538 = vxor.u32 %v1506, 2147483648
        %v1539 = vxor.u32 %v1507, 2147483648
        %v1540 = vxor.u32 %v1508, 2147483648
        %v1541 = vxor.u32 %v1509, 2147483648
        %v1542 = vxor.u32 %v1510, 2147483648
        %v1543 = vxor.u32 %v1511, 2147483648
        %v1544 = vxor.u32 %v1512, 2147483648
        %v1545 = vxor.u32 %v1513, 2147483648
        %v1546 = vmul.f32 %v1530, 1.442695
        %v1547 = vpow.pop %v1546
        %v1548 = vmul.f32 %v1531, 1.442695
        %v1549 = vpow.pop %v1548
        %v1550 = vmul.f32 %v1532, 1.442695
        %v1551 = vpow.pop %v1550
        %v1552 = vmul.f32 %v1533, 1.442695
        %v1553 = vpow.pop %v1552
        %v1554 = vmul.f32 %v1534, 1.442695
        %v1555 = vpow.pop %v1554
        %v1556 = vmul.f32 %v1535, 1.442695
        %v1557 = vpow.pop %v1556
        %v1558 = vmul.f32 %v1536, 1.442695
        %v1559 = vpow.pop %v1558
        %v1560 = vmul.f32 %v1537, 1.442695
        %v1561 = vpow.pop %v1560
        %v1562 = vmul.f32 %v1538, 1.442695
        %v1563 = vpow.pop %v1562
        %v1564 = vmul.f32 %v1539, 1.442695
        %v1565 = vpow.pop %v1564
        %v1566 = vmul.f32 %v1540, 1.442695
        %v1567 = vpow.pop %v1566
        %v1568 = vmul.f32 %v1541, 1.442695
        %v1569 = vpow.pop %v1568
        %v1570 = vmul.f32 %v1542, 1.442695
        %v1571 = vpow.pop %v1570
        %v1572 = vmul.f32 %v1543, 1.442695
        %v1573 = vpow.pop %v1572
        %v1574 = vmul.f32 %v1544, 1.442695
        %v1575 = vpow.pop %v1574
        %v1576 = vmul.f32 %v1545, 1.442695
        %v1577 = vpow.pop %v1576
        %v1578 = vadd.f32 %v1547, 1.0
        %v1579 = vadd.f32 %v1549, 1.0
        %v1580 = vadd.f32 %v1551, 1.0
        %v1581 = vadd.f32 %v1553, 1.0
        %v1582 = vadd.f32 %v1555, 1.0
        %v1583 = vadd.f32 %v1557, 1.0
        %v1584 = vadd.f32 %v1559, 1.0
        %v1585 = vadd.f32 %v1561, 1.0
        %v1586 = vadd.f32 %v1563, 1.0
        %v1587 = vadd.f32 %v1565, 1.0
        %v1588 = vadd.f32 %v1567, 1.0
        %v1589 = vadd.f32 %v1569, 1.0
        %v1590 = vadd.f32 %v1571, 1.0
        %v1591 = vadd.f32 %v1573, 1.0
        %v1592 = vadd.f32 %v1575, 1.0
        %v1593 = vadd.f32 %v1577, 1.0
        %v1594 = vrcp.pop %v1578
        %v1595 = vmul.f32 1.0, %v1594
        %v1596 = vrcp.pop %v1579
        %v1597 = vmul.f32 1.0, %v1596
        %v1598 = vrcp.pop %v1580
        %v1599 = vmul.f32 1.0, %v1598
        %v1600 = vrcp.pop %v1581
        %v1601 = vmul.f32 1.0, %v1600
        %v1602 = vrcp.pop %v1582
        %v1603 = vmul.f32 1.0, %v1602
        %v1604 = vrcp.pop %v1583
        %v1605 = vmul.f32 1.0, %v1604
        %v1606 = vrcp.pop %v1584
        %v1607 = vmul.f32 1.0, %v1606
        %v1608 = vrcp.pop %v1585
        %v1609 = vmul.f32 1.0, %v1608
        %v1610 = vrcp.pop %v1586
        %v1611 = vmul.f32 1.0, %v1610
        %v1612 = vrcp.pop %v1587
        %v1613 = vmul.f32 1.0, %v1612
        %v1614 = vrcp.pop %v1588
        %v1615 = vmul.f32 1.0, %v1614
        %v1616 = vrcp.pop %v1589
        %v1617 = vmul.f32 1.0, %v1616
        %v1618 = vrcp.pop %v1590
        %v1619 = vmul.f32 1.0, %v1618
        %v1620 = vrcp.pop %v1591
        %v1621 = vmul.f32 1.0, %v1620
        %v1622 = vrcp.pop %v1592
        %v1623 = vmul.f32 1.0, %v1622
        %v1624 = vrcp.pop %v1593
        %v1625 = vmul.f32 1.0, %v1624
        %1642 = vrot.lane.b32.xlu0 %v1595, 96
        %v1643 = vpop.permute.xlu0 %1642
        %1644 = vrot.lane.b32.xlu0 %v1597, 96
        %v1645 = vpop.permute.xlu0 %1644
        %1646 = vrot.lane.b32.xlu0 %v1599, 96
        %v1647 = vpop.permute.xlu0 %1646
        %1648 = vrot.lane.b32.xlu0 %v1601, 96
        %v1649 = vpop.permute.xlu0 %1648
        %1650 = vrot.lane.b32.xlu0 %v1603, 96
        %v1651 = vpop.permute.xlu0 %1650
        %1652 = vrot.lane.b32.xlu0 %v1605, 96
        %v1653 = vpop.permute.xlu0 %1652
        %1654 = vrot.lane.b32.xlu0 %v1607, 96
        %v1655 = vpop.permute.xlu0 %1654
        %1656 = vrot.lane.b32.xlu0 %v1609, 96
        %v1657 = vpop.permute.xlu0 %1656
        %1658 = vrot.lane.b32.xlu0 %v1611, 96
        %v1659 = vpop.permute.xlu0 %1658
        %1660 = vrot.lane.b32.xlu0 %v1613, 96
        %v1661 = vpop.permute.xlu0 %1660
        %1662 = vrot.lane.b32.xlu0 %v1615, 96
        %v1663 = vpop.permute.xlu0 %1662
        %1664 = vrot.lane.b32.xlu0 %v1617, 96
        %v1665 = vpop.permute.xlu0 %1664
        %1666 = vrot.lane.b32.xlu0 %v1619, 96
        %v1667 = vpop.permute.xlu0 %1666
        %1668 = vrot.lane.b32.xlu0 %v1621, 96
        %v1669 = vpop.permute.xlu0 %1668
        %1670 = vrot.lane.b32.xlu0 %v1623, 96
        %v1671 = vpop.permute.xlu0 %1670
        %1672 = vrot.lane.b32.xlu0 %v1625, 96
        %v1673 = vpop.permute.xlu0 %1672
        %v1690 = vmul.f32 %v1514, %v1643
        %v1691 = vmul.f32 %v1515, %v1645
        %v1692 = vmul.f32 %v1516, %v1647
        %v1693 = vmul.f32 %v1517, %v1649
        %v1694 = vmul.f32 %v1518, %v1651
        %v1695 = vmul.f32 %v1519, %v1653
        %v1696 = vmul.f32 %v1520, %v1655
        %v1697 = vmul.f32 %v1521, %v1657
        %v1698 = vmul.f32 %v1522, %v1659
        %v1699 = vmul.f32 %v1523, %v1661
        %v1700 = vmul.f32 %v1524, %v1663
        %v1701 = vmul.f32 %v1525, %v1665
        %v1702 = vmul.f32 %v1526, %v1667
        %v1703 = vmul.f32 %v1527, %v1669
        %v1704 = vmul.f32 %v1528, %v1671
        %v1705 = vmul.f32 %v1529, %v1673
        %v1706 = vld [vmem:[%s4] sm:$0xff]
        %v1707 = vld [vmem:[%s4 + $0x8] sm:$0xff]
        %v1708 = vld [vmem:[%s4 + $0x10] sm:$0xff]
        %v1709 = vld [vmem:[%s4 + $0x18] sm:$0xff]
        %v1710 = vld [vmem:[%s5] sm:$0x1]
        %v1712 = vlaneseq
        %v1713 = vshrl.u32 %v1712, 7
        %v1714 = vsub.s32 0, %v1713
        %v1715 = vrot.slane %v1710, %v1714
        %v1718 = vsel %vm377, %v1690, 0
        %v1721 = vsel %vm377, %v1691, 0
        %v1724 = vsel %vm377, %v1692, 0
        %v1727 = vsel %vm377, %v1693, 0
        %v1730 = vsel %vm377, %v1694, 0
        %v1733 = vsel %vm377, %v1695, 0
        %v1736 = vsel %vm377, %v1696, 0
        %v1739 = vsel %vm377, %v1697, 0
        %v1742 = vsel %vm377, %v1698, 0
        %v1745 = vsel %vm377, %v1699, 0
        %v1748 = vsel %vm377, %v1700, 0
        %v1751 = vsel %vm377, %v1701, 0
        %v1754 = vsel %vm377, %v1702, 0
        %v1757 = vsel %vm377, %v1703, 0
        %v1760 = vsel %vm377, %v1704, 0
        %v1763 = vsel %vm377, %v1705, 0
        %1765 = vmatprep.subr.mxu0 0.0
        %1766 = vmatpush1.msra.mxu0 %v1706
        %1767 = vmatprep.subr.mxu0 0.0
        %1768 = vmatpush1.msra.mxu0 %v1707
        %1769 = vmatprep.subr.mxu0 0.0
        %1770 = vmatpush1.msra.mxu0 %v1708
        %1771 = vmatprep.subr.mxu0 0.0
        %1772 = vmatpush1.msra.mxu0 %v1709
        %1773 = vmatprep.subr.mxu0 0.0
        %1774 = vmatpush1.msra.mxu0 0.0
        %1775 = vmatprep.subr.mxu0 0.0
        %1776 = vmatpush1.msra.mxu0 0.0
        %1777 = vmatprep.subr.mxu0 0.0
        %1778 = vmatpush1.msra.mxu0 0.0
        %1779 = vmatprep.subr.mxu0 0.0
        %1780 = vmatpush1.msra.mxu0 0.0
        %1781 = vmatprep.subr.mxu0 0.0
        %1782 = vmatpush1.msra.mxu0 0.0
        %1783 = vmatprep.subr.mxu0 0.0
        %1784 = vmatpush1.msra.mxu0 0.0
        %1785 = vmatprep.subr.mxu0 0.0
        %1786 = vmatpush1.msra.mxu0 0.0
        %1787 = vmatprep.subr.mxu0 0.0
        %1788 = vmatpush1.msra.mxu0 0.0
        %1789 = vmatprep.subr.mxu0 0.0
        %1790 = vmatpush1.msra.mxu0 0.0
        %1791 = vmatprep.subr.mxu0 0.0
        %1792 = vmatpush1.msra.mxu0 0.0
        %1793 = vmatprep.subr.mxu0 0.0
        %1794 = vmatpush1.msra.mxu0 0.0
        %1795 = vmatprep.subr.mxu0 0.0
        %1796 = vmatpush1.msra.mxu0 0.0
        %1797 = vmatprep.subr.mxu0 0.0
        %1798 = vmatpush1.msra.mxu0 0.0
        %1799 = vmatprep.subr.mxu0 0.0
        %1800 = vmatpush1.msra.mxu0 0.0
        %1801 = vmatprep.subr.mxu0 0.0
        %1802 = vmatpush1.msra.mxu0 0.0
        %1803 = vmatprep.subr.mxu0 0.0
        %1804 = vmatpush1.msra.mxu0 0.0
        %1805 = vmatprep.subr.mxu0 0.0
        %1806 = vmatpush1.msra.mxu0 0.0
        %1807 = vmatprep.subr.mxu0 0.0
        %1808 = vmatpush1.msra.mxu0 0.0
        %1809 = vmatprep.subr.mxu0 0.0
        %1810 = vmatpush1.msra.mxu0 0.0
        %1811 = vmatprep.subr.mxu0 0.0
        %1812 = vmatpush1.msra.mxu0 0.0
        %1813 = vmatprep.subr.mxu0 0.0
        %1814 = vmatpush1.msra.mxu0 0.0
        %1815 = vmatprep.subr.mxu0 0.0
        %1816 = vmatpush1.msra.mxu0 0.0
        %1817 = vmatprep.subr.mxu0 0.0
        %1818 = vmatpush1.msra.mxu0 0.0
        %1819 = vmatprep.subr.mxu0 0.0
        %1820 = vmatpush1.msra.mxu0 0.0
        %1821 = vmatprep.subr.mxu0 0.0
        %1822 = vmatpush1.msra.mxu0 0.0
        %1823 = vmatprep.subr.mxu0 0.0
        %1824 = vmatpush1.msra.mxu0 0.0
        %1825 = vmatprep.subr.mxu0 0.0
        %1826 = vmatpush1.msra.mxu0 0.0
        %1827 = vmatprep.subr.mxu0 0.0
        %1828 = vmatpush1.msra.mxu0 0.0
        %1829 = vmatprep.mubr.f32.mxu0 0.0
        %1830 = vmatmul.mubr.f32.gmra.mrb[0].mxu0 %v1718
        %v1831 = vpop.f32.mrb[0].mxu0
        %v1832 = vadd.f32 %v1715, %v1831
        %v1833 = vpop.f32.mrb[0].mxu0
        %1834 = vmatprep.mubr.f32.mxu0 0.0
        %1835 = vmatmul.mubr.f32.gmra.mrb[0].mxu0 %v1721
        %v1836 = vpop.f32.mrb[0].mxu0
        %v1837 = vadd.f32 %v1715, %v1836
        %v1838 = vpop.f32.mrb[0].mxu0
        %1839 = vmatprep.mubr.f32.mxu0 0.0
        %1840 = vmatmul.mubr.f32.gmra.mrb[0].mxu0 %v1724
        %v1841 = vpop.f32.mrb[0].mxu0
        %v1842 = vadd.f32 %v1715, %v1841
        %v1843 = vpop.f32.mrb[0].mxu0
        %1844 = vmatprep.mubr.f32.mxu0 0.0
        %1845 = vmatmul.mubr.f32.gmra.mrb[0].mxu0 %v1727
        %v1846 = vpop.f32.mrb[0].mxu0
        %v1847 = vadd.f32 %v1715, %v1846
        %v1848 = vpop.f32.mrb[0].mxu0
        %1849 = vmatprep.mubr.f32.mxu0 0.0
        %1850 = vmatmul.mubr.f32.gmra.mrb[0].mxu0 %v1730
        %v1851 = vpop.f32.mrb[0].mxu0
        %v1852 = vadd.f32 %v1715, %v1851
        %v1853 = vpop.f32.mrb[0].mxu0
        %1854 = vmatprep.mubr.f32.mxu0 0.0
        %1855 = vmatmul.mubr.f32.gmra.mrb[0].mxu0 %v1733
        %v1856 = vpop.f32.mrb[0].mxu0
        %v1857 = vadd.f32 %v1715, %v1856
        %v1858 = vpop.f32.mrb[0].mxu0
        %1859 = vmatprep.mubr.f32.mxu0 0.0
        %1860 = vmatmul.mubr.f32.gmra.mrb[0].mxu0 %v1736
        %v1861 = vpop.f32.mrb[0].mxu0
        %v1862 = vadd.f32 %v1715, %v1861
        %v1863 = vpop.f32.mrb[0].mxu0
        %1864 = vmatprep.mubr.f32.mxu0 0.0
        %1865 = vmatmul.mubr.f32.gmra.mrb[0].mxu0 %v1739
        %v1866 = vpop.f32.mrb[0].mxu0
        %v1867 = vadd.f32 %v1715, %v1866
        %v1868 = vpop.f32.mrb[0].mxu0
        %1869 = vmatprep.mubr.f32.mxu0 0.0
        %1870 = vmatmul.mubr.f32.gmra.mrb[0].mxu0 %v1742
        %v1871 = vpop.f32.mrb[0].mxu0
        %v1872 = vadd.f32 %v1715, %v1871
        %v1873 = vpop.f32.mrb[0].mxu0
        %1874 = vmatprep.mubr.f32.mxu0 0.0
        %1875 = vmatmul.mubr.f32.gmra.mrb[0].mxu0 %v1745
        %v1876 = vpop.f32.mrb[0].mxu0
        %v1877 = vadd.f32 %v1715, %v1876
        %v1878 = vpop.f32.mrb[0].mxu0
        %1879 = vmatprep.mubr.f32.mxu0 0.0
        %1880 = vmatmul.mubr.f32.gmra.mrb[0].mxu0 %v1748
        %v1881 = vpop.f32.mrb[0].mxu0
        %v1882 = vadd.f32 %v1715, %v1881
        %v1883 = vpop.f32.mrb[0].mxu0
        %1884 = vmatprep.mubr.f32.mxu0 0.0
        %1885 = vmatmul.mubr.f32.gmra.mrb[0].mxu0 %v1751
        %v1886 = vpop.f32.mrb[0].mxu0
        %v1887 = vadd.f32 %v1715, %v1886
        %v1888 = vpop.f32.mrb[0].mxu0
        %1889 = vmatprep.mubr.f32.mxu0 0.0
        %1890 = vmatmul.mubr.f32.gmra.mrb[0].mxu0 %v1754
        %v1891 = vpop.f32.mrb[0].mxu0
        %v1892 = vadd.f32 %v1715, %v1891
        %v1893 = vpop.f32.mrb[0].mxu0
        %1894 = vmatprep.mubr.f32.mxu0 0.0
        %1895 = vmatmul.mubr.f32.gmra.mrb[0].mxu0 %v1757
        %v1896 = vpop.f32.mrb[0].mxu0
        %v1897 = vadd.f32 %v1715, %v1896
        %v1898 = vpop.f32.mrb[0].mxu0
        %1899 = vmatprep.mubr.f32.mxu0 0.0
        %1900 = vmatmul.mubr.f32.gmra.mrb[0].mxu0 %v1760
        %v1901 = vpop.f32.mrb[0].mxu0
        %v1902 = vadd.f32 %v1715, %v1901
        %v1903 = vpop.f32.mrb[0].mxu0
        %1904 = vmatprep.mubr.f32.mxu0 0.0
        %1905 = vmatmul.mubr.f32.gmra.mrb[0].mxu0 %v1763
        %v1906 = vpop.f32.mrb[0].mxu0
        %v1907 = vadd.f32 %v1715, %v1906
        %v1908 = vpop.f32.mrb[0].mxu0
        %1909 = vdwg.mxu0
        %s1910 = sld [smem:[#allocation2 + %s24]]
        %v1911 = vlaneseq
        %v1912 = vshrl.u32 %v1911, 7
        %v1913 = vadd.s32 %v1912, 8
        %v1914 = vadd.s32 %v1912, 16
        %v1915 = vadd.s32 %v1912, 24
        %v1916 = vadd.s32 %v1912, 32
        %v1917 = vadd.s32 %v1912, 40
        %v1918 = vadd.s32 %v1912, 48
        %v1919 = vadd.s32 %v1912, 56
        %v1920 = vadd.s32 %v1912, 64
        %v1921 = vadd.s32 %v1912, 72
        %v1922 = vadd.s32 %v1912, 80
        %v1923 = vadd.s32 %v1912, 88
        %v1924 = vadd.s32 %v1912, 96
        %v1925 = vadd.s32 %v1912, 104
        %v1926 = vadd.s32 %v1912, 112
        %v1927 = vadd.s32 %v1912, 120
        %v1928 = vstv %s345
        %v1929 = vadd.s32 %v1928, %v1912
        %v1930 = vadd.s32 %v1928, %v1913
        %v1931 = vadd.s32 %v1928, %v1914
        %v1932 = vadd.s32 %v1928, %v1915
        %v1933 = vadd.s32 %v1928, %v1916
        %v1934 = vadd.s32 %v1928, %v1917
        %v1935 = vadd.s32 %v1928, %v1918
        %v1936 = vadd.s32 %v1928, %v1919
        %v1937 = vadd.s32 %v1928, %v1920
        %v1938 = vadd.s32 %v1928, %v1921
        %v1939 = vadd.s32 %v1928, %v1922
        %v1940 = vadd.s32 %v1928, %v1923
        %v1941 = vadd.s32 %v1928, %v1924
        %v1942 = vadd.s32 %v1928, %v1925
        %v1943 = vadd.s32 %v1928, %v1926
        %v1944 = vadd.s32 %v1928, %v1927
        %vm1945 = vcmp.ge.s32.totalorder %v1929, 0
        %vm1946 = vcmp.ge.s32.totalorder %v1930, 0
        %vm1947 = vcmp.ge.s32.totalorder %v1931, 0
        %vm1948 = vcmp.ge.s32.totalorder %v1932, 0
        %vm1949 = vcmp.ge.s32.totalorder %v1933, 0
        %vm1950 = vcmp.ge.s32.totalorder %v1934, 0
        %vm1951 = vcmp.ge.s32.totalorder %v1935, 0
        %vm1952 = vcmp.ge.s32.totalorder %v1936, 0
        %vm1953 = vcmp.ge.s32.totalorder %v1937, 0
        %vm1954 = vcmp.ge.s32.totalorder %v1938, 0
        %vm1955 = vcmp.ge.s32.totalorder %v1939, 0
        %vm1956 = vcmp.ge.s32.totalorder %v1940, 0
        %vm1957 = vcmp.ge.s32.totalorder %v1941, 0
        %vm1958 = vcmp.ge.s32.totalorder %v1942, 0
        %vm1959 = vcmp.ge.s32.totalorder %v1943, 0
        %vm1960 = vcmp.ge.s32.totalorder %v1944, 0
        %v1961 = vstv %s1910
        %vm1962 = vcmp.lt.s32.totalorder %v1929, %v1961
        %vm1963 = vcmp.lt.s32.totalorder %v1930, %v1961
        %vm1964 = vcmp.lt.s32.totalorder %v1931, %v1961
        %vm1965 = vcmp.lt.s32.totalorder %v1932, %v1961
        %vm1966 = vcmp.lt.s32.totalorder %v1933, %v1961
        %vm1967 = vcmp.lt.s32.totalorder %v1934, %v1961
        %vm1968 = vcmp.lt.s32.totalorder %v1935, %v1961
        %vm1969 = vcmp.lt.s32.totalorder %v1936, %v1961
        %vm1970 = vcmp.lt.s32.totalorder %v1937, %v1961
        %vm1971 = vcmp.lt.s32.totalorder %v1938, %v1961
        %vm1972 = vcmp.lt.s32.totalorder %v1939, %v1961
        %vm1973 = vcmp.lt.s32.totalorder %v1940, %v1961
        %vm1974 = vcmp.lt.s32.totalorder %v1941, %v1961
        %vm1975 = vcmp.lt.s32.totalorder %v1942, %v1961
        %vm1976 = vcmp.lt.s32.totalorder %v1943, %v1961
        %vm1977 = vcmp.lt.s32.totalorder %v1944, %v1961
        %vm1978 = vmand %vm1945, %vm1962
        %vm1979 = vmand %vm1946, %vm1963
        %vm1980 = vmand %vm1947, %vm1964
        %vm1981 = vmand %vm1948, %vm1965
        %vm1982 = vmand %vm1949, %vm1966
        %vm1983 = vmand %vm1950, %vm1967
        %vm1984 = vmand %vm1951, %vm1968
        %vm1985 = vmand %vm1952, %vm1969
        %vm1986 = vmand %vm1953, %vm1970
        %vm1987 = vmand %vm1954, %vm1971
        %vm1988 = vmand %vm1955, %vm1972
        %vm1989 = vmand %vm1956, %vm1973
        %vm1990 = vmand %vm1957, %vm1974
        %vm1991 = vmand %vm1958, %vm1975
        %vm1992 = vmand %vm1959, %vm1976
        %vm1993 = vmand %vm1960, %vm1977
        %v1994 = vsel %vm1978, 1, 0
        %v1995 = vsel %vm1979, 1, 0
        %v1996 = vsel %vm1980, 1, 0
        %v1997 = vsel %vm1981, 1, 0
        %v1998 = vsel %vm1982, 1, 0
        %v1999 = vsel %vm1983, 1, 0
        %v2000 = vsel %vm1984, 1, 0
        %v2001 = vsel %vm1985, 1, 0
        %v2002 = vsel %vm1986, 1, 0
        %v2003 = vsel %vm1987, 1, 0
        %v2004 = vsel %vm1988, 1, 0
        %v2005 = vsel %vm1989, 1, 0
        %v2006 = vsel %vm1990, 1, 0
        %v2007 = vsel %vm1991, 1, 0
        %v2008 = vsel %vm1992, 1, 0
        %v2009 = vsel %vm1993, 1, 0
        %v2010 = vcvt.s32.f32 %v1994
        %v2011 = vcvt.s32.f32 %v1995
        %v2012 = vcvt.s32.f32 %v1996
        %v2013 = vcvt.s32.f32 %v1997
        %v2014 = vcvt.s32.f32 %v1998
        %v2015 = vcvt.s32.f32 %v1999
        %v2016 = vcvt.s32.f32 %v2000
        %v2017 = vcvt.s32.f32 %v2001
        %v2018 = vcvt.s32.f32 %v2002
        %v2019 = vcvt.s32.f32 %v2003
        %v2020 = vcvt.s32.f32 %v2004
        %v2021 = vcvt.s32.f32 %v2005
        %v2022 = vcvt.s32.f32 %v2006
        %v2023 = vcvt.s32.f32 %v2007
        %v2024 = vcvt.s32.f32 %v2008
        %v2025 = vcvt.s32.f32 %v2009
        %v2026 = vadd.f32 %v820, %v1832
        %v2027 = vadd.f32 %v821, %v1837
        %v2028 = vadd.f32 %v822, %v1842
        %v2029 = vadd.f32 %v823, %v1847
        %v2030 = vadd.f32 %v824, %v1852
        %v2031 = vadd.f32 %v825, %v1857
        %v2032 = vadd.f32 %v826, %v1862
        %v2033 = vadd.f32 %v827, %v1867
        %v2034 = vadd.f32 %v828, %v1872
        %v2035 = vadd.f32 %v829, %v1877
        %v2036 = vadd.f32 %v830, %v1882
        %v2037 = vadd.f32 %v831, %v1887
        %v2038 = vadd.f32 %v832, %v1892
        %v2039 = vadd.f32 %v833, %v1897
        %v2040 = vadd.f32 %v834, %v1902
        %v2041 = vadd.f32 %v835, %v1907
        %v2042 = vmul.f32 %v2026, %v2010
        %v2043 = vmul.f32 %v2027, %v2011
        %v2044 = vmul.f32 %v2028, %v2012
        %v2045 = vmul.f32 %v2029, %v2013
        %v2046 = vmul.f32 %v2030, %v2014
        %v2047 = vmul.f32 %v2031, %v2015
        %v2048 = vmul.f32 %v2032, %v2016
        %v2049 = vmul.f32 %v2033, %v2017
        %v2050 = vmul.f32 %v2034, %v2018
        %v2051 = vmul.f32 %v2035, %v2019
        %v2052 = vmul.f32 %v2036, %v2020
        %v2053 = vmul.f32 %v2037, %v2021
        %v2054 = vmul.f32 %v2038, %v2022
        %v2055 = vmul.f32 %v2039, %v2023
        %v2056 = vmul.f32 %v2040, %v2024
        %v2057 = vmul.f32 %v2041, %v2025
        %2058 = vst.msk [vmem:[%s332] sm:$0xff] %vm377, %v2042
        %2059 = vst.msk [vmem:[%s332 + $0x8] sm:$0xff] %vm377, %v2043
        %2060 = vst.msk [vmem:[%s332 + $0x10] sm:$0xff] %vm377, %v2044
        %2061 = vst.msk [vmem:[%s332 + $0x18] sm:$0xff] %vm377, %v2045
        %2062 = vst.msk [vmem:[%s332 + $0x20] sm:$0xff] %vm377, %v2046
        %2063 = vst.msk [vmem:[%s332 + $0x28] sm:$0xff] %vm377, %v2047
        %2064 = vst.msk [vmem:[%s332 + $0x30] sm:$0xff] %vm377, %v2048
        %2065 = vst.msk [vmem:[%s332 + $0x38] sm:$0xff] %vm377, %v2049
        %2066 = vst.msk [vmem:[%s332 + $0x40] sm:$0xff] %vm377, %v2050
        %2067 = vst.msk [vmem:[%s332 + $0x48] sm:$0xff] %vm377, %v2051
        %2068 = vst.msk [vmem:[%s332 + $0x50] sm:$0xff] %vm377, %v2052
        %2069 = vst.msk [vmem:[%s332 + $0x58] sm:$0xff] %vm377, %v2053
        %2070 = vst.msk [vmem:[%s332 + $0x60] sm:$0xff] %vm377, %v2054
        %2071 = vst.msk [vmem:[%s332 + $0x68] sm:$0xff] %vm377, %v2055
        %2072 = vst.msk [vmem:[%s332 + $0x70] sm:$0xff] %vm377, %v2056
        %2073 = vst.msk [vmem:[%s332 + $0x78] sm:$0xff] %vm377, %v2057
        %2090 = vrot.lane.b32.xlu0 %v1832, 96
        %v2091 = vpop.permute.xlu0 %2090
        %2092 = vrot.lane.b32.xlu0 %v1837, 96
        %v2093 = vpop.permute.xlu0 %2092
        %2094 = vrot.lane.b32.xlu0 %v1842, 96
        %v2095 = vpop.permute.xlu0 %2094
        %2096 = vrot.lane.b32.xlu0 %v1847, 96
        %v2097 = vpop.permute.xlu0 %2096
        %2098 = vrot.lane.b32.xlu0 %v1852, 96
        %v2099 = vpop.permute.xlu0 %2098
        %2100 = vrot.lane.b32.xlu0 %v1857, 96
        %v2101 = vpop.permute.xlu0 %2100
        %2102 = vrot.lane.b32.xlu0 %v1862, 96
        %v2103 = vpop.permute.xlu0 %2102
        %2104 = vrot.lane.b32.xlu0 %v1867, 96
        %v2105 = vpop.permute.xlu0 %2104
        %2106 = vrot.lane.b32.xlu0 %v1872, 96
        %v2107 = vpop.permute.xlu0 %2106
        %2108 = vrot.lane.b32.xlu0 %v1877, 96
        %v2109 = vpop.permute.xlu0 %2108
        %2110 = vrot.lane.b32.xlu0 %v1882, 96
        %v2111 = vpop.permute.xlu0 %2110
        %2112 = vrot.lane.b32.xlu0 %v1887, 96
        %v2113 = vpop.permute.xlu0 %2112
        %2114 = vrot.lane.b32.xlu0 %v1892, 96
        %v2115 = vpop.permute.xlu0 %2114
        %2116 = vrot.lane.b32.xlu0 %v1897, 96
        %v2117 = vpop.permute.xlu0 %2116
        %2118 = vrot.lane.b32.xlu0 %v1902, 96
        %v2119 = vpop.permute.xlu0 %2118
        %2120 = vrot.lane.b32.xlu0 %v1907, 96
        %v2121 = vpop.permute.xlu0 %2120
        %2138 = vst.msk [vmem:[%s343] sm:$0xff] %vm377, %v2091
        %2139 = vst.msk [vmem:[%s343 + $0x8] sm:$0xff] %vm377, %v2093
        %2140 = vst.msk [vmem:[%s343 + $0x10] sm:$0xff] %vm377, %v2095
        %2141 = vst.msk [vmem:[%s343 + $0x18] sm:$0xff] %vm377, %v2097
        %2142 = vst.msk [vmem:[%s343 + $0x20] sm:$0xff] %vm377, %v2099
        %2143 = vst.msk [vmem:[%s343 + $0x28] sm:$0xff] %vm377, %v2101
        %2144 = vst.msk [vmem:[%s343 + $0x30] sm:$0xff] %vm377, %v2103
        %2145 = vst.msk [vmem:[%s343 + $0x38] sm:$0xff] %vm377, %v2105
        %2146 = vst.msk [vmem:[%s343 + $0x40] sm:$0xff] %vm377, %v2107
        %2147 = vst.msk [vmem:[%s343 + $0x48] sm:$0xff] %vm377, %v2109
        %2148 = vst.msk [vmem:[%s343 + $0x50] sm:$0xff] %vm377, %v2111
        %2149 = vst.msk [vmem:[%s343 + $0x58] sm:$0xff] %vm377, %v2113
        %2150 = vst.msk [vmem:[%s343 + $0x60] sm:$0xff] %vm377, %v2115
        %2151 = vst.msk [vmem:[%s343 + $0x68] sm:$0xff] %vm377, %v2117
        %2152 = vst.msk [vmem:[%s343 + $0x70] sm:$0xff] %vm377, %v2119
        %2153 = vst.msk [vmem:[%s343 + $0x78] sm:$0xff] %vm377, %v2121
        %s2154 = sadd.s32 %s25, 1
        %s2155 = smul.u32 16, %s2154
        %p2156 = scmp.lt.s32.totalorder %s24, 1
        %s2157 = scalar_select %p2156, %s24, 1
        %p2158 = scmp.lt.s32.totalorder %s2155, 47
        %s2159 = scalar_select %p2158, %s2155, 47
        %s2160 = smul.addr %s2157, 48
        %s2161 = sadd.s32 %s2159, %s2160
        %s2162 = smul.addr %s2161, 8
        %s2163 = scalar_lea.vmem %s6, %s2162
        %s2164 = smul.u32 16, %s25
        %p2165 = scmp.lt.s32.totalorder %s24, 1
        %s2166 = scalar_select %p2165, %s24, 1
        %p2167 = scmp.lt.s32.totalorder %s2164, 15
        %s2168 = scalar_select %p2167, %s2164, 15
        %s2169 = smul.addr %s2166, 16
        %s2170 = sadd.s32 %s2168, %s2169
        %s2171 = smul.addr %s2170, 8
        %s2172 = scalar_lea.vmem %s7, %s2171
        // Predicated region
        $region49: #{posterior_encoder_forward.6} parent=43 // pred_check
          %p2173 = pneg %p185
        $region50: #{posterior_encoder_forward.6} parent=43 // pred_check_branch
          %2175 = sbr.rel (%p2173) target = $region52
        $region51: #{posterior_encoder_forward.6} parent=43 // pred_region
          %s2176 = sadd.s32 %s25, 1
          %s2177 = smul.u32 16, %s2176
        $region52: #{posterior_encoder_forward.6} parent=43 // pred_fallthru
          _
        // Predicated region
        $region53: #{posterior_encoder_forward.6} parent=43 // pred_check
          %p2178 = pneg %p213
        $region54: #{posterior_encoder_forward.6} parent=43 // pred_check_branch
          %2180 = sbr.rel (%p2178) target = $region56
        $region55: #{posterior_encoder_forward.6} parent=43 // pred_region
          %s2181 = smul.u32 16, %s25
        $region56: #{posterior_encoder_forward.6} parent=43 // pred_fallthru
          _
      $region44: #{posterior_encoder_forward.6} parent=5 // pred_fallthru
        _
      %p2182 = scmp.le.s32.totalorder 2, %s15
      // Predicated region
      $region57: #{posterior_encoder_forward.6} parent=5 // pred_check
        %p2183 = pneg %p2182
      $region58: #{posterior_encoder_forward.6} parent=5 // pred_check_branch
        %2185 = sbr.rel (%p2183) target = $region60
      $region59: #{posterior_encoder_forward.6} parent=5 // pred_region
        %s2186 = ssub.s32 %s15, 2
        // Predicated region
        $region61: #{posterior_encoder_forward.6} parent=59 // pred_check
          %p2187 = pneg %p191
        $region62: #{posterior_encoder_forward.6} parent=59 // pred_check_branch
          %2189 = sbr.rel (%p2187) target = $region64
        $region63: #{posterior_encoder_forward.6} parent=59 // pred_region
          %s2190 = sadd.s32 %s27, 1
          %s2191 = smul.u32 16, %s2190
          %p2192 = scmp.lt.s32.totalorder %s26, 1
          %s2193 = scalar_select %p2192, %s26, 1
          %p2194 = scmp.lt.s32.totalorder %s2191, 47
          %s2195 = scalar_select %p2194, %s2191, 47
          %s2196 = smul.addr %s2193, 48
          %s2197 = sadd.s32 %s2195, %s2196
          %s2198 = smul.addr %s2197, 8
          %s2199 = scalar_lea.vmem %s6, %s2198
        $region64: #{posterior_encoder_forward.6} parent=59 // pred_fallthru
          _
        // Predicated region
        $region65: #{posterior_encoder_forward.6} parent=59 // pred_check
          %p2200 = pneg %p219
        $region66: #{posterior_encoder_forward.6} parent=59 // pred_check_branch
          %2202 = sbr.rel (%p2200) target = $region68
        $region67: #{posterior_encoder_forward.6} parent=59 // pred_region
          %s2203 = smul.u32 16, %s27
          %p2204 = scmp.lt.s32.totalorder %s26, 1
          %s2205 = scalar_select %p2204, %s26, 1
          %p2206 = scmp.lt.s32.totalorder %s2203, 15
          %s2207 = scalar_select %p2206, %s2203, 15
          %s2208 = smul.addr %s2205, 16
          %s2209 = sadd.s32 %s2207, %s2208
          %s2210 = smul.addr %s2209, 8
          %s2211 = scalar_lea.vmem %s7, %s2210
        $region68: #{posterior_encoder_forward.6} parent=59 // pred_fallthru
          _
      $region60: #{posterior_encoder_forward.6} parent=5 // pred_fallthru
        _
    $region6: #{posterior_encoder_forward.6} parent=1 // loop_footer
      %s19 = sadd.s32 1, %s15
    $region7: #{posterior_encoder_forward.6} parent=1 // loop_footer_branch
      %14 = sbr.rel target = $region3
    $region8: #{posterior_encoder_forward.6} parent=1 // loop_exit
      _
    %2212 = vsyncpa [#allocation3], 1
    %s2213 = scalar_lea.sflag [#allocation3], 1
    %2214 = vsyncpa %s2213, 1

// kernel: posterior_encoder_forward.8
$region0: #{posterior_encoder_forward.8}
  #allocation0 [shape = 'u32[]', space=smem, size = 0x4, offset = 0x4, fixed_abs, tag = 'smem constant byte address 0x4 - core index']
  #allocation1 [shape = 'u32[144,128]{1,0:T(1,128)}', space=vmem, size = 0x12000, scoped, tag = 'internal scratch']
  %s0 = inlined_call_operand.vmem [shape: s32[2], index: 0, kind: input, shape index: {}]
  %s1 = inlined_call_operand.vmem [shape: f32[2,384,32], index: 1, kind: input, shape index: {}, may-alias: {1,7}]
  %s2 = inlined_call_operand.vmem [shape: f32[2,128,32], index: 2, kind: input, shape index: {}, may-alias: {2,8}]
  %s3 = inlined_call_operand.vmem [shape: f32[5,32,64], index: 3, kind: input, shape index: {}]
  %s4 = inlined_call_operand.vmem [shape: f32[1,64], index: 4, kind: input, shape index: {}]
  %s5 = inlined_call_operand.vmem [shape: f32[32,64], index: 5, kind: input, shape index: {}]
  %s6 = inlined_call_operand.vmem [shape: f32[1,64], index: 6, kind: input, shape index: {}]
  %s7 = inlined_call_operand.vmem [shape: f32[2,384,32], index: 7, kind: output, shape index: {0}, may-alias: {1,7}]
  %s8 = inlined_call_operand.vmem [shape: f32[2,128,32], index: 8, kind: output, shape index: {1}, may-alias: {2,8}]
  %9 = xla_tuple %s7, %s8
  %s10 = sld [smem:[#allocation0]]
  $region73: #{posterior_encoder_forward.8} parent=0
    _
  %s12 = ssub.s32 1, %s10
  %s13 = scalar_select 0, %s12, %s10
  $region1: #{posterior_encoder_forward.8} parent=0
    #allocation2 [shape = 'u8[512]{0}', space=smem, size = 0x200, scoped, tag = 'input window, operand 0, single buffered']
    #allocation3 [shape = 's32[2]{0}', space=sflag, size = 0x8, scoped, tag = 'scoped memory for posterior_encoder_forward.8']
    %14 = vsyncpa [#allocation3], 0
    loop: start=0, step=1, limit=4
    $region2: #{posterior_encoder_forward.8} parent=1 // loop_pre_header
      _
    $region3: #{posterior_encoder_forward.8} parent=1 // loop_header
      %s16 = sphi 0, %s20
      %p17 = scmp.ge.s32.totalorder %s16, 4
      %s23 = sphi 0, %s35
      %s24 = sphi 0, %s31
      %s25 = sphi 0, %s23
      %s26 = sphi 0, %s24
      %s27 = sphi 0, %s25
      %s28 = sphi 0, %s26
      %s36 = sphi 0, %s36
      %s38 = sphi 0, %s36
      %s39 = sphi 0, %s38
      %s53 = sphi 0, %s39
      %s59 = sphi 0, %s61
      %s62 = sphi 0, %s59
      %s63 = sphi 0, %s62
      %s79 = sphi 0, %s63
      %s87 = sphi 0, %s89
      %s90 = sphi 0, %s87
      %s91 = sphi 0, %s90
      %s107 = sphi 0, %s91
      %s111 = sphi 0, %s111
      %s113 = sphi 0, %s111
      %s114 = sphi 0, %s113
      %s128 = sphi 0, %s114
      %s132 = sphi 0, %s132
      %s134 = sphi 0, %s132
      %s135 = sphi 0, %s134
      %s149 = sphi 0, %s135
      %s153 = sphi 0, %s153
      %s155 = sphi 0, %s153
      %s156 = sphi 0, %s155
      %s170 = sphi 0, %s156
      %s174 = sphi 0, %s174
      %s176 = sphi 0, %s174
      %s177 = sphi 0, %s176
      %s191 = sphi 0, %s177
      %s201 = sphi 0, %s203
      %s204 = sphi 0, %s201
      %s205 = sphi 0, %s204
      %s221 = sphi 0, %s205
      %s229 = sphi 0, %s231
      %s232 = sphi 0, %s229
      %s233 = sphi 0, %s232
      %s249 = sphi 0, %s233
    $region4: #{posterior_encoder_forward.8} parent=1 // loop_header_branch
      %19 = sbr.rel (%p17) target = $region8
    $region5: #{posterior_encoder_forward.8} parent=1 // loop_body
      %s21 = ssub.s32 %s16, 1
      %s22 = ssub.s32 %s16, 2
      %s29 = sadd.s32 1, %s24
      %p30 = scmp.ge.s32.totalorder %s29, 1
      %s31 = scalar_select %p30, 0, %s29
      %s32 = sadd.s32 1, %s23
      %s33 = scalar_select %p30, %s32, %s23
      %p34 = scmp.ge.s32.totalorder %s33, 2
      %s35 = scalar_select %p34, 0, %s33
      %s37 = sadd.s32 %s36, 1
      %p40 = scmp.eq.s32.totalorder %s16, 1
      %p41 = scmp.ne.s32.totalorder %s36, %s38
      %p42 = scmp.eq.s32.totalorder %s16, 0
      %p43 = por %p41, %p42
      %p44 = scmp.ne.s32.totalorder %s36, %s38
      %p45 = scmp.eq.s32.totalorder %s21, 1
      %p46 = por %p44, %p45
      %p47 = scmp.ne.s32.totalorder %s38, %s39
      %p48 = scmp.eq.s32.totalorder %s21, 0
      %p49 = por %p47, %p48
      %p50 = scmp.ne.s32.totalorder %s38, %s39
      %p51 = scmp.eq.s32.totalorder %s22, 1
      %p52 = por %p50, %p51
      %p54 = scmp.ne.s32.totalorder %s39, %s53
      %p55 = scmp.eq.s32.totalorder %s22, 0
      %p56 = por %p54, %p55
      %s57 = ssub.s32 %s23, %s35
      %p58 = scmp.eq.s32.totalorder %s57, 0
      %s60 = sadd.s32 %s59, 1
      %s61 = scalar_select %p58, %s59, %s60
      %p64 = pneg %p58
      %p65 = scmp.eq.s32.totalorder %s16, 1
      %p66 = por %p64, %p65
      %p67 = scmp.ne.s32.totalorder %s59, %s62
      %p68 = scmp.eq.s32.totalorder %s16, 0
      %p69 = por %p67, %p68
      %p70 = scmp.ne.s32.totalorder %s59, %s62
      %p71 = scmp.eq.s32.totalorder %s21, 1
      %p72 = por %p70, %p71
      %p73 = scmp.ne.s32.totalorder %s62, %s63
      %p74 = scmp.eq.s32.totalorder %s21, 0
      %p75 = por %p73, %p74
      %p76 = scmp.ne.s32.totalorder %s62, %s63
      %p77 = scmp.eq.s32.totalorder %s22, 1
      %p78 = por %p76, %p77
      %p80 = scmp.ne.s32.totalorder %s63, %s79
      %p81 = scmp.eq.s32.totalorder %s22, 0
      %p82 = por %p80, %p81
      %s83 = ssub.s32 %s23, %s35
      %s84 = ssub.s32 %s24, %s31
      %s85 = sor.u32 %s83, %s84
      %p86 = scmp.eq.s32.totalorder %s85, 0
      %s88 = sadd.s32 %s87, 1
      %s89 = scalar_select %p86, %s87, %s88
      %p92 = pneg %p86
      %p93 = scmp.eq.s32.totalorder %s16, 1
      %p94 = por %p92, %p93
      %p95 = scmp.ne.s32.totalorder %s87, %s90
      %p96 = scmp.eq.s32.totalorder %s16, 0
      %p97 = por %p95, %p96
      %p98 = scmp.ne.s32.totalorder %s87, %s90
      %p99 = scmp.eq.s32.totalorder %s21, 1
      %p100 = por %p98, %p99
      %p101 = scmp.ne.s32.totalorder %s90, %s91
      %p102 = scmp.eq.s32.totalorder %s21, 0
      %p103 = por %p101, %p102
      %p104 = scmp.ne.s32.totalorder %s90, %s91
      %p105 = scmp.eq.s32.totalorder %s22, 1
      %p106 = por %p104, %p105
      %p108 = scmp.ne.s32.totalorder %s91, %s107
      %p109 = scmp.eq.s32.totalorder %s22, 0
      %p110 = por %p108, %p109
      %s112 = sadd.s32 %s111, 1
      %p115 = scmp.eq.s32.totalorder %s16, 1
      %p116 = scmp.ne.s32.totalorder %s111, %s113
      %p117 = scmp.eq.s32.totalorder %s16, 0
      %p118 = por %p116, %p117
      %p119 = scmp.ne.s32.totalorder %s111, %s113
      %p120 = scmp.eq.s32.totalorder %s21, 1
      %p121 = por %p119, %p120
      %p122 = scmp.ne.s32.totalorder %s113, %s114
      %p123 = scmp.eq.s32.totalorder %s21, 0
      %p124 = por %p122, %p123
      %p125 = scmp.ne.s32.totalorder %s113, %s114
      %p126 = scmp.eq.s32.totalorder %s22, 1
      %p127 = por %p125, %p126
      %p129 = scmp.ne.s32.totalorder %s114, %s128
      %p130 = scmp.eq.s32.totalorder %s22, 0
      %p131 = por %p129, %p130
      %s133 = sadd.s32 %s132, 1
      %p136 = scmp.eq.s32.totalorder %s16, 1
      %p137 = scmp.ne.s32.totalorder %s132, %s134
      %p138 = scmp.eq.s32.totalorder %s16, 0
      %p139 = por %p137, %p138
      %p140 = scmp.ne.s32.totalorder %s132, %s134
      %p141 = scmp.eq.s32.totalorder %s21, 1
      %p142 = por %p140, %p141
      %p143 = scmp.ne.s32.totalorder %s134, %s135
      %p144 = scmp.eq.s32.totalorder %s21, 0
      %p145 = por %p143, %p144
      %p146 = scmp.ne.s32.totalorder %s134, %s135
      %p147 = scmp.eq.s32.totalorder %s22, 1
      %p148 = por %p146, %p147
      %p150 = scmp.ne.s32.totalorder %s135, %s149
      %p151 = scmp.eq.s32.totalorder %s22, 0
      %p152 = por %p150, %p151
      %s154 = sadd.s32 %s153, 1
      %p157 = scmp.eq.s32.totalorder %s16, 1
      %p158 = scmp.ne.s32.totalorder %s153, %s155
      %p159 = scmp.eq.s32.totalorder %s16, 0
      %p160 = por %p158, %p159
      %p161 = scmp.ne.s32.totalorder %s153, %s155
      %p162 = scmp.eq.s32.totalorder %s21, 1
      %p163 = por %p161, %p162
      %p164 = scmp.ne.s32.totalorder %s155, %s156
      %p165 = scmp.eq.s32.totalorder %s21, 0
      %p166 = por %p164, %p165
      %p167 = scmp.ne.s32.totalorder %s155, %s156
      %p168 = scmp.eq.s32.totalorder %s22, 1
      %p169 = por %p167, %p168
      %p171 = scmp.ne.s32.totalorder %s156, %s170
      %p172 = scmp.eq.s32.totalorder %s22, 0
      %p173 = por %p171, %p172
      %s175 = sadd.s32 %s174, 1
      %p178 = scmp.eq.s32.totalorder %s16, 1
      %p179 = scmp.ne.s32.totalorder %s174, %s176
      %p180 = scmp.eq.s32.totalorder %s16, 0
      %p181 = por %p179, %p180
      %p182 = scmp.ne.s32.totalorder %s174, %s176
      %p183 = scmp.eq.s32.totalorder %s21, 1
      %p184 = por %p182, %p183
      %p185 = scmp.ne.s32.totalorder %s176, %s177
      %p186 = scmp.eq.s32.totalorder %s21, 0
      %p187 = por %p185, %p186
      %p188 = scmp.ne.s32.totalorder %s176, %s177
      %p189 = scmp.eq.s32.totalorder %s22, 1
      %p190 = por %p188, %p189
      %p192 = scmp.ne.s32.totalorder %s177, %s191
      %p193 = scmp.eq.s32.totalorder %s22, 0
      %p194 = por %p192, %p193
      %s195 = sadd.s32 %s24, 1
      %s196 = sadd.s32 %s31, 1
      %s197 = ssub.s32 %s23, %s35
      %s198 = ssub.s32 %s195, %s196
      %s199 = sor.u32 %s197, %s198
      %p200 = scmp.eq.s32.totalorder %s199, 0
      %s202 = sadd.s32 %s201, 1
      %s203 = scalar_select %p200, %s201, %s202
      %p206 = pneg %p200
      %p207 = scmp.eq.s32.totalorder %s16, 1
      %p208 = por %p206, %p207
      %p209 = scmp.ne.s32.totalorder %s201, %s204
      %p210 = scmp.eq.s32.totalorder %s16, 0
      %p211 = por %p209, %p210
      %p212 = scmp.ne.s32.totalorder %s201, %s204
      %p213 = scmp.eq.s32.totalorder %s21, 1
      %p214 = por %p212, %p213
      %p215 = scmp.ne.s32.totalorder %s204, %s205
      %p216 = scmp.eq.s32.totalorder %s21, 0
      %p217 = por %p215, %p216
      %p218 = scmp.ne.s32.totalorder %s204, %s205
      %p219 = scmp.eq.s32.totalorder %s22, 1
      %p220 = por %p218, %p219
      %p222 = scmp.ne.s32.totalorder %s205, %s221
      %p223 = scmp.eq.s32.totalorder %s22, 0
      %p224 = por %p222, %p223
      %s225 = ssub.s32 %s23, %s35
      %s226 = ssub.s32 %s24, %s31
      %s227 = sor.u32 %s225, %s226
      %p228 = scmp.eq.s32.totalorder %s227, 0
      %s230 = sadd.s32 %s229, 1
      %s231 = scalar_select %p228, %s229, %s230
      %p234 = pneg %p228
      %p235 = scmp.eq.s32.totalorder %s16, 1
      %p236 = por %p234, %p235
      %p237 = scmp.ne.s32.totalorder %s229, %s232
      %p238 = scmp.eq.s32.totalorder %s16, 0
      %p239 = por %p237, %p238
      %p240 = scmp.ne.s32.totalorder %s229, %s232
      %p241 = scmp.eq.s32.totalorder %s21, 1
      %p242 = por %p240, %p241
      %p243 = scmp.ne.s32.totalorder %s232, %s233
      %p244 = scmp.eq.s32.totalorder %s21, 0
      %p245 = por %p243, %p244
      %p246 = scmp.ne.s32.totalorder %s232, %s233
      %p247 = scmp.eq.s32.totalorder %s22, 1
      %p248 = por %p246, %p247
      %p250 = scmp.ne.s32.totalorder %s233, %s249
      %p251 = scmp.eq.s32.totalorder %s22, 0
      %p252 = por %p250, %p251
      %p253 = scmp.le.s32.totalorder 1, %s16
      %p254 = scmp.lt.s32.totalorder %s16, 3
      %p255 = pnand %p253, %p254
      %p256 = pneg %p255
      // Predicated region
      $region9: #{posterior_encoder_forward.8} parent=5 // pred_check
        _
      $region10: #{posterior_encoder_forward.8} parent=5 // pred_check_branch
        %258 = sbr.rel (%p255) target = $region12
      $region11: #{posterior_encoder_forward.8} parent=5 // pred_region
        %s259 = ssub.s32 %s16, 1
        // Predicated region
        $region13: #{posterior_encoder_forward.8} parent=11 // pred_check
          %p260 = pneg %p49
        $region14: #{posterior_encoder_forward.8} parent=11 // pred_check_branch
          %262 = sbr.rel (%p260) target = $region16
        $region15: #{posterior_encoder_forward.8} parent=11 // pred_region
          %s264 = ssub.s32 16, 16
          %265 = vsyncadd [#allocation3], %s264
          %s267 = sshll.u32 %s0, 4
          %s268 = int_to_ptr.vmem [resolvable:$true] %s267
          %270 = dma.vmem_to_smem %s268, 16, [#allocation2], [#allocation3]
        $region16: #{posterior_encoder_forward.8} parent=11 // pred_fallthru
          _
        // Predicated region
        $region17: #{posterior_encoder_forward.8} parent=11 // pred_check
          %p271 = pneg %p124
        $region18: #{posterior_encoder_forward.8} parent=11 // pred_check_branch
          %273 = sbr.rel (%p271) target = $region20
        $region19: #{posterior_encoder_forward.8} parent=11 // pred_region
          _
        $region20: #{posterior_encoder_forward.8} parent=11 // pred_fallthru
          _
        // Predicated region
        $region21: #{posterior_encoder_forward.8} parent=11 // pred_check
          %p274 = pneg %p145
        $region22: #{posterior_encoder_forward.8} parent=11 // pred_check_branch
          %276 = sbr.rel (%p274) target = $region24
        $region23: #{posterior_encoder_forward.8} parent=11 // pred_region
          _
        $region24: #{posterior_encoder_forward.8} parent=11 // pred_fallthru
          _
        // Predicated region
        $region25: #{posterior_encoder_forward.8} parent=11 // pred_check
          %p277 = pneg %p166
        $region26: #{posterior_encoder_forward.8} parent=11 // pred_check_branch
          %279 = sbr.rel (%p277) target = $region28
        $region27: #{posterior_encoder_forward.8} parent=11 // pred_region
          _
        $region28: #{posterior_encoder_forward.8} parent=11 // pred_fallthru
          _
        // Predicated region
        $region29: #{posterior_encoder_forward.8} parent=11 // pred_check
          %p280 = pneg %p187
        $region30: #{posterior_encoder_forward.8} parent=11 // pred_check_branch
          %282 = sbr.rel (%p280) target = $region32
        $region31: #{posterior_encoder_forward.8} parent=11 // pred_region
          _
        $region32: #{posterior_encoder_forward.8} parent=11 // pred_fallthru
          _
      $region12: #{posterior_encoder_forward.8} parent=5 // pred_fallthru
        _
      %p283 = scmp.lt.s32.totalorder %s16, 2
      // Predicated region
      $region33: #{posterior_encoder_forward.8} parent=5 // pred_check
        %p284 = pneg %p283
      $region34: #{posterior_encoder_forward.8} parent=5 // pred_check_branch
        %286 = sbr.rel (%p284) target = $region36
      $region35: #{posterior_encoder_forward.8} parent=5 // pred_region
        // Predicated region
        $region37: #{posterior_encoder_forward.8} parent=35 // pred_check
          %p287 = pneg %p69
        $region38: #{posterior_encoder_forward.8} parent=35 // pred_check_branch
          %289 = sbr.rel (%p287) target = $region40
        $region39: #{posterior_encoder_forward.8} parent=35 // pred_region
          %p290 = scmp.lt.s32.totalorder %s23, 1
          %s291 = scalar_select %p290, %s23, 1
          %s292 = smul.addr %s291, 48
          %s293 = smul.addr %s292, 8
          %s294 = scalar_lea.vmem %s1, %s293
        $region40: #{posterior_encoder_forward.8} parent=35 // pred_fallthru
          _
        // Predicated region
        $region41: #{posterior_encoder_forward.8} parent=35 // pred_check
          %p295 = pneg %p97
        $region42: #{posterior_encoder_forward.8} parent=35 // pred_check_branch
          %297 = sbr.rel (%p295) target = $region44
        $region43: #{posterior_encoder_forward.8} parent=35 // pred_region
          %s298 = smul.u32 16, %s24
          %p299 = scmp.lt.s32.totalorder %s23, 1
          %s300 = scalar_select %p299, %s23, 1
          %p301 = scmp.lt.s32.totalorder %s298, 15
          %s302 = scalar_select %p301, %s298, 15
          %s303 = smul.addr %s300, 16
          %s304 = sadd.s32 %s302, %s303
          %s305 = smul.addr %s304, 8
          %s306 = scalar_lea.vmem %s2, %s305
          %s307 = smul.u32 16, %s24
        $region44: #{posterior_encoder_forward.8} parent=35 // pred_fallthru
          _
      $region36: #{posterior_encoder_forward.8} parent=5 // pred_fallthru
        _
      %p308 = scmp.le.s32.totalorder 1, %s16
      %p309 = scmp.lt.s32.totalorder %s16, 3
      %p310 = pnand %p308, %p309
      %p311 = pneg %p310
      // Predicated region
      $region45: #{posterior_encoder_forward.8} parent=5 // pred_check
        _
      $region46: #{posterior_encoder_forward.8} parent=5 // pred_check_branch
        %313 = sbr.rel (%p310) target = $region48
      $region47: #{posterior_encoder_forward.8} parent=5 // pred_region
        %s314 = ssub.s32 %s16, 1
        // Predicated region
        $region49: #{posterior_encoder_forward.8} parent=47 // pred_check
          %p315 = pneg %p49
        $region50: #{posterior_encoder_forward.8} parent=47 // pred_check_branch
          %317 = sbr.rel (%p315) target = $region52
        $region51: #{posterior_encoder_forward.8} parent=47 // pred_region
          %318 = dma.done [#allocation3], 16
        $region52: #{posterior_encoder_forward.8} parent=47 // pred_fallthru
          _
        %319 = sfence
        %p320 = pneg %p49
        %p321 = pneg %p46
        %p322 = scmp.lt.s32.totalorder %s25, 1
        %s323 = scalar_select %p322, %s25, 1
        %s324 = smul.addr %s323, 48
        %s325 = smul.addr %s324, 8
        %s326 = scalar_lea.vmem %s1, %s325
        %p327 = pneg %p75
        %p328 = pneg %p72
        %s329 = smul.u32 16, %s26
        %p330 = scmp.lt.s32.totalorder %s25, 1
        %s331 = scalar_select %p330, %s25, 1
        %p332 = scmp.lt.s32.totalorder %s329, 15
        %s333 = scalar_select %p332, %s329, 15
        %s334 = smul.addr %s331, 16
        %s335 = sadd.s32 %s333, %s334
        %s336 = smul.addr %s335, 8
        %s337 = scalar_lea.vmem %s2, %s336
        %p338 = pneg %p103
        %p339 = pneg %p100
        %p340 = pneg %p124
        %p341 = pneg %p121
        %p342 = pneg %p145
        %p343 = pneg %p142
        %p344 = pneg %p166
        %p345 = pneg %p163
        %p346 = pneg %p187
        %p347 = pneg %p184
        %p348 = pneg %p217
        %p349 = pneg %p214
        %s350 = sadd.s32 %s26, 1
        %s351 = smul.u32 16, %s350
        %p352 = scmp.lt.s32.totalorder %s25, 1
        %s353 = scalar_select %p352, %s25, 1
        %p354 = scmp.lt.s32.totalorder %s351, 47
        %s355 = scalar_select %p354, %s351, 47
        %s356 = smul.addr %s353, 48
        %s357 = sadd.s32 %s355, %s356
        %s358 = smul.addr %s357, 8
        %s359 = scalar_lea.vmem %s7, %s358
        %p360 = pneg %p245
        %p361 = pneg %p242
        %s362 = smul.u32 16, %s26
        %p363 = scmp.lt.s32.totalorder %s25, 1
        %s364 = scalar_select %p363, %s25, 1
        %p365 = scmp.lt.s32.totalorder %s362, 15
        %s366 = scalar_select %p365, %s362, 15
        %s367 = smul.addr %s364, 16
        %s368 = sadd.s32 %s366, %s367
        %s369 = smul.addr %s368, 8
        %s370 = scalar_lea.vmem %s8, %s369
        %p371 = scmp.lt.s32.totalorder %s25, 1
        %s372 = scalar_select %p371, %s25, 1
        %s373 = smul.addr %s372, 48
        %s374 = smul.addr %s373, 8
        %s375 = scalar_lea.vmem %s1, %s374
        %s376 = smul.u32 16, %s26
        %p377 = scmp.lt.s32.totalorder %s25, 1
        %s378 = scalar_select %p377, %s25, 1
        %p379 = scmp.lt.s32.totalorder %s376, 15
        %s380 = scalar_select %p379, %s376, 15
        %s381 = smul.addr %s378, 16
        %s382 = sadd.s32 %s380, %s381
        %s383 = smul.addr %s382, 8
        %s384 = scalar_lea.vmem %s2, %s383
        %s385 = smul.u32 16, %s26
        %s386 = sadd.s32 %s26, 1
        %s387 = smul.u32 16, %s386
        %p388 = scmp.lt.s32.totalorder %s25, 1
        %s389 = scalar_select %p388, %s25, 1
        %p390 = scmp.lt.s32.totalorder %s387, 47
        %s391 = scalar_select %p390, %s387, 47
        %s392 = smul.addr %s389, 48
        %s393 = sadd.s32 %s391, %s392
        %s394 = smul.addr %s393, 8
        %s395 = scalar_lea.vmem %s7, %s394
        %s396 = sadd.s32 %s26, 1
        %s397 = smul.u32 16, %s396
        %s398 = smul.u32 16, %s26
        %p399 = scmp.lt.s32.totalorder %s25, 1
        %s400 = scalar_select %p399, %s25, 1
        %p401 = scmp.lt.s32.totalorder %s398, 15
        %s402 = scalar_select %p401, %s398, 15
        %s403 = smul.addr %s400, 16
        %s404 = sadd.s32 %s402, %s403
        %s405 = smul.addr %s404, 8
        %s406 = scalar_lea.vmem %s8, %s405
        %s407 = smul.u32 16, %s26
        %s408 = smul.u32 %s26, 128
        %s409 = sadd.s32 %s408, 128
        %v410 = vld [vmem:[%s4] sm:$0x1]
        %v412 = vlaneseq
        %v413 = vshrl.u32 %v412, 7
        %v414 = vsub.s32 0, %v413
        %v415 = vrot.slane %v410, %v414
        %v417 = vadd.f32 %v415, 0.0
        %s418 = sadd.s32 %s409, 4294967288
        %s419 = scalar_lea.vmem %s375, %s418
        %v420 = vld [vmem:[%s419] sm:$0xff]
        %v421 = vld [vmem:[%s419 + $0x8] sm:$0xff]
        %v422 = vld [vmem:[%s419 + $0x10] sm:$0xff]
        %v423 = vld [vmem:[%s419 + $0x18] sm:$0xff]
        %v424 = vld [vmem:[%s419 + $0x20] sm:$0xff]
        %v425 = vld [vmem:[%s419 + $0x28] sm:$0xff]
        %v426 = vld [vmem:[%s419 + $0x30] sm:$0xff]
        %v427 = vld [vmem:[%s419 + $0x38] sm:$0xff]
        %v428 = vld [vmem:[%s419 + $0x40] sm:$0xff]
        %v429 = vld [vmem:[%s419 + $0x48] sm:$0xff]
        %v430 = vld [vmem:[%s419 + $0x50] sm:$0xff]
        %v431 = vld [vmem:[%s419 + $0x58] sm:$0xff]
        %v432 = vld [vmem:[%s419 + $0x60] sm:$0xff]
        %v433 = vld [vmem:[%s419 + $0x68] sm:$0xff]
        %v434 = vld [vmem:[%s419 + $0x70] sm:$0xff]
        %v435 = vld [vmem:[%s419 + $0x78] sm:$0xff]
        %v436 = vld [vmem:[%s3] sm:$0xff]
        %v437 = vld [vmem:[%s3 + $0x8] sm:$0xff]
        %v438 = vld [vmem:[%s3 + $0x10] sm:$0xff]
        %v439 = vld [vmem:[%s3 + $0x18] sm:$0xff]
        %vm440 = vcmask 261120
        %v442 = vsel %vm440, %v420, 0
        %v445 = vsel %vm440, %v421, 0
        %v448 = vsel %vm440, %v422, 0
        %v451 = vsel %vm440, %v423, 0
        %v454 = vsel %vm440, %v424, 0
        %v457 = vsel %vm440, %v425, 0
        %v460 = vsel %vm440, %v426, 0
        %v463 = vsel %vm440, %v427, 0
        %v466 = vsel %vm440, %v428, 0
        %v469 = vsel %vm440, %v429, 0
        %v472 = vsel %vm440, %v430, 0
        %v475 = vsel %vm440, %v431, 0
        %v478 = vsel %vm440, %v432, 0
        %v481 = vsel %vm440, %v433, 0
        %v484 = vsel %vm440, %v434, 0
        %v487 = vsel %vm440, %v435, 0
        %489 = vmatprep.subr.mxu0 0.0
        %490 = vmatpush1.msra.mxu0 %v436
        %491 = vmatprep.subr.mxu0 0.0
        %492 = vmatpush1.msra.mxu0 %v437
        %493 = vmatprep.subr.mxu0 0.0
        %494 = vmatpush1.msra.mxu0 %v438
        %495 = vmatprep.subr.mxu0 0.0
        %496 = vmatpush1.msra.mxu0 %v439
        %497 = vmatprep.subr.mxu0 0.0
        %498 = vmatpush1.msra.mxu0 0.0
        %499 = vmatprep.subr.mxu0 0.0
        %500 = vmatpush1.msra.mxu0 0.0
        %501 = vmatprep.subr.mxu0 0.0
        %502 = vmatpush1.msra.mxu0 0.0
        %503 = vmatprep.subr.mxu0 0.0
        %504 = vmatpush1.msra.mxu0 0.0
        %505 = vmatprep.subr.mxu0 0.0
        %506 = vmatpush1.msra.mxu0 0.0
        %507 = vmatprep.subr.mxu0 0.0
        %508 = vmatpush1.msra.mxu0 0.0
        %509 = vmatprep.subr.mxu0 0.0
        %510 = vmatpush1.msra.mxu0 0.0
        %511 = vmatprep.subr.mxu0 0.0
        %512 = vmatpush1.msra.mxu0 0.0
        %513 = vmatprep.subr.mxu0 0.0
        %514 = vmatpush1.msra.mxu0 0.0
        %515 = vmatprep.subr.mxu0 0.0
        %516 = vmatpush1.msra.mxu0 0.0
        %517 = vmatprep.subr.mxu0 0.0
        %518 = vmatpush1.msra.mxu0 0.0
        %519 = vmatprep.subr.mxu0 0.0
        %520 = vmatpush1.msra.mxu0 0.0
        %521 = vmatprep.subr.mxu0 0.0
        %522 = vmatpush1.msra.mxu0 0.0
        %523 = vmatprep.subr.mxu0 0.0
        %524 = vmatpush1.msra.mxu0 0.0
        %525 = vmatprep.subr.mxu0 0.0
        %526 = vmatpush1.msra.mxu0 0.0
        %527 = vmatprep.subr.mxu0 0.0
        %528 = vmatpush1.msra.mxu0 0.0
        %529 = vmatprep.subr.mxu0 0.0
        %530 = vmatpush1.msra.mxu0 0.0
        %531 = vmatprep.subr.mxu0 0.0
        %532 = vmatpush1.msra.mxu0 0.0
        %533 = vmatprep.subr.mxu0 0.0
        %534 = vmatpush1.msra.mxu0 0.0
        %535 = vmatprep.subr.mxu0 0.0
        %536 = vmatpush1.msra.mxu0 0.0
        %537 = vmatprep.subr.mxu0 0.0
        %538 = vmatpush1.msra.mxu0 0.0
        %539 = vmatprep.subr.mxu0 0.0
        %540 = vmatpush1.msra.mxu0 0.0
        %541 = vmatprep.subr.mxu0 0.0
        %542 = vmatpush1.msra.mxu0 0.0
        %543 = vmatprep.subr.mxu0 0.0
        %544 = vmatpush1.msra.mxu0 0.0
        %545 = vmatprep.subr.mxu0 0.0
        %546 = vmatpush1.msra.mxu0 0.0
        %547 = vmatprep.subr.mxu0 0.0
        %548 = vmatpush1.msra.mxu0 0.0
        %549 = vmatprep.subr.mxu0 0.0
        %550 = vmatpush1.msra.mxu0 0.0
        %551 = vmatprep.subr.mxu0 0.0
        %552 = vmatpush1.msra.mxu0 0.0
        %553 = vmatprep.mubr.f32.mxu0 0.0
        %554 = vmatmul.mubr.f32.gmra.mrb[0].mxu0 %v442
        %v555 = vpop.f32.mrb[0].mxu0
        %v556 = vadd.f32 0.0, %v555
        %v557 = vpop.f32.mrb[0].mxu0
        %558 = vmatprep.mubr.f32.mxu0 0.0
        %559 = vmatmul.mubr.f32.gmra.mrb[0].mxu0 %v445
        %v560 = vpop.f32.mrb[0].mxu0
        %v561 = vadd.f32 0.0, %v560
        %v562 = vpop.f32.mrb[0].mxu0
        %563 = vmatprep.mubr.f32.mxu0 0.0
        %564 = vmatmul.mubr.f32.gmra.mrb[0].mxu0 %v448
        %v565 = vpop.f32.mrb[0].mxu0
        %v566 = vadd.f32 0.0, %v565
        %v567 = vpop.f32.mrb[0].mxu0
        %568 = vmatprep.mubr.f32.mxu0 0.0
        %569 = vmatmul.mubr.f32.gmra.mrb[0].mxu0 %v451
        %v570 = vpop.f32.mrb[0].mxu0
        %v571 = vadd.f32 0.0, %v570
        %v572 = vpop.f32.mrb[0].mxu0
        %573 = vmatprep.mubr.f32.mxu0 0.0
        %574 = vmatmul.mubr.f32.gmra.mrb[0].mxu0 %v454
        %v575 = vpop.f32.mrb[0].mxu0
        %v576 = vadd.f32 0.0, %v575
        %v577 = vpop.f32.mrb[0].mxu0
        %578 = vmatprep.mubr.f32.mxu0 0.0
        %579 = vmatmul.mubr.f32.gmra.mrb[0].mxu0 %v457
        %v580 = vpop.f32.mrb[0].mxu0
        %v581 = vadd.f32 0.0, %v580
        %v582 = vpop.f32.mrb[0].mxu0
        %583 = vmatprep.mubr.f32.mxu0 0.0
        %584 = vmatmul.mubr.f32.gmra.mrb[0].mxu0 %v460
        %v585 = vpop.f32.mrb[0].mxu0
        %v586 = vadd.f32 0.0, %v585
        %v587 = vpop.f32.mrb[0].mxu0
        %588 = vmatprep.mubr.f32.mxu0 0.0
        %589 = vmatmul.mubr.f32.gmra.mrb[0].mxu0 %v463
        %v590 = vpop.f32.mrb[0].mxu0
        %v591 = vadd.f32 0.0, %v590
        %v592 = vpop.f32.mrb[0].mxu0
        %593 = vmatprep.mubr.f32.mxu0 0.0
        %594 = vmatmul.mubr.f32.gmra.mrb[0].mxu0 %v466
        %v595 = vpop.f32.mrb[0].mxu0
        %v596 = vadd.f32 0.0, %v595
        %v597 = vpop.f32.mrb[0].mxu0
        %598 = vmatprep.mubr.f32.mxu0 0.0
        %599 = vmatmul.mubr.f32.gmra.mrb[0].mxu0 %v469
        %v600 = vpop.f32.mrb[0].mxu0
        %v601 = vadd.f32 0.0, %v600
        %v602 = vpop.f32.mrb[0].mxu0
        %603 = vmatprep.mubr.f32.mxu0 0.0
        %604 = vmatmul.mubr.f32.gmra.mrb[0].mxu0 %v472
        %v605 = vpop.f32.mrb[0].mxu0
        %v606 = vadd.f32 0.0, %v605
        %v607 = vpop.f32.mrb[0].mxu0
        %608 = vmatprep.mubr.f32.mxu0 0.0
        %609 = vmatmul.mubr.f32.gmra.mrb[0].mxu0 %v475
        %v610 = vpop.f32.mrb[0].mxu0
        %v611 = vadd.f32 0.0, %v610
        %v612 = vpop.f32.mrb[0].mxu0
        %613 = vmatprep.mubr.f32.mxu0 0.0
        %614 = vmatmul.mubr.f32.gmra.mrb[0].mxu0 %v478
        %v615 = vpop.f32.mrb[0].mxu0
        %v616 = vadd.f32 0.0, %v615
        %v617 = vpop.f32.mrb[0].mxu0
        %618 = vmatprep.mubr.f32.mxu0 0.0
        %619 = vmatmul.mubr.f32.gmra.mrb[0].mxu0 %v481
        %v620 = vpop.f32.mrb[0].mxu0
        %v621 = vadd.f32 0.0, %v620
        %v622 = vpop.f32.mrb[0].mxu0
        %623 = vmatprep.mubr.f32.mxu0 0.0
        %624 = vmatmul.mubr.f32.gmra.mrb[0].mxu0 %v484
        %v625 = vpop.f32.mrb[0].mxu0
        %v626 = vadd.f32 0.0, %v625
        %v627 = vpop.f32.mrb[0].mxu0
        %628 = vmatprep.mubr.f32.mxu0 0.0
        %629 = vmatmul.mubr.f32.gmra.mrb[0].mxu0 %v487
        %v630 = vpop.f32.mrb[0].mxu0
        %v631 = vadd.f32 0.0, %v630
        %v632 = vpop.f32.mrb[0].mxu0
        %633 = vdwg.mxu0
        %v634 = vadd.f32 %v417, %v556
        %v635 = vadd.f32 %v417, %v561
        %v636 = vadd.f32 %v417, %v566
        %v637 = vadd.f32 %v417, %v571
        %v638 = vadd.f32 %v417, %v576
        %v639 = vadd.f32 %v417, %v581
        %v640 = vadd.f32 %v417, %v586
        %v641 = vadd.f32 %v417, %v591
        %v642 = vadd.f32 %v417, %v596
        %v643 = vadd.f32 %v417, %v601
        %v644 = vadd.f32 %v417, %v606
        %v645 = vadd.f32 %v417, %v611
        %v646 = vadd.f32 %v417, %v616
        %v647 = vadd.f32 %v417, %v621
        %v648 = vadd.f32 %v417, %v626
        %v649 = vadd.f32 %v417, %v631
        %s650 = sadd.s32 %s409, 4294967292
        %s651 = scalar_lea.vmem %s375, %s650
        %v652 = vld [vmem:[%s651] sm:$0xff]
        %v653 = vld [vmem:[%s651 + $0x8] sm:$0xff]
        %v654 = vld [vmem:[%s651 + $0x10] sm:$0xff]
        %v655 = vld [vmem:[%s651 + $0x18] sm:$0xff]
        %v656 = vld [vmem:[%s651 + $0x20] sm:$0xff]
        %v657 = vld [vmem:[%s651 + $0x28] sm:$0xff]
        %v658 = vld [vmem:[%s651 + $0x30] sm:$0xff]
        %v659 = vld [vmem:[%s651 + $0x38] sm:$0xff]
        %v660 = vld [vmem:[%s651 + $0x40] sm:$0xff]
        %v661 = vld [vmem:[%s651 + $0x48] sm:$0xff]
        %v662 = vld [vmem:[%s651 + $0x50] sm:$0xff]
        %v663 = vld [vmem:[%s651 + $0x58] sm:$0xff]
        %v664 = vld [vmem:[%s651 + $0x60] sm:$0xff]
        %v665 = vld [vmem:[%s651 + $0x68] sm:$0xff]
        %v666 = vld [vmem:[%s651 + $0x70] sm:$0xff]
        %v667 = vld [vmem:[%s651 + $0x78] sm:$0xff]
        %s668 = scalar_lea.vmem %s3, 32
        %v669 = vld [vmem:[%s668] sm:$0xff]
        %v670 = vld [vmem:[%s668 + $0x8] sm:$0xff]
        %v671 = vld [vmem:[%s668 + $0x10] sm:$0xff]
        %v672 = vld [vmem:[%s668 + $0x18] sm:$0xff]
        %v674 = vsel %vm440, %v652, 0
        %v677 = vsel %vm440, %v653, 0
        %v680 = vsel %vm440, %v654, 0
        %v683 = vsel %vm440, %v655, 0
        %v686 = vsel %vm440, %v656, 0
        %v689 = vsel %vm440, %v657, 0
        %v692 = vsel %vm440, %v658, 0
        %v695 = vsel %vm440, %v659, 0
        %v698 = vsel %vm440, %v660, 0
        %v701 = vsel %vm440, %v661, 0
        %v704 = vsel %vm440, %v662, 0
        %v707 = vsel %vm440, %v663, 0
        %v710 = vsel %vm440, %v664, 0
        %v713 = vsel %vm440, %v665, 0
        %v716 = vsel %vm440, %v666, 0
        %v719 = vsel %vm440, %v667, 0
        %721 = vmatprep.subr.mxu0 0.0
        %722 = vmatpush1.msra.mxu0 %v669
        %723 = vmatprep.subr.mxu0 0.0
        %724 = vmatpush1.msra.mxu0 %v670
        %725 = vmatprep.subr.mxu0 0.0
        %726 = vmatpush1.msra.mxu0 %v671
        %727 = vmatprep.subr.mxu0 0.0
        %728 = vmatpush1.msra.mxu0 %v672
        %729 = vmatprep.subr.mxu0 0.0
        %730 = vmatpush1.msra.mxu0 0.0
        %731 = vmatprep.subr.mxu0 0.0
        %732 = vmatpush1.msra.mxu0 0.0
        %733 = vmatprep.subr.mxu0 0.0
        %734 = vmatpush1.msra.mxu0 0.0
        %735 = vmatprep.subr.mxu0 0.0
        %736 = vmatpush1.msra.mxu0 0.0
        %737 = vmatprep.subr.mxu0 0.0
        %738 = vmatpush1.msra.mxu0 0.0
        %739 = vmatprep.subr.mxu0 0.0
        %740 = vmatpush1.msra.mxu0 0.0
        %741 = vmatprep.subr.mxu0 0.0
        %742 = vmatpush1.msra.mxu0 0.0
        %743 = vmatprep.subr.mxu0 0.0
        %744 = vmatpush1.msra.mxu0 0.0
        %745 = vmatprep.subr.mxu0 0.0
        %746 = vmatpush1.msra.mxu0 0.0
        %747 = vmatprep.subr.mxu0 0.0
        %748 = vmatpush1.msra.mxu0 0.0
        %749 = vmatprep.subr.mxu0 0.0
        %750 = vmatpush1.msra.mxu0 0.0
        %751 = vmatprep.subr.mxu0 0.0
        %752 = vmatpush1.msra.mxu0 0.0
        %753 = vmatprep.subr.mxu0 0.0
        %754 = vmatpush1.msra.mxu0 0.0
        %755 = vmatprep.subr.mxu0 0.0
        %756 = vmatpush1.msra.mxu0 0.0
        %757 = vmatprep.subr.mxu0 0.0
        %758 = vmatpush1.msra.mxu0 0.0
        %759 = vmatprep.subr.mxu0 0.0
        %760 = vmatpush1.msra.mxu0 0.0
        %761 = vmatprep.subr.mxu0 0.0
        %762 = vmatpush1.msra.mxu0 0.0
        %763 = vmatprep.subr.mxu0 0.0
        %764 = vmatpush1.msra.mxu0 0.0
        %765 = vmatprep.subr.mxu0 0.0
        %766 = vmatpush1.msra.mxu0 0.0
        %767 = vmatprep.subr.mxu0 0.0
        %768 = vmatpush1.msra.mxu0 0.0
        %769 = vmatprep.subr.mxu0 0.0
        %770 = vmatpush1.msra.mxu0 0.0
        %771 = vmatprep.subr.mxu0 0.0
        %772 = vmatpush1.msra.mxu0 0.0
        %773 = vmatprep.subr.mxu0 0.0
        %774 = vmatpush1.msra.mxu0 0.0
        %775 = vmatprep.subr.mxu0 0.0
        %776 = vmatpush1.msra.mxu0 0.0
        %777 = vmatprep.subr.mxu0 0.0
        %778 = vmatpush1.msra.mxu0 0.0
        %779 = vmatprep.subr.mxu0 0.0
        %780 = vmatpush1.msra.mxu0 0.0
        %781 = vmatprep.subr.mxu0 0.0
        %782 = vmatpush1.msra.mxu0 0.0
        %783 = vmatprep.subr.mxu0 0.0
        %784 = vmatpush1.msra.mxu0 0.0
        %785 = vmatprep.mubr.f32.mxu0 0.0
        %786 = vmatmul.mubr.f32.gmra.mrb[0].mxu0 %v674
        %v787 = vpop.f32.mrb[0].mxu0
        %v788 = vadd.f32 0.0, %v787
        %v789 = vpop.f32.mrb[0].mxu0
        %790 = vmatprep.mubr.f32.mxu0 0.0
        %791 = vmatmul.mubr.f32.gmra.mrb[0].mxu0 %v677
        %v792 = vpop.f32.mrb[0].mxu0
        %v793 = vadd.f32 0.0, %v792
        %v794 = vpop.f32.mrb[0].mxu0
        %795 = vmatprep.mubr.f32.mxu0 0.0
        %796 = vmatmul.mubr.f32.gmra.mrb[0].mxu0 %v680
        %v797 = vpop.f32.mrb[0].mxu0
        %v798 = vadd.f32 0.0, %v797
        %v799 = vpop.f32.mrb[0].mxu0
        %800 = vmatprep.mubr.f32.mxu0 0.0
        %801 = vmatmul.mubr.f32.gmra.mrb[0].mxu0 %v683
        %v802 = vpop.f32.mrb[0].mxu0
        %v803 = vadd.f32 0.0, %v802
        %v804 = vpop.f32.mrb[0].mxu0
        %805 = vmatprep.mubr.f32.mxu0 0.0
        %806 = vmatmul.mubr.f32.gmra.mrb[0].mxu0 %v686
        %v807 = vpop.f32.mrb[0].mxu0
        %v808 = vadd.f32 0.0, %v807
        %v809 = vpop.f32.mrb[0].mxu0
        %810 = vmatprep.mubr.f32.mxu0 0.0
        %811 = vmatmul.mubr.f32.gmra.mrb[0].mxu0 %v689
        %v812 = vpop.f32.mrb[0].mxu0
        %v813 = vadd.f32 0.0, %v812
        %v814 = vpop.f32.mrb[0].mxu0
        %815 = vmatprep.mubr.f32.mxu0 0.0
        %816 = vmatmul.mubr.f32.gmra.mrb[0].mxu0 %v692
        %v817 = vpop.f32.mrb[0].mxu0
        %v818 = vadd.f32 0.0, %v817
        %v819 = vpop.f32.mrb[0].mxu0
        %820 = vmatprep.mubr.f32.mxu0 0.0
        %821 = vmatmul.mubr.f32.gmra.mrb[0].mxu0 %v695
        %v822 = vpop.f32.mrb[0].mxu0
        %v823 = vadd.f32 0.0, %v822
        %v824 = vpop.f32.mrb[0].mxu0
        %825 = vmatprep.mubr.f32.mxu0 0.0
        %826 = vmatmul.mubr.f32.gmra.mrb[0].mxu0 %v698
        %v827 = vpop.f32.mrb[0].mxu0
        %v828 = vadd.f32 0.0, %v827
        %v829 = vpop.f32.mrb[0].mxu0
        %830 = vmatprep.mubr.f32.mxu0 0.0
        %831 = vmatmul.mubr.f32.gmra.mrb[0].mxu0 %v701
        %v832 = vpop.f32.mrb[0].mxu0
        %v833 = vadd.f32 0.0, %v832
        %v834 = vpop.f32.mrb[0].mxu0
        %835 = vmatprep.mubr.f32.mxu0 0.0
        %836 = vmatmul.mubr.f32.gmra.mrb[0].mxu0 %v704
        %v837 = vpop.f32.mrb[0].mxu0
        %v838 = vadd.f32 0.0, %v837
        %v839 = vpop.f32.mrb[0].mxu0
        %840 = vmatprep.mubr.f32.mxu0 0.0
        %841 = vmatmul.mubr.f32.gmra.mrb[0].mxu0 %v707
        %v842 = vpop.f32.mrb[0].mxu0
        %v843 = vadd.f32 0.0, %v842
        %v844 = vpop.f32.mrb[0].mxu0
        %845 = vmatprep.mubr.f32.mxu0 0.0
        %846 = vmatmul.mubr.f32.gmra.mrb[0].mxu0 %v710
        %v847 = vpop.f32.mrb[0].mxu0
        %v848 = vadd.f32 0.0, %v847
        %v849 = vpop.f32.mrb[0].mxu0
        %850 = vmatprep.mubr.f32.mxu0 0.0
        %851 = vmatmul.mubr.f32.gmra.mrb[0].mxu0 %v713
        %v852 = vpop.f32.mrb[0].mxu0
        %v853 = vadd.f32 0.0, %v852
        %v854 = vpop.f32.mrb[0].mxu0
        %855 = vmatprep.mubr.f32.mxu0 0.0
        %856 = vmatmul.mubr.f32.gmra.mrb[0].mxu0 %v716
        %v857 = vpop.f32.mrb[0].mxu0
        %v858 = vadd.f32 0.0, %v857
        %v859 = vpop.f32.mrb[0].mxu0
        %860 = vmatprep.mubr.f32.mxu0 0.0
        %861 = vmatmul.mubr.f32.gmra.mrb[0].mxu0 %v719
        %v862 = vpop.f32.mrb[0].mxu0
        %v863 = vadd.f32 0.0, %v862
        %v864 = vpop.f32.mrb[0].mxu0
        %865 = vdwg.mxu0
        %v866 = vadd.f32 %v634, %v788
        %v867 = vadd.f32 %v635, %v793
        %v868 = vadd.f32 %v636, %v798
        %v869 = vadd.f32 %v637, %v803
        %v870 = vadd.f32 %v638, %v808
        %v871 = vadd.f32 %v639, %v813
        %v872 = vadd.f32 %v640, %v818
        %v873 = vadd.f32 %v641, %v823
        %v874 = vadd.f32 %v642, %v828
        %v875 = vadd.f32 %v643, %v833
        %v876 = vadd.f32 %v644, %v838
        %v877 = vadd.f32 %v645, %v843
        %v878 = vadd.f32 %v646, %v848
        %v879 = vadd.f32 %v647, %v853
        %v880 = vadd.f32 %v648, %v858
        %v881 = vadd.f32 %v649, %v863
        %s882 = scalar_lea.vmem %s375, %s409
        %v883 = vld [vmem:[%s882] sm:$0xff]
        %v884 = vld [vmem:[%s882 + $0x8] sm:$0xff]
        %v885 = vld [vmem:[%s882 + $0x10] sm:$0xff]
        %v886 = vld [vmem:[%s882 + $0x18] sm:$0xff]
        %v887 = vld [vmem:[%s882 + $0x20] sm:$0xff]
        %v888 = vld [vmem:[%s882 + $0x28] sm:$0xff]
        %v889 = vld [vmem:[%s882 + $0x30] sm:$0xff]
        %v890 = vld [vmem:[%s882 + $0x38] sm:$0xff]
        %v891 = vld [vmem:[%s882 + $0x40] sm:$0xff]
        %v892 = vld [vmem:[%s882 + $0x48] sm:$0xff]
        %v893 = vld [vmem:[%s882 + $0x50] sm:$0xff]
        %v894 = vld [vmem:[%s882 + $0x58] sm:$0xff]
        %v895 = vld [vmem:[%s882 + $0x60] sm:$0xff]
        %v896 = vld [vmem:[%s882 + $0x68] sm:$0xff]
        %v897 = vld [vmem:[%s882 + $0x70] sm:$0xff]
        %v898 = vld [vmem:[%s882 + $0x78] sm:$0xff]
        %s899 = scalar_lea.vmem %s3, 64
        %v900 = vld [vmem:[%s899] sm:$0xff]
        %v901 = vld [vmem:[%s899 + $0x8] sm:$0xff]
        %v902 = vld [vmem:[%s899 + $0x10] sm:$0xff]
        %v903 = vld [vmem:[%s899 + $0x18] sm:$0xff]
        %v905 = vsel %vm440, %v883, 0
        %v908 = vsel %vm440, %v884, 0
        %v911 = vsel %vm440, %v885, 0
        %v914 = vsel %vm440, %v886, 0
        %v917 = vsel %vm440, %v887, 0
        %v920 = vsel %vm440, %v888, 0
        %v923 = vsel %vm440, %v889, 0
        %v926 = vsel %vm440, %v890, 0
        %v929 = vsel %vm440, %v891, 0
        %v932 = vsel %vm440, %v892, 0
        %v935 = vsel %vm440, %v893, 0
        %v938 = vsel %vm440, %v894, 0
        %v941 = vsel %vm440, %v895, 0
        %v944 = vsel %vm440, %v896, 0
        %v947 = vsel %vm440, %v897, 0
        %v950 = vsel %vm440, %v898, 0
        %952 = vmatprep.subr.mxu0 0.0
        %953 = vmatpush1.msra.mxu0 %v900
        %954 = vmatprep.subr.mxu0 0.0
        %955 = vmatpush1.msra.mxu0 %v901
        %956 = vmatprep.subr.mxu0 0.0
        %957 = vmatpush1.msra.mxu0 %v902
        %958 = vmatprep.subr.mxu0 0.0
        %959 = vmatpush1.msra.mxu0 %v903
        %960 = vmatprep.subr.mxu0 0.0
        %961 = vmatpush1.msra.mxu0 0.0
        %962 = vmatprep.subr.mxu0 0.0
        %963 = vmatpush1.msra.mxu0 0.0
        %964 = vmatprep.subr.mxu0 0.0
        %965 = vmatpush1.msra.mxu0 0.0
        %966 = vmatprep.subr.mxu0 0.0
        %967 = vmatpush1.msra.mxu0 0.0
        %968 = vmatprep.subr.mxu0 0.0
        %969 = vmatpush1.msra.mxu0 0.0
        %970 = vmatprep.subr.mxu0 0.0
        %971 = vmatpush1.msra.mxu0 0.0
        %972 = vmatprep.subr.mxu0 0.0
        %973 = vmatpush1.msra.mxu0 0.0
        %974 = vmatprep.subr.mxu0 0.0
        %975 = vmatpush1.msra.mxu0 0.0
        %976 = vmatprep.subr.mxu0 0.0
        %977 = vmatpush1.msra.mxu0 0.0
        %978 = vmatprep.subr.mxu0 0.0
        %979 = vmatpush1.msra.mxu0 0.0
        %980 = vmatprep.subr.mxu0 0.0
        %981 = vmatpush1.msra.mxu0 0.0
        %982 = vmatprep.subr.mxu0 0.0
        %983 = vmatpush1.msra.mxu0 0.0
        %984 = vmatprep.subr.mxu0 0.0
        %985 = vmatpush1.msra.mxu0 0.0
        %986 = vmatprep.subr.mxu0 0.0
        %987 = vmatpush1.msra.mxu0 0.0
        %988 = vmatprep.subr.mxu0 0.0
        %989 = vmatpush1.msra.mxu0 0.0
        %990 = vmatprep.subr.mxu0 0.0
        %991 = vmatpush1.msra.mxu0 0.0
        %992 = vmatprep.subr.mxu0 0.0
        %993 = vmatpush1.msra.mxu0 0.0
        %994 = vmatprep.subr.mxu0 0.0
        %995 = vmatpush1.msra.mxu0 0.0
        %996 = vmatprep.subr.mxu0 0.0
        %997 = vmatpush1.msra.mxu0 0.0
        %998 = vmatprep.subr.mxu0 0.0
        %999 = vmatpush1.msra.mxu0 0.0
        %1000 = vmatprep.subr.mxu0 0.0
        %1001 = vmatpush1.msra.mxu0 0.0
        %1002 = vmatprep.subr.mxu0 0.0
        %1003 = vmatpush1.msra.mxu0 0.0
        %1004 = vmatprep.subr.mxu0 0.0
        %1005 = vmatpush1.msra.mxu0 0.0
        %1006 = vmatprep.subr.mxu0 0.0
        %1007 = vmatpush1.msra.mxu0 0.0
        %1008 = vmatprep.subr.mxu0 0.0
        %1009 = vmatpush1.msra.mxu0 0.0
        %1010 = vmatprep.subr.mxu0 0.0
        %1011 = vmatpush1.msra.mxu0 0.0
        %1012 = vmatprep.subr.mxu0 0.0
        %1013 = vmatpush1.msra.mxu0 0.0
        %1014 = vmatprep.subr.mxu0 0.0
        %1015 = vmatpush1.msra.mxu0 0.0
        %1016 = vmatprep.mubr.f32.mxu0 0.0
        %1017 = vmatmul.mubr.f32.gmra.mrb[0].mxu0 %v905
        %v1018 = vpop.f32.mrb[0].mxu0
        %v1019 = vadd.f32 0.0, %v1018
        %v1020 = vpop.f32.mrb[0].mxu0
        %1021 = vmatprep.mubr.f32.mxu0 0.0
        %1022 = vmatmul.mubr.f32.gmra.mrb[0].mxu0 %v908
        %v1023 = vpop.f32.mrb[0].mxu0
        %v1024 = vadd.f32 0.0, %v1023
        %v1025 = vpop.f32.mrb[0].mxu0
        %1026 = vmatprep.mubr.f32.mxu0 0.0
        %1027 = vmatmul.mubr.f32.gmra.mrb[0].mxu0 %v911
        %v1028 = vpop.f32.mrb[0].mxu0
        %v1029 = vadd.f32 0.0, %v1028
        %v1030 = vpop.f32.mrb[0].mxu0
        %1031 = vmatprep.mubr.f32.mxu0 0.0
        %1032 = vmatmul.mubr.f32.gmra.mrb[0].mxu0 %v914
        %v1033 = vpop.f32.mrb[0].mxu0
        %v1034 = vadd.f32 0.0, %v1033
        %v1035 = vpop.f32.mrb[0].mxu0
        %1036 = vmatprep.mubr.f32.mxu0 0.0
        %1037 = vmatmul.mubr.f32.gmra.mrb[0].mxu0 %v917
        %v1038 = vpop.f32.mrb[0].mxu0
        %v1039 = vadd.f32 0.0, %v1038
        %v1040 = vpop.f32.mrb[0].mxu0
        %1041 = vmatprep.mubr.f32.mxu0 0.0
        %1042 = vmatmul.mubr.f32.gmra.mrb[0].mxu0 %v920
        %v1043 = vpop.f32.mrb[0].mxu0
        %v1044 = vadd.f32 0.0, %v1043
        %v1045 = vpop.f32.mrb[0].mxu0
        %1046 = vmatprep.mubr.f32.mxu0 0.0
        %1047 = vmatmul.mubr.f32.gmra.mrb[0].mxu0 %v923
        %v1048 = vpop.f32.mrb[0].mxu0
        %v1049 = vadd.f32 0.0, %v1048
        %v1050 = vpop.f32.mrb[0].mxu0
        %1051 = vmatprep.mubr.f32.mxu0 0.0
        %1052 = vmatmul.mubr.f32.gmra.mrb[0].mxu0 %v926
        %v1053 = vpop.f32.mrb[0].mxu0
        %v1054 = vadd.f32 0.0, %v1053
        %v1055 = vpop.f32.mrb[0].mxu0
        %1056 = vmatprep.mubr.f32.mxu0 0.0
        %1057 = vmatmul.mubr.f32.gmra.mrb[0].mxu0 %v929
        %v1058 = vpop.f32.mrb[0].mxu0
        %v1059 = vadd.f32 0.0, %v1058
        %v1060 = vpop.f32.mrb[0].mxu0
        %1061 = vmatprep.mubr.f32.mxu0 0.0
        %1062 = vmatmul.mubr.f32.gmra.mrb[0].mxu0 %v932
        %v1063 = vpop.f32.mrb[0].mxu0
        %v1064 = vadd.f32 0.0, %v1063
        %v1065 = vpop.f32.mrb[0].mxu0
        %1066 = vmatprep.mubr.f32.mxu0 0.0
        %1067 = vmatmul.mubr.f32.gmra.mrb[0].mxu0 %v935
        %v1068 = vpop.f32.mrb[0].mxu0
        %v1069 = vadd.f32 0.0, %v1068
        %v1070 = vpop.f32.mrb[0].mxu0
        %1071 = vmatprep.mubr.f32.mxu0 0.0
        %1072 = vmatmul.mubr.f32.gmra.mrb[0].mxu0 %v938
        %v1073 = vpop.f32.mrb[0].mxu0
        %v1074 = vadd.f32 0.0, %v1073
        %v1075 = vpop.f32.mrb[0].mxu0
        %1076 = vmatprep.mubr.f32.mxu0 0.0
        %1077 = vmatmul.mubr.f32.gmra.mrb[0].mxu0 %v941
        %v1078 = vpop.f32.mrb[0].mxu0
        %v1079 = vadd.f32 0.0, %v1078
        %v1080 = vpop.f32.mrb[0].mxu0
        %1081 = vmatprep.mubr.f32.mxu0 0.0
        %1082 = vmatmul.mubr.f32.gmra.mrb[0].mxu0 %v944
        %v1083 = vpop.f32.mrb[0].mxu0
        %v1084 = vadd.f32 0.0, %v1083
        %v1085 = vpop.f32.mrb[0].mxu0
        %1086 = vmatprep.mubr.f32.mxu0 0.0
        %1087 = vmatmul.mubr.f32.gmra.mrb[0].mxu0 %v947
        %v1088 = vpop.f32.mrb[0].mxu0
        %v1089 = vadd.f32 0.0, %v1088
        %v1090 = vpop.f32.mrb[0].mxu0
        %1091 = vmatprep.mubr.f32.mxu0 0.0
        %1092 = vmatmul.mubr.f32.gmra.mrb[0].mxu0 %v950
        %v1093 = vpop.f32.mrb[0].mxu0
        %v1094 = vadd.f32 0.0, %v1093
        %v1095 = vpop.f32.mrb[0].mxu0
        %1096 = vdwg.mxu0
        %v1097 = vadd.f32 %v866, %v1019
        %v1098 = vadd.f32 %v867, %v1024
        %v1099 = vadd.f32 %v868, %v1029
        %v1100 = vadd.f32 %v869, %v1034
        %v1101 = vadd.f32 %v870, %v1039
        %v1102 = vadd.f32 %v871, %v1044
        %v1103 = vadd.f32 %v872, %v1049
        %v1104 = vadd.f32 %v873, %v1054
        %v1105 = vadd.f32 %v874, %v1059
        %v1106 = vadd.f32 %v875, %v1064
        %v1107 = vadd.f32 %v876, %v1069
        %v1108 = vadd.f32 %v877, %v1074
        %v1109 = vadd.f32 %v878, %v1079
        %v1110 = vadd.f32 %v879, %v1084
        %v1111 = vadd.f32 %v880, %v1089
        %v1112 = vadd.f32 %v881, %v1094
        %s1113 = sadd.s32 %s409, 4
        %s1114 = scalar_lea.vmem %s375, %s1113
        %v1115 = vld [vmem:[%s1114] sm:$0xff]
        %v1116 = vld [vmem:[%s1114 + $0x8] sm:$0xff]
        %v1117 = vld [vmem:[%s1114 + $0x10] sm:$0xff]
        %v1118 = vld [vmem:[%s1114 + $0x18] sm:$0xff]
        %v1119 = vld [vmem:[%s1114 + $0x20] sm:$0xff]
        %v1120 = vld [vmem:[%s1114 + $0x28] sm:$0xff]
        %v1121 = vld [vmem:[%s1114 + $0x30] sm:$0xff]
        %v1122 = vld [vmem:[%s1114 + $0x38] sm:$0xff]
        %v1123 = vld [vmem:[%s1114 + $0x40] sm:$0xff]
        %v1124 = vld [vmem:[%s1114 + $0x48] sm:$0xff]
        %v1125 = vld [vmem:[%s1114 + $0x50] sm:$0xff]
        %v1126 = vld [vmem:[%s1114 + $0x58] sm:$0xff]
        %v1127 = vld [vmem:[%s1114 + $0x60] sm:$0xff]
        %v1128 = vld [vmem:[%s1114 + $0x68] sm:$0xff]
        %v1129 = vld [vmem:[%s1114 + $0x70] sm:$0xff]
        %v1130 = vld [vmem:[%s1114 + $0x78] sm:$0xff]
        %s1131 = scalar_lea.vmem %s3, 96
        %v1132 = vld [vmem:[%s1131] sm:$0xff]
        %v1133 = vld [vmem:[%s1131 + $0x8] sm:$0xff]
        %v1134 = vld [vmem:[%s1131 + $0x10] sm:$0xff]
        %v1135 = vld [vmem:[%s1131 + $0x18] sm:$0xff]
        %v1137 = vsel %vm440, %v1115, 0
        %v1140 = vsel %vm440, %v1116, 0
        %v1143 = vsel %vm440, %v1117, 0
        %v1146 = vsel %vm440, %v1118, 0
        %v1149 = vsel %vm440, %v1119, 0
        %v1152 = vsel %vm440, %v1120, 0
        %v1155 = vsel %vm440, %v1121, 0
        %v1158 = vsel %vm440, %v1122, 0
        %v1161 = vsel %vm440, %v1123, 0
        %v1164 = vsel %vm440, %v1124, 0
        %v1167 = vsel %vm440, %v1125, 0
        %v1170 = vsel %vm440, %v1126, 0
        %v1173 = vsel %vm440, %v1127, 0
        %v1176 = vsel %vm440, %v1128, 0
        %v1179 = vsel %vm440, %v1129, 0
        %v1182 = vsel %vm440, %v1130, 0
        %1184 = vmatprep.subr.mxu0 0.0
        %1185 = vmatpush1.msra.mxu0 %v1132
        %1186 = vmatprep.subr.mxu0 0.0
        %1187 = vmatpush1.msra.mxu0 %v1133
        %1188 = vmatprep.subr.mxu0 0.0
        %1189 = vmatpush1.msra.mxu0 %v1134
        %1190 = vmatprep.subr.mxu0 0.0
        %1191 = vmatpush1.msra.mxu0 %v1135
        %1192 = vmatprep.subr.mxu0 0.0
        %1193 = vmatpush1.msra.mxu0 0.0
        %1194 = vmatprep.subr.mxu0 0.0
        %1195 = vmatpush1.msra.mxu0 0.0
        %1196 = vmatprep.subr.mxu0 0.0
        %1197 = vmatpush1.msra.mxu0 0.0
        %1198 = vmatprep.subr.mxu0 0.0
        %1199 = vmatpush1.msra.mxu0 0.0
        %1200 = vmatprep.subr.mxu0 0.0
        %1201 = vmatpush1.msra.mxu0 0.0
        %1202 = vmatprep.subr.mxu0 0.0
        %1203 = vmatpush1.msra.mxu0 0.0
        %1204 = vmatprep.subr.mxu0 0.0
        %1205 = vmatpush1.msra.mxu0 0.0
        %1206 = vmatprep.subr.mxu0 0.0
        %1207 = vmatpush1.msra.mxu0 0.0
        %1208 = vmatprep.subr.mxu0 0.0
        %1209 = vmatpush1.msra.mxu0 0.0
        %1210 = vmatprep.subr.mxu0 0.0
        %1211 = vmatpush1.msra.mxu0 0.0
        %1212 = vmatprep.subr.mxu0 0.0
        %1213 = vmatpush1.msra.mxu0 0.0
        %1214 = vmatprep.subr.mxu0 0.0
        %1215 = vmatpush1.msra.mxu0 0.0
        %1216 = vmatprep.subr.mxu0 0.0
        %1217 = vmatpush1.msra.mxu0 0.0
        %1218 = vmatprep.subr.mxu0 0.0
        %1219 = vmatpush1.msra.mxu0 0.0
        %1220 = vmatprep.subr.mxu0 0.0
        %1221 = vmatpush1.msra.mxu0 0.0
        %1222 = vmatprep.subr.mxu0 0.0
        %1223 = vmatpush1.msra.mxu0 0.0
        %1224 = vmatprep.subr.mxu0 0.0
        %1225 = vmatpush1.msra.mxu0 0.0
        %1226 = vmatprep.subr.mxu0 0.0
        %1227 = vmatpush1.msra.mxu0 0.0
        %1228 = vmatprep.subr.mxu0 0.0
        %1229 = vmatpush1.msra.mxu0 0.0
        %1230 = vmatprep.subr.mxu0 0.0
        %1231 = vmatpush1.msra.mxu0 0.0
        %1232 = vmatprep.subr.mxu0 0.0
        %1233 = vmatpush1.msra.mxu0 0.0
        %1234 = vmatprep.subr.mxu0 0.0
        %1235 = vmatpush1.msra.mxu0 0.0
        %1236 = vmatprep.subr.mxu0 0.0
        %1237 = vmatpush1.msra.mxu0 0.0
        %1238 = vmatprep.subr.mxu0 0.0
        %1239 = vmatpush1.msra.mxu0 0.0
        %1240 = vmatprep.subr.mxu0 0.0
        %1241 = vmatpush1.msra.mxu0 0.0
        %1242 = vmatprep.subr.mxu0 0.0
        %1243 = vmatpush1.msra.mxu0 0.0
        %1244 = vmatprep.subr.mxu0 0.0
        %1245 = vmatpush1.msra.mxu0 0.0
        %1246 = vmatprep.subr.mxu0 0.0
        %1247 = vmatpush1.msra.mxu0 0.0
        %1248 = vmatprep.mubr.f32.mxu0 0.0
        %1249 = vmatmul.mubr.f32.gmra.mrb[0].mxu0 %v1137
        %v1250 = vpop.f32.mrb[0].mxu0
        %v1251 = vadd.f32 0.0, %v1250
        %v1252 = vpop.f32.mrb[0].mxu0
        %1253 = vmatprep.mubr.f32.mxu0 0.0
        %1254 = vmatmul.mubr.f32.gmra.mrb[0].mxu0 %v1140
        %v1255 = vpop.f32.mrb[0].mxu0
        %v1256 = vadd.f32 0.0, %v1255
        %v1257 = vpop.f32.mrb[0].mxu0
        %1258 = vmatprep.mubr.f32.mxu0 0.0
        %1259 = vmatmul.mubr.f32.gmra.mrb[0].mxu0 %v1143
        %v1260 = vpop.f32.mrb[0].mxu0
        %v1261 = vadd.f32 0.0, %v1260
        %v1262 = vpop.f32.mrb[0].mxu0
        %1263 = vmatprep.mubr.f32.mxu0 0.0
        %1264 = vmatmul.mubr.f32.gmra.mrb[0].mxu0 %v1146
        %v1265 = vpop.f32.mrb[0].mxu0
        %v1266 = vadd.f32 0.0, %v1265
        %v1267 = vpop.f32.mrb[0].mxu0
        %1268 = vmatprep.mubr.f32.mxu0 0.0
        %1269 = vmatmul.mubr.f32.gmra.mrb[0].mxu0 %v1149
        %v1270 = vpop.f32.mrb[0].mxu0
        %v1271 = vadd.f32 0.0, %v1270
        %v1272 = vpop.f32.mrb[0].mxu0
        %1273 = vmatprep.mubr.f32.mxu0 0.0
        %1274 = vmatmul.mubr.f32.gmra.mrb[0].mxu0 %v1152
        %v1275 = vpop.f32.mrb[0].mxu0
        %v1276 = vadd.f32 0.0, %v1275
        %v1277 = vpop.f32.mrb[0].mxu0
        %1278 = vmatprep.mubr.f32.mxu0 0.0
        %1279 = vmatmul.mubr.f32.gmra.mrb[0].mxu0 %v1155
        %v1280 = vpop.f32.mrb[0].mxu0
        %v1281 = vadd.f32 0.0, %v1280
        %v1282 = vpop.f32.mrb[0].mxu0
        %1283 = vmatprep.mubr.f32.mxu0 0.0
        %1284 = vmatmul.mubr.f32.gmra.mrb[0].mxu0 %v1158
        %v1285 = vpop.f32.mrb[0].mxu0
        %v1286 = vadd.f32 0.0, %v1285
        %v1287 = vpop.f32.mrb[0].mxu0
        %1288 = vmatprep.mubr.f32.mxu0 0.0
        %1289 = vmatmul.mubr.f32.gmra.mrb[0].mxu0 %v1161
        %v1290 = vpop.f32.mrb[0].mxu0
        %v1291 = vadd.f32 0.0, %v1290
        %v1292 = vpop.f32.mrb[0].mxu0
        %1293 = vmatprep.mubr.f32.mxu0 0.0
        %1294 = vmatmul.mubr.f32.gmra.mrb[0].mxu0 %v1164
        %v1295 = vpop.f32.mrb[0].mxu0
        %v1296 = vadd.f32 0.0, %v1295
        %v1297 = vpop.f32.mrb[0].mxu0
        %1298 = vmatprep.mubr.f32.mxu0 0.0
        %1299 = vmatmul.mubr.f32.gmra.mrb[0].mxu0 %v1167
        %v1300 = vpop.f32.mrb[0].mxu0
        %v1301 = vadd.f32 0.0, %v1300
        %v1302 = vpop.f32.mrb[0].mxu0
        %1303 = vmatprep.mubr.f32.mxu0 0.0
        %1304 = vmatmul.mubr.f32.gmra.mrb[0].mxu0 %v1170
        %v1305 = vpop.f32.mrb[0].mxu0
        %v1306 = vadd.f32 0.0, %v1305
        %v1307 = vpop.f32.mrb[0].mxu0
        %1308 = vmatprep.mubr.f32.mxu0 0.0
        %1309 = vmatmul.mubr.f32.gmra.mrb[0].mxu0 %v1173
        %v1310 = vpop.f32.mrb[0].mxu0
        %v1311 = vadd.f32 0.0, %v1310
        %v1312 = vpop.f32.mrb[0].mxu0
        %1313 = vmatprep.mubr.f32.mxu0 0.0
        %1314 = vmatmul.mubr.f32.gmra.mrb[0].mxu0 %v1176
        %v1315 = vpop.f32.mrb[0].mxu0
        %v1316 = vadd.f32 0.0, %v1315
        %v1317 = vpop.f32.mrb[0].mxu0
        %1318 = vmatprep.mubr.f32.mxu0 0.0
        %1319 = vmatmul.mubr.f32.gmra.mrb[0].mxu0 %v1179
        %v1320 = vpop.f32.mrb[0].mxu0
        %v1321 = vadd.f32 0.0, %v1320
        %v1322 = vpop.f32.mrb[0].mxu0
        %1323 = vmatprep.mubr.f32.mxu0 0.0
        %1324 = vmatmul.mubr.f32.gmra.mrb[0].mxu0 %v1182
        %v1325 = vpop.f32.mrb[0].mxu0
        %v1326 = vadd.f32 0.0, %v1325
        %v1327 = vpop.f32.mrb[0].mxu0
        %1328 = vdwg.mxu0
        %v1329 = vadd.f32 %v1097, %v1251
        %v1330 = vadd.f32 %v1098, %v1256
        %v1331 = vadd.f32 %v1099, %v1261
        %v1332 = vadd.f32 %v1100, %v1266
        %v1333 = vadd.f32 %v1101, %v1271
        %v1334 = vadd.f32 %v1102, %v1276
        %v1335 = vadd.f32 %v1103, %v1281
        %v1336 = vadd.f32 %v1104, %v1286
        %v1337 = vadd.f32 %v1105, %v1291
        %v1338 = vadd.f32 %v1106, %v1296
        %v1339 = vadd.f32 %v1107, %v1301
        %v1340 = vadd.f32 %v1108, %v1306
        %v1341 = vadd.f32 %v1109, %v1311
        %v1342 = vadd.f32 %v1110, %v1316
        %v1343 = vadd.f32 %v1111, %v1321
        %v1344 = vadd.f32 %v1112, %v1326
        %s1345 = sadd.s32 %s409, 8
        %s1346 = scalar_lea.vmem %s375, %s1345
        %v1347 = vld [vmem:[%s1346] sm:$0xff]
        %v1348 = vld [vmem:[%s1346 + $0x8] sm:$0xff]
        %v1349 = vld [vmem:[%s1346 + $0x10] sm:$0xff]
        %v1350 = vld [vmem:[%s1346 + $0x18] sm:$0xff]
        %v1351 = vld [vmem:[%s1346 + $0x20] sm:$0xff]
        %v1352 = vld [vmem:[%s1346 + $0x28] sm:$0xff]
        %v1353 = vld [vmem:[%s1346 + $0x30] sm:$0xff]
        %v1354 = vld [vmem:[%s1346 + $0x38] sm:$0xff]
        %v1355 = vld [vmem:[%s1346 + $0x40] sm:$0xff]
        %v1356 = vld [vmem:[%s1346 + $0x48] sm:$0xff]
        %v1357 = vld [vmem:[%s1346 + $0x50] sm:$0xff]
        %v1358 = vld [vmem:[%s1346 + $0x58] sm:$0xff]
        %v1359 = vld [vmem:[%s1346 + $0x60] sm:$0xff]
        %v1360 = vld [vmem:[%s1346 + $0x68] sm:$0xff]
        %v1361 = vld [vmem:[%s1346 + $0x70] sm:$0xff]
        %v1362 = vld [vmem:[%s1346 + $0x78] sm:$0xff]
        %s1363 = scalar_lea.vmem %s3, 128
        %v1364 = vld [vmem:[%s1363] sm:$0xff]
        %v1365 = vld [vmem:[%s1363 + $0x8] sm:$0xff]
        %v1366 = vld [vmem:[%s1363 + $0x10] sm:$0xff]
        %v1367 = vld [vmem:[%s1363 + $0x18] sm:$0xff]
        %v1369 = vsel %vm440, %v1347, 0
        %v1372 = vsel %vm440, %v1348, 0
        %v1375 = vsel %vm440, %v1349, 0
        %v1378 = vsel %vm440, %v1350, 0
        %v1381 = vsel %vm440, %v1351, 0
        %v1384 = vsel %vm440, %v1352, 0
        %v1387 = vsel %vm440, %v1353, 0
        %v1390 = vsel %vm440, %v1354, 0
        %v1393 = vsel %vm440, %v1355, 0
        %v1396 = vsel %vm440, %v1356, 0
        %v1399 = vsel %vm440, %v1357, 0
        %v1402 = vsel %vm440, %v1358, 0
        %v1405 = vsel %vm440, %v1359, 0
        %v1408 = vsel %vm440, %v1360, 0
        %v1411 = vsel %vm440, %v1361, 0
        %v1414 = vsel %vm440, %v1362, 0
        %1416 = vmatprep.subr.mxu0 0.0
        %1417 = vmatpush1.msra.mxu0 %v1364
        %1418 = vmatprep.subr.mxu0 0.0
        %1419 = vmatpush1.msra.mxu0 %v1365
        %1420 = vmatprep.subr.mxu0 0.0
        %1421 = vmatpush1.msra.mxu0 %v1366
        %1422 = vmatprep.subr.mxu0 0.0
        %1423 = vmatpush1.msra.mxu0 %v1367
        %1424 = vmatprep.subr.mxu0 0.0
        %1425 = vmatpush1.msra.mxu0 0.0
        %1426 = vmatprep.subr.mxu0 0.0
        %1427 = vmatpush1.msra.mxu0 0.0
        %1428 = vmatprep.subr.mxu0 0.0
        %1429 = vmatpush1.msra.mxu0 0.0
        %1430 = vmatprep.subr.mxu0 0.0
        %1431 = vmatpush1.msra.mxu0 0.0
        %1432 = vmatprep.subr.mxu0 0.0
        %1433 = vmatpush1.msra.mxu0 0.0
        %1434 = vmatprep.subr.mxu0 0.0
        %1435 = vmatpush1.msra.mxu0 0.0
        %1436 = vmatprep.subr.mxu0 0.0
        %1437 = vmatpush1.msra.mxu0 0.0
        %1438 = vmatprep.subr.mxu0 0.0
        %1439 = vmatpush1.msra.mxu0 0.0
        %1440 = vmatprep.subr.mxu0 0.0
        %1441 = vmatpush1.msra.mxu0 0.0
        %1442 = vmatprep.subr.mxu0 0.0
        %1443 = vmatpush1.msra.mxu0 0.0
        %1444 = vmatprep.subr.mxu0 0.0
        %1445 = vmatpush1.msra.mxu0 0.0
        %1446 = vmatprep.subr.mxu0 0.0
        %1447 = vmatpush1.msra.mxu0 0.0
        %1448 = vmatprep.subr.mxu0 0.0
        %1449 = vmatpush1.msra.mxu0 0.0
        %1450 = vmatprep.subr.mxu0 0.0
        %1451 = vmatpush1.msra.mxu0 0.0
        %1452 = vmatprep.subr.mxu0 0.0
        %1453 = vmatpush1.msra.mxu0 0.0
        %1454 = vmatprep.subr.mxu0 0.0
        %1455 = vmatpush1.msra.mxu0 0.0
        %1456 = vmatprep.subr.mxu0 0.0
        %1457 = vmatpush1.msra.mxu0 0.0
        %1458 = vmatprep.subr.mxu0 0.0
        %1459 = vmatpush1.msra.mxu0 0.0
        %1460 = vmatprep.subr.mxu0 0.0
        %1461 = vmatpush1.msra.mxu0 0.0
        %1462 = vmatprep.subr.mxu0 0.0
        %1463 = vmatpush1.msra.mxu0 0.0
        %1464 = vmatprep.subr.mxu0 0.0
        %1465 = vmatpush1.msra.mxu0 0.0
        %1466 = vmatprep.subr.mxu0 0.0
        %1467 = vmatpush1.msra.mxu0 0.0
        %1468 = vmatprep.subr.mxu0 0.0
        %1469 = vmatpush1.msra.mxu0 0.0
        %1470 = vmatprep.subr.mxu0 0.0
        %1471 = vmatpush1.msra.mxu0 0.0
        %1472 = vmatprep.subr.mxu0 0.0
        %1473 = vmatpush1.msra.mxu0 0.0
        %1474 = vmatprep.subr.mxu0 0.0
        %1475 = vmatpush1.msra.mxu0 0.0
        %1476 = vmatprep.subr.mxu0 0.0
        %1477 = vmatpush1.msra.mxu0 0.0
        %1478 = vmatprep.subr.mxu0 0.0
        %1479 = vmatpush1.msra.mxu0 0.0
        %1480 = vmatprep.mubr.f32.mxu0 0.0
        %1481 = vmatmul.mubr.f32.gmra.mrb[0].mxu0 %v1369
        %v1482 = vpop.f32.mrb[0].mxu0
        %v1483 = vadd.f32 0.0, %v1482
        %v1484 = vpop.f32.mrb[0].mxu0
        %1485 = vmatprep.mubr.f32.mxu0 0.0
        %1486 = vmatmul.mubr.f32.gmra.mrb[0].mxu0 %v1372
        %v1487 = vpop.f32.mrb[0].mxu0
        %v1488 = vadd.f32 0.0, %v1487
        %v1489 = vpop.f32.mrb[0].mxu0
        %1490 = vmatprep.mubr.f32.mxu0 0.0
        %1491 = vmatmul.mubr.f32.gmra.mrb[0].mxu0 %v1375
        %v1492 = vpop.f32.mrb[0].mxu0
        %v1493 = vadd.f32 0.0, %v1492
        %v1494 = vpop.f32.mrb[0].mxu0
        %1495 = vmatprep.mubr.f32.mxu0 0.0
        %1496 = vmatmul.mubr.f32.gmra.mrb[0].mxu0 %v1378
        %v1497 = vpop.f32.mrb[0].mxu0
        %v1498 = vadd.f32 0.0, %v1497
        %v1499 = vpop.f32.mrb[0].mxu0
        %1500 = vmatprep.mubr.f32.mxu0 0.0
        %1501 = vmatmul.mubr.f32.gmra.mrb[0].mxu0 %v1381
        %v1502 = vpop.f32.mrb[0].mxu0
        %v1503 = vadd.f32 0.0, %v1502
        %v1504 = vpop.f32.mrb[0].mxu0
        %1505 = vmatprep.mubr.f32.mxu0 0.0
        %1506 = vmatmul.mubr.f32.gmra.mrb[0].mxu0 %v1384
        %v1507 = vpop.f32.mrb[0].mxu0
        %v1508 = vadd.f32 0.0, %v1507
        %v1509 = vpop.f32.mrb[0].mxu0
        %1510 = vmatprep.mubr.f32.mxu0 0.0
        %1511 = vmatmul.mubr.f32.gmra.mrb[0].mxu0 %v1387
        %v1512 = vpop.f32.mrb[0].mxu0
        %v1513 = vadd.f32 0.0, %v1512
        %v1514 = vpop.f32.mrb[0].mxu0
        %1515 = vmatprep.mubr.f32.mxu0 0.0
        %1516 = vmatmul.mubr.f32.gmra.mrb[0].mxu0 %v1390
        %v1517 = vpop.f32.mrb[0].mxu0
        %v1518 = vadd.f32 0.0, %v1517
        %v1519 = vpop.f32.mrb[0].mxu0
        %1520 = vmatprep.mubr.f32.mxu0 0.0
        %1521 = vmatmul.mubr.f32.gmra.mrb[0].mxu0 %v1393
        %v1522 = vpop.f32.mrb[0].mxu0
        %v1523 = vadd.f32 0.0, %v1522
        %v1524 = vpop.f32.mrb[0].mxu0
        %1525 = vmatprep.mubr.f32.mxu0 0.0
        %1526 = vmatmul.mubr.f32.gmra.mrb[0].mxu0 %v1396
        %v1527 = vpop.f32.mrb[0].mxu0
        %v1528 = vadd.f32 0.0, %v1527
        %v1529 = vpop.f32.mrb[0].mxu0
        %1530 = vmatprep.mubr.f32.mxu0 0.0
        %1531 = vmatmul.mubr.f32.gmra.mrb[0].mxu0 %v1399
        %v1532 = vpop.f32.mrb[0].mxu0
        %v1533 = vadd.f32 0.0, %v1532
        %v1534 = vpop.f32.mrb[0].mxu0
        %1535 = vmatprep.mubr.f32.mxu0 0.0
        %1536 = vmatmul.mubr.f32.gmra.mrb[0].mxu0 %v1402
        %v1537 = vpop.f32.mrb[0].mxu0
        %v1538 = vadd.f32 0.0, %v1537
        %v1539 = vpop.f32.mrb[0].mxu0
        %1540 = vmatprep.mubr.f32.mxu0 0.0
        %1541 = vmatmul.mubr.f32.gmra.mrb[0].mxu0 %v1405
        %v1542 = vpop.f32.mrb[0].mxu0
        %v1543 = vadd.f32 0.0, %v1542
        %v1544 = vpop.f32.mrb[0].mxu0
        %1545 = vmatprep.mubr.f32.mxu0 0.0
        %1546 = vmatmul.mubr.f32.gmra.mrb[0].mxu0 %v1408
        %v1547 = vpop.f32.mrb[0].mxu0
        %v1548 = vadd.f32 0.0, %v1547
        %v1549 = vpop.f32.mrb[0].mxu0
        %1550 = vmatprep.mubr.f32.mxu0 0.0
        %1551 = vmatmul.mubr.f32.gmra.mrb[0].mxu0 %v1411
        %v1552 = vpop.f32.mrb[0].mxu0
        %v1553 = vadd.f32 0.0, %v1552
        %v1554 = vpop.f32.mrb[0].mxu0
        %1555 = vmatprep.mubr.f32.mxu0 0.0
        %1556 = vmatmul.mubr.f32.gmra.mrb[0].mxu0 %v1414
        %v1557 = vpop.f32.mrb[0].mxu0
        %v1558 = vadd.f32 0.0, %v1557
        %v1559 = vpop.f32.mrb[0].mxu0
        %1560 = vdwg.mxu0
        %v1561 = vadd.f32 %v1329, %v1483
        %v1562 = vadd.f32 %v1330, %v1488
        %v1563 = vadd.f32 %v1331, %v1493
        %v1564 = vadd.f32 %v1332, %v1498
        %v1565 = vadd.f32 %v1333, %v1503
        %v1566 = vadd.f32 %v1334, %v1508
        %v1567 = vadd.f32 %v1335, %v1513
        %v1568 = vadd.f32 %v1336, %v1518
        %v1569 = vadd.f32 %v1337, %v1523
        %v1570 = vadd.f32 %v1338, %v1528
        %v1571 = vadd.f32 %v1339, %v1533
        %v1572 = vadd.f32 %v1340, %v1538
        %v1573 = vadd.f32 %v1341, %v1543
        %v1574 = vadd.f32 %v1342, %v1548
        %v1575 = vadd.f32 %v1343, %v1553
        %v1576 = vadd.f32 %v1344, %v1558
        %v1577 = vtanh.pop %v1561
        %v1578 = vtanh.pop %v1562
        %v1579 = vtanh.pop %v1563
        %v1580 = vtanh.pop %v1564
        %v1581 = vtanh.pop %v1565
        %v1582 = vtanh.pop %v1566
        %v1583 = vtanh.pop %v1567
        %v1584 = vtanh.pop %v1568
        %v1585 = vtanh.pop %v1569
        %v1586 = vtanh.pop %v1570
        %v1587 = vtanh.pop %v1571
        %v1588 = vtanh.pop %v1572
        %v1589 = vtanh.pop %v1573
        %v1590 = vtanh.pop %v1574
        %v1591 = vtanh.pop %v1575
        %v1592 = vtanh.pop %v1576
        %v1593 = vxor.u32 %v1561, 2147483648
        %v1594 = vxor.u32 %v1562, 2147483648
        %v1595 = vxor.u32 %v1563, 2147483648
        %v1596 = vxor.u32 %v1564, 2147483648
        %v1597 = vxor.u32 %v1565, 2147483648
        %v1598 = vxor.u32 %v1566, 2147483648
        %v1599 = vxor.u32 %v1567, 2147483648
        %v1600 = vxor.u32 %v1568, 2147483648
        %v1601 = vxor.u32 %v1569, 2147483648
        %v1602 = vxor.u32 %v1570, 2147483648
        %v1603 = vxor.u32 %v1571, 2147483648
        %v1604 = vxor.u32 %v1572, 2147483648
        %v1605 = vxor.u32 %v1573, 2147483648
        %v1606 = vxor.u32 %v1574, 2147483648
        %v1607 = vxor.u32 %v1575, 2147483648
        %v1608 = vxor.u32 %v1576, 2147483648
        %v1609 = vmul.f32 %v1593, 1.442695
        %v1610 = vpow.pop %v1609
        %v1611 = vmul.f32 %v1594, 1.442695
        %v1612 = vpow.pop %v1611
        %v1613 = vmul.f32 %v1595, 1.442695
        %v1614 = vpow.pop %v1613
        %v1615 = vmul.f32 %v1596, 1.442695
        %v1616 = vpow.pop %v1615
        %v1617 = vmul.f32 %v1597, 1.442695
        %v1618 = vpow.pop %v1617
        %v1619 = vmul.f32 %v1598, 1.442695
        %v1620 = vpow.pop %v1619
        %v1621 = vmul.f32 %v1599, 1.442695
        %v1622 = vpow.pop %v1621
        %v1623 = vmul.f32 %v1600, 1.442695
        %v1624 = vpow.pop %v1623
        %v1625 = vmul.f32 %v1601, 1.442695
        %v1626 = vpow.pop %v1625
        %v1627 = vmul.f32 %v1602, 1.442695
        %v1628 = vpow.pop %v1627
        %v1629 = vmul.f32 %v1603, 1.442695
        %v1630 = vpow.pop %v1629
        %v1631 = vmul.f32 %v1604, 1.442695
        %v1632 = vpow.pop %v1631
        %v1633 = vmul.f32 %v1605, 1.442695
        %v1634 = vpow.pop %v1633
        %v1635 = vmul.f32 %v1606, 1.442695
        %v1636 = vpow.pop %v1635
        %v1637 = vmul.f32 %v1607, 1.442695
        %v1638 = vpow.pop %v1637
        %v1639 = vmul.f32 %v1608, 1.442695
        %v1640 = vpow.pop %v1639
        %v1641 = vadd.f32 %v1610, 1.0
        %v1642 = vadd.f32 %v1612, 1.0
        %v1643 = vadd.f32 %v1614, 1.0
        %v1644 = vadd.f32 %v1616, 1.0
        %v1645 = vadd.f32 %v1618, 1.0
        %v1646 = vadd.f32 %v1620, 1.0
        %v1647 = vadd.f32 %v1622, 1.0
        %v1648 = vadd.f32 %v1624, 1.0
        %v1649 = vadd.f32 %v1626, 1.0
        %v1650 = vadd.f32 %v1628, 1.0
        %v1651 = vadd.f32 %v1630, 1.0
        %v1652 = vadd.f32 %v1632, 1.0
        %v1653 = vadd.f32 %v1634, 1.0
        %v1654 = vadd.f32 %v1636, 1.0
        %v1655 = vadd.f32 %v1638, 1.0
        %v1656 = vadd.f32 %v1640, 1.0
        %v1657 = vrcp.pop %v1641
        %v1658 = vmul.f32 1.0, %v1657
        %v1659 = vrcp.pop %v1642
        %v1660 = vmul.f32 1.0, %v1659
        %v1661 = vrcp.pop %v1643
        %v1662 = vmul.f32 1.0, %v1661
        %v1663 = vrcp.pop %v1644
        %v1664 = vmul.f32 1.0, %v1663
        %v1665 = vrcp.pop %v1645
        %v1666 = vmul.f32 1.0, %v1665
        %v1667 = vrcp.pop %v1646
        %v1668 = vmul.f32 1.0, %v1667
        %v1669 = vrcp.pop %v1647
        %v1670 = vmul.f32 1.0, %v1669
        %v1671 = vrcp.pop %v1648
        %v1672 = vmul.f32 1.0, %v1671
        %v1673 = vrcp.pop %v1649
        %v1674 = vmul.f32 1.0, %v1673
        %v1675 = vrcp.pop %v1650
        %v1676 = vmul.f32 1.0, %v1675
        %v1677 = vrcp.pop %v1651
        %v1678 = vmul.f32 1.0, %v1677
        %v1679 = vrcp.pop %v1652
        %v1680 = vmul.f32 1.0, %v1679
        %v1681 = vrcp.pop %v1653
        %v1682 = vmul.f32 1.0, %v1681
        %v1683 = vrcp.pop %v1654
        %v1684 = vmul.f32 1.0, %v1683
        %v1685 = vrcp.pop %v1655
        %v1686 = vmul.f32 1.0, %v1685
        %v1687 = vrcp.pop %v1656
        %v1688 = vmul.f32 1.0, %v1687
        %1705 = vrot.lane.b32.xlu0 %v1658, 96
        %v1706 = vpop.permute.xlu0 %1705
        %1707 = vrot.lane.b32.xlu0 %v1660, 96
        %v1708 = vpop.permute.xlu0 %1707
        %1709 = vrot.lane.b32.xlu0 %v1662, 96
        %v1710 = vpop.permute.xlu0 %1709
        %1711 = vrot.lane.b32.xlu0 %v1664, 96
        %v1712 = vpop.permute.xlu0 %1711
        %1713 = vrot.lane.b32.xlu0 %v1666, 96
        %v1714 = vpop.permute.xlu0 %1713
        %1715 = vrot.lane.b32.xlu0 %v1668, 96
        %v1716 = vpop.permute.xlu0 %1715
        %1717 = vrot.lane.b32.xlu0 %v1670, 96
        %v1718 = vpop.permute.xlu0 %1717
        %1719 = vrot.lane.b32.xlu0 %v1672, 96
        %v1720 = vpop.permute.xlu0 %1719
        %1721 = vrot.lane.b32.xlu0 %v1674, 96
        %v1722 = vpop.permute.xlu0 %1721
        %1723 = vrot.lane.b32.xlu0 %v1676, 96
        %v1724 = vpop.permute.xlu0 %1723
        %1725 = vrot.lane.b32.xlu0 %v1678, 96
        %v1726 = vpop.permute.xlu0 %1725
        %1727 = vrot.lane.b32.xlu0 %v1680, 96
        %v1728 = vpop.permute.xlu0 %1727
        %1729 = vrot.lane.b32.xlu0 %v1682, 96
        %v1730 = vpop.permute.xlu0 %1729
        %1731 = vrot.lane.b32.xlu0 %v1684, 96
        %v1732 = vpop.permute.xlu0 %1731
        %1733 = vrot.lane.b32.xlu0 %v1686, 96
        %v1734 = vpop.permute.xlu0 %1733
        %1735 = vrot.lane.b32.xlu0 %v1688, 96
        %v1736 = vpop.permute.xlu0 %1735
        %v1753 = vmul.f32 %v1577, %v1706
        %v1754 = vmul.f32 %v1578, %v1708
        %v1755 = vmul.f32 %v1579, %v1710
        %v1756 = vmul.f32 %v1580, %v1712
        %v1757 = vmul.f32 %v1581, %v1714
        %v1758 = vmul.f32 %v1582, %v1716
        %v1759 = vmul.f32 %v1583, %v1718
        %v1760 = vmul.f32 %v1584, %v1720
        %v1761 = vmul.f32 %v1585, %v1722
        %v1762 = vmul.f32 %v1586, %v1724
        %v1763 = vmul.f32 %v1587, %v1726
        %v1764 = vmul.f32 %v1588, %v1728
        %v1765 = vmul.f32 %v1589, %v1730
        %v1766 = vmul.f32 %v1590, %v1732
        %v1767 = vmul.f32 %v1591, %v1734
        %v1768 = vmul.f32 %v1592, %v1736
        %v1769 = vld [vmem:[%s5] sm:$0xff]
        %v1770 = vld [vmem:[%s5 + $0x8] sm:$0xff]
        %v1771 = vld [vmem:[%s5 + $0x10] sm:$0xff]
        %v1772 = vld [vmem:[%s5 + $0x18] sm:$0xff]
        %v1773 = vld [vmem:[%s6] sm:$0x1]
        %v1775 = vlaneseq
        %v1776 = vshrl.u32 %v1775, 7
        %v1777 = vsub.s32 0, %v1776
        %v1778 = vrot.slane %v1773, %v1777
        %v1781 = vsel %vm440, %v1753, 0
        %v1784 = vsel %vm440, %v1754, 0
        %v1787 = vsel %vm440, %v1755, 0
        %v1790 = vsel %vm440, %v1756, 0
        %v1793 = vsel %vm440, %v1757, 0
        %v1796 = vsel %vm440, %v1758, 0
        %v1799 = vsel %vm440, %v1759, 0
        %v1802 = vsel %vm440, %v1760, 0
        %v1805 = vsel %vm440, %v1761, 0
        %v1808 = vsel %vm440, %v1762, 0
        %v1811 = vsel %vm440, %v1763, 0
        %v1814 = vsel %vm440, %v1764, 0
        %v1817 = vsel %vm440, %v1765, 0
        %v1820 = vsel %vm440, %v1766, 0
        %v1823 = vsel %vm440, %v1767, 0
        %v1826 = vsel %vm440, %v1768, 0
        %1828 = vmatprep.subr.mxu0 0.0
        %1829 = vmatpush1.msra.mxu0 %v1769
        %1830 = vmatprep.subr.mxu0 0.0
        %1831 = vmatpush1.msra.mxu0 %v1770
        %1832 = vmatprep.subr.mxu0 0.0
        %1833 = vmatpush1.msra.mxu0 %v1771
        %1834 = vmatprep.subr.mxu0 0.0
        %1835 = vmatpush1.msra.mxu0 %v1772
        %1836 = vmatprep.subr.mxu0 0.0
        %1837 = vmatpush1.msra.mxu0 0.0
        %1838 = vmatprep.subr.mxu0 0.0
        %1839 = vmatpush1.msra.mxu0 0.0
        %1840 = vmatprep.subr.mxu0 0.0
        %1841 = vmatpush1.msra.mxu0 0.0
        %1842 = vmatprep.subr.mxu0 0.0
        %1843 = vmatpush1.msra.mxu0 0.0
        %1844 = vmatprep.subr.mxu0 0.0
        %1845 = vmatpush1.msra.mxu0 0.0
        %1846 = vmatprep.subr.mxu0 0.0
        %1847 = vmatpush1.msra.mxu0 0.0
        %1848 = vmatprep.subr.mxu0 0.0
        %1849 = vmatpush1.msra.mxu0 0.0
        %1850 = vmatprep.subr.mxu0 0.0
        %1851 = vmatpush1.msra.mxu0 0.0
        %1852 = vmatprep.subr.mxu0 0.0
        %1853 = vmatpush1.msra.mxu0 0.0
        %1854 = vmatprep.subr.mxu0 0.0
        %1855 = vmatpush1.msra.mxu0 0.0
        %1856 = vmatprep.subr.mxu0 0.0
        %1857 = vmatpush1.msra.mxu0 0.0
        %1858 = vmatprep.subr.mxu0 0.0
        %1859 = vmatpush1.msra.mxu0 0.0
        %1860 = vmatprep.subr.mxu0 0.0
        %1861 = vmatpush1.msra.mxu0 0.0
        %1862 = vmatprep.subr.mxu0 0.0
        %1863 = vmatpush1.msra.mxu0 0.0
        %1864 = vmatprep.subr.mxu0 0.0
        %1865 = vmatpush1.msra.mxu0 0.0
        %1866 = vmatprep.subr.mxu0 0.0
        %1867 = vmatpush1.msra.mxu0 0.0
        %1868 = vmatprep.subr.mxu0 0.0
        %1869 = vmatpush1.msra.mxu0 0.0
        %1870 = vmatprep.subr.mxu0 0.0
        %1871 = vmatpush1.msra.mxu0 0.0
        %1872 = vmatprep.subr.mxu0 0.0
        %1873 = vmatpush1.msra.mxu0 0.0
        %1874 = vmatprep.subr.mxu0 0.0
        %1875 = vmatpush1.msra.mxu0 0.0
        %1876 = vmatprep.subr.mxu0 0.0
        %1877 = vmatpush1.msra.mxu0 0.0
        %1878 = vmatprep.subr.mxu0 0.0
        %1879 = vmatpush1.msra.mxu0 0.0
        %1880 = vmatprep.subr.mxu0 0.0
        %1881 = vmatpush1.msra.mxu0 0.0
        %1882 = vmatprep.subr.mxu0 0.0
        %1883 = vmatpush1.msra.mxu0 0.0
        %1884 = vmatprep.subr.mxu0 0.0
        %1885 = vmatpush1.msra.mxu0 0.0
        %1886 = vmatprep.subr.mxu0 0.0
        %1887 = vmatpush1.msra.mxu0 0.0
        %1888 = vmatprep.subr.mxu0 0.0
        %1889 = vmatpush1.msra.mxu0 0.0
        %1890 = vmatprep.subr.mxu0 0.0
        %1891 = vmatpush1.msra.mxu0 0.0
        %1892 = vmatprep.mubr.f32.mxu0 0.0
        %1893 = vmatmul.mubr.f32.gmra.mrb[0].mxu0 %v1781
        %v1894 = vpop.f32.mrb[0].mxu0
        %v1895 = vadd.f32 %v1778, %v1894
        %v1896 = vpop.f32.mrb[0].mxu0
        %1897 = vmatprep.mubr.f32.mxu0 0.0
        %1898 = vmatmul.mubr.f32.gmra.mrb[0].mxu0 %v1784
        %v1899 = vpop.f32.mrb[0].mxu0
        %v1900 = vadd.f32 %v1778, %v1899
        %v1901 = vpop.f32.mrb[0].mxu0
        %1902 = vmatprep.mubr.f32.mxu0 0.0
        %1903 = vmatmul.mubr.f32.gmra.mrb[0].mxu0 %v1787
        %v1904 = vpop.f32.mrb[0].mxu0
        %v1905 = vadd.f32 %v1778, %v1904
        %v1906 = vpop.f32.mrb[0].mxu0
        %1907 = vmatprep.mubr.f32.mxu0 0.0
        %1908 = vmatmul.mubr.f32.gmra.mrb[0].mxu0 %v1790
        %v1909 = vpop.f32.mrb[0].mxu0
        %v1910 = vadd.f32 %v1778, %v1909
        %v1911 = vpop.f32.mrb[0].mxu0
        %1912 = vmatprep.mubr.f32.mxu0 0.0
        %1913 = vmatmul.mubr.f32.gmra.mrb[0].mxu0 %v1793
        %v1914 = vpop.f32.mrb[0].mxu0
        %v1915 = vadd.f32 %v1778, %v1914
        %v1916 = vpop.f32.mrb[0].mxu0
        %1917 = vmatprep.mubr.f32.mxu0 0.0
        %1918 = vmatmul.mubr.f32.gmra.mrb[0].mxu0 %v1796
        %v1919 = vpop.f32.mrb[0].mxu0
        %v1920 = vadd.f32 %v1778, %v1919
        %v1921 = vpop.f32.mrb[0].mxu0
        %1922 = vmatprep.mubr.f32.mxu0 0.0
        %1923 = vmatmul.mubr.f32.gmra.mrb[0].mxu0 %v1799
        %v1924 = vpop.f32.mrb[0].mxu0
        %v1925 = vadd.f32 %v1778, %v1924
        %v1926 = vpop.f32.mrb[0].mxu0
        %1927 = vmatprep.mubr.f32.mxu0 0.0
        %1928 = vmatmul.mubr.f32.gmra.mrb[0].mxu0 %v1802
        %v1929 = vpop.f32.mrb[0].mxu0
        %v1930 = vadd.f32 %v1778, %v1929
        %v1931 = vpop.f32.mrb[0].mxu0
        %1932 = vmatprep.mubr.f32.mxu0 0.0
        %1933 = vmatmul.mubr.f32.gmra.mrb[0].mxu0 %v1805
        %v1934 = vpop.f32.mrb[0].mxu0
        %v1935 = vadd.f32 %v1778, %v1934
        %v1936 = vpop.f32.mrb[0].mxu0
        %1937 = vmatprep.mubr.f32.mxu0 0.0
        %1938 = vmatmul.mubr.f32.gmra.mrb[0].mxu0 %v1808
        %v1939 = vpop.f32.mrb[0].mxu0
        %v1940 = vadd.f32 %v1778, %v1939
        %v1941 = vpop.f32.mrb[0].mxu0
        %1942 = vmatprep.mubr.f32.mxu0 0.0
        %1943 = vmatmul.mubr.f32.gmra.mrb[0].mxu0 %v1811
        %v1944 = vpop.f32.mrb[0].mxu0
        %v1945 = vadd.f32 %v1778, %v1944
        %v1946 = vpop.f32.mrb[0].mxu0
        %1947 = vmatprep.mubr.f32.mxu0 0.0
        %1948 = vmatmul.mubr.f32.gmra.mrb[0].mxu0 %v1814
        %v1949 = vpop.f32.mrb[0].mxu0
        %v1950 = vadd.f32 %v1778, %v1949
        %v1951 = vpop.f32.mrb[0].mxu0
        %1952 = vmatprep.mubr.f32.mxu0 0.0
        %1953 = vmatmul.mubr.f32.gmra.mrb[0].mxu0 %v1817
        %v1954 = vpop.f32.mrb[0].mxu0
        %v1955 = vadd.f32 %v1778, %v1954
        %v1956 = vpop.f32.mrb[0].mxu0
        %1957 = vmatprep.mubr.f32.mxu0 0.0
        %1958 = vmatmul.mubr.f32.gmra.mrb[0].mxu0 %v1820
        %v1959 = vpop.f32.mrb[0].mxu0
        %v1960 = vadd.f32 %v1778, %v1959
        %v1961 = vpop.f32.mrb[0].mxu0
        %1962 = vmatprep.mubr.f32.mxu0 0.0
        %1963 = vmatmul.mubr.f32.gmra.mrb[0].mxu0 %v1823
        %v1964 = vpop.f32.mrb[0].mxu0
        %v1965 = vadd.f32 %v1778, %v1964
        %v1966 = vpop.f32.mrb[0].mxu0
        %1967 = vmatprep.mubr.f32.mxu0 0.0
        %1968 = vmatmul.mubr.f32.gmra.mrb[0].mxu0 %v1826
        %v1969 = vpop.f32.mrb[0].mxu0
        %v1970 = vadd.f32 %v1778, %v1969
        %v1971 = vpop.f32.mrb[0].mxu0
        %1972 = vdwg.mxu0
        %s1973 = sld [smem:[#allocation2 + %s25]]
        %v1974 = vlaneseq
        %v1975 = vshrl.u32 %v1974, 7
        %v1976 = vadd.s32 %v1975, 8
        %v1977 = vadd.s32 %v1975, 16
        %v1978 = vadd.s32 %v1975, 24
        %v1979 = vadd.s32 %v1975, 32
        %v1980 = vadd.s32 %v1975, 40
        %v1981 = vadd.s32 %v1975, 48
        %v1982 = vadd.s32 %v1975, 56
        %v1983 = vadd.s32 %v1975, 64
        %v1984 = vadd.s32 %v1975, 72
        %v1985 = vadd.s32 %v1975, 80
        %v1986 = vadd.s32 %v1975, 88
        %v1987 = vadd.s32 %v1975, 96
        %v1988 = vadd.s32 %v1975, 104
        %v1989 = vadd.s32 %v1975, 112
        %v1990 = vadd.s32 %v1975, 120
        %v1991 = vstv %s408
        %v1992 = vadd.s32 %v1991, %v1975
        %v1993 = vadd.s32 %v1991, %v1976
        %v1994 = vadd.s32 %v1991, %v1977
        %v1995 = vadd.s32 %v1991, %v1978
        %v1996 = vadd.s32 %v1991, %v1979
        %v1997 = vadd.s32 %v1991, %v1980
        %v1998 = vadd.s32 %v1991, %v1981
        %v1999 = vadd.s32 %v1991, %v1982
        %v2000 = vadd.s32 %v1991, %v1983
        %v2001 = vadd.s32 %v1991, %v1984
        %v2002 = vadd.s32 %v1991, %v1985
        %v2003 = vadd.s32 %v1991, %v1986
        %v2004 = vadd.s32 %v1991, %v1987
        %v2005 = vadd.s32 %v1991, %v1988
        %v2006 = vadd.s32 %v1991, %v1989
        %v2007 = vadd.s32 %v1991, %v1990
        %vm2008 = vcmp.ge.s32.totalorder %v1992, 0
        %vm2009 = vcmp.ge.s32.totalorder %v1993, 0
        %vm2010 = vcmp.ge.s32.totalorder %v1994, 0
        %vm2011 = vcmp.ge.s32.totalorder %v1995, 0
        %vm2012 = vcmp.ge.s32.totalorder %v1996, 0
        %vm2013 = vcmp.ge.s32.totalorder %v1997, 0
        %vm2014 = vcmp.ge.s32.totalorder %v1998, 0
        %vm2015 = vcmp.ge.s32.totalorder %v1999, 0
        %vm2016 = vcmp.ge.s32.totalorder %v2000, 0
        %vm2017 = vcmp.ge.s32.totalorder %v2001, 0
        %vm2018 = vcmp.ge.s32.totalorder %v2002, 0
        %vm2019 = vcmp.ge.s32.totalorder %v2003, 0
        %vm2020 = vcmp.ge.s32.totalorder %v2004, 0
        %vm2021 = vcmp.ge.s32.totalorder %v2005, 0
        %vm2022 = vcmp.ge.s32.totalorder %v2006, 0
        %vm2023 = vcmp.ge.s32.totalorder %v2007, 0
        %v2024 = vstv %s1973
        %vm2025 = vcmp.lt.s32.totalorder %v1992, %v2024
        %vm2026 = vcmp.lt.s32.totalorder %v1993, %v2024
        %vm2027 = vcmp.lt.s32.totalorder %v1994, %v2024
        %vm2028 = vcmp.lt.s32.totalorder %v1995, %v2024
        %vm2029 = vcmp.lt.s32.totalorder %v1996, %v2024
        %vm2030 = vcmp.lt.s32.totalorder %v1997, %v2024
        %vm2031 = vcmp.lt.s32.totalorder %v1998, %v2024
        %vm2032 = vcmp.lt.s32.totalorder %v1999, %v2024
        %vm2033 = vcmp.lt.s32.totalorder %v2000, %v2024
        %vm2034 = vcmp.lt.s32.totalorder %v2001, %v2024
        %vm2035 = vcmp.lt.s32.totalorder %v2002, %v2024
        %vm2036 = vcmp.lt.s32.totalorder %v2003, %v2024
        %vm2037 = vcmp.lt.s32.totalorder %v2004, %v2024
        %vm2038 = vcmp.lt.s32.totalorder %v2005, %v2024
        %vm2039 = vcmp.lt.s32.totalorder %v2006, %v2024
        %vm2040 = vcmp.lt.s32.totalorder %v2007, %v2024
        %vm2041 = vmand %vm2008, %vm2025
        %vm2042 = vmand %vm2009, %vm2026
        %vm2043 = vmand %vm2010, %vm2027
        %vm2044 = vmand %vm2011, %vm2028
        %vm2045 = vmand %vm2012, %vm2029
        %vm2046 = vmand %vm2013, %vm2030
        %vm2047 = vmand %vm2014, %vm2031
        %vm2048 = vmand %vm2015, %vm2032
        %vm2049 = vmand %vm2016, %vm2033
        %vm2050 = vmand %vm2017, %vm2034
        %vm2051 = vmand %vm2018, %vm2035
        %vm2052 = vmand %vm2019, %vm2036
        %vm2053 = vmand %vm2020, %vm2037
        %vm2054 = vmand %vm2021, %vm2038
        %vm2055 = vmand %vm2022, %vm2039
        %vm2056 = vmand %vm2023, %vm2040
        %v2057 = vsel %vm2041, 1, 0
        %v2058 = vsel %vm2042, 1, 0
        %v2059 = vsel %vm2043, 1, 0
        %v2060 = vsel %vm2044, 1, 0
        %v2061 = vsel %vm2045, 1, 0
        %v2062 = vsel %vm2046, 1, 0
        %v2063 = vsel %vm2047, 1, 0
        %v2064 = vsel %vm2048, 1, 0
        %v2065 = vsel %vm2049, 1, 0
        %v2066 = vsel %vm2050, 1, 0
        %v2067 = vsel %vm2051, 1, 0
        %v2068 = vsel %vm2052, 1, 0
        %v2069 = vsel %vm2053, 1, 0
        %v2070 = vsel %vm2054, 1, 0
        %v2071 = vsel %vm2055, 1, 0
        %v2072 = vsel %vm2056, 1, 0
        %v2073 = vcvt.s32.f32 %v2057
        %v2074 = vcvt.s32.f32 %v2058
        %v2075 = vcvt.s32.f32 %v2059
        %v2076 = vcvt.s32.f32 %v2060
        %v2077 = vcvt.s32.f32 %v2061
        %v2078 = vcvt.s32.f32 %v2062
        %v2079 = vcvt.s32.f32 %v2063
        %v2080 = vcvt.s32.f32 %v2064
        %v2081 = vcvt.s32.f32 %v2065
        %v2082 = vcvt.s32.f32 %v2066
        %v2083 = vcvt.s32.f32 %v2067
        %v2084 = vcvt.s32.f32 %v2068
        %v2085 = vcvt.s32.f32 %v2069
        %v2086 = vcvt.s32.f32 %v2070
        %v2087 = vcvt.s32.f32 %v2071
        %v2088 = vcvt.s32.f32 %v2072
        %v2089 = vadd.f32 %v883, %v1895
        %v2090 = vadd.f32 %v884, %v1900
        %v2091 = vadd.f32 %v885, %v1905
        %v2092 = vadd.f32 %v886, %v1910
        %v2093 = vadd.f32 %v887, %v1915
        %v2094 = vadd.f32 %v888, %v1920
        %v2095 = vadd.f32 %v889, %v1925
        %v2096 = vadd.f32 %v890, %v1930
        %v2097 = vadd.f32 %v891, %v1935
        %v2098 = vadd.f32 %v892, %v1940
        %v2099 = vadd.f32 %v893, %v1945
        %v2100 = vadd.f32 %v894, %v1950
        %v2101 = vadd.f32 %v895, %v1955
        %v2102 = vadd.f32 %v896, %v1960
        %v2103 = vadd.f32 %v897, %v1965
        %v2104 = vadd.f32 %v898, %v1970
        %v2105 = vmul.f32 %v2089, %v2073
        %v2106 = vmul.f32 %v2090, %v2074
        %v2107 = vmul.f32 %v2091, %v2075
        %v2108 = vmul.f32 %v2092, %v2076
        %v2109 = vmul.f32 %v2093, %v2077
        %v2110 = vmul.f32 %v2094, %v2078
        %v2111 = vmul.f32 %v2095, %v2079
        %v2112 = vmul.f32 %v2096, %v2080
        %v2113 = vmul.f32 %v2097, %v2081
        %v2114 = vmul.f32 %v2098, %v2082
        %v2115 = vmul.f32 %v2099, %v2083
        %v2116 = vmul.f32 %v2100, %v2084
        %v2117 = vmul.f32 %v2101, %v2085
        %v2118 = vmul.f32 %v2102, %v2086
        %v2119 = vmul.f32 %v2103, %v2087
        %v2120 = vmul.f32 %v2104, %v2088
        %2121 = vst.msk [vmem:[%s395] sm:$0xff] %vm440, %v2105
        %2122 = vst.msk [vmem:[%s395 + $0x8] sm:$0xff] %vm440, %v2106
        %2123 = vst.msk [vmem:[%s395 + $0x10] sm:$0xff] %vm440, %v2107
        %2124 = vst.msk [vmem:[%s395 + $0x18] sm:$0xff] %vm440, %v2108
        %2125 = vst.msk [vmem:[%s395 + $0x20] sm:$0xff] %vm440, %v2109
        %2126 = vst.msk [vmem:[%s395 + $0x28] sm:$0xff] %vm440, %v2110
        %2127 = vst.msk [vmem:[%s395 + $0x30] sm:$0xff] %vm440, %v2111
        %2128 = vst.msk [vmem:[%s395 + $0x38] sm:$0xff] %vm440, %v2112
        %2129 = vst.msk [vmem:[%s395 + $0x40] sm:$0xff] %vm440, %v2113
        %2130 = vst.msk [vmem:[%s395 + $0x48] sm:$0xff] %vm440, %v2114
        %2131 = vst.msk [vmem:[%s395 + $0x50] sm:$0xff] %vm440, %v2115
        %2132 = vst.msk [vmem:[%s395 + $0x58] sm:$0xff] %vm440, %v2116
        %2133 = vst.msk [vmem:[%s395 + $0x60] sm:$0xff] %vm440, %v2117
        %2134 = vst.msk [vmem:[%s395 + $0x68] sm:$0xff] %vm440, %v2118
        %2135 = vst.msk [vmem:[%s395 + $0x70] sm:$0xff] %vm440, %v2119
        %2136 = vst.msk [vmem:[%s395 + $0x78] sm:$0xff] %vm440, %v2120
        %v2137 = vld [vmem:[%s384] sm:$0xff]
        %v2138 = vld [vmem:[%s384 + $0x8] sm:$0xff]
        %v2139 = vld [vmem:[%s384 + $0x10] sm:$0xff]
        %v2140 = vld [vmem:[%s384 + $0x18] sm:$0xff]
        %v2141 = vld [vmem:[%s384 + $0x20] sm:$0xff]
        %v2142 = vld [vmem:[%s384 + $0x28] sm:$0xff]
        %v2143 = vld [vmem:[%s384 + $0x30] sm:$0xff]
        %v2144 = vld [vmem:[%s384 + $0x38] sm:$0xff]
        %v2145 = vld [vmem:[%s384 + $0x40] sm:$0xff]
        %v2146 = vld [vmem:[%s384 + $0x48] sm:$0xff]
        %v2147 = vld [vmem:[%s384 + $0x50] sm:$0xff]
        %v2148 = vld [vmem:[%s384 + $0x58] sm:$0xff]
        %v2149 = vld [vmem:[%s384 + $0x60] sm:$0xff]
        %v2150 = vld [vmem:[%s384 + $0x68] sm:$0xff]
        %v2151 = vld [vmem:[%s384 + $0x70] sm:$0xff]
        %v2152 = vld [vmem:[%s384 + $0x78] sm:$0xff]
        %2169 = vrot.lane.b32.xlu0 %v1895, 96
        %v2170 = vpop.permute.xlu0 %2169
        %2171 = vrot.lane.b32.xlu0 %v1900, 96
        %v2172 = vpop.permute.xlu0 %2171
        %2173 = vrot.lane.b32.xlu0 %v1905, 96
        %v2174 = vpop.permute.xlu0 %2173
        %2175 = vrot.lane.b32.xlu0 %v1910, 96
        %v2176 = vpop.permute.xlu0 %2175
        %2177 = vrot.lane.b32.xlu0 %v1915, 96
        %v2178 = vpop.permute.xlu0 %2177
        %2179 = vrot.lane.b32.xlu0 %v1920, 96
        %v2180 = vpop.permute.xlu0 %2179
        %2181 = vrot.lane.b32.xlu0 %v1925, 96
        %v2182 = vpop.permute.xlu0 %2181
        %2183 = vrot.lane.b32.xlu0 %v1930, 96
        %v2184 = vpop.permute.xlu0 %2183
        %2185 = vrot.lane.b32.xlu0 %v1935, 96
        %v2186 = vpop.permute.xlu0 %2185
        %2187 = vrot.lane.b32.xlu0 %v1940, 96
        %v2188 = vpop.permute.xlu0 %2187
        %2189 = vrot.lane.b32.xlu0 %v1945, 96
        %v2190 = vpop.permute.xlu0 %2189
        %2191 = vrot.lane.b32.xlu0 %v1950, 96
        %v2192 = vpop.permute.xlu0 %2191
        %2193 = vrot.lane.b32.xlu0 %v1955, 96
        %v2194 = vpop.permute.xlu0 %2193
        %2195 = vrot.lane.b32.xlu0 %v1960, 96
        %v2196 = vpop.permute.xlu0 %2195
        %2197 = vrot.lane.b32.xlu0 %v1965, 96
        %v2198 = vpop.permute.xlu0 %2197
        %2199 = vrot.lane.b32.xlu0 %v1970, 96
        %v2200 = vpop.permute.xlu0 %2199
        %v2217 = vadd.f32 %v2137, %v2170
        %v2218 = vadd.f32 %v2138, %v2172
        %v2219 = vadd.f32 %v2139, %v2174
        %v2220 = vadd.f32 %v2140, %v2176
        %v2221 = vadd.f32 %v2141, %v2178
        %v2222 = vadd.f32 %v2142, %v2180
        %v2223 = vadd.f32 %v2143, %v2182
        %v2224 = vadd.f32 %v2144, %v2184
        %v2225 = vadd.f32 %v2145, %v2186
        %v2226 = vadd.f32 %v2146, %v2188
        %v2227 = vadd.f32 %v2147, %v2190
        %v2228 = vadd.f32 %v2148, %v2192
        %v2229 = vadd.f32 %v2149, %v2194
        %v2230 = vadd.f32 %v2150, %v2196
        %v2231 = vadd.f32 %v2151, %v2198
        %v2232 = vadd.f32 %v2152, %v2200
        %2233 = vst.msk [vmem:[%s406] sm:$0xff] %vm440, %v2217
        %2234 = vst.msk [vmem:[%s406 + $0x8] sm:$0xff] %vm440, %v2218
        %2235 = vst.msk [vmem:[%s406 + $0x10] sm:$0xff] %vm440, %v2219
        %2236 = vst.msk [vmem:[%s406 + $0x18] sm:$0xff] %vm440, %v2220
        %2237 = vst.msk [vmem:[%s406 + $0x20] sm:$0xff] %vm440, %v2221
        %2238 = vst.msk [vmem:[%s406 + $0x28] sm:$0xff] %vm440, %v2222
        %2239 = vst.msk [vmem:[%s406 + $0x30] sm:$0xff] %vm440, %v2223
        %2240 = vst.msk [vmem:[%s406 + $0x38] sm:$0xff] %vm440, %v2224
        %2241 = vst.msk [vmem:[%s406 + $0x40] sm:$0xff] %vm440, %v2225
        %2242 = vst.msk [vmem:[%s406 + $0x48] sm:$0xff] %vm440, %v2226
        %2243 = vst.msk [vmem:[%s406 + $0x50] sm:$0xff] %vm440, %v2227
        %2244 = vst.msk [vmem:[%s406 + $0x58] sm:$0xff] %vm440, %v2228
        %2245 = vst.msk [vmem:[%s406 + $0x60] sm:$0xff] %vm440, %v2229
        %2246 = vst.msk [vmem:[%s406 + $0x68] sm:$0xff] %vm440, %v2230
        %2247 = vst.msk [vmem:[%s406 + $0x70] sm:$0xff] %vm440, %v2231
        %2248 = vst.msk [vmem:[%s406 + $0x78] sm:$0xff] %vm440, %v2232
        %s2249 = sadd.s32 %s26, 1
        %s2250 = smul.u32 16, %s2249
        %p2251 = scmp.lt.s32.totalorder %s25, 1
        %s2252 = scalar_select %p2251, %s25, 1
        %p2253 = scmp.lt.s32.totalorder %s2250, 47
        %s2254 = scalar_select %p2253, %s2250, 47
        %s2255 = smul.addr %s2252, 48
        %s2256 = sadd.s32 %s2254, %s2255
        %s2257 = smul.addr %s2256, 8
        %s2258 = scalar_lea.vmem %s7, %s2257
        %s2259 = smul.u32 16, %s26
        %p2260 = scmp.lt.s32.totalorder %s25, 1
        %s2261 = scalar_select %p2260, %s25, 1
        %p2262 = scmp.lt.s32.totalorder %s2259, 15
        %s2263 = scalar_select %p2262, %s2259, 15
        %s2264 = smul.addr %s2261, 16
        %s2265 = sadd.s32 %s2263, %s2264
        %s2266 = smul.addr %s2265, 8
        %s2267 = scalar_lea.vmem %s8, %s2266
        // Predicated region
        $region53: #{posterior_encoder_forward.8} parent=47 // pred_check
          %p2268 = pneg %p214
        $region54: #{posterior_encoder_forward.8} parent=47 // pred_check_branch
          %2270 = sbr.rel (%p2268) target = $region56
        $region55: #{posterior_encoder_forward.8} parent=47 // pred_region
          %s2271 = sadd.s32 %s26, 1
          %s2272 = smul.u32 16, %s2271
        $region56: #{posterior_encoder_forward.8} parent=47 // pred_fallthru
          _
        // Predicated region
        $region57: #{posterior_encoder_forward.8} parent=47 // pred_check
          %p2273 = pneg %p242
        $region58: #{posterior_encoder_forward.8} parent=47 // pred_check_branch
          %2275 = sbr.rel (%p2273) target = $region60
        $region59: #{posterior_encoder_forward.8} parent=47 // pred_region
          %s2276 = smul.u32 16, %s26
        $region60: #{posterior_encoder_forward.8} parent=47 // pred_fallthru
          _
      $region48: #{posterior_encoder_forward.8} parent=5 // pred_fallthru
        _
      %p2277 = scmp.le.s32.totalorder 2, %s16
      // Predicated region
      $region61: #{posterior_encoder_forward.8} parent=5 // pred_check
        %p2278 = pneg %p2277
      $region62: #{posterior_encoder_forward.8} parent=5 // pred_check_branch
        %2280 = sbr.rel (%p2278) target = $region64
      $region63: #{posterior_encoder_forward.8} parent=5 // pred_region
        %s2281 = ssub.s32 %s16, 2
        // Predicated region
        $region65: #{posterior_encoder_forward.8} parent=63 // pred_check
          %p2282 = pneg %p220
        $region66: #{posterior_encoder_forward.8} parent=63 // pred_check_branch
          %2284 = sbr.rel (%p2282) target = $region68
        $region67: #{posterior_encoder_forward.8} parent=63 // pred_region
          %s2285 = sadd.s32 %s28, 1
          %s2286 = smul.u32 16, %s2285
          %p2287 = scmp.lt.s32.totalorder %s27, 1
          %s2288 = scalar_select %p2287, %s27, 1
          %p2289 = scmp.lt.s32.totalorder %s2286, 47
          %s2290 = scalar_select %p2289, %s2286, 47
          %s2291 = smul.addr %s2288, 48
          %s2292 = sadd.s32 %s2290, %s2291
          %s2293 = smul.addr %s2292, 8
          %s2294 = scalar_lea.vmem %s7, %s2293
        $region68: #{posterior_encoder_forward.8} parent=63 // pred_fallthru
          _
        // Predicated region
        $region69: #{posterior_encoder_forward.8} parent=63 // pred_check
          %p2295 = pneg %p248
        $region70: #{posterior_encoder_forward.8} parent=63 // pred_check_branch
          %2297 = sbr.rel (%p2295) target = $region72
        $region71: #{posterior_encoder_forward.8} parent=63 // pred_region
          %s2298 = smul.u32 16, %s28
          %p2299 = scmp.lt.s32.totalorder %s27, 1
          %s2300 = scalar_select %p2299, %s27, 1
          %p2301 = scmp.lt.s32.totalorder %s2298, 15
          %s2302 = scalar_select %p2301, %s2298, 15
          %s2303 = smul.addr %s2300, 16
          %s2304 = sadd.s32 %s2302, %s2303
          %s2305 = smul.addr %s2304, 8
          %s2306 = scalar_lea.vmem %s8, %s2305
        $region72: #{posterior_encoder_forward.8} parent=63 // pred_fallthru
          _
      $region64: #{posterior_encoder_forward.8} parent=5 // pred_fallthru
        _
    $region6: #{posterior_encoder_forward.8} parent=1 // loop_footer
      %s20 = sadd.s32 1, %s16
    $region7: #{posterior_encoder_forward.8} parent=1 // loop_footer_branch
      %15 = sbr.rel target = $region3
    $region8: #{posterior_encoder_forward.8} parent=1 // loop_exit
      _
    %2307 = vsyncpa [#allocation3], 1
    %s2308 = scalar_lea.sflag [#allocation3], 1
    %2309 = vsyncpa %s2308, 1

// kernel: posterior_encoder_forward.7
$region0: #{posterior_encoder_forward.7}
  #allocation0 [shape = 'u32[]', space=smem, size = 0x4, offset = 0x4, fixed_abs, tag = 'smem constant byte address 0x4 - core index']
  #allocation1 [shape = 'u32[144,128]{1,0:T(1,128)}', space=vmem, size = 0x12000, scoped, tag = 'internal scratch']
  %s0 = inlined_call_operand.vmem [shape: s32[2], index: 0, kind: input, shape index: {}]
  %s1 = inlined_call_operand.vmem [shape: f32[2,384,32], index: 1, kind: input, shape index: {}, may-alias: {1,7}]
  %s2 = inlined_call_operand.vmem [shape: f32[2,128,32], index: 2, kind: input, shape index: {}, may-alias: {2,8}]
  %s3 = inlined_call_operand.vmem [shape: f32[5,32,64], index: 3, kind: input, shape index: {}]
  %s4 = inlined_call_operand.vmem [shape: f32[1,64], index: 4, kind: input, shape index: {}]
  %s5 = inlined_call_operand.vmem [shape: f32[32,64], index: 5, kind: input, shape index: {}]
  %s6 = inlined_call_operand.vmem [shape: f32[1,64], index: 6, kind: input, shape index: {}]
  %s7 = inlined_call_operand.vmem [shape: f32[2,384,32], index: 7, kind: output, shape index: {0}, may-alias: {1,7}]
  %s8 = inlined_call_operand.vmem [shape: f32[2,128,32], index: 8, kind: output, shape index: {1}, may-alias: {2,8}]
  %9 = xla_tuple %s7, %s8
  %s10 = sld [smem:[#allocation0]]
  $region73: #{posterior_encoder_forward.7} parent=0
    _
  %s12 = ssub.s32 1, %s10
  %s13 = scalar_select 0, %s12, %s10
  $region1: #{posterior_encoder_forward.7} parent=0
    #allocation2 [shape = 'u8[512]{0}', space=smem, size = 0x200, scoped, tag = 'input window, operand 0, single buffered']
    #allocation3 [shape = 's32[2]{0}', space=sflag, size = 0x8, scoped, tag = 'scoped memory for posterior_encoder_forward.7']
    %14 = vsyncpa [#allocation3], 0
    loop: start=0, step=1, limit=4
    $region2: #{posterior_encoder_forward.7} parent=1 // loop_pre_header
      _
    $region3: #{posterior_encoder_forward.7} parent=1 // loop_header
      %s16 = sphi 0, %s20
      %p17 = scmp.ge.s32.totalorder %s16, 4
      %s23 = sphi 0, %s35
      %s24 = sphi 0, %s31
      %s25 = sphi 0, %s23
      %s26 = sphi 0, %s24
      %s27 = sphi 0, %s25
      %s28 = sphi 0, %s26
      %s36 = sphi 0, %s36
      %s38 = sphi 0, %s36
      %s39 = sphi 0, %s38
      %s53 = sphi 0, %s39
      %s59 = sphi 0, %s61
      %s62 = sphi 0, %s59
      %s63 = sphi 0, %s62
      %s79 = sphi 0, %s63
      %s87 = sphi 0, %s89
      %s90 = sphi 0, %s87
      %s91 = sphi 0, %s90
      %s107 = sphi 0, %s91
      %s111 = sphi 0, %s111
      %s113 = sphi 0, %s111
      %s114 = sphi 0, %s113
      %s128 = sphi 0, %s114
      %s132 = sphi 0, %s132
      %s134 = sphi 0, %s132
      %s135 = sphi 0, %s134
      %s149 = sphi 0, %s135
      %s153 = sphi 0, %s153
      %s155 = sphi 0, %s153
      %s156 = sphi 0, %s155
      %s170 = sphi 0, %s156
      %s174 = sphi 0, %s174
      %s176 = sphi 0, %s174
      %s177 = sphi 0, %s176
      %s191 = sphi 0, %s177
      %s201 = sphi 0, %s203
      %s204 = sphi 0, %s201
      %s205 = sphi 0, %s204
      %s221 = sphi 0, %s205
      %s229 = sphi 0, %s231
      %s232 = sphi 0, %s229
      %s233 = sphi 0, %s232
      %s249 = sphi 0, %s233
    $region4: #{posterior_encoder_forward.7} parent=1 // loop_header_branch
      %19 = sbr.rel (%p17) target = $region8
    $region5: #{posterior_encoder_forward.7} parent=1 // loop_body
      %s21 = ssub.s32 %s16, 1
      %s22 = ssub.s32 %s16, 2
      %s29 = sadd.s32 1, %s24
      %p30 = scmp.ge.s32.totalorder %s29, 1
      %s31 = scalar_select %p30, 0, %s29
      %s32 = sadd.s32 1, %s23
      %s33 = scalar_select %p30, %s32, %s23
      %p34 = scmp.ge.s32.totalorder %s33, 2
      %s35 = scalar_select %p34, 0, %s33
      %s37 = sadd.s32 %s36, 1
      %p40 = scmp.eq.s32.totalorder %s16, 1
      %p41 = scmp.ne.s32.totalorder %s36, %s38
      %p42 = scmp.eq.s32.totalorder %s16, 0
      %p43 = por %p41, %p42
      %p44 = scmp.ne.s32.totalorder %s36, %s38
      %p45 = scmp.eq.s32.totalorder %s21, 1
      %p46 = por %p44, %p45
      %p47 = scmp.ne.s32.totalorder %s38, %s39
      %p48 = scmp.eq.s32.totalorder %s21, 0
      %p49 = por %p47, %p48
      %p50 = scmp.ne.s32.totalorder %s38, %s39
      %p51 = scmp.eq.s32.totalorder %s22, 1
      %p52 = por %p50, %p51
      %p54 = scmp.ne.s32.totalorder %s39, %s53
      %p55 = scmp.eq.s32.totalorder %s22, 0
      %p56 = por %p54, %p55
      %s57 = ssub.s32 %s23, %s35
      %p58 = scmp.eq.s32.totalorder %s57, 0
      %s60 = sadd.s32 %s59, 1
      %s61 = scalar_select %p58, %s59, %s60
      %p64 = pneg %p58
      %p65 = scmp.eq.s32.totalorder %s16, 1
      %p66 = por %p64, %p65
      %p67 = scmp.ne.s32.totalorder %s59, %s62
      %p68 = scmp.eq.s32.totalorder %s16, 0
      %p69 = por %p67, %p68
      %p70 = scmp.ne.s32.totalorder %s59, %s62
      %p71 = scmp.eq.s32.totalorder %s21, 1
      %p72 = por %p70, %p71
      %p73 = scmp.ne.s32.totalorder %s62, %s63
      %p74 = scmp.eq.s32.totalorder %s21, 0
      %p75 = por %p73, %p74
      %p76 = scmp.ne.s32.totalorder %s62, %s63
      %p77 = scmp.eq.s32.totalorder %s22, 1
      %p78 = por %p76, %p77
      %p80 = scmp.ne.s32.totalorder %s63, %s79
      %p81 = scmp.eq.s32.totalorder %s22, 0
      %p82 = por %p80, %p81
      %s83 = ssub.s32 %s23, %s35
      %s84 = ssub.s32 %s24, %s31
      %s85 = sor.u32 %s83, %s84
      %p86 = scmp.eq.s32.totalorder %s85, 0
      %s88 = sadd.s32 %s87, 1
      %s89 = scalar_select %p86, %s87, %s88
      %p92 = pneg %p86
      %p93 = scmp.eq.s32.totalorder %s16, 1
      %p94 = por %p92, %p93
      %p95 = scmp.ne.s32.totalorder %s87, %s90
      %p96 = scmp.eq.s32.totalorder %s16, 0
      %p97 = por %p95, %p96
      %p98 = scmp.ne.s32.totalorder %s87, %s90
      %p99 = scmp.eq.s32.totalorder %s21, 1
      %p100 = por %p98, %p99
      %p101 = scmp.ne.s32.totalorder %s90, %s91
      %p102 = scmp.eq.s32.totalorder %s21, 0
      %p103 = por %p101, %p102
      %p104 = scmp.ne.s32.totalorder %s90, %s91
      %p105 = scmp.eq.s32.totalorder %s22, 1
      %p106 = por %p104, %p105
      %p108 = scmp.ne.s32.totalorder %s91, %s107
      %p109 = scmp.eq.s32.totalorder %s22, 0
      %p110 = por %p108, %p109
      %s112 = sadd.s32 %s111, 1
      %p115 = scmp.eq.s32.totalorder %s16, 1
      %p116 = scmp.ne.s32.totalorder %s111, %s113
      %p117 = scmp.eq.s32.totalorder %s16, 0
      %p118 = por %p116, %p117
      %p119 = scmp.ne.s32.totalorder %s111, %s113
      %p120 = scmp.eq.s32.totalorder %s21, 1
      %p121 = por %p119, %p120
      %p122 = scmp.ne.s32.totalorder %s113, %s114
      %p123 = scmp.eq.s32.totalorder %s21, 0
      %p124 = por %p122, %p123
      %p125 = scmp.ne.s32.totalorder %s113, %s114
      %p126 = scmp.eq.s32.totalorder %s22, 1
      %p127 = por %p125, %p126
      %p129 = scmp.ne.s32.totalorder %s114, %s128
      %p130 = scmp.eq.s32.totalorder %s22, 0
      %p131 = por %p129, %p130
      %s133 = sadd.s32 %s132, 1
      %p136 = scmp.eq.s32.totalorder %s16, 1
      %p137 = scmp.ne.s32.totalorder %s132, %s134
      %p138 = scmp.eq.s32.totalorder %s16, 0
      %p139 = por %p137, %p138
      %p140 = scmp.ne.s32.totalorder %s132, %s134
      %p141 = scmp.eq.s32.totalorder %s21, 1
      %p142 = por %p140, %p141
      %p143 = scmp.ne.s32.totalorder %s134, %s135
      %p144 = scmp.eq.s32.totalorder %s21, 0
      %p145 = por %p143, %p144
      %p146 = scmp.ne.s32.totalorder %s134, %s135
      %p147 = scmp.eq.s32.totalorder %s22, 1
      %p148 = por %p146, %p147
      %p150 = scmp.ne.s32.totalorder %s135, %s149
      %p151 = scmp.eq.s32.totalorder %s22, 0
      %p152 = por %p150, %p151
      %s154 = sadd.s32 %s153, 1
      %p157 = scmp.eq.s32.totalorder %s16, 1
      %p158 = scmp.ne.s32.totalorder %s153, %s155
      %p159 = scmp.eq.s32.totalorder %s16, 0
      %p160 = por %p158, %p159
      %p161 = scmp.ne.s32.totalorder %s153, %s155
      %p162 = scmp.eq.s32.totalorder %s21, 1
      %p163 = por %p161, %p162
      %p164 = scmp.ne.s32.totalorder %s155, %s156
      %p165 = scmp.eq.s32.totalorder %s21, 0
      %p166 = por %p164, %p165
      %p167 = scmp.ne.s32.totalorder %s155, %s156
      %p168 = scmp.eq.s32.totalorder %s22, 1
      %p169 = por %p167, %p168
      %p171 = scmp.ne.s32.totalorder %s156, %s170
      %p172 = scmp.eq.s32.totalorder %s22, 0
      %p173 = por %p171, %p172
      %s175 = sadd.s32 %s174, 1
      %p178 = scmp.eq.s32.totalorder %s16, 1
      %p179 = scmp.ne.s32.totalorder %s174, %s176
      %p180 = scmp.eq.s32.totalorder %s16, 0
      %p181 = por %p179, %p180
      %p182 = scmp.ne.s32.totalorder %s174, %s176
      %p183 = scmp.eq.s32.totalorder %s21, 1
      %p184 = por %p182, %p183
      %p185 = scmp.ne.s32.totalorder %s176, %s177
      %p186 = scmp.eq.s32.totalorder %s21, 0
      %p187 = por %p185, %p186
      %p188 = scmp.ne.s32.totalorder %s176, %s177
      %p189 = scmp.eq.s32.totalorder %s22, 1
      %p190 = por %p188, %p189
      %p192 = scmp.ne.s32.totalorder %s177, %s191
      %p193 = scmp.eq.s32.totalorder %s22, 0
      %p194 = por %p192, %p193
      %s195 = sadd.s32 %s24, 1
      %s196 = sadd.s32 %s31, 1
      %s197 = ssub.s32 %s23, %s35
      %s198 = ssub.s32 %s195, %s196
      %s199 = sor.u32 %s197, %s198
      %p200 = scmp.eq.s32.totalorder %s199, 0
      %s202 = sadd.s32 %s201, 1
      %s203 = scalar_select %p200, %s201, %s202
      %p206 = pneg %p200
      %p207 = scmp.eq.s32.totalorder %s16, 1
      %p208 = por %p206, %p207
      %p209 = scmp.ne.s32.totalorder %s201, %s204
      %p210 = scmp.eq.s32.totalorder %s16, 0
      %p211 = por %p209, %p210
      %p212 = scmp.ne.s32.totalorder %s201, %s204
      %p213 = scmp.eq.s32.totalorder %s21, 1
      %p214 = por %p212, %p213
      %p215 = scmp.ne.s32.totalorder %s204, %s205
      %p216 = scmp.eq.s32.totalorder %s21, 0
      %p217 = por %p215, %p216
      %p218 = scmp.ne.s32.totalorder %s204, %s205
      %p219 = scmp.eq.s32.totalorder %s22, 1
      %p220 = por %p218, %p219
      %p222 = scmp.ne.s32.totalorder %s205, %s221
      %p223 = scmp.eq.s32.totalorder %s22, 0
      %p224 = por %p222, %p223
      %s225 = ssub.s32 %s23, %s35
      %s226 = ssub.s32 %s24, %s31
      %s227 = sor.u32 %s225, %s226
      %p228 = scmp.eq.s32.totalorder %s227, 0
      %s230 = sadd.s32 %s229, 1
      %s231 = scalar_select %p228, %s229, %s230
      %p234 = pneg %p228
      %p235 = scmp.eq.s32.totalorder %s16, 1
      %p236 = por %p234, %p235
      %p237 = scmp.ne.s32.totalorder %s229, %s232
      %p238 = scmp.eq.s32.totalorder %s16, 0
      %p239 = por %p237, %p238
      %p240 = scmp.ne.s32.totalorder %s229, %s232
      %p241 = scmp.eq.s32.totalorder %s21, 1
      %p242 = por %p240, %p241
      %p243 = scmp.ne.s32.totalorder %s232, %s233
      %p244 = scmp.eq.s32.totalorder %s21, 0
      %p245 = por %p243, %p244
      %p246 = scmp.ne.s32.totalorder %s232, %s233
      %p247 = scmp.eq.s32.totalorder %s22, 1
      %p248 = por %p246, %p247
      %p250 = scmp.ne.s32.totalorder %s233, %s249
      %p251 = scmp.eq.s32.totalorder %s22, 0
      %p252 = por %p250, %p251
      %p253 = scmp.le.s32.totalorder 1, %s16
      %p254 = scmp.lt.s32.totalorder %s16, 3
      %p255 = pnand %p253, %p254
      %p256 = pneg %p255
      // Predicated region
      $region9: #{posterior_encoder_forward.7} parent=5 // pred_check
        _
      $region10: #{posterior_encoder_forward.7} parent=5 // pred_check_branch
        %258 = sbr.rel (%p255) target = $region12
      $region11: #{posterior_encoder_forward.7} parent=5 // pred_region
        %s259 = ssub.s32 %s16, 1
        // Predicated region
        $region13: #{posterior_encoder_forward.7} parent=11 // pred_check
          %p260 = pneg %p49
        $region14: #{posterior_encoder_forward.7} parent=11 // pred_check_branch
          %262 = sbr.rel (%p260) target = $region16
        $region15: #{posterior_encoder_forward.7} parent=11 // pred_region
          %s264 = ssub.s32 16, 16
          %265 = vsyncadd [#allocation3], %s264
          %s267 = sshll.u32 %s0, 4
          %s268 = int_to_ptr.vmem [resolvable:$true] %s267
          %270 = dma.vmem_to_smem %s268, 16, [#allocation2], [#allocation3]
        $region16: #{posterior_encoder_forward.7} parent=11 // pred_fallthru
          _
        // Predicated region
        $region17: #{posterior_encoder_forward.7} parent=11 // pred_check
          %p271 = pneg %p124
        $region18: #{posterior_encoder_forward.7} parent=11 // pred_check_branch
          %273 = sbr.rel (%p271) target = $region20
        $region19: #{posterior_encoder_forward.7} parent=11 // pred_region
          _
        $region20: #{posterior_encoder_forward.7} parent=11 // pred_fallthru
          _
        // Predicated region
        $region21: #{posterior_encoder_forward.7} parent=11 // pred_check
          %p274 = pneg %p145
        $region22: #{posterior_encoder_forward.7} parent=11 // pred_check_branch
          %276 = sbr.rel (%p274) target = $region24
        $region23: #{posterior_encoder_forward.7} parent=11 // pred_region
          _
        $region24: #{posterior_encoder_forward.7} parent=11 // pred_fallthru
          _
        // Predicated region
        $region25: #{posterior_encoder_forward.7} parent=11 // pred_check
          %p277 = pneg %p166
        $region26: #{posterior_encoder_forward.7} parent=11 // pred_check_branch
          %279 = sbr.rel (%p277) target = $region28
        $region27: #{posterior_encoder_forward.7} parent=11 // pred_region
          _
        $region28: #{posterior_encoder_forward.7} parent=11 // pred_fallthru
          _
        // Predicated region
        $region29: #{posterior_encoder_forward.7} parent=11 // pred_check
          %p280 = pneg %p187
        $region30: #{posterior_encoder_forward.7} parent=11 // pred_check_branch
          %282 = sbr.rel (%p280) target = $region32
        $region31: #{posterior_encoder_forward.7} parent=11 // pred_region
          _
        $region32: #{posterior_encoder_forward.7} parent=11 // pred_fallthru
          _
      $region12: #{posterior_encoder_forward.7} parent=5 // pred_fallthru
        _
      %p283 = scmp.lt.s32.totalorder %s16, 2
      // Predicated region
      $region33: #{posterior_encoder_forward.7} parent=5 // pred_check
        %p284 = pneg %p283
      $region34: #{posterior_encoder_forward.7} parent=5 // pred_check_branch
        %286 = sbr.rel (%p284) target = $region36
      $region35: #{posterior_encoder_forward.7} parent=5 // pred_region
        // Predicated region
        $region37: #{posterior_encoder_forward.7} parent=35 // pred_check
          %p287 = pneg %p69
        $region38: #{posterior_encoder_forward.7} parent=35 // pred_check_branch
          %289 = sbr.rel (%p287) target = $region40
        $region39: #{posterior_encoder_forward.7} parent=35 // pred_region
          %p290 = scmp.lt.s32.totalorder %s23, 1
          %s291 = scalar_select %p290, %s23, 1
          %s292 = smul.addr %s291, 48
          %s293 = smul.addr %s292, 8
          %s294 = scalar_lea.vmem %s1, %s293
        $region40: #{posterior_encoder_forward.7} parent=35 // pred_fallthru
          _
        // Predicated region
        $region41: #{posterior_encoder_forward.7} parent=35 // pred_check
          %p295 = pneg %p97
        $region42: #{posterior_encoder_forward.7} parent=35 // pred_check_branch
          %297 = sbr.rel (%p295) target = $region44
        $region43: #{posterior_encoder_forward.7} parent=35 // pred_region
          %s298 = smul.u32 16, %s24
          %p299 = scmp.lt.s32.totalorder %s23, 1
          %s300 = scalar_select %p299, %s23, 1
          %p301 = scmp.lt.s32.totalorder %s298, 15
          %s302 = scalar_select %p301, %s298, 15
          %s303 = smul.addr %s300, 16
          %s304 = sadd.s32 %s302, %s303
          %s305 = smul.addr %s304, 8
          %s306 = scalar_lea.vmem %s2, %s305
          %s307 = smul.u32 16, %s24
        $region44: #{posterior_encoder_forward.7} parent=35 // pred_fallthru
          _
      $region36: #{posterior_encoder_forward.7} parent=5 // pred_fallthru
        _
      %p308 = scmp.le.s32.totalorder 1, %s16
      %p309 = scmp.lt.s32.totalorder %s16, 3
      %p310 = pnand %p308, %p309
      %p311 = pneg %p310
      // Predicated region
      $region45: #{posterior_encoder_forward.7} parent=5 // pred_check
        _
      $region46: #{posterior_encoder_forward.7} parent=5 // pred_check_branch
        %313 = sbr.rel (%p310) target = $region48
      $region47: #{posterior_encoder_forward.7} parent=5 // pred_region
        %s314 = ssub.s32 %s16, 1
        // Predicated region
        $region49: #{posterior_encoder_forward.7} parent=47 // pred_check
          %p315 = pneg %p49
        $region50: #{posterior_encoder_forward.7} parent=47 // pred_check_branch
          %317 = sbr.rel (%p315) target = $region52
        $region51: #{posterior_encoder_forward.7} parent=47 // pred_region
          %318 = dma.done [#allocation3], 16
        $region52: #{posterior_encoder_forward.7} parent=47 // pred_fallthru
          _
        %319 = sfence
        %p320 = pneg %p49
        %p321 = pneg %p46
        %p322 = scmp.lt.s32.totalorder %s25, 1
        %s323 = scalar_select %p322, %s25, 1
        %s324 = smul.addr %s323, 48
        %s325 = smul.addr %s324, 8
        %s326 = scalar_lea.vmem %s1, %s325
        %p327 = pneg %p75
        %p328 = pneg %p72
        %s329 = smul.u32 16, %s26
        %p330 = scmp.lt.s32.totalorder %s25, 1
        %s331 = scalar_select %p330, %s25, 1
        %p332 = scmp.lt.s32.totalorder %s329, 15
        %s333 = scalar_select %p332, %s329, 15
        %s334 = smul.addr %s331, 16
        %s335 = sadd.s32 %s333, %s334
        %s336 = smul.addr %s335, 8
        %s337 = scalar_lea.vmem %s2, %s336
        %p338 = pneg %p103
        %p339 = pneg %p100
        %p340 = pneg %p124
        %p341 = pneg %p121
        %p342 = pneg %p145
        %p343 = pneg %p142
        %p344 = pneg %p166
        %p345 = pneg %p163
        %p346 = pneg %p187
        %p347 = pneg %p184
        %p348 = pneg %p217
        %p349 = pneg %p214
        %s350 = sadd.s32 %s26, 1
        %s351 = smul.u32 16, %s350
        %p352 = scmp.lt.s32.totalorder %s25, 1
        %s353 = scalar_select %p352, %s25, 1
        %p354 = scmp.lt.s32.totalorder %s351, 47
        %s355 = scalar_select %p354, %s351, 47
        %s356 = smul.addr %s353, 48
        %s357 = sadd.s32 %s355, %s356
        %s358 = smul.addr %s357, 8
        %s359 = scalar_lea.vmem %s7, %s358
        %p360 = pneg %p245
        %p361 = pneg %p242
        %s362 = smul.u32 16, %s26
        %p363 = scmp.lt.s32.totalorder %s25, 1
        %s364 = scalar_select %p363, %s25, 1
        %p365 = scmp.lt.s32.totalorder %s362, 15
        %s366 = scalar_select %p365, %s362, 15
        %s367 = smul.addr %s364, 16
        %s368 = sadd.s32 %s366, %s367
        %s369 = smul.addr %s368, 8
        %s370 = scalar_lea.vmem %s8, %s369
        %p371 = scmp.lt.s32.totalorder %s25, 1
        %s372 = scalar_select %p371, %s25, 1
        %s373 = smul.addr %s372, 48
        %s374 = smul.addr %s373, 8
        %s375 = scalar_lea.vmem %s1, %s374
        %s376 = smul.u32 16, %s26
        %p377 = scmp.lt.s32.totalorder %s25, 1
        %s378 = scalar_select %p377, %s25, 1
        %p379 = scmp.lt.s32.totalorder %s376, 15
        %s380 = scalar_select %p379, %s376, 15
        %s381 = smul.addr %s378, 16
        %s382 = sadd.s32 %s380, %s381
        %s383 = smul.addr %s382, 8
        %s384 = scalar_lea.vmem %s2, %s383
        %s385 = smul.u32 16, %s26
        %s386 = sadd.s32 %s26, 1
        %s387 = smul.u32 16, %s386
        %p388 = scmp.lt.s32.totalorder %s25, 1
        %s389 = scalar_select %p388, %s25, 1
        %p390 = scmp.lt.s32.totalorder %s387, 47
        %s391 = scalar_select %p390, %s387, 47
        %s392 = smul.addr %s389, 48
        %s393 = sadd.s32 %s391, %s392
        %s394 = smul.addr %s393, 8
        %s395 = scalar_lea.vmem %s7, %s394
        %s396 = sadd.s32 %s26, 1
        %s397 = smul.u32 16, %s396
        %s398 = smul.u32 16, %s26
        %p399 = scmp.lt.s32.totalorder %s25, 1
        %s400 = scalar_select %p399, %s25, 1
        %p401 = scmp.lt.s32.totalorder %s398, 15
        %s402 = scalar_select %p401, %s398, 15
        %s403 = smul.addr %s400, 16
        %s404 = sadd.s32 %s402, %s403
        %s405 = smul.addr %s404, 8
        %s406 = scalar_lea.vmem %s8, %s405
        %s407 = smul.u32 16, %s26
        %s408 = smul.u32 %s26, 128
        %s409 = sadd.s32 %s408, 128
        %v410 = vld [vmem:[%s4] sm:$0x1]
        %v412 = vlaneseq
        %v413 = vshrl.u32 %v412, 7
        %v414 = vsub.s32 0, %v413
        %v415 = vrot.slane %v410, %v414
        %v417 = vadd.f32 %v415, 0.0
        %s418 = sadd.s32 %s409, 4294967292
        %s419 = scalar_lea.vmem %s375, %s418
        %v420 = vld [vmem:[%s419] sm:$0xff]
        %v421 = vld [vmem:[%s419 + $0x8] sm:$0xff]
        %v422 = vld [vmem:[%s419 + $0x10] sm:$0xff]
        %v423 = vld [vmem:[%s419 + $0x18] sm:$0xff]
        %v424 = vld [vmem:[%s419 + $0x20] sm:$0xff]
        %v425 = vld [vmem:[%s419 + $0x28] sm:$0xff]
        %v426 = vld [vmem:[%s419 + $0x30] sm:$0xff]
        %v427 = vld [vmem:[%s419 + $0x38] sm:$0xff]
        %v428 = vld [vmem:[%s419 + $0x40] sm:$0xff]
        %v429 = vld [vmem:[%s419 + $0x48] sm:$0xff]
        %v430 = vld [vmem:[%s419 + $0x50] sm:$0xff]
        %v431 = vld [vmem:[%s419 + $0x58] sm:$0xff]
        %v432 = vld [vmem:[%s419 + $0x60] sm:$0xff]
        %v433 = vld [vmem:[%s419 + $0x68] sm:$0xff]
        %v434 = vld [vmem:[%s419 + $0x70] sm:$0xff]
        %v435 = vld [vmem:[%s419 + $0x78] sm:$0xff]
        %v436 = vld [vmem:[%s3] sm:$0xff]
        %v437 = vld [vmem:[%s3 + $0x8] sm:$0xff]
        %v438 = vld [vmem:[%s3 + $0x10] sm:$0xff]
        %v439 = vld [vmem:[%s3 + $0x18] sm:$0xff]
        %vm440 = vcmask 261120
        %v442 = vsel %vm440, %v420, 0
        %v445 = vsel %vm440, %v421, 0
        %v448 = vsel %vm440, %v422, 0
        %v451 = vsel %vm440, %v423, 0
        %v454 = vsel %vm440, %v424, 0
        %v457 = vsel %vm440, %v425, 0
        %v460 = vsel %vm440, %v426, 0
        %v463 = vsel %vm440, %v427, 0
        %v466 = vsel %vm440, %v428, 0
        %v469 = vsel %vm440, %v429, 0
        %v472 = vsel %vm440, %v430, 0
        %v475 = vsel %vm440, %v431, 0
        %v478 = vsel %vm440, %v432, 0
        %v481 = vsel %vm440, %v433, 0
        %v484 = vsel %vm440, %v434, 0
        %v487 = vsel %vm440, %v435, 0
        %489 = vmatprep.subr.mxu0 0.0
        %490 = vmatpush1.msra.mxu0 %v436
        %491 = vmatprep.subr.mxu0 0.0
        %492 = vmatpush1.msra.mxu0 %v437
        %493 = vmatprep.subr.mxu0 0.0
        %494 = vmatpush1.msra.mxu0 %v438
        %495 = vmatprep.subr.mxu0 0.0
        %496 = vmatpush1.msra.mxu0 %v439
        %497 = vmatprep.subr.mxu0 0.0
        %498 = vmatpush1.msra.mxu0 0.0
        %499 = vmatprep.subr.mxu0 0.0
        %500 = vmatpush1.msra.mxu0 0.0
        %501 = vmatprep.subr.mxu0 0.0
        %502 = vmatpush1.msra.mxu0 0.0
        %503 = vmatprep.subr.mxu0 0.0
        %504 = vmatpush1.msra.mxu0 0.0
        %505 = vmatprep.subr.mxu0 0.0
        %506 = vmatpush1.msra.mxu0 0.0
        %507 = vmatprep.subr.mxu0 0.0
        %508 = vmatpush1.msra.mxu0 0.0
        %509 = vmatprep.subr.mxu0 0.0
        %510 = vmatpush1.msra.mxu0 0.0
        %511 = vmatprep.subr.mxu0 0.0
        %512 = vmatpush1.msra.mxu0 0.0
        %513 = vmatprep.subr.mxu0 0.0
        %514 = vmatpush1.msra.mxu0 0.0
        %515 = vmatprep.subr.mxu0 0.0
        %516 = vmatpush1.msra.mxu0 0.0
        %517 = vmatprep.subr.mxu0 0.0
        %518 = vmatpush1.msra.mxu0 0.0
        %519 = vmatprep.subr.mxu0 0.0
        %520 = vmatpush1.msra.mxu0 0.0
        %521 = vmatprep.subr.mxu0 0.0
        %522 = vmatpush1.msra.mxu0 0.0
        %523 = vmatprep.subr.mxu0 0.0
        %524 = vmatpush1.msra.mxu0 0.0
        %525 = vmatprep.subr.mxu0 0.0
        %526 = vmatpush1.msra.mxu0 0.0
        %527 = vmatprep.subr.mxu0 0.0
        %528 = vmatpush1.msra.mxu0 0.0
        %529 = vmatprep.subr.mxu0 0.0
        %530 = vmatpush1.msra.mxu0 0.0
        %531 = vmatprep.subr.mxu0 0.0
        %532 = vmatpush1.msra.mxu0 0.0
        %533 = vmatprep.subr.mxu0 0.0
        %534 = vmatpush1.msra.mxu0 0.0
        %535 = vmatprep.subr.mxu0 0.0
        %536 = vmatpush1.msra.mxu0 0.0
        %537 = vmatprep.subr.mxu0 0.0
        %538 = vmatpush1.msra.mxu0 0.0
        %539 = vmatprep.subr.mxu0 0.0
        %540 = vmatpush1.msra.mxu0 0.0
        %541 = vmatprep.subr.mxu0 0.0
        %542 = vmatpush1.msra.mxu0 0.0
        %543 = vmatprep.subr.mxu0 0.0
        %544 = vmatpush1.msra.mxu0 0.0
        %545 = vmatprep.subr.mxu0 0.0
        %546 = vmatpush1.msra.mxu0 0.0
        %547 = vmatprep.subr.mxu0 0.0
        %548 = vmatpush1.msra.mxu0 0.0
        %549 = vmatprep.subr.mxu0 0.0
        %550 = vmatpush1.msra.mxu0 0.0
        %551 = vmatprep.subr.mxu0 0.0
        %552 = vmatpush1.msra.mxu0 0.0
        %553 = vmatprep.mubr.f32.mxu0 0.0
        %554 = vmatmul.mubr.f32.gmra.mrb[0].mxu0 %v442
        %v555 = vpop.f32.mrb[0].mxu0
        %v556 = vadd.f32 0.0, %v555
        %v557 = vpop.f32.mrb[0].mxu0
        %558 = vmatprep.mubr.f32.mxu0 0.0
        %559 = vmatmul.mubr.f32.gmra.mrb[0].mxu0 %v445
        %v560 = vpop.f32.mrb[0].mxu0
        %v561 = vadd.f32 0.0, %v560
        %v562 = vpop.f32.mrb[0].mxu0
        %563 = vmatprep.mubr.f32.mxu0 0.0
        %564 = vmatmul.mubr.f32.gmra.mrb[0].mxu0 %v448
        %v565 = vpop.f32.mrb[0].mxu0
        %v566 = vadd.f32 0.0, %v565
        %v567 = vpop.f32.mrb[0].mxu0
        %568 = vmatprep.mubr.f32.mxu0 0.0
        %569 = vmatmul.mubr.f32.gmra.mrb[0].mxu0 %v451
        %v570 = vpop.f32.mrb[0].mxu0
        %v571 = vadd.f32 0.0, %v570
        %v572 = vpop.f32.mrb[0].mxu0
        %573 = vmatprep.mubr.f32.mxu0 0.0
        %574 = vmatmul.mubr.f32.gmra.mrb[0].mxu0 %v454
        %v575 = vpop.f32.mrb[0].mxu0
        %v576 = vadd.f32 0.0, %v575
        %v577 = vpop.f32.mrb[0].mxu0
        %578 = vmatprep.mubr.f32.mxu0 0.0
        %579 = vmatmul.mubr.f32.gmra.mrb[0].mxu0 %v457
        %v580 = vpop.f32.mrb[0].mxu0
        %v581 = vadd.f32 0.0, %v580
        %v582 = vpop.f32.mrb[0].mxu0
        %583 = vmatprep.mubr.f32.mxu0 0.0
        %584 = vmatmul.mubr.f32.gmra.mrb[0].mxu0 %v460
        %v585 = vpop.f32.mrb[0].mxu0
        %v586 = vadd.f32 0.0, %v585
        %v587 = vpop.f32.mrb[0].mxu0
        %588 = vmatprep.mubr.f32.mxu0 0.0
        %589 = vmatmul.mubr.f32.gmra.mrb[0].mxu0 %v463
        %v590 = vpop.f32.mrb[0].mxu0
        %v591 = vadd.f32 0.0, %v590
        %v592 = vpop.f32.mrb[0].mxu0
        %593 = vmatprep.mubr.f32.mxu0 0.0
        %594 = vmatmul.mubr.f32.gmra.mrb[0].mxu0 %v466
        %v595 = vpop.f32.mrb[0].mxu0
        %v596 = vadd.f32 0.0, %v595
        %v597 = vpop.f32.mrb[0].mxu0
        %598 = vmatprep.mubr.f32.mxu0 0.0
        %599 = vmatmul.mubr.f32.gmra.mrb[0].mxu0 %v469
        %v600 = vpop.f32.mrb[0].mxu0
        %v601 = vadd.f32 0.0, %v600
        %v602 = vpop.f32.mrb[0].mxu0
        %603 = vmatprep.mubr.f32.mxu0 0.0
        %604 = vmatmul.mubr.f32.gmra.mrb[0].mxu0 %v472
        %v605 = vpop.f32.mrb[0].mxu0
        %v606 = vadd.f32 0.0, %v605
        %v607 = vpop.f32.mrb[0].mxu0
        %608 = vmatprep.mubr.f32.mxu0 0.0
        %609 = vmatmul.mubr.f32.gmra.mrb[0].mxu0 %v475
        %v610 = vpop.f32.mrb[0].mxu0
        %v611 = vadd.f32 0.0, %v610
        %v612 = vpop.f32.mrb[0].mxu0
        %613 = vmatprep.mubr.f32.mxu0 0.0
        %614 = vmatmul.mubr.f32.gmra.mrb[0].mxu0 %v478
        %v615 = vpop.f32.mrb[0].mxu0
        %v616 = vadd.f32 0.0, %v615
        %v617 = vpop.f32.mrb[0].mxu0
        %618 = vmatprep.mubr.f32.mxu0 0.0
        %619 = vmatmul.mubr.f32.gmra.mrb[0].mxu0 %v481
        %v620 = vpop.f32.mrb[0].mxu0
        %v621 = vadd.f32 0.0, %v620
        %v622 = vpop.f32.mrb[0].mxu0
        %623 = vmatprep.mubr.f32.mxu0 0.0
        %624 = vmatmul.mubr.f32.gmra.mrb[0].mxu0 %v484
        %v625 = vpop.f32.mrb[0].mxu0
        %v626 = vadd.f32 0.0, %v625
        %v627 = vpop.f32.mrb[0].mxu0
        %628 = vmatprep.mubr.f32.mxu0 0.0
        %629 = vmatmul.mubr.f32.gmra.mrb[0].mxu0 %v487
        %v630 = vpop.f32.mrb[0].mxu0
        %v631 = vadd.f32 0.0, %v630
        %v632 = vpop.f32.mrb[0].mxu0
        %633 = vdwg.mxu0
        %v634 = vadd.f32 %v417, %v556
        %v635 = vadd.f32 %v417, %v561
        %v636 = vadd.f32 %v417, %v566
        %v637 = vadd.f32 %v417, %v571
        %v638 = vadd.f32 %v417, %v576
        %v639 = vadd.f32 %v417, %v581
        %v640 = vadd.f32 %v417, %v586
        %v641 = vadd.f32 %v417, %v591
        %v642 = vadd.f32 %v417, %v596
        %v643 = vadd.f32 %v417, %v601
        %v644 = vadd.f32 %v417, %v606
        %v645 = vadd.f32 %v417, %v611
        %v646 = vadd.f32 %v417, %v616
        %v647 = vadd.f32 %v417, %v621
        %v648 = vadd.f32 %v417, %v626
        %v649 = vadd.f32 %v417, %v631
        %s650 = sadd.s32 %s409, 4294967294
        %s651 = scalar_lea.vmem %s375, %s650
        %v652 = vld [vmem:[%s651] sm:$0xff]
        %v653 = vld [vmem:[%s651 + $0x8] sm:$0xff]
        %v654 = vld [vmem:[%s651 + $0x10] sm:$0xff]
        %v655 = vld [vmem:[%s651 + $0x18] sm:$0xff]
        %v656 = vld [vmem:[%s651 + $0x20] sm:$0xff]
        %v657 = vld [vmem:[%s651 + $0x28] sm:$0xff]
        %v658 = vld [vmem:[%s651 + $0x30] sm:$0xff]
        %v659 = vld [vmem:[%s651 + $0x38] sm:$0xff]
        %v660 = vld [vmem:[%s651 + $0x40] sm:$0xff]
        %v661 = vld [vmem:[%s651 + $0x48] sm:$0xff]
        %v662 = vld [vmem:[%s651 + $0x50] sm:$0xff]
        %v663 = vld [vmem:[%s651 + $0x58] sm:$0xff]
        %v664 = vld [vmem:[%s651 + $0x60] sm:$0xff]
        %v665 = vld [vmem:[%s651 + $0x68] sm:$0xff]
        %v666 = vld [vmem:[%s651 + $0x70] sm:$0xff]
        %v667 = vld [vmem:[%s651 + $0x78] sm:$0xff]
        %s668 = scalar_lea.vmem %s3, 32
        %v669 = vld [vmem:[%s668] sm:$0xff]
        %v670 = vld [vmem:[%s668 + $0x8] sm:$0xff]
        %v671 = vld [vmem:[%s668 + $0x10] sm:$0xff]
        %v672 = vld [vmem:[%s668 + $0x18] sm:$0xff]
        %v674 = vsel %vm440, %v652, 0
        %v677 = vsel %vm440, %v653, 0
        %v680 = vsel %vm440, %v654, 0
        %v683 = vsel %vm440, %v655, 0
        %v686 = vsel %vm440, %v656, 0
        %v689 = vsel %vm440, %v657, 0
        %v692 = vsel %vm440, %v658, 0
        %v695 = vsel %vm440, %v659, 0
        %v698 = vsel %vm440, %v660, 0
        %v701 = vsel %vm440, %v661, 0
        %v704 = vsel %vm440, %v662, 0
        %v707 = vsel %vm440, %v663, 0
        %v710 = vsel %vm440, %v664, 0
        %v713 = vsel %vm440, %v665, 0
        %v716 = vsel %vm440, %v666, 0
        %v719 = vsel %vm440, %v667, 0
        %721 = vmatprep.subr.mxu0 0.0
        %722 = vmatpush1.msra.mxu0 %v669
        %723 = vmatprep.subr.mxu0 0.0
        %724 = vmatpush1.msra.mxu0 %v670
        %725 = vmatprep.subr.mxu0 0.0
        %726 = vmatpush1.msra.mxu0 %v671
        %727 = vmatprep.subr.mxu0 0.0
        %728 = vmatpush1.msra.mxu0 %v672
        %729 = vmatprep.subr.mxu0 0.0
        %730 = vmatpush1.msra.mxu0 0.0
        %731 = vmatprep.subr.mxu0 0.0
        %732 = vmatpush1.msra.mxu0 0.0
        %733 = vmatprep.subr.mxu0 0.0
        %734 = vmatpush1.msra.mxu0 0.0
        %735 = vmatprep.subr.mxu0 0.0
        %736 = vmatpush1.msra.mxu0 0.0
        %737 = vmatprep.subr.mxu0 0.0
        %738 = vmatpush1.msra.mxu0 0.0
        %739 = vmatprep.subr.mxu0 0.0
        %740 = vmatpush1.msra.mxu0 0.0
        %741 = vmatprep.subr.mxu0 0.0
        %742 = vmatpush1.msra.mxu0 0.0
        %743 = vmatprep.subr.mxu0 0.0
        %744 = vmatpush1.msra.mxu0 0.0
        %745 = vmatprep.subr.mxu0 0.0
        %746 = vmatpush1.msra.mxu0 0.0
        %747 = vmatprep.subr.mxu0 0.0
        %748 = vmatpush1.msra.mxu0 0.0
        %749 = vmatprep.subr.mxu0 0.0
        %750 = vmatpush1.msra.mxu0 0.0
        %751 = vmatprep.subr.mxu0 0.0
        %752 = vmatpush1.msra.mxu0 0.0
        %753 = vmatprep.subr.mxu0 0.0
        %754 = vmatpush1.msra.mxu0 0.0
        %755 = vmatprep.subr.mxu0 0.0
        %756 = vmatpush1.msra.mxu0 0.0
        %757 = vmatprep.subr.mxu0 0.0
        %758 = vmatpush1.msra.mxu0 0.0
        %759 = vmatprep.subr.mxu0 0.0
        %760 = vmatpush1.msra.mxu0 0.0
        %761 = vmatprep.subr.mxu0 0.0
        %762 = vmatpush1.msra.mxu0 0.0
        %763 = vmatprep.subr.mxu0 0.0
        %764 = vmatpush1.msra.mxu0 0.0
        %765 = vmatprep.subr.mxu0 0.0
        %766 = vmatpush1.msra.mxu0 0.0
        %767 = vmatprep.subr.mxu0 0.0
        %768 = vmatpush1.msra.mxu0 0.0
        %769 = vmatprep.subr.mxu0 0.0
        %770 = vmatpush1.msra.mxu0 0.0
        %771 = vmatprep.subr.mxu0 0.0
        %772 = vmatpush1.msra.mxu0 0.0
        %773 = vmatprep.subr.mxu0 0.0
        %774 = vmatpush1.msra.mxu0 0.0
        %775 = vmatprep.subr.mxu0 0.0
        %776 = vmatpush1.msra.mxu0 0.0
        %777 = vmatprep.subr.mxu0 0.0
        %778 = vmatpush1.msra.mxu0 0.0
        %779 = vmatprep.subr.mxu0 0.0
        %780 = vmatpush1.msra.mxu0 0.0
        %781 = vmatprep.subr.mxu0 0.0
        %782 = vmatpush1.msra.mxu0 0.0
        %783 = vmatprep.subr.mxu0 0.0
        %784 = vmatpush1.msra.mxu0 0.0
        %785 = vmatprep.mubr.f32.mxu0 0.0
        %786 = vmatmul.mubr.f32.gmra.mrb[0].mxu0 %v674
        %v787 = vpop.f32.mrb[0].mxu0
        %v788 = vadd.f32 0.0, %v787
        %v789 = vpop.f32.mrb[0].mxu0
        %790 = vmatprep.mubr.f32.mxu0 0.0
        %791 = vmatmul.mubr.f32.gmra.mrb[0].mxu0 %v677
        %v792 = vpop.f32.mrb[0].mxu0
        %v793 = vadd.f32 0.0, %v792
        %v794 = vpop.f32.mrb[0].mxu0
        %795 = vmatprep.mubr.f32.mxu0 0.0
        %796 = vmatmul.mubr.f32.gmra.mrb[0].mxu0 %v680
        %v797 = vpop.f32.mrb[0].mxu0
        %v798 = vadd.f32 0.0, %v797
        %v799 = vpop.f32.mrb[0].mxu0
        %800 = vmatprep.mubr.f32.mxu0 0.0
        %801 = vmatmul.mubr.f32.gmra.mrb[0].mxu0 %v683
        %v802 = vpop.f32.mrb[0].mxu0
        %v803 = vadd.f32 0.0, %v802
        %v804 = vpop.f32.mrb[0].mxu0
        %805 = vmatprep.mubr.f32.mxu0 0.0
        %806 = vmatmul.mubr.f32.gmra.mrb[0].mxu0 %v686
        %v807 = vpop.f32.mrb[0].mxu0
        %v808 = vadd.f32 0.0, %v807
        %v809 = vpop.f32.mrb[0].mxu0
        %810 = vmatprep.mubr.f32.mxu0 0.0
        %811 = vmatmul.mubr.f32.gmra.mrb[0].mxu0 %v689
        %v812 = vpop.f32.mrb[0].mxu0
        %v813 = vadd.f32 0.0, %v812
        %v814 = vpop.f32.mrb[0].mxu0
        %815 = vmatprep.mubr.f32.mxu0 0.0
        %816 = vmatmul.mubr.f32.gmra.mrb[0].mxu0 %v692
        %v817 = vpop.f32.mrb[0].mxu0
        %v818 = vadd.f32 0.0, %v817
        %v819 = vpop.f32.mrb[0].mxu0
        %820 = vmatprep.mubr.f32.mxu0 0.0
        %821 = vmatmul.mubr.f32.gmra.mrb[0].mxu0 %v695
        %v822 = vpop.f32.mrb[0].mxu0
        %v823 = vadd.f32 0.0, %v822
        %v824 = vpop.f32.mrb[0].mxu0
        %825 = vmatprep.mubr.f32.mxu0 0.0
        %826 = vmatmul.mubr.f32.gmra.mrb[0].mxu0 %v698
        %v827 = vpop.f32.mrb[0].mxu0
        %v828 = vadd.f32 0.0, %v827
        %v829 = vpop.f32.mrb[0].mxu0
        %830 = vmatprep.mubr.f32.mxu0 0.0
        %831 = vmatmul.mubr.f32.gmra.mrb[0].mxu0 %v701
        %v832 = vpop.f32.mrb[0].mxu0
        %v833 = vadd.f32 0.0, %v832
        %v834 = vpop.f32.mrb[0].mxu0
        %835 = vmatprep.mubr.f32.mxu0 0.0
        %836 = vmatmul.mubr.f32.gmra.mrb[0].mxu0 %v704
        %v837 = vpop.f32.mrb[0].mxu0
        %v838 = vadd.f32 0.0, %v837
        %v839 = vpop.f32.mrb[0].mxu0
        %840 = vmatprep.mubr.f32.mxu0 0.0
        %841 = vmatmul.mubr.f32.gmra.mrb[0].mxu0 %v707
        %v842 = vpop.f32.mrb[0].mxu0
        %v843 = vadd.f32 0.0, %v842
        %v844 = vpop.f32.mrb[0].mxu0
        %845 = vmatprep.mubr.f32.mxu0 0.0
        %846 = vmatmul.mubr.f32.gmra.mrb[0].mxu0 %v710
        %v847 = vpop.f32.mrb[0].mxu0
        %v848 = vadd.f32 0.0, %v847
        %v849 = vpop.f32.mrb[0].mxu0
        %850 = vmatprep.mubr.f32.mxu0 0.0
        %851 = vmatmul.mubr.f32.gmra.mrb[0].mxu0 %v713
        %v852 = vpop.f32.mrb[0].mxu0
        %v853 = vadd.f32 0.0, %v852
        %v854 = vpop.f32.mrb[0].mxu0
        %855 = vmatprep.mubr.f32.mxu0 0.0
        %856 = vmatmul.mubr.f32.gmra.mrb[0].mxu0 %v716
        %v857 = vpop.f32.mrb[0].mxu0
        %v858 = vadd.f32 0.0, %v857
        %v859 = vpop.f32.mrb[0].mxu0
        %860 = vmatprep.mubr.f32.mxu0 0.0
        %861 = vmatmul.mubr.f32.gmra.mrb[0].mxu0 %v719
        %v862 = vpop.f32.mrb[0].mxu0
        %v863 = vadd.f32 0.0, %v862
        %v864 = vpop.f32.mrb[0].mxu0
        %865 = vdwg.mxu0
        %v866 = vadd.f32 %v634, %v788
        %v867 = vadd.f32 %v635, %v793
        %v868 = vadd.f32 %v636, %v798
        %v869 = vadd.f32 %v637, %v803
        %v870 = vadd.f32 %v638, %v808
        %v871 = vadd.f32 %v639, %v813
        %v872 = vadd.f32 %v640, %v818
        %v873 = vadd.f32 %v641, %v823
        %v874 = vadd.f32 %v642, %v828
        %v875 = vadd.f32 %v643, %v833
        %v876 = vadd.f32 %v644, %v838
        %v877 = vadd.f32 %v645, %v843
        %v878 = vadd.f32 %v646, %v848
        %v879 = vadd.f32 %v647, %v853
        %v880 = vadd.f32 %v648, %v858
        %v881 = vadd.f32 %v649, %v863
        %s882 = scalar_lea.vmem %s375, %s409
        %v883 = vld [vmem:[%s882] sm:$0xff]
        %v884 = vld [vmem:[%s882 + $0x8] sm:$0xff]
        %v885 = vld [vmem:[%s882 + $0x10] sm:$0xff]
        %v886 = vld [vmem:[%s882 + $0x18] sm:$0xff]
        %v887 = vld [vmem:[%s882 + $0x20] sm:$0xff]
        %v888 = vld [vmem:[%s882 + $0x28] sm:$0xff]
        %v889 = vld [vmem:[%s882 + $0x30] sm:$0xff]
        %v890 = vld [vmem:[%s882 + $0x38] sm:$0xff]
        %v891 = vld [vmem:[%s882 + $0x40] sm:$0xff]
        %v892 = vld [vmem:[%s882 + $0x48] sm:$0xff]
        %v893 = vld [vmem:[%s882 + $0x50] sm:$0xff]
        %v894 = vld [vmem:[%s882 + $0x58] sm:$0xff]
        %v895 = vld [vmem:[%s882 + $0x60] sm:$0xff]
        %v896 = vld [vmem:[%s882 + $0x68] sm:$0xff]
        %v897 = vld [vmem:[%s882 + $0x70] sm:$0xff]
        %v898 = vld [vmem:[%s882 + $0x78] sm:$0xff]
        %s899 = scalar_lea.vmem %s3, 64
        %v900 = vld [vmem:[%s899] sm:$0xff]
        %v901 = vld [vmem:[%s899 + $0x8] sm:$0xff]
        %v902 = vld [vmem:[%s899 + $0x10] sm:$0xff]
        %v903 = vld [vmem:[%s899 + $0x18] sm:$0xff]
        %v905 = vsel %vm440, %v883, 0
        %v908 = vsel %vm440, %v884, 0
        %v911 = vsel %vm440, %v885, 0
        %v914 = vsel %vm440, %v886, 0
        %v917 = vsel %vm440, %v887, 0
        %v920 = vsel %vm440, %v888, 0
        %v923 = vsel %vm440, %v889, 0
        %v926 = vsel %vm440, %v890, 0
        %v929 = vsel %vm440, %v891, 0
        %v932 = vsel %vm440, %v892, 0
        %v935 = vsel %vm440, %v893, 0
        %v938 = vsel %vm440, %v894, 0
        %v941 = vsel %vm440, %v895, 0
        %v944 = vsel %vm440, %v896, 0
        %v947 = vsel %vm440, %v897, 0
        %v950 = vsel %vm440, %v898, 0
        %952 = vmatprep.subr.mxu0 0.0
        %953 = vmatpush1.msra.mxu0 %v900
        %954 = vmatprep.subr.mxu0 0.0
        %955 = vmatpush1.msra.mxu0 %v901
        %956 = vmatprep.subr.mxu0 0.0
        %957 = vmatpush1.msra.mxu0 %v902
        %958 = vmatprep.subr.mxu0 0.0
        %959 = vmatpush1.msra.mxu0 %v903
        %960 = vmatprep.subr.mxu0 0.0
        %961 = vmatpush1.msra.mxu0 0.0
        %962 = vmatprep.subr.mxu0 0.0
        %963 = vmatpush1.msra.mxu0 0.0
        %964 = vmatprep.subr.mxu0 0.0
        %965 = vmatpush1.msra.mxu0 0.0
        %966 = vmatprep.subr.mxu0 0.0
        %967 = vmatpush1.msra.mxu0 0.0
        %968 = vmatprep.subr.mxu0 0.0
        %969 = vmatpush1.msra.mxu0 0.0
        %970 = vmatprep.subr.mxu0 0.0
        %971 = vmatpush1.msra.mxu0 0.0
        %972 = vmatprep.subr.mxu0 0.0
        %973 = vmatpush1.msra.mxu0 0.0
        %974 = vmatprep.subr.mxu0 0.0
        %975 = vmatpush1.msra.mxu0 0.0
        %976 = vmatprep.subr.mxu0 0.0
        %977 = vmatpush1.msra.mxu0 0.0
        %978 = vmatprep.subr.mxu0 0.0
        %979 = vmatpush1.msra.mxu0 0.0
        %980 = vmatprep.subr.mxu0 0.0
        %981 = vmatpush1.msra.mxu0 0.0
        %982 = vmatprep.subr.mxu0 0.0
        %983 = vmatpush1.msra.mxu0 0.0
        %984 = vmatprep.subr.mxu0 0.0
        %985 = vmatpush1.msra.mxu0 0.0
        %986 = vmatprep.subr.mxu0 0.0
        %987 = vmatpush1.msra.mxu0 0.0
        %988 = vmatprep.subr.mxu0 0.0
        %989 = vmatpush1.msra.mxu0 0.0
        %990 = vmatprep.subr.mxu0 0.0
        %991 = vmatpush1.msra.mxu0 0.0
        %992 = vmatprep.subr.mxu0 0.0
        %993 = vmatpush1.msra.mxu0 0.0
        %994 = vmatprep.subr.mxu0 0.0
        %995 = vmatpush1.msra.mxu0 0.0
        %996 = vmatprep.subr.mxu0 0.0
        %997 = vmatpush1.msra.mxu0 0.0
        %998 = vmatprep.subr.mxu0 0.0
        %999 = vmatpush1.msra.mxu0 0.0
        %1000 = vmatprep.subr.mxu0 0.0
        %1001 = vmatpush1.msra.mxu0 0.0
        %1002 = vmatprep.subr.mxu0 0.0
        %1003 = vmatpush1.msra.mxu0 0.0
        %1004 = vmatprep.subr.mxu0 0.0
        %1005 = vmatpush1.msra.mxu0 0.0
        %1006 = vmatprep.subr.mxu0 0.0
        %1007 = vmatpush1.msra.mxu0 0.0
        %1008 = vmatprep.subr.mxu0 0.0
        %1009 = vmatpush1.msra.mxu0 0.0
        %1010 = vmatprep.subr.mxu0 0.0
        %1011 = vmatpush1.msra.mxu0 0.0
        %1012 = vmatprep.subr.mxu0 0.0
        %1013 = vmatpush1.msra.mxu0 0.0
        %1014 = vmatprep.subr.mxu0 0.0
        %1015 = vmatpush1.msra.mxu0 0.0
        %1016 = vmatprep.mubr.f32.mxu0 0.0
        %1017 = vmatmul.mubr.f32.gmra.mrb[0].mxu0 %v905
        %v1018 = vpop.f32.mrb[0].mxu0
        %v1019 = vadd.f32 0.0, %v1018
        %v1020 = vpop.f32.mrb[0].mxu0
        %1021 = vmatprep.mubr.f32.mxu0 0.0
        %1022 = vmatmul.mubr.f32.gmra.mrb[0].mxu0 %v908
        %v1023 = vpop.f32.mrb[0].mxu0
        %v1024 = vadd.f32 0.0, %v1023
        %v1025 = vpop.f32.mrb[0].mxu0
        %1026 = vmatprep.mubr.f32.mxu0 0.0
        %1027 = vmatmul.mubr.f32.gmra.mrb[0].mxu0 %v911
        %v1028 = vpop.f32.mrb[0].mxu0
        %v1029 = vadd.f32 0.0, %v1028
        %v1030 = vpop.f32.mrb[0].mxu0
        %1031 = vmatprep.mubr.f32.mxu0 0.0
        %1032 = vmatmul.mubr.f32.gmra.mrb[0].mxu0 %v914
        %v1033 = vpop.f32.mrb[0].mxu0
        %v1034 = vadd.f32 0.0, %v1033
        %v1035 = vpop.f32.mrb[0].mxu0
        %1036 = vmatprep.mubr.f32.mxu0 0.0
        %1037 = vmatmul.mubr.f32.gmra.mrb[0].mxu0 %v917
        %v1038 = vpop.f32.mrb[0].mxu0
        %v1039 = vadd.f32 0.0, %v1038
        %v1040 = vpop.f32.mrb[0].mxu0
        %1041 = vmatprep.mubr.f32.mxu0 0.0
        %1042 = vmatmul.mubr.f32.gmra.mrb[0].mxu0 %v920
        %v1043 = vpop.f32.mrb[0].mxu0
        %v1044 = vadd.f32 0.0, %v1043
        %v1045 = vpop.f32.mrb[0].mxu0
        %1046 = vmatprep.mubr.f32.mxu0 0.0
        %1047 = vmatmul.mubr.f32.gmra.mrb[0].mxu0 %v923
        %v1048 = vpop.f32.mrb[0].mxu0
        %v1049 = vadd.f32 0.0, %v1048
        %v1050 = vpop.f32.mrb[0].mxu0
        %1051 = vmatprep.mubr.f32.mxu0 0.0
        %1052 = vmatmul.mubr.f32.gmra.mrb[0].mxu0 %v926
        %v1053 = vpop.f32.mrb[0].mxu0
        %v1054 = vadd.f32 0.0, %v1053
        %v1055 = vpop.f32.mrb[0].mxu0
        %1056 = vmatprep.mubr.f32.mxu0 0.0
        %1057 = vmatmul.mubr.f32.gmra.mrb[0].mxu0 %v929
        %v1058 = vpop.f32.mrb[0].mxu0
        %v1059 = vadd.f32 0.0, %v1058
        %v1060 = vpop.f32.mrb[0].mxu0
        %1061 = vmatprep.mubr.f32.mxu0 0.0
        %1062 = vmatmul.mubr.f32.gmra.mrb[0].mxu0 %v932
        %v1063 = vpop.f32.mrb[0].mxu0
        %v1064 = vadd.f32 0.0, %v1063
        %v1065 = vpop.f32.mrb[0].mxu0
        %1066 = vmatprep.mubr.f32.mxu0 0.0
        %1067 = vmatmul.mubr.f32.gmra.mrb[0].mxu0 %v935
        %v1068 = vpop.f32.mrb[0].mxu0
        %v1069 = vadd.f32 0.0, %v1068
        %v1070 = vpop.f32.mrb[0].mxu0
        %1071 = vmatprep.mubr.f32.mxu0 0.0
        %1072 = vmatmul.mubr.f32.gmra.mrb[0].mxu0 %v938
        %v1073 = vpop.f32.mrb[0].mxu0
        %v1074 = vadd.f32 0.0, %v1073
        %v1075 = vpop.f32.mrb[0].mxu0
        %1076 = vmatprep.mubr.f32.mxu0 0.0
        %1077 = vmatmul.mubr.f32.gmra.mrb[0].mxu0 %v941
        %v1078 = vpop.f32.mrb[0].mxu0
        %v1079 = vadd.f32 0.0, %v1078
        %v1080 = vpop.f32.mrb[0].mxu0
        %1081 = vmatprep.mubr.f32.mxu0 0.0
        %1082 = vmatmul.mubr.f32.gmra.mrb[0].mxu0 %v944
        %v1083 = vpop.f32.mrb[0].mxu0
        %v1084 = vadd.f32 0.0, %v1083
        %v1085 = vpop.f32.mrb[0].mxu0
        %1086 = vmatprep.mubr.f32.mxu0 0.0
        %1087 = vmatmul.mubr.f32.gmra.mrb[0].mxu0 %v947
        %v1088 = vpop.f32.mrb[0].mxu0
        %v1089 = vadd.f32 0.0, %v1088
        %v1090 = vpop.f32.mrb[0].mxu0
        %1091 = vmatprep.mubr.f32.mxu0 0.0
        %1092 = vmatmul.mubr.f32.gmra.mrb[0].mxu0 %v950
        %v1093 = vpop.f32.mrb[0].mxu0
        %v1094 = vadd.f32 0.0, %v1093
        %v1095 = vpop.f32.mrb[0].mxu0
        %1096 = vdwg.mxu0
        %v1097 = vadd.f32 %v866, %v1019
        %v1098 = vadd.f32 %v867, %v1024
        %v1099 = vadd.f32 %v868, %v1029
        %v1100 = vadd.f32 %v869, %v1034
        %v1101 = vadd.f32 %v870, %v1039
        %v1102 = vadd.f32 %v871, %v1044
        %v1103 = vadd.f32 %v872, %v1049
        %v1104 = vadd.f32 %v873, %v1054
        %v1105 = vadd.f32 %v874, %v1059
        %v1106 = vadd.f32 %v875, %v1064
        %v1107 = vadd.f32 %v876, %v1069
        %v1108 = vadd.f32 %v877, %v1074
        %v1109 = vadd.f32 %v878, %v1079
        %v1110 = vadd.f32 %v879, %v1084
        %v1111 = vadd.f32 %v880, %v1089
        %v1112 = vadd.f32 %v881, %v1094
        %s1113 = sadd.s32 %s409, 2
        %s1114 = scalar_lea.vmem %s375, %s1113
        %v1115 = vld [vmem:[%s1114] sm:$0xff]
        %v1116 = vld [vmem:[%s1114 + $0x8] sm:$0xff]
        %v1117 = vld [vmem:[%s1114 + $0x10] sm:$0xff]
        %v1118 = vld [vmem:[%s1114 + $0x18] sm:$0xff]
        %v1119 = vld [vmem:[%s1114 + $0x20] sm:$0xff]
        %v1120 = vld [vmem:[%s1114 + $0x28] sm:$0xff]
        %v1121 = vld [vmem:[%s1114 + $0x30] sm:$0xff]
        %v1122 = vld [vmem:[%s1114 + $0x38] sm:$0xff]
        %v1123 = vld [vmem:[%s1114 + $0x40] sm:$0xff]
        %v1124 = vld [vmem:[%s1114 + $0x48] sm:$0xff]
        %v1125 = vld [vmem:[%s1114 + $0x50] sm:$0xff]
        %v1126 = vld [vmem:[%s1114 + $0x58] sm:$0xff]
        %v1127 = vld [vmem:[%s1114 + $0x60] sm:$0xff]
        %v1128 = vld [vmem:[%s1114 + $0x68] sm:$0xff]
        %v1129 = vld [vmem:[%s1114 + $0x70] sm:$0xff]
        %v1130 = vld [vmem:[%s1114 + $0x78] sm:$0xff]
        %s1131 = scalar_lea.vmem %s3, 96
        %v1132 = vld [vmem:[%s1131] sm:$0xff]
        %v1133 = vld [vmem:[%s1131 + $0x8] sm:$0xff]
        %v1134 = vld [vmem:[%s1131 + $0x10] sm:$0xff]
        %v1135 = vld [vmem:[%s1131 + $0x18] sm:$0xff]
        %v1137 = vsel %vm440, %v1115, 0
        %v1140 = vsel %vm440, %v1116, 0
        %v1143 = vsel %vm440, %v1117, 0
        %v1146 = vsel %vm440, %v1118, 0
        %v1149 = vsel %vm440, %v1119, 0
        %v1152 = vsel %vm440, %v1120, 0
        %v1155 = vsel %vm440, %v1121, 0
        %v1158 = vsel %vm440, %v1122, 0
        %v1161 = vsel %vm440, %v1123, 0
        %v1164 = vsel %vm440, %v1124, 0
        %v1167 = vsel %vm440, %v1125, 0
        %v1170 = vsel %vm440, %v1126, 0
        %v1173 = vsel %vm440, %v1127, 0
        %v1176 = vsel %vm440, %v1128, 0
        %v1179 = vsel %vm440, %v1129, 0
        %v1182 = vsel %vm440, %v1130, 0
        %1184 = vmatprep.subr.mxu0 0.0
        %1185 = vmatpush1.msra.mxu0 %v1132
        %1186 = vmatprep.subr.mxu0 0.0
        %1187 = vmatpush1.msra.mxu0 %v1133
        %1188 = vmatprep.subr.mxu0 0.0
        %1189 = vmatpush1.msra.mxu0 %v1134
        %1190 = vmatprep.subr.mxu0 0.0
        %1191 = vmatpush1.msra.mxu0 %v1135
        %1192 = vmatprep.subr.mxu0 0.0
        %1193 = vmatpush1.msra.mxu0 0.0
        %1194 = vmatprep.subr.mxu0 0.0
        %1195 = vmatpush1.msra.mxu0 0.0
        %1196 = vmatprep.subr.mxu0 0.0
        %1197 = vmatpush1.msra.mxu0 0.0
        %1198 = vmatprep.subr.mxu0 0.0
        %1199 = vmatpush1.msra.mxu0 0.0
        %1200 = vmatprep.subr.mxu0 0.0
        %1201 = vmatpush1.msra.mxu0 0.0
        %1202 = vmatprep.subr.mxu0 0.0
        %1203 = vmatpush1.msra.mxu0 0.0
        %1204 = vmatprep.subr.mxu0 0.0
        %1205 = vmatpush1.msra.mxu0 0.0
        %1206 = vmatprep.subr.mxu0 0.0
        %1207 = vmatpush1.msra.mxu0 0.0
        %1208 = vmatprep.subr.mxu0 0.0
        %1209 = vmatpush1.msra.mxu0 0.0
        %1210 = vmatprep.subr.mxu0 0.0
        %1211 = vmatpush1.msra.mxu0 0.0
        %1212 = vmatprep.subr.mxu0 0.0
        %1213 = vmatpush1.msra.mxu0 0.0
        %1214 = vmatprep.subr.mxu0 0.0
        %1215 = vmatpush1.msra.mxu0 0.0
        %1216 = vmatprep.subr.mxu0 0.0
        %1217 = vmatpush1.msra.mxu0 0.0
        %1218 = vmatprep.subr.mxu0 0.0
        %1219 = vmatpush1.msra.mxu0 0.0
        %1220 = vmatprep.subr.mxu0 0.0
        %1221 = vmatpush1.msra.mxu0 0.0
        %1222 = vmatprep.subr.mxu0 0.0
        %1223 = vmatpush1.msra.mxu0 0.0
        %1224 = vmatprep.subr.mxu0 0.0
        %1225 = vmatpush1.msra.mxu0 0.0
        %1226 = vmatprep.subr.mxu0 0.0
        %1227 = vmatpush1.msra.mxu0 0.0
        %1228 = vmatprep.subr.mxu0 0.0
        %1229 = vmatpush1.msra.mxu0 0.0
        %1230 = vmatprep.subr.mxu0 0.0
        %1231 = vmatpush1.msra.mxu0 0.0
        %1232 = vmatprep.subr.mxu0 0.0
        %1233 = vmatpush1.msra.mxu0 0.0
        %1234 = vmatprep.subr.mxu0 0.0
        %1235 = vmatpush1.msra.mxu0 0.0
        %1236 = vmatprep.subr.mxu0 0.0
        %1237 = vmatpush1.msra.mxu0 0.0
        %1238 = vmatprep.subr.mxu0 0.0
        %1239 = vmatpush1.msra.mxu0 0.0
        %1240 = vmatprep.subr.mxu0 0.0
        %1241 = vmatpush1.msra.mxu0 0.0
        %1242 = vmatprep.subr.mxu0 0.0
        %1243 = vmatpush1.msra.mxu0 0.0
        %1244 = vmatprep.subr.mxu0 0.0
        %1245 = vmatpush1.msra.mxu0 0.0
        %1246 = vmatprep.subr.mxu0 0.0
        %1247 = vmatpush1.msra.mxu0 0.0
        %1248 = vmatprep.mubr.f32.mxu0 0.0
        %1249 = vmatmul.mubr.f32.gmra.mrb[0].mxu0 %v1137
        %v1250 = vpop.f32.mrb[0].mxu0
        %v1251 = vadd.f32 0.0, %v1250
        %v1252 = vpop.f32.mrb[0].mxu0
        %1253 = vmatprep.mubr.f32.mxu0 0.0
        %1254 = vmatmul.mubr.f32.gmra.mrb[0].mxu0 %v1140
        %v1255 = vpop.f32.mrb[0].mxu0
        %v1256 = vadd.f32 0.0, %v1255
        %v1257 = vpop.f32.mrb[0].mxu0
        %1258 = vmatprep.mubr.f32.mxu0 0.0
        %1259 = vmatmul.mubr.f32.gmra.mrb[0].mxu0 %v1143
        %v1260 = vpop.f32.mrb[0].mxu0
        %v1261 = vadd.f32 0.0, %v1260
        %v1262 = vpop.f32.mrb[0].mxu0
        %1263 = vmatprep.mubr.f32.mxu0 0.0
        %1264 = vmatmul.mubr.f32.gmra.mrb[0].mxu0 %v1146
        %v1265 = vpop.f32.mrb[0].mxu0
        %v1266 = vadd.f32 0.0, %v1265
        %v1267 = vpop.f32.mrb[0].mxu0
        %1268 = vmatprep.mubr.f32.mxu0 0.0
        %1269 = vmatmul.mubr.f32.gmra.mrb[0].mxu0 %v1149
        %v1270 = vpop.f32.mrb[0].mxu0
        %v1271 = vadd.f32 0.0, %v1270
        %v1272 = vpop.f32.mrb[0].mxu0
        %1273 = vmatprep.mubr.f32.mxu0 0.0
        %1274 = vmatmul.mubr.f32.gmra.mrb[0].mxu0 %v1152
        %v1275 = vpop.f32.mrb[0].mxu0
        %v1276 = vadd.f32 0.0, %v1275
        %v1277 = vpop.f32.mrb[0].mxu0
        %1278 = vmatprep.mubr.f32.mxu0 0.0
        %1279 = vmatmul.mubr.f32.gmra.mrb[0].mxu0 %v1155
        %v1280 = vpop.f32.mrb[0].mxu0
        %v1281 = vadd.f32 0.0, %v1280
        %v1282 = vpop.f32.mrb[0].mxu0
        %1283 = vmatprep.mubr.f32.mxu0 0.0
        %1284 = vmatmul.mubr.f32.gmra.mrb[0].mxu0 %v1158
        %v1285 = vpop.f32.mrb[0].mxu0
        %v1286 = vadd.f32 0.0, %v1285
        %v1287 = vpop.f32.mrb[0].mxu0
        %1288 = vmatprep.mubr.f32.mxu0 0.0
        %1289 = vmatmul.mubr.f32.gmra.mrb[0].mxu0 %v1161
        %v1290 = vpop.f32.mrb[0].mxu0
        %v1291 = vadd.f32 0.0, %v1290
        %v1292 = vpop.f32.mrb[0].mxu0
        %1293 = vmatprep.mubr.f32.mxu0 0.0
        %1294 = vmatmul.mubr.f32.gmra.mrb[0].mxu0 %v1164
        %v1295 = vpop.f32.mrb[0].mxu0
        %v1296 = vadd.f32 0.0, %v1295
        %v1297 = vpop.f32.mrb[0].mxu0
        %1298 = vmatprep.mubr.f32.mxu0 0.0
        %1299 = vmatmul.mubr.f32.gmra.mrb[0].mxu0 %v1167
        %v1300 = vpop.f32.mrb[0].mxu0
        %v1301 = vadd.f32 0.0, %v1300
        %v1302 = vpop.f32.mrb[0].mxu0
        %1303 = vmatprep.mubr.f32.mxu0 0.0
        %1304 = vmatmul.mubr.f32.gmra.mrb[0].mxu0 %v1170
        %v1305 = vpop.f32.mrb[0].mxu0
        %v1306 = vadd.f32 0.0, %v1305
        %v1307 = vpop.f32.mrb[0].mxu0
        %1308 = vmatprep.mubr.f32.mxu0 0.0
        %1309 = vmatmul.mubr.f32.gmra.mrb[0].mxu0 %v1173
        %v1310 = vpop.f32.mrb[0].mxu0
        %v1311 = vadd.f32 0.0, %v1310
        %v1312 = vpop.f32.mrb[0].mxu0
        %1313 = vmatprep.mubr.f32.mxu0 0.0
        %1314 = vmatmul.mubr.f32.gmra.mrb[0].mxu0 %v1176
        %v1315 = vpop.f32.mrb[0].mxu0
        %v1316 = vadd.f32 0.0, %v1315
        %v1317 = vpop.f32.mrb[0].mxu0
        %1318 = vmatprep.mubr.f32.mxu0 0.0
        %1319 = vmatmul.mubr.f32.gmra.mrb[0].mxu0 %v1179
        %v1320 = vpop.f32.mrb[0].mxu0
        %v1321 = vadd.f32 0.0, %v1320
        %v1322 = vpop.f32.mrb[0].mxu0
        %1323 = vmatprep.mubr.f32.mxu0 0.0
        %1324 = vmatmul.mubr.f32.gmra.mrb[0].mxu0 %v1182
        %v1325 = vpop.f32.mrb[0].mxu0
        %v1326 = vadd.f32 0.0, %v1325
        %v1327 = vpop.f32.mrb[0].mxu0
        %1328 = vdwg.mxu0
        %v1329 = vadd.f32 %v1097, %v1251
        %v1330 = vadd.f32 %v1098, %v1256
        %v1331 = vadd.f32 %v1099, %v1261
        %v1332 = vadd.f32 %v1100, %v1266
        %v1333 = vadd.f32 %v1101, %v1271
        %v1334 = vadd.f32 %v1102, %v1276
        %v1335 = vadd.f32 %v1103, %v1281
        %v1336 = vadd.f32 %v1104, %v1286
        %v1337 = vadd.f32 %v1105, %v1291
        %v1338 = vadd.f32 %v1106, %v1296
        %v1339 = vadd.f32 %v1107, %v1301
        %v1340 = vadd.f32 %v1108, %v1306
        %v1341 = vadd.f32 %v1109, %v1311
        %v1342 = vadd.f32 %v1110, %v1316
        %v1343 = vadd.f32 %v1111, %v1321
        %v1344 = vadd.f32 %v1112, %v1326
        %s1345 = sadd.s32 %s409, 4
        %s1346 = scalar_lea.vmem %s375, %s1345
        %v1347 = vld [vmem:[%s1346] sm:$0xff]
        %v1348 = vld [vmem:[%s1346 + $0x8] sm:$0xff]
        %v1349 = vld [vmem:[%s1346 + $0x10] sm:$0xff]
        %v1350 = vld [vmem:[%s1346 + $0x18] sm:$0xff]
        %v1351 = vld [vmem:[%s1346 + $0x20] sm:$0xff]
        %v1352 = vld [vmem:[%s1346 + $0x28] sm:$0xff]
        %v1353 = vld [vmem:[%s1346 + $0x30] sm:$0xff]
        %v1354 = vld [vmem:[%s1346 + $0x38] sm:$0xff]
        %v1355 = vld [vmem:[%s1346 + $0x40] sm:$0xff]
        %v1356 = vld [vmem:[%s1346 + $0x48] sm:$0xff]
        %v1357 = vld [vmem:[%s1346 + $0x50] sm:$0xff]
        %v1358 = vld [vmem:[%s1346 + $0x58] sm:$0xff]
        %v1359 = vld [vmem:[%s1346 + $0x60] sm:$0xff]
        %v1360 = vld [vmem:[%s1346 + $0x68] sm:$0xff]
        %v1361 = vld [vmem:[%s1346 + $0x70] sm:$0xff]
        %v1362 = vld [vmem:[%s1346 + $0x78] sm:$0xff]
        %s1363 = scalar_lea.vmem %s3, 128
        %v1364 = vld [vmem:[%s1363] sm:$0xff]
        %v1365 = vld [vmem:[%s1363 + $0x8] sm:$0xff]
        %v1366 = vld [vmem:[%s1363 + $0x10] sm:$0xff]
        %v1367 = vld [vmem:[%s1363 + $0x18] sm:$0xff]
        %v1369 = vsel %vm440, %v1347, 0
        %v1372 = vsel %vm440, %v1348, 0
        %v1375 = vsel %vm440, %v1349, 0
        %v1378 = vsel %vm440, %v1350, 0
        %v1381 = vsel %vm440, %v1351, 0
        %v1384 = vsel %vm440, %v1352, 0
        %v1387 = vsel %vm440, %v1353, 0
        %v1390 = vsel %vm440, %v1354, 0
        %v1393 = vsel %vm440, %v1355, 0
        %v1396 = vsel %vm440, %v1356, 0
        %v1399 = vsel %vm440, %v1357, 0
        %v1402 = vsel %vm440, %v1358, 0
        %v1405 = vsel %vm440, %v1359, 0
        %v1408 = vsel %vm440, %v1360, 0
        %v1411 = vsel %vm440, %v1361, 0
        %v1414 = vsel %vm440, %v1362, 0
        %1416 = vmatprep.subr.mxu0 0.0
        %1417 = vmatpush1.msra.mxu0 %v1364
        %1418 = vmatprep.subr.mxu0 0.0
        %1419 = vmatpush1.msra.mxu0 %v1365
        %1420 = vmatprep.subr.mxu0 0.0
        %1421 = vmatpush1.msra.mxu0 %v1366
        %1422 = vmatprep.subr.mxu0 0.0
        %1423 = vmatpush1.msra.mxu0 %v1367
        %1424 = vmatprep.subr.mxu0 0.0
        %1425 = vmatpush1.msra.mxu0 0.0
        %1426 = vmatprep.subr.mxu0 0.0
        %1427 = vmatpush1.msra.mxu0 0.0
        %1428 = vmatprep.subr.mxu0 0.0
        %1429 = vmatpush1.msra.mxu0 0.0
        %1430 = vmatprep.subr.mxu0 0.0
        %1431 = vmatpush1.msra.mxu0 0.0
        %1432 = vmatprep.subr.mxu0 0.0
        %1433 = vmatpush1.msra.mxu0 0.0
        %1434 = vmatprep.subr.mxu0 0.0
        %1435 = vmatpush1.msra.mxu0 0.0
        %1436 = vmatprep.subr.mxu0 0.0
        %1437 = vmatpush1.msra.mxu0 0.0
        %1438 = vmatprep.subr.mxu0 0.0
        %1439 = vmatpush1.msra.mxu0 0.0
        %1440 = vmatprep.subr.mxu0 0.0
        %1441 = vmatpush1.msra.mxu0 0.0
        %1442 = vmatprep.subr.mxu0 0.0
        %1443 = vmatpush1.msra.mxu0 0.0
        %1444 = vmatprep.subr.mxu0 0.0
        %1445 = vmatpush1.msra.mxu0 0.0
        %1446 = vmatprep.subr.mxu0 0.0
        %1447 = vmatpush1.msra.mxu0 0.0
        %1448 = vmatprep.subr.mxu0 0.0
        %1449 = vmatpush1.msra.mxu0 0.0
        %1450 = vmatprep.subr.mxu0 0.0
        %1451 = vmatpush1.msra.mxu0 0.0
        %1452 = vmatprep.subr.mxu0 0.0
        %1453 = vmatpush1.msra.mxu0 0.0
        %1454 = vmatprep.subr.mxu0 0.0
        %1455 = vmatpush1.msra.mxu0 0.0
        %1456 = vmatprep.subr.mxu0 0.0
        %1457 = vmatpush1.msra.mxu0 0.0
        %1458 = vmatprep.subr.mxu0 0.0
        %1459 = vmatpush1.msra.mxu0 0.0
        %1460 = vmatprep.subr.mxu0 0.0
        %1461 = vmatpush1.msra.mxu0 0.0
        %1462 = vmatprep.subr.mxu0 0.0
        %1463 = vmatpush1.msra.mxu0 0.0
        %1464 = vmatprep.subr.mxu0 0.0
        %1465 = vmatpush1.msra.mxu0 0.0
        %1466 = vmatprep.subr.mxu0 0.0
        %1467 = vmatpush1.msra.mxu0 0.0
        %1468 = vmatprep.subr.mxu0 0.0
        %1469 = vmatpush1.msra.mxu0 0.0
        %1470 = vmatprep.subr.mxu0 0.0
        %1471 = vmatpush1.msra.mxu0 0.0
        %1472 = vmatprep.subr.mxu0 0.0
        %1473 = vmatpush1.msra.mxu0 0.0
        %1474 = vmatprep.subr.mxu0 0.0
        %1475 = vmatpush1.msra.mxu0 0.0
        %1476 = vmatprep.subr.mxu0 0.0
        %1477 = vmatpush1.msra.mxu0 0.0
        %1478 = vmatprep.subr.mxu0 0.0
        %1479 = vmatpush1.msra.mxu0 0.0
        %1480 = vmatprep.mubr.f32.mxu0 0.0
        %1481 = vmatmul.mubr.f32.gmra.mrb[0].mxu0 %v1369
        %v1482 = vpop.f32.mrb[0].mxu0
        %v1483 = vadd.f32 0.0, %v1482
        %v1484 = vpop.f32.mrb[0].mxu0
        %1485 = vmatprep.mubr.f32.mxu0 0.0
        %1486 = vmatmul.mubr.f32.gmra.mrb[0].mxu0 %v1372
        %v1487 = vpop.f32.mrb[0].mxu0
        %v1488 = vadd.f32 0.0, %v1487
        %v1489 = vpop.f32.mrb[0].mxu0
        %1490 = vmatprep.mubr.f32.mxu0 0.0
        %1491 = vmatmul.mubr.f32.gmra.mrb[0].mxu0 %v1375
        %v1492 = vpop.f32.mrb[0].mxu0
        %v1493 = vadd.f32 0.0, %v1492
        %v1494 = vpop.f32.mrb[0].mxu0
        %1495 = vmatprep.mubr.f32.mxu0 0.0
        %1496 = vmatmul.mubr.f32.gmra.mrb[0].mxu0 %v1378
        %v1497 = vpop.f32.mrb[0].mxu0
        %v1498 = vadd.f32 0.0, %v1497
        %v1499 = vpop.f32.mrb[0].mxu0
        %1500 = vmatprep.mubr.f32.mxu0 0.0
        %1501 = vmatmul.mubr.f32.gmra.mrb[0].mxu0 %v1381
        %v1502 = vpop.f32.mrb[0].mxu0
        %v1503 = vadd.f32 0.0, %v1502
        %v1504 = vpop.f32.mrb[0].mxu0
        %1505 = vmatprep.mubr.f32.mxu0 0.0
        %1506 = vmatmul.mubr.f32.gmra.mrb[0].mxu0 %v1384
        %v1507 = vpop.f32.mrb[0].mxu0
        %v1508 = vadd.f32 0.0, %v1507
        %v1509 = vpop.f32.mrb[0].mxu0
        %1510 = vmatprep.mubr.f32.mxu0 0.0
        %1511 = vmatmul.mubr.f32.gmra.mrb[0].mxu0 %v1387
        %v1512 = vpop.f32.mrb[0].mxu0
        %v1513 = vadd.f32 0.0, %v1512
        %v1514 = vpop.f32.mrb[0].mxu0
        %1515 = vmatprep.mubr.f32.mxu0 0.0
        %1516 = vmatmul.mubr.f32.gmra.mrb[0].mxu0 %v1390
        %v1517 = vpop.f32.mrb[0].mxu0
        %v1518 = vadd.f32 0.0, %v1517
        %v1519 = vpop.f32.mrb[0].mxu0
        %1520 = vmatprep.mubr.f32.mxu0 0.0
        %1521 = vmatmul.mubr.f32.gmra.mrb[0].mxu0 %v1393
        %v1522 = vpop.f32.mrb[0].mxu0
        %v1523 = vadd.f32 0.0, %v1522
        %v1524 = vpop.f32.mrb[0].mxu0
        %1525 = vmatprep.mubr.f32.mxu0 0.0
        %1526 = vmatmul.mubr.f32.gmra.mrb[0].mxu0 %v1396
        %v1527 = vpop.f32.mrb[0].mxu0
        %v1528 = vadd.f32 0.0, %v1527
        %v1529 = vpop.f32.mrb[0].mxu0
        %1530 = vmatprep.mubr.f32.mxu0 0.0
        %1531 = vmatmul.mubr.f32.gmra.mrb[0].mxu0 %v1399
        %v1532 = vpop.f32.mrb[0].mxu0
        %v1533 = vadd.f32 0.0, %v1532
        %v1534 = vpop.f32.mrb[0].mxu0
        %1535 = vmatprep.mubr.f32.mxu0 0.0
        %1536 = vmatmul.mubr.f32.gmra.mrb[0].mxu0 %v1402
        %v1537 = vpop.f32.mrb[0].mxu0
        %v1538 = vadd.f32 0.0, %v1537
        %v1539 = vpop.f32.mrb[0].mxu0
        %1540 = vmatprep.mubr.f32.mxu0 0.0
        %1541 = vmatmul.mubr.f32.gmra.mrb[0].mxu0 %v1405
        %v1542 = vpop.f32.mrb[0].mxu0
        %v1543 = vadd.f32 0.0, %v1542
        %v1544 = vpop.f32.mrb[0].mxu0
        %1545 = vmatprep.mubr.f32.mxu0 0.0
        %1546 = vmatmul.mubr.f32.gmra.mrb[0].mxu0 %v1408
        %v1547 = vpop.f32.mrb[0].mxu0
        %v1548 = vadd.f32 0.0, %v1547
        %v1549 = vpop.f32.mrb[0].mxu0
        %1550 = vmatprep.mubr.f32.mxu0 0.0
        %1551 = vmatmul.mubr.f32.gmra.mrb[0].mxu0 %v1411
        %v1552 = vpop.f32.mrb[0].mxu0
        %v1553 = vadd.f32 0.0, %v1552
        %v1554 = vpop.f32.mrb[0].mxu0
        %1555 = vmatprep.mubr.f32.mxu0 0.0
        %1556 = vmatmul.mubr.f32.gmra.mrb[0].mxu0 %v1414
        %v1557 = vpop.f32.mrb[0].mxu0
        %v1558 = vadd.f32 0.0, %v1557
        %v1559 = vpop.f32.mrb[0].mxu0
        %1560 = vdwg.mxu0
        %v1561 = vadd.f32 %v1329, %v1483
        %v1562 = vadd.f32 %v1330, %v1488
        %v1563 = vadd.f32 %v1331, %v1493
        %v1564 = vadd.f32 %v1332, %v1498
        %v1565 = vadd.f32 %v1333, %v1503
        %v1566 = vadd.f32 %v1334, %v1508
        %v1567 = vadd.f32 %v1335, %v1513
        %v1568 = vadd.f32 %v1336, %v1518
        %v1569 = vadd.f32 %v1337, %v1523
        %v1570 = vadd.f32 %v1338, %v1528
        %v1571 = vadd.f32 %v1339, %v1533
        %v1572 = vadd.f32 %v1340, %v1538
        %v1573 = vadd.f32 %v1341, %v1543
        %v1574 = vadd.f32 %v1342, %v1548
        %v1575 = vadd.f32 %v1343, %v1553
        %v1576 = vadd.f32 %v1344, %v1558
        %v1577 = vtanh.pop %v1561
        %v1578 = vtanh.pop %v1562
        %v1579 = vtanh.pop %v1563
        %v1580 = vtanh.pop %v1564
        %v1581 = vtanh.pop %v1565
        %v1582 = vtanh.pop %v1566
        %v1583 = vtanh.pop %v1567
        %v1584 = vtanh.pop %v1568
        %v1585 = vtanh.pop %v1569
        %v1586 = vtanh.pop %v1570
        %v1587 = vtanh.pop %v1571
        %v1588 = vtanh.pop %v1572
        %v1589 = vtanh.pop %v1573
        %v1590 = vtanh.pop %v1574
        %v1591 = vtanh.pop %v1575
        %v1592 = vtanh.pop %v1576
        %v1593 = vxor.u32 %v1561, 2147483648
        %v1594 = vxor.u32 %v1562, 2147483648
        %v1595 = vxor.u32 %v1563, 2147483648
        %v1596 = vxor.u32 %v1564, 2147483648
        %v1597 = vxor.u32 %v1565, 2147483648
        %v1598 = vxor.u32 %v1566, 2147483648
        %v1599 = vxor.u32 %v1567, 2147483648
        %v1600 = vxor.u32 %v1568, 2147483648
        %v1601 = vxor.u32 %v1569, 2147483648
        %v1602 = vxor.u32 %v1570, 2147483648
        %v1603 = vxor.u32 %v1571, 2147483648
        %v1604 = vxor.u32 %v1572, 2147483648
        %v1605 = vxor.u32 %v1573, 2147483648
        %v1606 = vxor.u32 %v1574, 2147483648
        %v1607 = vxor.u32 %v1575, 2147483648
        %v1608 = vxor.u32 %v1576, 2147483648
        %v1609 = vmul.f32 %v1593, 1.442695
        %v1610 = vpow.pop %v1609
        %v1611 = vmul.f32 %v1594, 1.442695
        %v1612 = vpow.pop %v1611
        %v1613 = vmul.f32 %v1595, 1.442695
        %v1614 = vpow.pop %v1613
        %v1615 = vmul.f32 %v1596, 1.442695
        %v1616 = vpow.pop %v1615
        %v1617 = vmul.f32 %v1597, 1.442695
        %v1618 = vpow.pop %v1617
        %v1619 = vmul.f32 %v1598, 1.442695
        %v1620 = vpow.pop %v1619
        %v1621 = vmul.f32 %v1599, 1.442695
        %v1622 = vpow.pop %v1621
        %v1623 = vmul.f32 %v1600, 1.442695
        %v1624 = vpow.pop %v1623
        %v1625 = vmul.f32 %v1601, 1.442695
        %v1626 = vpow.pop %v1625
        %v1627 = vmul.f32 %v1602, 1.442695
        %v1628 = vpow.pop %v1627
        %v1629 = vmul.f32 %v1603, 1.442695
        %v1630 = vpow.pop %v1629
        %v1631 = vmul.f32 %v1604, 1.442695
        %v1632 = vpow.pop %v1631
        %v1633 = vmul.f32 %v1605, 1.442695
        %v1634 = vpow.pop %v1633
        %v1635 = vmul.f32 %v1606, 1.442695
        %v1636 = vpow.pop %v1635
        %v1637 = vmul.f32 %v1607, 1.442695
        %v1638 = vpow.pop %v1637
        %v1639 = vmul.f32 %v1608, 1.442695
        %v1640 = vpow.pop %v1639
        %v1641 = vadd.f32 %v1610, 1.0
        %v1642 = vadd.f32 %v1612, 1.0
        %v1643 = vadd.f32 %v1614, 1.0
        %v1644 = vadd.f32 %v1616, 1.0
        %v1645 = vadd.f32 %v1618, 1.0
        %v1646 = vadd.f32 %v1620, 1.0
        %v1647 = vadd.f32 %v1622, 1.0
        %v1648 = vadd.f32 %v1624, 1.0
        %v1649 = vadd.f32 %v1626, 1.0
        %v1650 = vadd.f32 %v1628, 1.0
        %v1651 = vadd.f32 %v1630, 1.0
        %v1652 = vadd.f32 %v1632, 1.0
        %v1653 = vadd.f32 %v1634, 1.0
        %v1654 = vadd.f32 %v1636, 1.0
        %v1655 = vadd.f32 %v1638, 1.0
        %v1656 = vadd.f32 %v1640, 1.0
        %v1657 = vrcp.pop %v1641
        %v1658 = vmul.f32 1.0, %v1657
        %v1659 = vrcp.pop %v1642
        %v1660 = vmul.f32 1.0, %v1659
        %v1661 = vrcp.pop %v1643
        %v1662 = vmul.f32 1.0, %v1661
        %v1663 = vrcp.pop %v1644
        %v1664 = vmul.f32 1.0, %v1663
        %v1665 = vrcp.pop %v1645
        %v1666 = vmul.f32 1.0, %v1665
        %v1667 = vrcp.pop %v1646
        %v1668 = vmul.f32 1.0, %v1667
        %v1669 = vrcp.pop %v1647
        %v1670 = vmul.f32 1.0, %v1669
        %v1671 = vrcp.pop %v1648
        %v1672 = vmul.f32 1.0, %v1671
        %v1673 = vrcp.pop %v1649
        %v1674 = vmul.f32 1.0, %v1673
        %v1675 = vrcp.pop %v1650
        %v1676 = vmul.f32 1.0, %v1675
        %v1677 = vrcp.pop %v1651
        %v1678 = vmul.f32 1.0, %v1677
        %v1679 = vrcp.pop %v1652
        %v1680 = vmul.f32 1.0, %v1679
        %v1681 = vrcp.pop %v1653
        %v1682 = vmul.f32 1.0, %v1681
        %v1683 = vrcp.pop %v1654
        %v1684 = vmul.f32 1.0, %v1683
        %v1685 = vrcp.pop %v1655
        %v1686 = vmul.f32 1.0, %v1685
        %v1687 = vrcp.pop %v1656
        %v1688 = vmul.f32 1.0, %v1687
        %1705 = vrot.lane.b32.xlu0 %v1658, 96
        %v1706 = vpop.permute.xlu0 %1705
        %1707 = vrot.lane.b32.xlu0 %v1660, 96
        %v1708 = vpop.permute.xlu0 %1707
        %1709 = vrot.lane.b32.xlu0 %v1662, 96
        %v1710 = vpop.permute.xlu0 %1709
        %1711 = vrot.lane.b32.xlu0 %v1664, 96
        %v1712 = vpop.permute.xlu0 %1711
        %1713 = vrot.lane.b32.xlu0 %v1666, 96
        %v1714 = vpop.permute.xlu0 %1713
        %1715 = vrot.lane.b32.xlu0 %v1668, 96
        %v1716 = vpop.permute.xlu0 %1715
        %1717 = vrot.lane.b32.xlu0 %v1670, 96
        %v1718 = vpop.permute.xlu0 %1717
        %1719 = vrot.lane.b32.xlu0 %v1672, 96
        %v1720 = vpop.permute.xlu0 %1719
        %1721 = vrot.lane.b32.xlu0 %v1674, 96
        %v1722 = vpop.permute.xlu0 %1721
        %1723 = vrot.lane.b32.xlu0 %v1676, 96
        %v1724 = vpop.permute.xlu0 %1723
        %1725 = vrot.lane.b32.xlu0 %v1678, 96
        %v1726 = vpop.permute.xlu0 %1725
        %1727 = vrot.lane.b32.xlu0 %v1680, 96
        %v1728 = vpop.permute.xlu0 %1727
        %1729 = vrot.lane.b32.xlu0 %v1682, 96
        %v1730 = vpop.permute.xlu0 %1729
        %1731 = vrot.lane.b32.xlu0 %v1684, 96
        %v1732 = vpop.permute.xlu0 %1731
        %1733 = vrot.lane.b32.xlu0 %v1686, 96
        %v1734 = vpop.permute.xlu0 %1733
        %1735 = vrot.lane.b32.xlu0 %v1688, 96
        %v1736 = vpop.permute.xlu0 %1735
        %v1753 = vmul.f32 %v1577, %v1706
        %v1754 = vmul.f32 %v1578, %v1708
        %v1755 = vmul.f32 %v1579, %v1710
        %v1756 = vmul.f32 %v1580, %v1712
        %v1757 = vmul.f32 %v1581, %v1714
        %v1758 = vmul.f32 %v1582, %v1716
        %v1759 = vmul.f32 %v1583, %v1718
        %v1760 = vmul.f32 %v1584, %v1720
        %v1761 = vmul.f32 %v1585, %v1722
        %v1762 = vmul.f32 %v1586, %v1724
        %v1763 = vmul.f32 %v1587, %v1726
        %v1764 = vmul.f32 %v1588, %v1728
        %v1765 = vmul.f32 %v1589, %v1730
        %v1766 = vmul.f32 %v1590, %v1732
        %v1767 = vmul.f32 %v1591, %v1734
        %v1768 = vmul.f32 %v1592, %v1736
        %v1769 = vld [vmem:[%s5] sm:$0xff]
        %v1770 = vld [vmem:[%s5 + $0x8] sm:$0xff]
        %v1771 = vld [vmem:[%s5 + $0x10] sm:$0xff]
        %v1772 = vld [vmem:[%s5 + $0x18] sm:$0xff]
        %v1773 = vld [vmem:[%s6] sm:$0x1]
        %v1775 = vlaneseq
        %v1776 = vshrl.u32 %v1775, 7
        %v1777 = vsub.s32 0, %v1776
        %v1778 = vrot.slane %v1773, %v1777
        %v1781 = vsel %vm440, %v1753, 0
        %v1784 = vsel %vm440, %v1754, 0
        %v1787 = vsel %vm440, %v1755, 0
        %v1790 = vsel %vm440, %v1756, 0
        %v1793 = vsel %vm440, %v1757, 0
        %v1796 = vsel %vm440, %v1758, 0
        %v1799 = vsel %vm440, %v1759, 0
        %v1802 = vsel %vm440, %v1760, 0
        %v1805 = vsel %vm440, %v1761, 0
        %v1808 = vsel %vm440, %v1762, 0
        %v1811 = vsel %vm440, %v1763, 0
        %v1814 = vsel %vm440, %v1764, 0
        %v1817 = vsel %vm440, %v1765, 0
        %v1820 = vsel %vm440, %v1766, 0
        %v1823 = vsel %vm440, %v1767, 0
        %v1826 = vsel %vm440, %v1768, 0
        %1828 = vmatprep.subr.mxu0 0.0
        %1829 = vmatpush1.msra.mxu0 %v1769
        %1830 = vmatprep.subr.mxu0 0.0
        %1831 = vmatpush1.msra.mxu0 %v1770
        %1832 = vmatprep.subr.mxu0 0.0
        %1833 = vmatpush1.msra.mxu0 %v1771
        %1834 = vmatprep.subr.mxu0 0.0
        %1835 = vmatpush1.msra.mxu0 %v1772
        %1836 = vmatprep.subr.mxu0 0.0
        %1837 = vmatpush1.msra.mxu0 0.0
        %1838 = vmatprep.subr.mxu0 0.0
        %1839 = vmatpush1.msra.mxu0 0.0
        %1840 = vmatprep.subr.mxu0 0.0
        %1841 = vmatpush1.msra.mxu0 0.0
        %1842 = vmatprep.subr.mxu0 0.0
        %1843 = vmatpush1.msra.mxu0 0.0
        %1844 = vmatprep.subr.mxu0 0.0
        %1845 = vmatpush1.msra.mxu0 0.0
        %1846 = vmatprep.subr.mxu0 0.0
        %1847 = vmatpush1.msra.mxu0 0.0
        %1848 = vmatprep.subr.mxu0 0.0
        %1849 = vmatpush1.msra.mxu0 0.0
        %1850 = vmatprep.subr.mxu0 0.0
        %1851 = vmatpush1.msra.mxu0 0.0
        %1852 = vmatprep.subr.mxu0 0.0
        %1853 = vmatpush1.msra.mxu0 0.0
        %1854 = vmatprep.subr.mxu0 0.0
        %1855 = vmatpush1.msra.mxu0 0.0
        %1856 = vmatprep.subr.mxu0 0.0
        %1857 = vmatpush1.msra.mxu0 0.0
        %1858 = vmatprep.subr.mxu0 0.0
        %1859 = vmatpush1.msra.mxu0 0.0
        %1860 = vmatprep.subr.mxu0 0.0
        %1861 = vmatpush1.msra.mxu0 0.0
        %1862 = vmatprep.subr.mxu0 0.0
        %1863 = vmatpush1.msra.mxu0 0.0
        %1864 = vmatprep.subr.mxu0 0.0
        %1865 = vmatpush1.msra.mxu0 0.0
        %1866 = vmatprep.subr.mxu0 0.0
        %1867 = vmatpush1.msra.mxu0 0.0
        %1868 = vmatprep.subr.mxu0 0.0
        %1869 = vmatpush1.msra.mxu0 0.0
        %1870 = vmatprep.subr.mxu0 0.0
        %1871 = vmatpush1.msra.mxu0 0.0
        %1872 = vmatprep.subr.mxu0 0.0
        %1873 = vmatpush1.msra.mxu0 0.0
        %1874 = vmatprep.subr.mxu0 0.0
        %1875 = vmatpush1.msra.mxu0 0.0
        %1876 = vmatprep.subr.mxu0 0.0
        %1877 = vmatpush1.msra.mxu0 0.0
        %1878 = vmatprep.subr.mxu0 0.0
        %1879 = vmatpush1.msra.mxu0 0.0
        %1880 = vmatprep.subr.mxu0 0.0
        %1881 = vmatpush1.msra.mxu0 0.0
        %1882 = vmatprep.subr.mxu0 0.0
        %1883 = vmatpush1.msra.mxu0 0.0
        %1884 = vmatprep.subr.mxu0 0.0
        %1885 = vmatpush1.msra.mxu0 0.0
        %1886 = vmatprep.subr.mxu0 0.0
        %1887 = vmatpush1.msra.mxu0 0.0
        %1888 = vmatprep.subr.mxu0 0.0
        %1889 = vmatpush1.msra.mxu0 0.0
        %1890 = vmatprep.subr.mxu0 0.0
        %1891 = vmatpush1.msra.mxu0 0.0
        %1892 = vmatprep.mubr.f32.mxu0 0.0
        %1893 = vmatmul.mubr.f32.gmra.mrb[0].mxu0 %v1781
        %v1894 = vpop.f32.mrb[0].mxu0
        %v1895 = vadd.f32 %v1778, %v1894
        %v1896 = vpop.f32.mrb[0].mxu0
        %1897 = vmatprep.mubr.f32.mxu0 0.0
        %1898 = vmatmul.mubr.f32.gmra.mrb[0].mxu0 %v1784
        %v1899 = vpop.f32.mrb[0].mxu0
        %v1900 = vadd.f32 %v1778, %v1899
        %v1901 = vpop.f32.mrb[0].mxu0
        %1902 = vmatprep.mubr.f32.mxu0 0.0
        %1903 = vmatmul.mubr.f32.gmra.mrb[0].mxu0 %v1787
        %v1904 = vpop.f32.mrb[0].mxu0
        %v1905 = vadd.f32 %v1778, %v1904
        %v1906 = vpop.f32.mrb[0].mxu0
        %1907 = vmatprep.mubr.f32.mxu0 0.0
        %1908 = vmatmul.mubr.f32.gmra.mrb[0].mxu0 %v1790
        %v1909 = vpop.f32.mrb[0].mxu0
        %v1910 = vadd.f32 %v1778, %v1909
        %v1911 = vpop.f32.mrb[0].mxu0
        %1912 = vmatprep.mubr.f32.mxu0 0.0
        %1913 = vmatmul.mubr.f32.gmra.mrb[0].mxu0 %v1793
        %v1914 = vpop.f32.mrb[0].mxu0
        %v1915 = vadd.f32 %v1778, %v1914
        %v1916 = vpop.f32.mrb[0].mxu0
        %1917 = vmatprep.mubr.f32.mxu0 0.0
        %1918 = vmatmul.mubr.f32.gmra.mrb[0].mxu0 %v1796
        %v1919 = vpop.f32.mrb[0].mxu0
        %v1920 = vadd.f32 %v1778, %v1919
        %v1921 = vpop.f32.mrb[0].mxu0
        %1922 = vmatprep.mubr.f32.mxu0 0.0
        %1923 = vmatmul.mubr.f32.gmra.mrb[0].mxu0 %v1799
        %v1924 = vpop.f32.mrb[0].mxu0
        %v1925 = vadd.f32 %v1778, %v1924
        %v1926 = vpop.f32.mrb[0].mxu0
        %1927 = vmatprep.mubr.f32.mxu0 0.0
        %1928 = vmatmul.mubr.f32.gmra.mrb[0].mxu0 %v1802
        %v1929 = vpop.f32.mrb[0].mxu0
        %v1930 = vadd.f32 %v1778, %v1929
        %v1931 = vpop.f32.mrb[0].mxu0
        %1932 = vmatprep.mubr.f32.mxu0 0.0
        %1933 = vmatmul.mubr.f32.gmra.mrb[0].mxu0 %v1805
        %v1934 = vpop.f32.mrb[0].mxu0
        %v1935 = vadd.f32 %v1778, %v1934
        %v1936 = vpop.f32.mrb[0].mxu0
        %1937 = vmatprep.mubr.f32.mxu0 0.0
        %1938 = vmatmul.mubr.f32.gmra.mrb[0].mxu0 %v1808
        %v1939 = vpop.f32.mrb[0].mxu0
        %v1940 = vadd.f32 %v1778, %v1939
        %v1941 = vpop.f32.mrb[0].mxu0
        %1942 = vmatprep.mubr.f32.mxu0 0.0
        %1943 = vmatmul.mubr.f32.gmra.mrb[0].mxu0 %v1811
        %v1944 = vpop.f32.mrb[0].mxu0
        %v1945 = vadd.f32 %v1778, %v1944
        %v1946 = vpop.f32.mrb[0].mxu0
        %1947 = vmatprep.mubr.f32.mxu0 0.0
        %1948 = vmatmul.mubr.f32.gmra.mrb[0].mxu0 %v1814
        %v1949 = vpop.f32.mrb[0].mxu0
        %v1950 = vadd.f32 %v1778, %v1949
        %v1951 = vpop.f32.mrb[0].mxu0
        %1952 = vmatprep.mubr.f32.mxu0 0.0
        %1953 = vmatmul.mubr.f32.gmra.mrb[0].mxu0 %v1817
        %v1954 = vpop.f32.mrb[0].mxu0
        %v1955 = vadd.f32 %v1778, %v1954
        %v1956 = vpop.f32.mrb[0].mxu0
        %1957 = vmatprep.mubr.f32.mxu0 0.0
        %1958 = vmatmul.mubr.f32.gmra.mrb[0].mxu0 %v1820
        %v1959 = vpop.f32.mrb[0].mxu0
        %v1960 = vadd.f32 %v1778, %v1959
        %v1961 = vpop.f32.mrb[0].mxu0
        %1962 = vmatprep.mubr.f32.mxu0 0.0
        %1963 = vmatmul.mubr.f32.gmra.mrb[0].mxu0 %v1823
        %v1964 = vpop.f32.mrb[0].mxu0
        %v1965 = vadd.f32 %v1778, %v1964
        %v1966 = vpop.f32.mrb[0].mxu0
        %1967 = vmatprep.mubr.f32.mxu0 0.0
        %1968 = vmatmul.mubr.f32.gmra.mrb[0].mxu0 %v1826
        %v1969 = vpop.f32.mrb[0].mxu0
        %v1970 = vadd.f32 %v1778, %v1969
        %v1971 = vpop.f32.mrb[0].mxu0
        %1972 = vdwg.mxu0
        %s1973 = sld [smem:[#allocation2 + %s25]]
        %v1974 = vlaneseq
        %v1975 = vshrl.u32 %v1974, 7
        %v1976 = vadd.s32 %v1975, 8
        %v1977 = vadd.s32 %v1975, 16
        %v1978 = vadd.s32 %v1975, 24
        %v1979 = vadd.s32 %v1975, 32
        %v1980 = vadd.s32 %v1975, 40
        %v1981 = vadd.s32 %v1975, 48
        %v1982 = vadd.s32 %v1975, 56
        %v1983 = vadd.s32 %v1975, 64
        %v1984 = vadd.s32 %v1975, 72
        %v1985 = vadd.s32 %v1975, 80
        %v1986 = vadd.s32 %v1975, 88
        %v1987 = vadd.s32 %v1975, 96
        %v1988 = vadd.s32 %v1975, 104
        %v1989 = vadd.s32 %v1975, 112
        %v1990 = vadd.s32 %v1975, 120
        %v1991 = vstv %s408
        %v1992 = vadd.s32 %v1991, %v1975
        %v1993 = vadd.s32 %v1991, %v1976
        %v1994 = vadd.s32 %v1991, %v1977
        %v1995 = vadd.s32 %v1991, %v1978
        %v1996 = vadd.s32 %v1991, %v1979
        %v1997 = vadd.s32 %v1991, %v1980
        %v1998 = vadd.s32 %v1991, %v1981
        %v1999 = vadd.s32 %v1991, %v1982
        %v2000 = vadd.s32 %v1991, %v1983
        %v2001 = vadd.s32 %v1991, %v1984
        %v2002 = vadd.s32 %v1991, %v1985
        %v2003 = vadd.s32 %v1991, %v1986
        %v2004 = vadd.s32 %v1991, %v1987
        %v2005 = vadd.s32 %v1991, %v1988
        %v2006 = vadd.s32 %v1991, %v1989
        %v2007 = vadd.s32 %v1991, %v1990
        %vm2008 = vcmp.ge.s32.totalorder %v1992, 0
        %vm2009 = vcmp.ge.s32.totalorder %v1993, 0
        %vm2010 = vcmp.ge.s32.totalorder %v1994, 0
        %vm2011 = vcmp.ge.s32.totalorder %v1995, 0
        %vm2012 = vcmp.ge.s32.totalorder %v1996, 0
        %vm2013 = vcmp.ge.s32.totalorder %v1997, 0
        %vm2014 = vcmp.ge.s32.totalorder %v1998, 0
        %vm2015 = vcmp.ge.s32.totalorder %v1999, 0
        %vm2016 = vcmp.ge.s32.totalorder %v2000, 0
        %vm2017 = vcmp.ge.s32.totalorder %v2001, 0
        %vm2018 = vcmp.ge.s32.totalorder %v2002, 0
        %vm2019 = vcmp.ge.s32.totalorder %v2003, 0
        %vm2020 = vcmp.ge.s32.totalorder %v2004, 0
        %vm2021 = vcmp.ge.s32.totalorder %v2005, 0
        %vm2022 = vcmp.ge.s32.totalorder %v2006, 0
        %vm2023 = vcmp.ge.s32.totalorder %v2007, 0
        %v2024 = vstv %s1973
        %vm2025 = vcmp.lt.s32.totalorder %v1992, %v2024
        %vm2026 = vcmp.lt.s32.totalorder %v1993, %v2024
        %vm2027 = vcmp.lt.s32.totalorder %v1994, %v2024
        %vm2028 = vcmp.lt.s32.totalorder %v1995, %v2024
        %vm2029 = vcmp.lt.s32.totalorder %v1996, %v2024
        %vm2030 = vcmp.lt.s32.totalorder %v1997, %v2024
        %vm2031 = vcmp.lt.s32.totalorder %v1998, %v2024
        %vm2032 = vcmp.lt.s32.totalorder %v1999, %v2024
        %vm2033 = vcmp.lt.s32.totalorder %v2000, %v2024
        %vm2034 = vcmp.lt.s32.totalorder %v2001, %v2024
        %vm2035 = vcmp.lt.s32.totalorder %v2002, %v2024
        %vm2036 = vcmp.lt.s32.totalorder %v2003, %v2024
        %vm2037 = vcmp.lt.s32.totalorder %v2004, %v2024
        %vm2038 = vcmp.lt.s32.totalorder %v2005, %v2024
        %vm2039 = vcmp.lt.s32.totalorder %v2006, %v2024
        %vm2040 = vcmp.lt.s32.totalorder %v2007, %v2024
        %vm2041 = vmand %vm2008, %vm2025
        %vm2042 = vmand %vm2009, %vm2026
        %vm2043 = vmand %vm2010, %vm2027
        %vm2044 = vmand %vm2011, %vm2028
        %vm2045 = vmand %vm2012, %vm2029
        %vm2046 = vmand %vm2013, %vm2030
        %vm2047 = vmand %vm2014, %vm2031
        %vm2048 = vmand %vm2015, %vm2032
        %vm2049 = vmand %vm2016, %vm2033
        %vm2050 = vmand %vm2017, %vm2034
        %vm2051 = vmand %vm2018, %vm2035
        %vm2052 = vmand %vm2019, %vm2036
        %vm2053 = vmand %vm2020, %vm2037
        %vm2054 = vmand %vm2021, %vm2038
        %vm2055 = vmand %vm2022, %vm2039
        %vm2056 = vmand %vm2023, %vm2040
        %v2057 = vsel %vm2041, 1, 0
        %v2058 = vsel %vm2042, 1, 0
        %v2059 = vsel %vm2043, 1, 0
        %v2060 = vsel %vm2044, 1, 0
        %v2061 = vsel %vm2045, 1, 0
        %v2062 = vsel %vm2046, 1, 0
        %v2063 = vsel %vm2047, 1, 0
        %v2064 = vsel %vm2048, 1, 0
        %v2065 = vsel %vm2049, 1, 0
        %v2066 = vsel %vm2050, 1, 0
        %v2067 = vsel %vm2051, 1, 0
        %v2068 = vsel %vm2052, 1, 0
        %v2069 = vsel %vm2053, 1, 0
        %v2070 = vsel %vm2054, 1, 0
        %v2071 = vsel %vm2055, 1, 0
        %v2072 = vsel %vm2056, 1, 0
        %v2073 = vcvt.s32.f32 %v2057
        %v2074 = vcvt.s32.f32 %v2058
        %v2075 = vcvt.s32.f32 %v2059
        %v2076 = vcvt.s32.f32 %v2060
        %v2077 = vcvt.s32.f32 %v2061
        %v2078 = vcvt.s32.f32 %v2062
        %v2079 = vcvt.s32.f32 %v2063
        %v2080 = vcvt.s32.f32 %v2064
        %v2081 = vcvt.s32.f32 %v2065
        %v2082 = vcvt.s32.f32 %v2066
        %v2083 = vcvt.s32.f32 %v2067
        %v2084 = vcvt.s32.f32 %v2068
        %v2085 = vcvt.s32.f32 %v2069
        %v2086 = vcvt.s32.f32 %v2070
        %v2087 = vcvt.s32.f32 %v2071
        %v2088 = vcvt.s32.f32 %v2072
        %v2089 = vadd.f32 %v883, %v1895
        %v2090 = vadd.f32 %v884, %v1900
        %v2091 = vadd.f32 %v885, %v1905
        %v2092 = vadd.f32 %v886, %v1910
        %v2093 = vadd.f32 %v887, %v1915
        %v2094 = vadd.f32 %v888, %v1920
        %v2095 = vadd.f32 %v889, %v1925
        %v2096 = vadd.f32 %v890, %v1930
        %v2097 = vadd.f32 %v891, %v1935
        %v2098 = vadd.f32 %v892, %v1940
        %v2099 = vadd.f32 %v893, %v1945
        %v2100 = vadd.f32 %v894, %v1950
        %v2101 = vadd.f32 %v895, %v1955
        %v2102 = vadd.f32 %v896, %v1960
        %v2103 = vadd.f32 %v897, %v1965
        %v2104 = vadd.f32 %v898, %v1970
        %v2105 = vmul.f32 %v2089, %v2073
        %v2106 = vmul.f32 %v2090, %v2074
        %v2107 = vmul.f32 %v2091, %v2075
        %v2108 = vmul.f32 %v2092, %v2076
        %v2109 = vmul.f32 %v2093, %v2077
        %v2110 = vmul.f32 %v2094, %v2078
        %v2111 = vmul.f32 %v2095, %v2079
        %v2112 = vmul.f32 %v2096, %v2080
        %v2113 = vmul.f32 %v2097, %v2081
        %v2114 = vmul.f32 %v2098, %v2082
        %v2115 = vmul.f32 %v2099, %v2083
        %v2116 = vmul.f32 %v2100, %v2084
        %v2117 = vmul.f32 %v2101, %v2085
        %v2118 = vmul.f32 %v2102, %v2086
        %v2119 = vmul.f32 %v2103, %v2087
        %v2120 = vmul.f32 %v2104, %v2088
        %2121 = vst.msk [vmem:[%s395] sm:$0xff] %vm440, %v2105
        %2122 = vst.msk [vmem:[%s395 + $0x8] sm:$0xff] %vm440, %v2106
        %2123 = vst.msk [vmem:[%s395 + $0x10] sm:$0xff] %vm440, %v2107
        %2124 = vst.msk [vmem:[%s395 + $0x18] sm:$0xff] %vm440, %v2108
        %2125 = vst.msk [vmem:[%s395 + $0x20] sm:$0xff] %vm440, %v2109
        %2126 = vst.msk [vmem:[%s395 + $0x28] sm:$0xff] %vm440, %v2110
        %2127 = vst.msk [vmem:[%s395 + $0x30] sm:$0xff] %vm440, %v2111
        %2128 = vst.msk [vmem:[%s395 + $0x38] sm:$0xff] %vm440, %v2112
        %2129 = vst.msk [vmem:[%s395 + $0x40] sm:$0xff] %vm440, %v2113
        %2130 = vst.msk [vmem:[%s395 + $0x48] sm:$0xff] %vm440, %v2114
        %2131 = vst.msk [vmem:[%s395 + $0x50] sm:$0xff] %vm440, %v2115
        %2132 = vst.msk [vmem:[%s395 + $0x58] sm:$0xff] %vm440, %v2116
        %2133 = vst.msk [vmem:[%s395 + $0x60] sm:$0xff] %vm440, %v2117
        %2134 = vst.msk [vmem:[%s395 + $0x68] sm:$0xff] %vm440, %v2118
        %2135 = vst.msk [vmem:[%s395 + $0x70] sm:$0xff] %vm440, %v2119
        %2136 = vst.msk [vmem:[%s395 + $0x78] sm:$0xff] %vm440, %v2120
        %v2137 = vld [vmem:[%s384] sm:$0xff]
        %v2138 = vld [vmem:[%s384 + $0x8] sm:$0xff]
        %v2139 = vld [vmem:[%s384 + $0x10] sm:$0xff]
        %v2140 = vld [vmem:[%s384 + $0x18] sm:$0xff]
        %v2141 = vld [vmem:[%s384 + $0x20] sm:$0xff]
        %v2142 = vld [vmem:[%s384 + $0x28] sm:$0xff]
        %v2143 = vld [vmem:[%s384 + $0x30] sm:$0xff]
        %v2144 = vld [vmem:[%s384 + $0x38] sm:$0xff]
        %v2145 = vld [vmem:[%s384 + $0x40] sm:$0xff]
        %v2146 = vld [vmem:[%s384 + $0x48] sm:$0xff]
        %v2147 = vld [vmem:[%s384 + $0x50] sm:$0xff]
        %v2148 = vld [vmem:[%s384 + $0x58] sm:$0xff]
        %v2149 = vld [vmem:[%s384 + $0x60] sm:$0xff]
        %v2150 = vld [vmem:[%s384 + $0x68] sm:$0xff]
        %v2151 = vld [vmem:[%s384 + $0x70] sm:$0xff]
        %v2152 = vld [vmem:[%s384 + $0x78] sm:$0xff]
        %2169 = vrot.lane.b32.xlu0 %v1895, 96
        %v2170 = vpop.permute.xlu0 %2169
        %2171 = vrot.lane.b32.xlu0 %v1900, 96
        %v2172 = vpop.permute.xlu0 %2171
        %2173 = vrot.lane.b32.xlu0 %v1905, 96
        %v2174 = vpop.permute.xlu0 %2173
        %2175 = vrot.lane.b32.xlu0 %v1910, 96
        %v2176 = vpop.permute.xlu0 %2175
        %2177 = vrot.lane.b32.xlu0 %v1915, 96
        %v2178 = vpop.permute.xlu0 %2177
        %2179 = vrot.lane.b32.xlu0 %v1920, 96
        %v2180 = vpop.permute.xlu0 %2179
        %2181 = vrot.lane.b32.xlu0 %v1925, 96
        %v2182 = vpop.permute.xlu0 %2181
        %2183 = vrot.lane.b32.xlu0 %v1930, 96
        %v2184 = vpop.permute.xlu0 %2183
        %2185 = vrot.lane.b32.xlu0 %v1935, 96
        %v2186 = vpop.permute.xlu0 %2185
        %2187 = vrot.lane.b32.xlu0 %v1940, 96
        %v2188 = vpop.permute.xlu0 %2187
        %2189 = vrot.lane.b32.xlu0 %v1945, 96
        %v2190 = vpop.permute.xlu0 %2189
        %2191 = vrot.lane.b32.xlu0 %v1950, 96
        %v2192 = vpop.permute.xlu0 %2191
        %2193 = vrot.lane.b32.xlu0 %v1955, 96
        %v2194 = vpop.permute.xlu0 %2193
        %2195 = vrot.lane.b32.xlu0 %v1960, 96
        %v2196 = vpop.permute.xlu0 %2195
        %2197 = vrot.lane.b32.xlu0 %v1965, 96
        %v2198 = vpop.permute.xlu0 %2197
        %2199 = vrot.lane.b32.xlu0 %v1970, 96
        %v2200 = vpop.permute.xlu0 %2199
        %v2217 = vadd.f32 %v2137, %v2170
        %v2218 = vadd.f32 %v2138, %v2172
        %v2219 = vadd.f32 %v2139, %v2174
        %v2220 = vadd.f32 %v2140, %v2176
        %v2221 = vadd.f32 %v2141, %v2178
        %v2222 = vadd.f32 %v2142, %v2180
        %v2223 = vadd.f32 %v2143, %v2182
        %v2224 = vadd.f32 %v2144, %v2184
        %v2225 = vadd.f32 %v2145, %v2186
        %v2226 = vadd.f32 %v2146, %v2188
        %v2227 = vadd.f32 %v2147, %v2190
        %v2228 = vadd.f32 %v2148, %v2192
        %v2229 = vadd.f32 %v2149, %v2194
        %v2230 = vadd.f32 %v2150, %v2196
        %v2231 = vadd.f32 %v2151, %v2198
        %v2232 = vadd.f32 %v2152, %v2200
        %2233 = vst.msk [vmem:[%s406] sm:$0xff] %vm440, %v2217
        %2234 = vst.msk [vmem:[%s406 + $0x8] sm:$0xff] %vm440, %v2218
        %2235 = vst.msk [vmem:[%s406 + $0x10] sm:$0xff] %vm440, %v2219
        %2236 = vst.msk [vmem:[%s406 + $0x18] sm:$0xff] %vm440, %v2220
        %2237 = vst.msk [vmem:[%s406 + $0x20] sm:$0xff] %vm440, %v2221
        %2238 = vst.msk [vmem:[%s406 + $0x28] sm:$0xff] %vm440, %v2222
        %2239 = vst.msk [vmem:[%s406 + $0x30] sm:$0xff] %vm440, %v2223
        %2240 = vst.msk [vmem:[%s406 + $0x38] sm:$0xff] %vm440, %v2224
        %2241 = vst.msk [vmem:[%s406 + $0x40] sm:$0xff] %vm440, %v2225
        %2242 = vst.msk [vmem:[%s406 + $0x48] sm:$0xff] %vm440, %v2226
        %2243 = vst.msk [vmem:[%s406 + $0x50] sm:$0xff] %vm440, %v2227
        %2244 = vst.msk [vmem:[%s406 + $0x58] sm:$0xff] %vm440, %v2228
        %2245 = vst.msk [vmem:[%s406 + $0x60] sm:$0xff] %vm440, %v2229
        %2246 = vst.msk [vmem:[%s406 + $0x68] sm:$0xff] %vm440, %v2230
        %2247 = vst.msk [vmem:[%s406 + $0x70] sm:$0xff] %vm440, %v2231
        %2248 = vst.msk [vmem:[%s406 + $0x78] sm:$0xff] %vm440, %v2232
        %s2249 = sadd.s32 %s26, 1
        %s2250 = smul.u32 16, %s2249
        %p2251 = scmp.lt.s32.totalorder %s25, 1
        %s2252 = scalar_select %p2251, %s25, 1
        %p2253 = scmp.lt.s32.totalorder %s2250, 47
        %s2254 = scalar_select %p2253, %s2250, 47
        %s2255 = smul.addr %s2252, 48
        %s2256 = sadd.s32 %s2254, %s2255
        %s2257 = smul.addr %s2256, 8
        %s2258 = scalar_lea.vmem %s7, %s2257
        %s2259 = smul.u32 16, %s26
        %p2260 = scmp.lt.s32.totalorder %s25, 1
        %s2261 = scalar_select %p2260, %s25, 1
        %p2262 = scmp.lt.s32.totalorder %s2259, 15
        %s2263 = scalar_select %p2262, %s2259, 15
        %s2264 = smul.addr %s2261, 16
        %s2265 = sadd.s32 %s2263, %s2264
        %s2266 = smul.addr %s2265, 8
        %s2267 = scalar_lea.vmem %s8, %s2266
        // Predicated region
        $region53: #{posterior_encoder_forward.7} parent=47 // pred_check
          %p2268 = pneg %p214
        $region54: #{posterior_encoder_forward.7} parent=47 // pred_check_branch
          %2270 = sbr.rel (%p2268) target = $region56
        $region55: #{posterior_encoder_forward.7} parent=47 // pred_region
          %s2271 = sadd.s32 %s26, 1
          %s2272 = smul.u32 16, %s2271
        $region56: #{posterior_encoder_forward.7} parent=47 // pred_fallthru
          _
        // Predicated region
        $region57: #{posterior_encoder_forward.7} parent=47 // pred_check
          %p2273 = pneg %p242
        $region58: #{posterior_encoder_forward.7} parent=47 // pred_check_branch
          %2275 = sbr.rel (%p2273) target = $region60
        $region59: #{posterior_encoder_forward.7} parent=47 // pred_region
          %s2276 = smul.u32 16, %s26
        $region60: #{posterior_encoder_forward.7} parent=47 // pred_fallthru
          _
      $region48: #{posterior_encoder_forward.7} parent=5 // pred_fallthru
        _
      %p2277 = scmp.le.s32.totalorder 2, %s16
      // Predicated region
      $region61: #{posterior_encoder_forward.7} parent=5 // pred_check
        %p2278 = pneg %p2277
      $region62: #{posterior_encoder_forward.7} parent=5 // pred_check_branch
        %2280 = sbr.rel (%p2278) target = $region64
      $region63: #{posterior_encoder_forward.7} parent=5 // pred_region
        %s2281 = ssub.s32 %s16, 2
        // Predicated region
        $region65: #{posterior_encoder_forward.7} parent=63 // pred_check
          %p2282 = pneg %p220
        $region66: #{posterior_encoder_forward.7} parent=63 // pred_check_branch
          %2284 = sbr.rel (%p2282) target = $region68
        $region67: #{posterior_encoder_forward.7} parent=63 // pred_region
          %s2285 = sadd.s32 %s28, 1
          %s2286 = smul.u32 16, %s2285
          %p2287 = scmp.lt.s32.totalorder %s27, 1
          %s2288 = scalar_select %p2287, %s27, 1
          %p2289 = scmp.lt.s32.totalorder %s2286, 47
          %s2290 = scalar_select %p2289, %s2286, 47
          %s2291 = smul.addr %s2288, 48
          %s2292 = sadd.s32 %s2290, %s2291
          %s2293 = smul.addr %s2292, 8
          %s2294 = scalar_lea.vmem %s7, %s2293
        $region68: #{posterior_encoder_forward.7} parent=63 // pred_fallthru
          _
        // Predicated region
        $region69: #{posterior_encoder_forward.7} parent=63 // pred_check
          %p2295 = pneg %p248
        $region70: #{posterior_encoder_forward.7} parent=63 // pred_check_branch
          %2297 = sbr.rel (%p2295) target = $region72
        $region71: #{posterior_encoder_forward.7} parent=63 // pred_region
          %s2298 = smul.u32 16, %s28
          %p2299 = scmp.lt.s32.totalorder %s27, 1
          %s2300 = scalar_select %p2299, %s27, 1
          %p2301 = scmp.lt.s32.totalorder %s2298, 15
          %s2302 = scalar_select %p2301, %s2298, 15
          %s2303 = smul.addr %s2300, 16
          %s2304 = sadd.s32 %s2302, %s2303
          %s2305 = smul.addr %s2304, 8
          %s2306 = scalar_lea.vmem %s8, %s2305
        $region72: #{posterior_encoder_forward.7} parent=63 // pred_fallthru
          _
      $region64: #{posterior_encoder_forward.7} parent=5 // pred_fallthru
        _
    $region6: #{posterior_encoder_forward.7} parent=1 // loop_footer
      %s20 = sadd.s32 1, %s16
    $region7: #{posterior_encoder_forward.7} parent=1 // loop_footer_branch
      %15 = sbr.rel target = $region3
    $region8: #{posterior_encoder_forward.7} parent=1 // loop_exit
      _
    %2307 = vsyncpa [#allocation3], 1
    %s2308 = scalar_lea.sflag [#allocation3], 1
    %2309 = vsyncpa %s2308, 1

// kernel: posterior_encoder_forward.9
$region0: #{posterior_encoder_forward.9}
  #allocation0 [shape = 'u32[]', space=smem, size = 0x4, offset = 0x4, fixed_abs, tag = 'smem constant byte address 0x4 - core index']
  #allocation1 [shape = 'u32[144,128]{1,0:T(1,128)}', space=vmem, size = 0x12000, scoped, tag = 'internal scratch']
  %s0 = inlined_call_operand.vmem [shape: s32[2], index: 0, kind: input, shape index: {}]
  %s1 = inlined_call_operand.vmem [shape: f32[2,384,32], index: 1, kind: input, shape index: {}]
  %s2 = inlined_call_operand.vmem [shape: f32[2,128,32], index: 2, kind: input, shape index: {}]
  %s3 = inlined_call_operand.vmem [shape: f32[2,128,16], index: 3, kind: input, shape index: {}]
  %s4 = inlined_call_operand.vmem [shape: f32[5,32,64], index: 4, kind: input, shape index: {}]
  %s5 = inlined_call_operand.vmem [shape: f32[1,64], index: 5, kind: input, shape index: {}]
  %s6 = inlined_call_operand.vmem [shape: f32[32,32], index: 6, kind: input, shape index: {}]
  %s7 = inlined_call_operand.vmem [shape: f32[1,32], index: 7, kind: input, shape index: {}]
  %s8 = inlined_call_operand.vmem [shape: f32[32,32], index: 8, kind: input, shape index: {}]
  %s9 = inlined_call_operand.vmem [shape: f32[1,32], index: 9, kind: input, shape index: {}]
  %s10 = inlined_call_operand.vmem [shape: f32[2,128,16], index: 10, kind: output, shape index: {0}]
  %s11 = inlined_call_operand.vmem [shape: f32[2,128,16], index: 11, kind: output, shape index: {1}]
  %s12 = inlined_call_operand.vmem [shape: f32[2,128,16], index: 12, kind: output, shape index: {2}]
  %13 = xla_tuple %s10, %s11, %s12
  %s14 = sld [smem:[#allocation0]]
  $region93: #{posterior_encoder_forward.9} parent=0
    _
  %s16 = ssub.s32 1, %s14
  %s17 = scalar_select 0, %s16, %s14
  $region1: #{posterior_encoder_forward.9} parent=0
    #allocation2 [shape = 'u8[512]{0}', space=smem, size = 0x200, scoped, tag = 'input window, operand 0, single buffered']
    #allocation3 [shape = 's32[2]{0}', space=sflag, size = 0x8, scoped, tag = 'scoped memory for posterior_encoder_forward.9']
    %18 = vsyncpa [#allocation3], 0
    loop: start=0, step=1, limit=4
    $region2: #{posterior_encoder_forward.9} parent=1 // loop_pre_header
      _
    $region3: #{posterior_encoder_forward.9} parent=1 // loop_header
      %s20 = sphi 0, %s24
      %p21 = scmp.ge.s32.totalorder %s20, 4
      %s27 = sphi 0, %s39
      %s28 = sphi 0, %s35
      %s29 = sphi 0, %s27
      %s30 = sphi 0, %s28
      %s31 = sphi 0, %s29
      %s32 = sphi 0, %s30
      %s40 = sphi 0, %s40
      %s42 = sphi 0, %s40
      %s43 = sphi 0, %s42
      %s57 = sphi 0, %s43
      %s63 = sphi 0, %s65
      %s66 = sphi 0, %s63
      %s67 = sphi 0, %s66
      %s83 = sphi 0, %s67
      %s91 = sphi 0, %s93
      %s94 = sphi 0, %s91
      %s95 = sphi 0, %s94
      %s111 = sphi 0, %s95
      %s119 = sphi 0, %s121
      %s122 = sphi 0, %s119
      %s123 = sphi 0, %s122
      %s139 = sphi 0, %s123
      %s143 = sphi 0, %s143
      %s145 = sphi 0, %s143
      %s146 = sphi 0, %s145
      %s160 = sphi 0, %s146
      %s164 = sphi 0, %s164
      %s166 = sphi 0, %s164
      %s167 = sphi 0, %s166
      %s181 = sphi 0, %s167
      %s185 = sphi 0, %s185
      %s187 = sphi 0, %s185
      %s188 = sphi 0, %s187
      %s202 = sphi 0, %s188
      %s206 = sphi 0, %s206
      %s208 = sphi 0, %s206
      %s209 = sphi 0, %s208
      %s223 = sphi 0, %s209
      %s227 = sphi 0, %s227
      %s229 = sphi 0, %s227
      %s230 = sphi 0, %s229
      %s244 = sphi 0, %s230
      %s248 = sphi 0, %s248
      %s250 = sphi 0, %s248
      %s251 = sphi 0, %s250
      %s265 = sphi 0, %s251
      %s273 = sphi 0, %s275
      %s276 = sphi 0, %s273
      %s277 = sphi 0, %s276
      %s293 = sphi 0, %s277
      %s301 = sphi 0, %s303
      %s304 = sphi 0, %s301
      %s305 = sphi 0, %s304
      %s321 = sphi 0, %s305
      %s329 = sphi 0, %s331
      %s332 = sphi 0, %s329
      %s333 = sphi 0, %s332
      %s349 = sphi 0, %s333
    $region4: #{posterior_encoder_forward.9} parent=1 // loop_header_branch
      %23 = sbr.rel (%p21) target = $region8
    $region5: #{posterior_encoder_forward.9} parent=1 // loop_body
      %s25 = ssub.s32 %s20, 1
      %s26 = ssub.s32 %s20, 2
      %s33 = sadd.s32 1, %s28
      %p34 = scmp.ge.s32.totalorder %s33, 1
      %s35 = scalar_select %p34, 0, %s33
      %s36 = sadd.s32 1, %s27
      %s37 = scalar_select %p34, %s36, %s27
      %p38 = scmp.ge.s32.totalorder %s37, 2
      %s39 = scalar_select %p38, 0, %s37
      %s41 = sadd.s32 %s40, 1
      %p44 = scmp.eq.s32.totalorder %s20, 1
      %p45 = scmp.ne.s32.totalorder %s40, %s42
      %p46 = scmp.eq.s32.totalorder %s20, 0
      %p47 = por %p45, %p46
      %p48 = scmp.ne.s32.totalorder %s40, %s42
      %p49 = scmp.eq.s32.totalorder %s25, 1
      %p50 = por %p48, %p49
      %p51 = scmp.ne.s32.totalorder %s42, %s43
      %p52 = scmp.eq.s32.totalorder %s25, 0
      %p53 = por %p51, %p52
      %p54 = scmp.ne.s32.totalorder %s42, %s43
      %p55 = scmp.eq.s32.totalorder %s26, 1
      %p56 = por %p54, %p55
      %p58 = scmp.ne.s32.totalorder %s43, %s57
      %p59 = scmp.eq.s32.totalorder %s26, 0
      %p60 = por %p58, %p59
      %s61 = ssub.s32 %s27, %s39
      %p62 = scmp.eq.s32.totalorder %s61, 0
      %s64 = sadd.s32 %s63, 1
      %s65 = scalar_select %p62, %s63, %s64
      %p68 = pneg %p62
      %p69 = scmp.eq.s32.totalorder %s20, 1
      %p70 = por %p68, %p69
      %p71 = scmp.ne.s32.totalorder %s63, %s66
      %p72 = scmp.eq.s32.totalorder %s20, 0
      %p73 = por %p71, %p72
      %p74 = scmp.ne.s32.totalorder %s63, %s66
      %p75 = scmp.eq.s32.totalorder %s25, 1
      %p76 = por %p74, %p75
      %p77 = scmp.ne.s32.totalorder %s66, %s67
      %p78 = scmp.eq.s32.totalorder %s25, 0
      %p79 = por %p77, %p78
      %p80 = scmp.ne.s32.totalorder %s66, %s67
      %p81 = scmp.eq.s32.totalorder %s26, 1
      %p82 = por %p80, %p81
      %p84 = scmp.ne.s32.totalorder %s67, %s83
      %p85 = scmp.eq.s32.totalorder %s26, 0
      %p86 = por %p84, %p85
      %s87 = ssub.s32 %s27, %s39
      %s88 = ssub.s32 %s28, %s35
      %s89 = sor.u32 %s87, %s88
      %p90 = scmp.eq.s32.totalorder %s89, 0
      %s92 = sadd.s32 %s91, 1
      %s93 = scalar_select %p90, %s91, %s92
      %p96 = pneg %p90
      %p97 = scmp.eq.s32.totalorder %s20, 1
      %p98 = por %p96, %p97
      %p99 = scmp.ne.s32.totalorder %s91, %s94
      %p100 = scmp.eq.s32.totalorder %s20, 0
      %p101 = por %p99, %p100
      %p102 = scmp.ne.s32.totalorder %s91, %s94
      %p103 = scmp.eq.s32.totalorder %s25, 1
      %p104 = por %p102, %p103
      %p105 = scmp.ne.s32.totalorder %s94, %s95
      %p106 = scmp.eq.s32.totalorder %s25, 0
      %p107 = por %p105, %p106
      %p108 = scmp.ne.s32.totalorder %s94, %s95
      %p109 = scmp.eq.s32.totalorder %s26, 1
      %p110 = por %p108, %p109
      %p112 = scmp.ne.s32.totalorder %s95, %s111
      %p113 = scmp.eq.s32.totalorder %s26, 0
      %p114 = por %p112, %p113
      %s115 = ssub.s32 %s27, %s39
      %s116 = ssub.s32 %s28, %s35
      %s117 = sor.u32 %s115, %s116
      %p118 = scmp.eq.s32.totalorder %s117, 0
      %s120 = sadd.s32 %s119, 1
      %s121 = scalar_select %p118, %s119, %s120
      %p124 = pneg %p118
      %p125 = scmp.eq.s32.totalorder %s20, 1
      %p126 = por %p124, %p125
      %p127 = scmp.ne.s32.totalorder %s119, %s122
      %p128 = scmp.eq.s32.totalorder %s20, 0
      %p129 = por %p127, %p128
      %p130 = scmp.ne.s32.totalorder %s119, %s122
      %p131 = scmp.eq.s32.totalorder %s25, 1
      %p132 = por %p130, %p131
      %p133 = scmp.ne.s32.totalorder %s122, %s123
      %p134 = scmp.eq.s32.totalorder %s25, 0
      %p135 = por %p133, %p134
      %p136 = scmp.ne.s32.totalorder %s122, %s123
      %p137 = scmp.eq.s32.totalorder %s26, 1
      %p138 = por %p136, %p137
      %p140 = scmp.ne.s32.totalorder %s123, %s139
      %p141 = scmp.eq.s32.totalorder %s26, 0
      %p142 = por %p140, %p141
      %s144 = sadd.s32 %s143, 1
      %p147 = scmp.eq.s32.totalorder %s20, 1
      %p148 = scmp.ne.s32.totalorder %s143, %s145
      %p149 = scmp.eq.s32.totalorder %s20, 0
      %p150 = por %p148, %p149
      %p151 = scmp.ne.s32.totalorder %s143, %s145
      %p152 = scmp.eq.s32.totalorder %s25, 1
      %p153 = por %p151, %p152
      %p154 = scmp.ne.s32.totalorder %s145, %s146
      %p155 = scmp.eq.s32.totalorder %s25, 0
      %p156 = por %p154, %p155
      %p157 = scmp.ne.s32.totalorder %s145, %s146
      %p158 = scmp.eq.s32.totalorder %s26, 1
      %p159 = por %p157, %p158
      %p161 = scmp.ne.s32.totalorder %s146, %s160
      %p162 = scmp.eq.s32.totalorder %s26, 0
      %p163 = por %p161, %p162
      %s165 = sadd.s32 %s164, 1
      %p168 = scmp.eq.s32.totalorder %s20, 1
      %p169 = scmp.ne.s32.totalorder %s164, %s166
      %p170 = scmp.eq.s32.totalorder %s20, 0
      %p171 = por %p169, %p170
      %p172 = scmp.ne.s32.totalorder %s164, %s166
      %p173 = scmp.eq.s32.totalorder %s25, 1
      %p174 = por %p172, %p173
      %p175 = scmp.ne.s32.totalorder %s166, %s167
      %p176 = scmp.eq.s32.totalorder %s25, 0
      %p177 = por %p175, %p176
      %p178 = scmp.ne.s32.totalorder %s166, %s167
      %p179 = scmp.eq.s32.totalorder %s26, 1
      %p180 = por %p178, %p179
      %p182 = scmp.ne.s32.totalorder %s167, %s181
      %p183 = scmp.eq.s32.totalorder %s26, 0
      %p184 = por %p182, %p183
      %s186 = sadd.s32 %s185, 1
      %p189 = scmp.eq.s32.totalorder %s20, 1
      %p190 = scmp.ne.s32.totalorder %s185, %s187
      %p191 = scmp.eq.s32.totalorder %s20, 0
      %p192 = por %p190, %p191
      %p193 = scmp.ne.s32.totalorder %s185, %s187
      %p194 = scmp.eq.s32.totalorder %s25, 1
      %p195 = por %p193, %p194
      %p196 = scmp.ne.s32.totalorder %s187, %s188
      %p197 = scmp.eq.s32.totalorder %s25, 0
      %p198 = por %p196, %p197
      %p199 = scmp.ne.s32.totalorder %s187, %s188
      %p200 = scmp.eq.s32.totalorder %s26, 1
      %p201 = por %p199, %p200
      %p203 = scmp.ne.s32.totalorder %s188, %s202
      %p204 = scmp.eq.s32.totalorder %s26, 0
      %p205 = por %p203, %p204
      %s207 = sadd.s32 %s206, 1
      %p210 = scmp.eq.s32.totalorder %s20, 1
      %p211 = scmp.ne.s32.totalorder %s206, %s208
      %p212 = scmp.eq.s32.totalorder %s20, 0
      %p213 = por %p211, %p212
      %p214 = scmp.ne.s32.totalorder %s206, %s208
      %p215 = scmp.eq.s32.totalorder %s25, 1
      %p216 = por %p214, %p215
      %p217 = scmp.ne.s32.totalorder %s208, %s209
      %p218 = scmp.eq.s32.totalorder %s25, 0
      %p219 = por %p217, %p218
      %p220 = scmp.ne.s32.totalorder %s208, %s209
      %p221 = scmp.eq.s32.totalorder %s26, 1
      %p222 = por %p220, %p221
      %p224 = scmp.ne.s32.totalorder %s209, %s223
      %p225 = scmp.eq.s32.totalorder %s26, 0
      %p226 = por %p224, %p225
      %s228 = sadd.s32 %s227, 1
      %p231 = scmp.eq.s32.totalorder %s20, 1
      %p232 = scmp.ne.s32.totalorder %s227, %s229
      %p233 = scmp.eq.s32.totalorder %s20, 0
      %p234 = por %p232, %p233
      %p235 = scmp.ne.s32.totalorder %s227, %s229
      %p236 = scmp.eq.s32.totalorder %s25, 1
      %p237 = por %p235, %p236
      %p238 = scmp.ne.s32.totalorder %s229, %s230
      %p239 = scmp.eq.s32.totalorder %s25, 0
      %p240 = por %p238, %p239
      %p241 = scmp.ne.s32.totalorder %s229, %s230
      %p242 = scmp.eq.s32.totalorder %s26, 1
      %p243 = por %p241, %p242
      %p245 = scmp.ne.s32.totalorder %s230, %s244
      %p246 = scmp.eq.s32.totalorder %s26, 0
      %p247 = por %p245, %p246
      %s249 = sadd.s32 %s248, 1
      %p252 = scmp.eq.s32.totalorder %s20, 1
      %p253 = scmp.ne.s32.totalorder %s248, %s250
      %p254 = scmp.eq.s32.totalorder %s20, 0
      %p255 = por %p253, %p254
      %p256 = scmp.ne.s32.totalorder %s248, %s250
      %p257 = scmp.eq.s32.totalorder %s25, 1
      %p258 = por %p256, %p257
      %p259 = scmp.ne.s32.totalorder %s250, %s251
      %p260 = scmp.eq.s32.totalorder %s25, 0
      %p261 = por %p259, %p260
      %p262 = scmp.ne.s32.totalorder %s250, %s251
      %p263 = scmp.eq.s32.totalorder %s26, 1
      %p264 = por %p262, %p263
      %p266 = scmp.ne.s32.totalorder %s251, %s265
      %p267 = scmp.eq.s32.totalorder %s26, 0
      %p268 = por %p266, %p267
      %s269 = ssub.s32 %s27, %s39
      %s270 = ssub.s32 %s28, %s35
      %s271 = sor.u32 %s269, %s270
      %p272 = scmp.eq.s32.totalorder %s271, 0
      %s274 = sadd.s32 %s273, 1
      %s275 = scalar_select %p272, %s273, %s274
      %p278 = pneg %p272
      %p279 = scmp.eq.s32.totalorder %s20, 1
      %p280 = por %p278, %p279
      %p281 = scmp.ne.s32.totalorder %s273, %s276
      %p282 = scmp.eq.s32.totalorder %s20, 0
      %p283 = por %p281, %p282
      %p284 = scmp.ne.s32.totalorder %s273, %s276
      %p285 = scmp.eq.s32.totalorder %s25, 1
      %p286 = por %p284, %p285
      %p287 = scmp.ne.s32.totalorder %s276, %s277
      %p288 = scmp.eq.s32.totalorder %s25, 0
      %p289 = por %p287, %p288
      %p290 = scmp.ne.s32.totalorder %s276, %s277
      %p291 = scmp.eq.s32.totalorder %s26, 1
      %p292 = por %p290, %p291
      %p294 = scmp.ne.s32.totalorder %s277, %s293
      %p295 = scmp.eq.s32.totalorder %s26, 0
      %p296 = por %p294, %p295
      %s297 = ssub.s32 %s27, %s39
      %s298 = ssub.s32 %s28, %s35
      %s299 = sor.u32 %s297, %s298
      %p300 = scmp.eq.s32.totalorder %s299, 0
      %s302 = sadd.s32 %s301, 1
      %s303 = scalar_select %p300, %s301, %s302
      %p306 = pneg %p300
      %p307 = scmp.eq.s32.totalorder %s20, 1
      %p308 = por %p306, %p307
      %p309 = scmp.ne.s32.totalorder %s301, %s304
      %p310 = scmp.eq.s32.totalorder %s20, 0
      %p311 = por %p309, %p310
      %p312 = scmp.ne.s32.totalorder %s301, %s304
      %p313 = scmp.eq.s32.totalorder %s25, 1
      %p314 = por %p312, %p313
      %p315 = scmp.ne.s32.totalorder %s304, %s305
      %p316 = scmp.eq.s32.totalorder %s25, 0
      %p317 = por %p315, %p316
      %p318 = scmp.ne.s32.totalorder %s304, %s305
      %p319 = scmp.eq.s32.totalorder %s26, 1
      %p320 = por %p318, %p319
      %p322 = scmp.ne.s32.totalorder %s305, %s321
      %p323 = scmp.eq.s32.totalorder %s26, 0
      %p324 = por %p322, %p323
      %s325 = ssub.s32 %s27, %s39
      %s326 = ssub.s32 %s28, %s35
      %s327 = sor.u32 %s325, %s326
      %p328 = scmp.eq.s32.totalorder %s327, 0
      %s330 = sadd.s32 %s329, 1
      %s331 = scalar_select %p328, %s329, %s330
      %p334 = pneg %p328
      %p335 = scmp.eq.s32.totalorder %s20, 1
      %p336 = por %p334, %p335
      %p337 = scmp.ne.s32.totalorder %s329, %s332
      %p338 = scmp.eq.s32.totalorder %s20, 0
      %p339 = por %p337, %p338
      %p340 = scmp.ne.s32.totalorder %s329, %s332
      %p341 = scmp.eq.s32.totalorder %s25, 1
      %p342 = por %p340, %p341
      %p343 = scmp.ne.s32.totalorder %s332, %s333
      %p344 = scmp.eq.s32.totalorder %s25, 0
      %p345 = por %p343, %p344
      %p346 = scmp.ne.s32.totalorder %s332, %s333
      %p347 = scmp.eq.s32.totalorder %s26, 1
      %p348 = por %p346, %p347
      %p350 = scmp.ne.s32.totalorder %s333, %s349
      %p351 = scmp.eq.s32.totalorder %s26, 0
      %p352 = por %p350, %p351
      %p353 = scmp.le.s32.totalorder 1, %s20
      %p354 = scmp.lt.s32.totalorder %s20, 3
      %p355 = pnand %p353, %p354
      %p356 = pneg %p355
      // Predicated region
      $region9: #{posterior_encoder_forward.9} parent=5 // pred_check
        _
      $region10: #{posterior_encoder_forward.9} parent=5 // pred_check_branch
        %358 = sbr.rel (%p355) target = $region12
      $region11: #{posterior_encoder_forward.9} parent=5 // pred_region
        %s359 = ssub.s32 %s20, 1
        // Predicated region
        $region13: #{posterior_encoder_forward.9} parent=11 // pred_check
          %p360 = pneg %p53
        $region14: #{posterior_encoder_forward.9} parent=11 // pred_check_branch
          %362 = sbr.rel (%p360) target = $region16
        $region15: #{posterior_encoder_forward.9} parent=11 // pred_region
          %s364 = ssub.s32 16, 16
          %365 = vsyncadd [#allocation3], %s364
          %s367 = sshll.u32 %s0, 4
          %s368 = int_to_ptr.vmem [resolvable:$true] %s367
          %370 = dma.vmem_to_smem %s368, 16, [#allocation2], [#allocation3]
        $region16: #{posterior_encoder_forward.9} parent=11 // pred_fallthru
          _
        // Predicated region
        $region17: #{posterior_encoder_forward.9} parent=11 // pred_check
          %p371 = pneg %p156
        $region18: #{posterior_encoder_forward.9} parent=11 // pred_check_branch
          %373 = sbr.rel (%p371) target = $region20
        $region19: #{posterior_encoder_forward.9} parent=11 // pred_region
          _
        $region20: #{posterior_encoder_forward.9} parent=11 // pred_fallthru
          _
        // Predicated region
        $region21: #{posterior_encoder_forward.9} parent=11 // pred_check
          %p374 = pneg %p177
        $region22: #{posterior_encoder_forward.9} parent=11 // pred_check_branch
          %376 = sbr.rel (%p374) target = $region24
        $region23: #{posterior_encoder_forward.9} parent=11 // pred_region
          _
        $region24: #{posterior_encoder_forward.9} parent=11 // pred_fallthru
          _
        // Predicated region
        $region25: #{posterior_encoder_forward.9} parent=11 // pred_check
          %p377 = pneg %p198
        $region26: #{posterior_encoder_forward.9} parent=11 // pred_check_branch
          %379 = sbr.rel (%p377) target = $region28
        $region27: #{posterior_encoder_forward.9} parent=11 // pred_region
          _
        $region28: #{posterior_encoder_forward.9} parent=11 // pred_fallthru
          _
        // Predicated region
        $region29: #{posterior_encoder_forward.9} parent=11 // pred_check
          %p380 = pneg %p219
        $region30: #{posterior_encoder_forward.9} parent=11 // pred_check_branch
          %382 = sbr.rel (%p380) target = $region32
        $region31: #{posterior_encoder_forward.9} parent=11 // pred_region
          _
        $region32: #{posterior_encoder_forward.9} parent=11 // pred_fallthru
          _
        // Predicated region
        $region33: #{posterior_encoder_forward.9} parent=11 // pred_check
          %p383 = pneg %p240
        $region34: #{posterior_encoder_forward.9} parent=11 // pred_check_branch
          %385 = sbr.rel (%p383) target = $region36
        $region35: #{posterior_encoder_forward.9} parent=11 // pred_region
          _
        $region36: #{posterior_encoder_forward.9} parent=11 // pred_fallthru
          _
        // Predicated region
        $region37: #{posterior_encoder_forward.9} parent=11 // pred_check
          %p386 = pneg %p261
        $region38: #{posterior_encoder_forward.9} parent=11 // pred_check_branch
          %388 = sbr.rel (%p386) target = $region40
        $region39: #{posterior_encoder_forward.9} parent=11 // pred_region
          _
        $region40: #{posterior_encoder_forward.9} parent=11 // pred_fallthru
          _
      $region12: #{posterior_encoder_forward.9} parent=5 // pred_fallthru
        _
      %p389 = scmp.lt.s32.totalorder %s20, 2
      // Predicated region
      $region41: #{posterior_encoder_forward.9} parent=5 // pred_check
        %p390 = pneg %p389
      $region42: #{posterior_encoder_forward.9} parent=5 // pred_check_branch
        %392 = sbr.rel (%p390) target = $region44
      $region43: #{posterior_encoder_forward.9} parent=5 // pred_region
        // Predicated region
        $region45: #{posterior_encoder_forward.9} parent=43 // pred_check
          %p393 = pneg %p73
        $region46: #{posterior_encoder_forward.9} parent=43 // pred_check_branch
          %395 = sbr.rel (%p393) target = $region48
        $region47: #{posterior_encoder_forward.9} parent=43 // pred_region
          %p396 = scmp.lt.s32.totalorder %s27, 1
          %s397 = scalar_select %p396, %s27, 1
          %s398 = smul.addr %s397, 48
          %s399 = smul.addr %s398, 8
          %s400 = scalar_lea.vmem %s1, %s399
        $region48: #{posterior_encoder_forward.9} parent=43 // pred_fallthru
          _
        // Predicated region
        $region49: #{posterior_encoder_forward.9} parent=43 // pred_check
          %p401 = pneg %p101
        $region50: #{posterior_encoder_forward.9} parent=43 // pred_check_branch
          %403 = sbr.rel (%p401) target = $region52
        $region51: #{posterior_encoder_forward.9} parent=43 // pred_region
          %s404 = smul.u32 16, %s28
          %p405 = scmp.lt.s32.totalorder %s27, 1
          %s406 = scalar_select %p405, %s27, 1
          %p407 = scmp.lt.s32.totalorder %s404, 15
          %s408 = scalar_select %p407, %s404, 15
          %s409 = smul.addr %s406, 16
          %s410 = sadd.s32 %s408, %s409
          %s411 = smul.addr %s410, 8
          %s412 = scalar_lea.vmem %s2, %s411
          %s413 = smul.u32 16, %s28
        $region52: #{posterior_encoder_forward.9} parent=43 // pred_fallthru
          _
        // Predicated region
        $region53: #{posterior_encoder_forward.9} parent=43 // pred_check
          %p414 = pneg %p129
        $region54: #{posterior_encoder_forward.9} parent=43 // pred_check_branch
          %416 = sbr.rel (%p414) target = $region56
        $region55: #{posterior_encoder_forward.9} parent=43 // pred_region
          %s417 = smul.u32 16, %s28
          %p418 = scmp.lt.s32.totalorder %s27, 1
          %s419 = scalar_select %p418, %s27, 1
          %p420 = scmp.lt.s32.totalorder %s417, 15
          %s421 = scalar_select %p420, %s417, 15
          %s422 = smul.addr %s419, 16
          %s423 = sadd.s32 %s421, %s422
          %s424 = smul.addr %s423, 8
          %s425 = scalar_lea.vmem %s3, %s424
          %s426 = smul.u32 16, %s28
        $region56: #{posterior_encoder_forward.9} parent=43 // pred_fallthru
          _
      $region44: #{posterior_encoder_forward.9} parent=5 // pred_fallthru
        _
      %p427 = scmp.le.s32.totalorder 1, %s20
      %p428 = scmp.lt.s32.totalorder %s20, 3
      %p429 = pnand %p427, %p428
      %p430 = pneg %p429
      // Predicated region
      $region57: #{posterior_encoder_forward.9} parent=5 // pred_check
        _
      $region58: #{posterior_encoder_forward.9} parent=5 // pred_check_branch
        %432 = sbr.rel (%p429) target = $region60
      $region59: #{posterior_encoder_forward.9} parent=5 // pred_region
        %s433 = ssub.s32 %s20, 1
        // Predicated region
        $region61: #{posterior_encoder_forward.9} parent=59 // pred_check
          %p434 = pneg %p53
        $region62: #{posterior_encoder_forward.9} parent=59 // pred_check_branch
          %436 = sbr.rel (%p434) target = $region64
        $region63: #{posterior_encoder_forward.9} parent=59 // pred_region
          %437 = dma.done [#allocation3], 16
        $region64: #{posterior_encoder_forward.9} parent=59 // pred_fallthru
          _
        %438 = sfence
        %p439 = pneg %p53
        %p440 = pneg %p50
        %p441 = scmp.lt.s32.totalorder %s29, 1
        %s442 = scalar_select %p441, %s29, 1
        %s443 = smul.addr %s442, 48
        %s444 = smul.addr %s443, 8
        %s445 = scalar_lea.vmem %s1, %s444
        %p446 = pneg %p79
        %p447 = pneg %p76
        %s448 = smul.u32 16, %s30
        %p449 = scmp.lt.s32.totalorder %s29, 1
        %s450 = scalar_select %p449, %s29, 1
        %p451 = scmp.lt.s32.totalorder %s448, 15
        %s452 = scalar_select %p451, %s448, 15
        %s453 = smul.addr %s450, 16
        %s454 = sadd.s32 %s452, %s453
        %s455 = smul.addr %s454, 8
        %s456 = scalar_lea.vmem %s2, %s455
        %p457 = pneg %p107
        %p458 = pneg %p104
        %s459 = smul.u32 16, %s30
        %p460 = scmp.lt.s32.totalorder %s29, 1
        %s461 = scalar_select %p460, %s29, 1
        %p462 = scmp.lt.s32.totalorder %s459, 15
        %s463 = scalar_select %p462, %s459, 15
        %s464 = smul.addr %s461, 16
        %s465 = sadd.s32 %s463, %s464
        %s466 = smul.addr %s465, 8
        %s467 = scalar_lea.vmem %s3, %s466
        %p468 = pneg %p135
        %p469 = pneg %p132
        %p470 = pneg %p156
        %p471 = pneg %p153
        %p472 = pneg %p177
        %p473 = pneg %p174
        %p474 = pneg %p198
        %p475 = pneg %p195
        %p476 = pneg %p219
        %p477 = pneg %p216
        %p478 = pneg %p240
        %p479 = pneg %p237
        %p480 = pneg %p261
        %p481 = pneg %p258
        %p482 = pneg %p289
        %p483 = pneg %p286
        %s484 = smul.u32 16, %s30
        %p485 = scmp.lt.s32.totalorder %s29, 1
        %s486 = scalar_select %p485, %s29, 1
        %p487 = scmp.lt.s32.totalorder %s484, 15
        %s488 = scalar_select %p487, %s484, 15
        %s489 = smul.addr %s486, 16
        %s490 = sadd.s32 %s488, %s489
        %s491 = smul.addr %s490, 8
        %s492 = scalar_lea.vmem %s10, %s491
        %p493 = pneg %p317
        %p494 = pneg %p314
        %s495 = smul.u32 16, %s30
        %p496 = scmp.lt.s32.totalorder %s29, 1
        %s497 = scalar_select %p496, %s29, 1
        %p498 = scmp.lt.s32.totalorder %s495, 15
        %s499 = scalar_select %p498, %s495, 15
        %s500 = smul.addr %s497, 16
        %s501 = sadd.s32 %s499, %s500
        %s502 = smul.addr %s501, 8
        %s503 = scalar_lea.vmem %s11, %s502
        %p504 = pneg %p345
        %p505 = pneg %p342
        %s506 = smul.u32 16, %s30
        %p507 = scmp.lt.s32.totalorder %s29, 1
        %s508 = scalar_select %p507, %s29, 1
        %p509 = scmp.lt.s32.totalorder %s506, 15
        %s510 = scalar_select %p509, %s506, 15
        %s511 = smul.addr %s508, 16
        %s512 = sadd.s32 %s510, %s511
        %s513 = smul.addr %s512, 8
        %s514 = scalar_lea.vmem %s12, %s513
        %p515 = scmp.lt.s32.totalorder %s29, 1
        %s516 = scalar_select %p515, %s29, 1
        %s517 = smul.addr %s516, 48
        %s518 = smul.addr %s517, 8
        %s519 = scalar_lea.vmem %s1, %s518
        %s520 = smul.u32 16, %s30
        %p521 = scmp.lt.s32.totalorder %s29, 1
        %s522 = scalar_select %p521, %s29, 1
        %p523 = scmp.lt.s32.totalorder %s520, 15
        %s524 = scalar_select %p523, %s520, 15
        %s525 = smul.addr %s522, 16
        %s526 = sadd.s32 %s524, %s525
        %s527 = smul.addr %s526, 8
        %s528 = scalar_lea.vmem %s2, %s527
        %s529 = smul.u32 16, %s30
        %s530 = smul.u32 16, %s30
        %p531 = scmp.lt.s32.totalorder %s29, 1
        %s532 = scalar_select %p531, %s29, 1
        %p533 = scmp.lt.s32.totalorder %s530, 15
        %s534 = scalar_select %p533, %s530, 15
        %s535 = smul.addr %s532, 16
        %s536 = sadd.s32 %s534, %s535
        %s537 = smul.addr %s536, 8
        %s538 = scalar_lea.vmem %s3, %s537
        %s539 = smul.u32 16, %s30
        %s540 = smul.u32 16, %s30
        %p541 = scmp.lt.s32.totalorder %s29, 1
        %s542 = scalar_select %p541, %s29, 1
        %p543 = scmp.lt.s32.totalorder %s540, 15
        %s544 = scalar_select %p543, %s540, 15
        %s545 = smul.addr %s542, 16
        %s546 = sadd.s32 %s544, %s545
        %s547 = smul.addr %s546, 8
        %s548 = scalar_lea.vmem %s10, %s547
        %s549 = smul.u32 16, %s30
        %s550 = smul.u32 16, %s30
        %p551 = scmp.lt.s32.totalorder %s29, 1
        %s552 = scalar_select %p551, %s29, 1
        %p553 = scmp.lt.s32.totalorder %s550, 15
        %s554 = scalar_select %p553, %s550, 15
        %s555 = smul.addr %s552, 16
        %s556 = sadd.s32 %s554, %s555
        %s557 = smul.addr %s556, 8
        %s558 = scalar_lea.vmem %s11, %s557
        %s559 = smul.u32 16, %s30
        %s560 = smul.u32 16, %s30
        %p561 = scmp.lt.s32.totalorder %s29, 1
        %s562 = scalar_select %p561, %s29, 1
        %p563 = scmp.lt.s32.totalorder %s560, 15
        %s564 = scalar_select %p563, %s560, 15
        %s565 = smul.addr %s562, 16
        %s566 = sadd.s32 %s564, %s565
        %s567 = smul.addr %s566, 8
        %s568 = scalar_lea.vmem %s12, %s567
        %s569 = smul.u32 16, %s30
        %s570 = smul.u32 %s30, 128
        %s571 = sadd.s32 %s570, 128
        %v572 = vld [vmem:[%s5] sm:$0x1]
        %v574 = vlaneseq
        %v575 = vshrl.u32 %v574, 7
        %v576 = vsub.s32 0, %v575
        %v577 = vrot.slane %v572, %v576
        %v579 = vadd.f32 %v577, 0.0
        %s580 = sadd.s32 %s571, 4294967280
        %s581 = scalar_lea.vmem %s519, %s580
        %v582 = vld [vmem:[%s581] sm:$0xff]
        %v583 = vld [vmem:[%s581 + $0x8] sm:$0xff]
        %v584 = vld [vmem:[%s581 + $0x10] sm:$0xff]
        %v585 = vld [vmem:[%s581 + $0x18] sm:$0xff]
        %v586 = vld [vmem:[%s581 + $0x20] sm:$0xff]
        %v587 = vld [vmem:[%s581 + $0x28] sm:$0xff]
        %v588 = vld [vmem:[%s581 + $0x30] sm:$0xff]
        %v589 = vld [vmem:[%s581 + $0x38] sm:$0xff]
        %v590 = vld [vmem:[%s581 + $0x40] sm:$0xff]
        %v591 = vld [vmem:[%s581 + $0x48] sm:$0xff]
        %v592 = vld [vmem:[%s581 + $0x50] sm:$0xff]
        %v593 = vld [vmem:[%s581 + $0x58] sm:$0xff]
        %v594 = vld [vmem:[%s581 + $0x60] sm:$0xff]
        %v595 = vld [vmem:[%s581 + $0x68] sm:$0xff]
        %v596 = vld [vmem:[%s581 + $0x70] sm:$0xff]
        %v597 = vld [vmem:[%s581 + $0x78] sm:$0xff]
        %v598 = vld [vmem:[%s4] sm:$0xff]
        %v599 = vld [vmem:[%s4 + $0x8] sm:$0xff]
        %v600 = vld [vmem:[%s4 + $0x10] sm:$0xff]
        %v601 = vld [vmem:[%s4 + $0x18] sm:$0xff]
        %vm602 = vcmask 261120
        %v604 = vsel %vm602, %v582, 0
        %v607 = vsel %vm602, %v583, 0
        %v610 = vsel %vm602, %v584, 0
        %v613 = vsel %vm602, %v585, 0
        %v616 = vsel %vm602, %v586, 0
        %v619 = vsel %vm602, %v587, 0
        %v622 = vsel %vm602, %v588, 0
        %v625 = vsel %vm602, %v589, 0
        %v628 = vsel %vm602, %v590, 0
        %v631 = vsel %vm602, %v591, 0
        %v634 = vsel %vm602, %v592, 0
        %v637 = vsel %vm602, %v593, 0
        %v640 = vsel %vm602, %v594, 0
        %v643 = vsel %vm602, %v595, 0
        %v646 = vsel %vm602, %v596, 0
        %v649 = vsel %vm602, %v597, 0
        %651 = vmatprep.subr.mxu0 0.0
        %652 = vmatpush1.msra.mxu0 %v598
        %653 = vmatprep.subr.mxu0 0.0
        %654 = vmatpush1.msra.mxu0 %v599
        %655 = vmatprep.subr.mxu0 0.0
        %656 = vmatpush1.msra.mxu0 %v600
        %657 = vmatprep.subr.mxu0 0.0
        %658 = vmatpush1.msra.mxu0 %v601
        %659 = vmatprep.subr.mxu0 0.0
        %660 = vmatpush1.msra.mxu0 0.0
        %661 = vmatprep.subr.mxu0 0.0
        %662 = vmatpush1.msra.mxu0 0.0
        %663 = vmatprep.subr.mxu0 0.0
        %664 = vmatpush1.msra.mxu0 0.0
        %665 = vmatprep.subr.mxu0 0.0
        %666 = vmatpush1.msra.mxu0 0.0
        %667 = vmatprep.subr.mxu0 0.0
        %668 = vmatpush1.msra.mxu0 0.0
        %669 = vmatprep.subr.mxu0 0.0
        %670 = vmatpush1.msra.mxu0 0.0
        %671 = vmatprep.subr.mxu0 0.0
        %672 = vmatpush1.msra.mxu0 0.0
        %673 = vmatprep.subr.mxu0 0.0
        %674 = vmatpush1.msra.mxu0 0.0
        %675 = vmatprep.subr.mxu0 0.0
        %676 = vmatpush1.msra.mxu0 0.0
        %677 = vmatprep.subr.mxu0 0.0
        %678 = vmatpush1.msra.mxu0 0.0
        %679 = vmatprep.subr.mxu0 0.0
        %680 = vmatpush1.msra.mxu0 0.0
        %681 = vmatprep.subr.mxu0 0.0
        %682 = vmatpush1.msra.mxu0 0.0
        %683 = vmatprep.subr.mxu0 0.0
        %684 = vmatpush1.msra.mxu0 0.0
        %685 = vmatprep.subr.mxu0 0.0
        %686 = vmatpush1.msra.mxu0 0.0
        %687 = vmatprep.subr.mxu0 0.0
        %688 = vmatpush1.msra.mxu0 0.0
        %689 = vmatprep.subr.mxu0 0.0
        %690 = vmatpush1.msra.mxu0 0.0
        %691 = vmatprep.subr.mxu0 0.0
        %692 = vmatpush1.msra.mxu0 0.0
        %693 = vmatprep.subr.mxu0 0.0
        %694 = vmatpush1.msra.mxu0 0.0
        %695 = vmatprep.subr.mxu0 0.0
        %696 = vmatpush1.msra.mxu0 0.0
        %697 = vmatprep.subr.mxu0 0.0
        %698 = vmatpush1.msra.mxu0 0.0
        %699 = vmatprep.subr.mxu0 0.0
        %700 = vmatpush1.msra.mxu0 0.0
        %701 = vmatprep.subr.mxu0 0.0
        %702 = vmatpush1.msra.mxu0 0.0
        %703 = vmatprep.subr.mxu0 0.0
        %704 = vmatpush1.msra.mxu0 0.0
        %705 = vmatprep.subr.mxu0 0.0
        %706 = vmatpush1.msra.mxu0 0.0
        %707 = vmatprep.subr.mxu0 0.0
        %708 = vmatpush1.msra.mxu0 0.0
        %709 = vmatprep.subr.mxu0 0.0
        %710 = vmatpush1.msra.mxu0 0.0
        %711 = vmatprep.subr.mxu0 0.0
        %712 = vmatpush1.msra.mxu0 0.0
        %713 = vmatprep.subr.mxu0 0.0
        %714 = vmatpush1.msra.mxu0 0.0
        %715 = vmatprep.mubr.f32.mxu0 0.0
        %716 = vmatmul.mubr.f32.gmra.mrb[0].mxu0 %v604
        %v717 = vpop.f32.mrb[0].mxu0
        %v718 = vadd.f32 0.0, %v717
        %v719 = vpop.f32.mrb[0].mxu0
        %720 = vmatprep.mubr.f32.mxu0 0.0
        %721 = vmatmul.mubr.f32.gmra.mrb[0].mxu0 %v607
        %v722 = vpop.f32.mrb[0].mxu0
        %v723 = vadd.f32 0.0, %v722
        %v724 = vpop.f32.mrb[0].mxu0
        %725 = vmatprep.mubr.f32.mxu0 0.0
        %726 = vmatmul.mubr.f32.gmra.mrb[0].mxu0 %v610
        %v727 = vpop.f32.mrb[0].mxu0
        %v728 = vadd.f32 0.0, %v727
        %v729 = vpop.f32.mrb[0].mxu0
        %730 = vmatprep.mubr.f32.mxu0 0.0
        %731 = vmatmul.mubr.f32.gmra.mrb[0].mxu0 %v613
        %v732 = vpop.f32.mrb[0].mxu0
        %v733 = vadd.f32 0.0, %v732
        %v734 = vpop.f32.mrb[0].mxu0
        %735 = vmatprep.mubr.f32.mxu0 0.0
        %736 = vmatmul.mubr.f32.gmra.mrb[0].mxu0 %v616
        %v737 = vpop.f32.mrb[0].mxu0
        %v738 = vadd.f32 0.0, %v737
        %v739 = vpop.f32.mrb[0].mxu0
        %740 = vmatprep.mubr.f32.mxu0 0.0
        %741 = vmatmul.mubr.f32.gmra.mrb[0].mxu0 %v619
        %v742 = vpop.f32.mrb[0].mxu0
        %v743 = vadd.f32 0.0, %v742
        %v744 = vpop.f32.mrb[0].mxu0
        %745 = vmatprep.mubr.f32.mxu0 0.0
        %746 = vmatmul.mubr.f32.gmra.mrb[0].mxu0 %v622
        %v747 = vpop.f32.mrb[0].mxu0
        %v748 = vadd.f32 0.0, %v747
        %v749 = vpop.f32.mrb[0].mxu0
        %750 = vmatprep.mubr.f32.mxu0 0.0
        %751 = vmatmul.mubr.f32.gmra.mrb[0].mxu0 %v625
        %v752 = vpop.f32.mrb[0].mxu0
        %v753 = vadd.f32 0.0, %v752
        %v754 = vpop.f32.mrb[0].mxu0
        %755 = vmatprep.mubr.f32.mxu0 0.0
        %756 = vmatmul.mubr.f32.gmra.mrb[0].mxu0 %v628
        %v757 = vpop.f32.mrb[0].mxu0
        %v758 = vadd.f32 0.0, %v757
        %v759 = vpop.f32.mrb[0].mxu0
        %760 = vmatprep.mubr.f32.mxu0 0.0
        %761 = vmatmul.mubr.f32.gmra.mrb[0].mxu0 %v631
        %v762 = vpop.f32.mrb[0].mxu0
        %v763 = vadd.f32 0.0, %v762
        %v764 = vpop.f32.mrb[0].mxu0
        %765 = vmatprep.mubr.f32.mxu0 0.0
        %766 = vmatmul.mubr.f32.gmra.mrb[0].mxu0 %v634
        %v767 = vpop.f32.mrb[0].mxu0
        %v768 = vadd.f32 0.0, %v767
        %v769 = vpop.f32.mrb[0].mxu0
        %770 = vmatprep.mubr.f32.mxu0 0.0
        %771 = vmatmul.mubr.f32.gmra.mrb[0].mxu0 %v637
        %v772 = vpop.f32.mrb[0].mxu0
        %v773 = vadd.f32 0.0, %v772
        %v774 = vpop.f32.mrb[0].mxu0
        %775 = vmatprep.mubr.f32.mxu0 0.0
        %776 = vmatmul.mubr.f32.gmra.mrb[0].mxu0 %v640
        %v777 = vpop.f32.mrb[0].mxu0
        %v778 = vadd.f32 0.0, %v777
        %v779 = vpop.f32.mrb[0].mxu0
        %780 = vmatprep.mubr.f32.mxu0 0.0
        %781 = vmatmul.mubr.f32.gmra.mrb[0].mxu0 %v643
        %v782 = vpop.f32.mrb[0].mxu0
        %v783 = vadd.f32 0.0, %v782
        %v784 = vpop.f32.mrb[0].mxu0
        %785 = vmatprep.mubr.f32.mxu0 0.0
        %786 = vmatmul.mubr.f32.gmra.mrb[0].mxu0 %v646
        %v787 = vpop.f32.mrb[0].mxu0
        %v788 = vadd.f32 0.0, %v787
        %v789 = vpop.f32.mrb[0].mxu0
        %790 = vmatprep.mubr.f32.mxu0 0.0
        %791 = vmatmul.mubr.f32.gmra.mrb[0].mxu0 %v649
        %v792 = vpop.f32.mrb[0].mxu0
        %v793 = vadd.f32 0.0, %v792
        %v794 = vpop.f32.mrb[0].mxu0
        %795 = vdwg.mxu0
        %v796 = vadd.f32 %v579, %v718
        %v797 = vadd.f32 %v579, %v723
        %v798 = vadd.f32 %v579, %v728
        %v799 = vadd.f32 %v579, %v733
        %v800 = vadd.f32 %v579, %v738
        %v801 = vadd.f32 %v579, %v743
        %v802 = vadd.f32 %v579, %v748
        %v803 = vadd.f32 %v579, %v753
        %v804 = vadd.f32 %v579, %v758
        %v805 = vadd.f32 %v579, %v763
        %v806 = vadd.f32 %v579, %v768
        %v807 = vadd.f32 %v579, %v773
        %v808 = vadd.f32 %v579, %v778
        %v809 = vadd.f32 %v579, %v783
        %v810 = vadd.f32 %v579, %v788
        %v811 = vadd.f32 %v579, %v793
        %s812 = sadd.s32 %s571, 4294967288
        %s813 = scalar_lea.vmem %s519, %s812
        %v814 = vld [vmem:[%s813] sm:$0xff]
        %v815 = vld [vmem:[%s813 + $0x8] sm:$0xff]
        %v816 = vld [vmem:[%s813 + $0x10] sm:$0xff]
        %v817 = vld [vmem:[%s813 + $0x18] sm:$0xff]
        %v818 = vld [vmem:[%s813 + $0x20] sm:$0xff]
        %v819 = vld [vmem:[%s813 + $0x28] sm:$0xff]
        %v820 = vld [vmem:[%s813 + $0x30] sm:$0xff]
        %v821 = vld [vmem:[%s813 + $0x38] sm:$0xff]
        %v822 = vld [vmem:[%s813 + $0x40] sm:$0xff]
        %v823 = vld [vmem:[%s813 + $0x48] sm:$0xff]
        %v824 = vld [vmem:[%s813 + $0x50] sm:$0xff]
        %v825 = vld [vmem:[%s813 + $0x58] sm:$0xff]
        %v826 = vld [vmem:[%s813 + $0x60] sm:$0xff]
        %v827 = vld [vmem:[%s813 + $0x68] sm:$0xff]
        %v828 = vld [vmem:[%s813 + $0x70] sm:$0xff]
        %v829 = vld [vmem:[%s813 + $0x78] sm:$0xff]
        %s830 = scalar_lea.vmem %s4, 32
        %v831 = vld [vmem:[%s830] sm:$0xff]
        %v832 = vld [vmem:[%s830 + $0x8] sm:$0xff]
        %v833 = vld [vmem:[%s830 + $0x10] sm:$0xff]
        %v834 = vld [vmem:[%s830 + $0x18] sm:$0xff]
        %v836 = vsel %vm602, %v814, 0
        %v839 = vsel %vm602, %v815, 0
        %v842 = vsel %vm602, %v816, 0
        %v845 = vsel %vm602, %v817, 0
        %v848 = vsel %vm602, %v818, 0
        %v851 = vsel %vm602, %v819, 0
        %v854 = vsel %vm602, %v820, 0
        %v857 = vsel %vm602, %v821, 0
        %v860 = vsel %vm602, %v822, 0
        %v863 = vsel %vm602, %v823, 0
        %v866 = vsel %vm602, %v824, 0
        %v869 = vsel %vm602, %v825, 0
        %v872 = vsel %vm602, %v826, 0
        %v875 = vsel %vm602, %v827, 0
        %v878 = vsel %vm602, %v828, 0
        %v881 = vsel %vm602, %v829, 0
        %883 = vmatprep.subr.mxu0 0.0
        %884 = vmatpush1.msra.mxu0 %v831
        %885 = vmatprep.subr.mxu0 0.0
        %886 = vmatpush1.msra.mxu0 %v832
        %887 = vmatprep.subr.mxu0 0.0
        %888 = vmatpush1.msra.mxu0 %v833
        %889 = vmatprep.subr.mxu0 0.0
        %890 = vmatpush1.msra.mxu0 %v834
        %891 = vmatprep.subr.mxu0 0.0
        %892 = vmatpush1.msra.mxu0 0.0
        %893 = vmatprep.subr.mxu0 0.0
        %894 = vmatpush1.msra.mxu0 0.0
        %895 = vmatprep.subr.mxu0 0.0
        %896 = vmatpush1.msra.mxu0 0.0
        %897 = vmatprep.subr.mxu0 0.0
        %898 = vmatpush1.msra.mxu0 0.0
        %899 = vmatprep.subr.mxu0 0.0
        %900 = vmatpush1.msra.mxu0 0.0
        %901 = vmatprep.subr.mxu0 0.0
        %902 = vmatpush1.msra.mxu0 0.0
        %903 = vmatprep.subr.mxu0 0.0
        %904 = vmatpush1.msra.mxu0 0.0
        %905 = vmatprep.subr.mxu0 0.0
        %906 = vmatpush1.msra.mxu0 0.0
        %907 = vmatprep.subr.mxu0 0.0
        %908 = vmatpush1.msra.mxu0 0.0
        %909 = vmatprep.subr.mxu0 0.0
        %910 = vmatpush1.msra.mxu0 0.0
        %911 = vmatprep.subr.mxu0 0.0
        %912 = vmatpush1.msra.mxu0 0.0
        %913 = vmatprep.subr.mxu0 0.0
        %914 = vmatpush1.msra.mxu0 0.0
        %915 = vmatprep.subr.mxu0 0.0
        %916 = vmatpush1.msra.mxu0 0.0
        %917 = vmatprep.subr.mxu0 0.0
        %918 = vmatpush1.msra.mxu0 0.0
        %919 = vmatprep.subr.mxu0 0.0
        %920 = vmatpush1.msra.mxu0 0.0
        %921 = vmatprep.subr.mxu0 0.0
        %922 = vmatpush1.msra.mxu0 0.0
        %923 = vmatprep.subr.mxu0 0.0
        %924 = vmatpush1.msra.mxu0 0.0
        %925 = vmatprep.subr.mxu0 0.0
        %926 = vmatpush1.msra.mxu0 0.0
        %927 = vmatprep.subr.mxu0 0.0
        %928 = vmatpush1.msra.mxu0 0.0
        %929 = vmatprep.subr.mxu0 0.0
        %930 = vmatpush1.msra.mxu0 0.0
        %931 = vmatprep.subr.mxu0 0.0
        %932 = vmatpush1.msra.mxu0 0.0
        %933 = vmatprep.subr.mxu0 0.0
        %934 = vmatpush1.msra.mxu0 0.0
        %935 = vmatprep.subr.mxu0 0.0
        %936 = vmatpush1.msra.mxu0 0.0
        %937 = vmatprep.subr.mxu0 0.0
        %938 = vmatpush1.msra.mxu0 0.0
        %939 = vmatprep.subr.mxu0 0.0
        %940 = vmatpush1.msra.mxu0 0.0
        %941 = vmatprep.subr.mxu0 0.0
        %942 = vmatpush1.msra.mxu0 0.0
        %943 = vmatprep.subr.mxu0 0.0
        %944 = vmatpush1.msra.mxu0 0.0
        %945 = vmatprep.subr.mxu0 0.0
        %946 = vmatpush1.msra.mxu0 0.0
        %947 = vmatprep.mubr.f32.mxu0 0.0
        %948 = vmatmul.mubr.f32.gmra.mrb[0].mxu0 %v836
        %v949 = vpop.f32.mrb[0].mxu0
        %v950 = vadd.f32 0.0, %v949
        %v951 = vpop.f32.mrb[0].mxu0
        %952 = vmatprep.mubr.f32.mxu0 0.0
        %953 = vmatmul.mubr.f32.gmra.mrb[0].mxu0 %v839
        %v954 = vpop.f32.mrb[0].mxu0
        %v955 = vadd.f32 0.0, %v954
        %v956 = vpop.f32.mrb[0].mxu0
        %957 = vmatprep.mubr.f32.mxu0 0.0
        %958 = vmatmul.mubr.f32.gmra.mrb[0].mxu0 %v842
        %v959 = vpop.f32.mrb[0].mxu0
        %v960 = vadd.f32 0.0, %v959
        %v961 = vpop.f32.mrb[0].mxu0
        %962 = vmatprep.mubr.f32.mxu0 0.0
        %963 = vmatmul.mubr.f32.gmra.mrb[0].mxu0 %v845
        %v964 = vpop.f32.mrb[0].mxu0
        %v965 = vadd.f32 0.0, %v964
        %v966 = vpop.f32.mrb[0].mxu0
        %967 = vmatprep.mubr.f32.mxu0 0.0
        %968 = vmatmul.mubr.f32.gmra.mrb[0].mxu0 %v848
        %v969 = vpop.f32.mrb[0].mxu0
        %v970 = vadd.f32 0.0, %v969
        %v971 = vpop.f32.mrb[0].mxu0
        %972 = vmatprep.mubr.f32.mxu0 0.0
        %973 = vmatmul.mubr.f32.gmra.mrb[0].mxu0 %v851
        %v974 = vpop.f32.mrb[0].mxu0
        %v975 = vadd.f32 0.0, %v974
        %v976 = vpop.f32.mrb[0].mxu0
        %977 = vmatprep.mubr.f32.mxu0 0.0
        %978 = vmatmul.mubr.f32.gmra.mrb[0].mxu0 %v854
        %v979 = vpop.f32.mrb[0].mxu0
        %v980 = vadd.f32 0.0, %v979
        %v981 = vpop.f32.mrb[0].mxu0
        %982 = vmatprep.mubr.f32.mxu0 0.0
        %983 = vmatmul.mubr.f32.gmra.mrb[0].mxu0 %v857
        %v984 = vpop.f32.mrb[0].mxu0
        %v985 = vadd.f32 0.0, %v984
        %v986 = vpop.f32.mrb[0].mxu0
        %987 = vmatprep.mubr.f32.mxu0 0.0
        %988 = vmatmul.mubr.f32.gmra.mrb[0].mxu0 %v860
        %v989 = vpop.f32.mrb[0].mxu0
        %v990 = vadd.f32 0.0, %v989
        %v991 = vpop.f32.mrb[0].mxu0
        %992 = vmatprep.mubr.f32.mxu0 0.0
        %993 = vmatmul.mubr.f32.gmra.mrb[0].mxu0 %v863
        %v994 = vpop.f32.mrb[0].mxu0
        %v995 = vadd.f32 0.0, %v994
        %v996 = vpop.f32.mrb[0].mxu0
        %997 = vmatprep.mubr.f32.mxu0 0.0
        %998 = vmatmul.mubr.f32.gmra.mrb[0].mxu0 %v866
        %v999 = vpop.f32.mrb[0].mxu0
        %v1000 = vadd.f32 0.0, %v999
        %v1001 = vpop.f32.mrb[0].mxu0
        %1002 = vmatprep.mubr.f32.mxu0 0.0
        %1003 = vmatmul.mubr.f32.gmra.mrb[0].mxu0 %v869
        %v1004 = vpop.f32.mrb[0].mxu0
        %v1005 = vadd.f32 0.0, %v1004
        %v1006 = vpop.f32.mrb[0].mxu0
        %1007 = vmatprep.mubr.f32.mxu0 0.0
        %1008 = vmatmul.mubr.f32.gmra.mrb[0].mxu0 %v872
        %v1009 = vpop.f32.mrb[0].mxu0
        %v1010 = vadd.f32 0.0, %v1009
        %v1011 = vpop.f32.mrb[0].mxu0
        %1012 = vmatprep.mubr.f32.mxu0 0.0
        %1013 = vmatmul.mubr.f32.gmra.mrb[0].mxu0 %v875
        %v1014 = vpop.f32.mrb[0].mxu0
        %v1015 = vadd.f32 0.0, %v1014
        %v1016 = vpop.f32.mrb[0].mxu0
        %1017 = vmatprep.mubr.f32.mxu0 0.0
        %1018 = vmatmul.mubr.f32.gmra.mrb[0].mxu0 %v878
        %v1019 = vpop.f32.mrb[0].mxu0
        %v1020 = vadd.f32 0.0, %v1019
        %v1021 = vpop.f32.mrb[0].mxu0
        %1022 = vmatprep.mubr.f32.mxu0 0.0
        %1023 = vmatmul.mubr.f32.gmra.mrb[0].mxu0 %v881
        %v1024 = vpop.f32.mrb[0].mxu0
        %v1025 = vadd.f32 0.0, %v1024
        %v1026 = vpop.f32.mrb[0].mxu0
        %1027 = vdwg.mxu0
        %v1028 = vadd.f32 %v796, %v950
        %v1029 = vadd.f32 %v797, %v955
        %v1030 = vadd.f32 %v798, %v960
        %v1031 = vadd.f32 %v799, %v965
        %v1032 = vadd.f32 %v800, %v970
        %v1033 = vadd.f32 %v801, %v975
        %v1034 = vadd.f32 %v802, %v980
        %v1035 = vadd.f32 %v803, %v985
        %v1036 = vadd.f32 %v804, %v990
        %v1037 = vadd.f32 %v805, %v995
        %v1038 = vadd.f32 %v806, %v1000
        %v1039 = vadd.f32 %v807, %v1005
        %v1040 = vadd.f32 %v808, %v1010
        %v1041 = vadd.f32 %v809, %v1015
        %v1042 = vadd.f32 %v810, %v1020
        %v1043 = vadd.f32 %v811, %v1025
        %s1044 = scalar_lea.vmem %s519, %s571
        %v1045 = vld [vmem:[%s1044] sm:$0xff]
        %v1046 = vld [vmem:[%s1044 + $0x8] sm:$0xff]
        %v1047 = vld [vmem:[%s1044 + $0x10] sm:$0xff]
        %v1048 = vld [vmem:[%s1044 + $0x18] sm:$0xff]
        %v1049 = vld [vmem:[%s1044 + $0x20] sm:$0xff]
        %v1050 = vld [vmem:[%s1044 + $0x28] sm:$0xff]
        %v1051 = vld [vmem:[%s1044 + $0x30] sm:$0xff]
        %v1052 = vld [vmem:[%s1044 + $0x38] sm:$0xff]
        %v1053 = vld [vmem:[%s1044 + $0x40] sm:$0xff]
        %v1054 = vld [vmem:[%s1044 + $0x48] sm:$0xff]
        %v1055 = vld [vmem:[%s1044 + $0x50] sm:$0xff]
        %v1056 = vld [vmem:[%s1044 + $0x58] sm:$0xff]
        %v1057 = vld [vmem:[%s1044 + $0x60] sm:$0xff]
        %v1058 = vld [vmem:[%s1044 + $0x68] sm:$0xff]
        %v1059 = vld [vmem:[%s1044 + $0x70] sm:$0xff]
        %v1060 = vld [vmem:[%s1044 + $0x78] sm:$0xff]
        %s1061 = scalar_lea.vmem %s4, 64
        %v1062 = vld [vmem:[%s1061] sm:$0xff]
        %v1063 = vld [vmem:[%s1061 + $0x8] sm:$0xff]
        %v1064 = vld [vmem:[%s1061 + $0x10] sm:$0xff]
        %v1065 = vld [vmem:[%s1061 + $0x18] sm:$0xff]
        %v1067 = vsel %vm602, %v1045, 0
        %v1070 = vsel %vm602, %v1046, 0
        %v1073 = vsel %vm602, %v1047, 0
        %v1076 = vsel %vm602, %v1048, 0
        %v1079 = vsel %vm602, %v1049, 0
        %v1082 = vsel %vm602, %v1050, 0
        %v1085 = vsel %vm602, %v1051, 0
        %v1088 = vsel %vm602, %v1052, 0
        %v1091 = vsel %vm602, %v1053, 0
        %v1094 = vsel %vm602, %v1054, 0
        %v1097 = vsel %vm602, %v1055, 0
        %v1100 = vsel %vm602, %v1056, 0
        %v1103 = vsel %vm602, %v1057, 0
        %v1106 = vsel %vm602, %v1058, 0
        %v1109 = vsel %vm602, %v1059, 0
        %v1112 = vsel %vm602, %v1060, 0
        %1114 = vmatprep.subr.mxu0 0.0
        %1115 = vmatpush1.msra.mxu0 %v1062
        %1116 = vmatprep.subr.mxu0 0.0
        %1117 = vmatpush1.msra.mxu0 %v1063
        %1118 = vmatprep.subr.mxu0 0.0
        %1119 = vmatpush1.msra.mxu0 %v1064
        %1120 = vmatprep.subr.mxu0 0.0
        %1121 = vmatpush1.msra.mxu0 %v1065
        %1122 = vmatprep.subr.mxu0 0.0
        %1123 = vmatpush1.msra.mxu0 0.0
        %1124 = vmatprep.subr.mxu0 0.0
        %1125 = vmatpush1.msra.mxu0 0.0
        %1126 = vmatprep.subr.mxu0 0.0
        %1127 = vmatpush1.msra.mxu0 0.0
        %1128 = vmatprep.subr.mxu0 0.0
        %1129 = vmatpush1.msra.mxu0 0.0
        %1130 = vmatprep.subr.mxu0 0.0
        %1131 = vmatpush1.msra.mxu0 0.0
        %1132 = vmatprep.subr.mxu0 0.0
        %1133 = vmatpush1.msra.mxu0 0.0
        %1134 = vmatprep.subr.mxu0 0.0
        %1135 = vmatpush1.msra.mxu0 0.0
        %1136 = vmatprep.subr.mxu0 0.0
        %1137 = vmatpush1.msra.mxu0 0.0
        %1138 = vmatprep.subr.mxu0 0.0
        %1139 = vmatpush1.msra.mxu0 0.0
        %1140 = vmatprep.subr.mxu0 0.0
        %1141 = vmatpush1.msra.mxu0 0.0
        %1142 = vmatprep.subr.mxu0 0.0
        %1143 = vmatpush1.msra.mxu0 0.0
        %1144 = vmatprep.subr.mxu0 0.0
        %1145 = vmatpush1.msra.mxu0 0.0
        %1146 = vmatprep.subr.mxu0 0.0
        %1147 = vmatpush1.msra.mxu0 0.0
        %1148 = vmatprep.subr.mxu0 0.0
        %1149 = vmatpush1.msra.mxu0 0.0
        %1150 = vmatprep.subr.mxu0 0.0
        %1151 = vmatpush1.msra.mxu0 0.0
        %1152 = vmatprep.subr.mxu0 0.0
        %1153 = vmatpush1.msra.mxu0 0.0
        %1154 = vmatprep.subr.mxu0 0.0
        %1155 = vmatpush1.msra.mxu0 0.0
        %1156 = vmatprep.subr.mxu0 0.0
        %1157 = vmatpush1.msra.mxu0 0.0
        %1158 = vmatprep.subr.mxu0 0.0
        %1159 = vmatpush1.msra.mxu0 0.0
        %1160 = vmatprep.subr.mxu0 0.0
        %1161 = vmatpush1.msra.mxu0 0.0
        %1162 = vmatprep.subr.mxu0 0.0
        %1163 = vmatpush1.msra.mxu0 0.0
        %1164 = vmatprep.subr.mxu0 0.0
        %1165 = vmatpush1.msra.mxu0 0.0
        %1166 = vmatprep.subr.mxu0 0.0
        %1167 = vmatpush1.msra.mxu0 0.0
        %1168 = vmatprep.subr.mxu0 0.0
        %1169 = vmatpush1.msra.mxu0 0.0
        %1170 = vmatprep.subr.mxu0 0.0
        %1171 = vmatpush1.msra.mxu0 0.0
        %1172 = vmatprep.subr.mxu0 0.0
        %1173 = vmatpush1.msra.mxu0 0.0
        %1174 = vmatprep.subr.mxu0 0.0
        %1175 = vmatpush1.msra.mxu0 0.0
        %1176 = vmatprep.subr.mxu0 0.0
        %1177 = vmatpush1.msra.mxu0 0.0
        %1178 = vmatprep.mubr.f32.mxu0 0.0
        %1179 = vmatmul.mubr.f32.gmra.mrb[0].mxu0 %v1067
        %v1180 = vpop.f32.mrb[0].mxu0
        %v1181 = vadd.f32 0.0, %v1180
        %v1182 = vpop.f32.mrb[0].mxu0
        %1183 = vmatprep.mubr.f32.mxu0 0.0
        %1184 = vmatmul.mubr.f32.gmra.mrb[0].mxu0 %v1070
        %v1185 = vpop.f32.mrb[0].mxu0
        %v1186 = vadd.f32 0.0, %v1185
        %v1187 = vpop.f32.mrb[0].mxu0
        %1188 = vmatprep.mubr.f32.mxu0 0.0
        %1189 = vmatmul.mubr.f32.gmra.mrb[0].mxu0 %v1073
        %v1190 = vpop.f32.mrb[0].mxu0
        %v1191 = vadd.f32 0.0, %v1190
        %v1192 = vpop.f32.mrb[0].mxu0
        %1193 = vmatprep.mubr.f32.mxu0 0.0
        %1194 = vmatmul.mubr.f32.gmra.mrb[0].mxu0 %v1076
        %v1195 = vpop.f32.mrb[0].mxu0
        %v1196 = vadd.f32 0.0, %v1195
        %v1197 = vpop.f32.mrb[0].mxu0
        %1198 = vmatprep.mubr.f32.mxu0 0.0
        %1199 = vmatmul.mubr.f32.gmra.mrb[0].mxu0 %v1079
        %v1200 = vpop.f32.mrb[0].mxu0
        %v1201 = vadd.f32 0.0, %v1200
        %v1202 = vpop.f32.mrb[0].mxu0
        %1203 = vmatprep.mubr.f32.mxu0 0.0
        %1204 = vmatmul.mubr.f32.gmra.mrb[0].mxu0 %v1082
        %v1205 = vpop.f32.mrb[0].mxu0
        %v1206 = vadd.f32 0.0, %v1205
        %v1207 = vpop.f32.mrb[0].mxu0
        %1208 = vmatprep.mubr.f32.mxu0 0.0
        %1209 = vmatmul.mubr.f32.gmra.mrb[0].mxu0 %v1085
        %v1210 = vpop.f32.mrb[0].mxu0
        %v1211 = vadd.f32 0.0, %v1210
        %v1212 = vpop.f32.mrb[0].mxu0
        %1213 = vmatprep.mubr.f32.mxu0 0.0
        %1214 = vmatmul.mubr.f32.gmra.mrb[0].mxu0 %v1088
        %v1215 = vpop.f32.mrb[0].mxu0
        %v1216 = vadd.f32 0.0, %v1215
        %v1217 = vpop.f32.mrb[0].mxu0
        %1218 = vmatprep.mubr.f32.mxu0 0.0
        %1219 = vmatmul.mubr.f32.gmra.mrb[0].mxu0 %v1091
        %v1220 = vpop.f32.mrb[0].mxu0
        %v1221 = vadd.f32 0.0, %v1220
        %v1222 = vpop.f32.mrb[0].mxu0
        %1223 = vmatprep.mubr.f32.mxu0 0.0
        %1224 = vmatmul.mubr.f32.gmra.mrb[0].mxu0 %v1094
        %v1225 = vpop.f32.mrb[0].mxu0
        %v1226 = vadd.f32 0.0, %v1225
        %v1227 = vpop.f32.mrb[0].mxu0
        %1228 = vmatprep.mubr.f32.mxu0 0.0
        %1229 = vmatmul.mubr.f32.gmra.mrb[0].mxu0 %v1097
        %v1230 = vpop.f32.mrb[0].mxu0
        %v1231 = vadd.f32 0.0, %v1230
        %v1232 = vpop.f32.mrb[0].mxu0
        %1233 = vmatprep.mubr.f32.mxu0 0.0
        %1234 = vmatmul.mubr.f32.gmra.mrb[0].mxu0 %v1100
        %v1235 = vpop.f32.mrb[0].mxu0
        %v1236 = vadd.f32 0.0, %v1235
        %v1237 = vpop.f32.mrb[0].mxu0
        %1238 = vmatprep.mubr.f32.mxu0 0.0
        %1239 = vmatmul.mubr.f32.gmra.mrb[0].mxu0 %v1103
        %v1240 = vpop.f32.mrb[0].mxu0
        %v1241 = vadd.f32 0.0, %v1240
        %v1242 = vpop.f32.mrb[0].mxu0
        %1243 = vmatprep.mubr.f32.mxu0 0.0
        %1244 = vmatmul.mubr.f32.gmra.mrb[0].mxu0 %v1106
        %v1245 = vpop.f32.mrb[0].mxu0
        %v1246 = vadd.f32 0.0, %v1245
        %v1247 = vpop.f32.mrb[0].mxu0
        %1248 = vmatprep.mubr.f32.mxu0 0.0
        %1249 = vmatmul.mubr.f32.gmra.mrb[0].mxu0 %v1109
        %v1250 = vpop.f32.mrb[0].mxu0
        %v1251 = vadd.f32 0.0, %v1250
        %v1252 = vpop.f32.mrb[0].mxu0
        %1253 = vmatprep.mubr.f32.mxu0 0.0
        %1254 = vmatmul.mubr.f32.gmra.mrb[0].mxu0 %v1112
        %v1255 = vpop.f32.mrb[0].mxu0
        %v1256 = vadd.f32 0.0, %v1255
        %v1257 = vpop.f32.mrb[0].mxu0
        %1258 = vdwg.mxu0
        %v1259 = vadd.f32 %v1028, %v1181
        %v1260 = vadd.f32 %v1029, %v1186
        %v1261 = vadd.f32 %v1030, %v1191
        %v1262 = vadd.f32 %v1031, %v1196
        %v1263 = vadd.f32 %v1032, %v1201
        %v1264 = vadd.f32 %v1033, %v1206
        %v1265 = vadd.f32 %v1034, %v1211
        %v1266 = vadd.f32 %v1035, %v1216
        %v1267 = vadd.f32 %v1036, %v1221
        %v1268 = vadd.f32 %v1037, %v1226
        %v1269 = vadd.f32 %v1038, %v1231
        %v1270 = vadd.f32 %v1039, %v1236
        %v1271 = vadd.f32 %v1040, %v1241
        %v1272 = vadd.f32 %v1041, %v1246
        %v1273 = vadd.f32 %v1042, %v1251
        %v1274 = vadd.f32 %v1043, %v1256
        %s1275 = sadd.s32 %s571, 8
        %s1276 = scalar_lea.vmem %s519, %s1275
        %v1277 = vld [vmem:[%s1276] sm:$0xff]
        %v1278 = vld [vmem:[%s1276 + $0x8] sm:$0xff]
        %v1279 = vld [vmem:[%s1276 + $0x10] sm:$0xff]
        %v1280 = vld [vmem:[%s1276 + $0x18] sm:$0xff]
        %v1281 = vld [vmem:[%s1276 + $0x20] sm:$0xff]
        %v1282 = vld [vmem:[%s1276 + $0x28] sm:$0xff]
        %v1283 = vld [vmem:[%s1276 + $0x30] sm:$0xff]
        %v1284 = vld [vmem:[%s1276 + $0x38] sm:$0xff]
        %v1285 = vld [vmem:[%s1276 + $0x40] sm:$0xff]
        %v1286 = vld [vmem:[%s1276 + $0x48] sm:$0xff]
        %v1287 = vld [vmem:[%s1276 + $0x50] sm:$0xff]
        %v1288 = vld [vmem:[%s1276 + $0x58] sm:$0xff]
        %v1289 = vld [vmem:[%s1276 + $0x60] sm:$0xff]
        %v1290 = vld [vmem:[%s1276 + $0x68] sm:$0xff]
        %v1291 = vld [vmem:[%s1276 + $0x70] sm:$0xff]
        %v1292 = vld [vmem:[%s1276 + $0x78] sm:$0xff]
        %s1293 = scalar_lea.vmem %s4, 96
        %v1294 = vld [vmem:[%s1293] sm:$0xff]
        %v1295 = vld [vmem:[%s1293 + $0x8] sm:$0xff]
        %v1296 = vld [vmem:[%s1293 + $0x10] sm:$0xff]
        %v1297 = vld [vmem:[%s1293 + $0x18] sm:$0xff]
        %v1299 = vsel %vm602, %v1277, 0
        %v1302 = vsel %vm602, %v1278, 0
        %v1305 = vsel %vm602, %v1279, 0
        %v1308 = vsel %vm602, %v1280, 0
        %v1311 = vsel %vm602, %v1281, 0
        %v1314 = vsel %vm602, %v1282, 0
        %v1317 = vsel %vm602, %v1283, 0
        %v1320 = vsel %vm602, %v1284, 0
        %v1323 = vsel %vm602, %v1285, 0
        %v1326 = vsel %vm602, %v1286, 0
        %v1329 = vsel %vm602, %v1287, 0
        %v1332 = vsel %vm602, %v1288, 0
        %v1335 = vsel %vm602, %v1289, 0
        %v1338 = vsel %vm602, %v1290, 0
        %v1341 = vsel %vm602, %v1291, 0
        %v1344 = vsel %vm602, %v1292, 0
        %1346 = vmatprep.subr.mxu0 0.0
        %1347 = vmatpush1.msra.mxu0 %v1294
        %1348 = vmatprep.subr.mxu0 0.0
        %1349 = vmatpush1.msra.mxu0 %v1295
        %1350 = vmatprep.subr.mxu0 0.0
        %1351 = vmatpush1.msra.mxu0 %v1296
        %1352 = vmatprep.subr.mxu0 0.0
        %1353 = vmatpush1.msra.mxu0 %v1297
        %1354 = vmatprep.subr.mxu0 0.0
        %1355 = vmatpush1.msra.mxu0 0.0
        %1356 = vmatprep.subr.mxu0 0.0
        %1357 = vmatpush1.msra.mxu0 0.0
        %1358 = vmatprep.subr.mxu0 0.0
        %1359 = vmatpush1.msra.mxu0 0.0
        %1360 = vmatprep.subr.mxu0 0.0
        %1361 = vmatpush1.msra.mxu0 0.0
        %1362 = vmatprep.subr.mxu0 0.0
        %1363 = vmatpush1.msra.mxu0 0.0
        %1364 = vmatprep.subr.mxu0 0.0
        %1365 = vmatpush1.msra.mxu0 0.0
        %1366 = vmatprep.subr.mxu0 0.0
        %1367 = vmatpush1.msra.mxu0 0.0
        %1368 = vmatprep.subr.mxu0 0.0
        %1369 = vmatpush1.msra.mxu0 0.0
        %1370 = vmatprep.subr.mxu0 0.0
        %1371 = vmatpush1.msra.mxu0 0.0
        %1372 = vmatprep.subr.mxu0 0.0
        %1373 = vmatpush1.msra.mxu0 0.0
        %1374 = vmatprep.subr.mxu0 0.0
        %1375 = vmatpush1.msra.mxu0 0.0
        %1376 = vmatprep.subr.mxu0 0.0
        %1377 = vmatpush1.msra.mxu0 0.0
        %1378 = vmatprep.subr.mxu0 0.0
        %1379 = vmatpush1.msra.mxu0 0.0
        %1380 = vmatprep.subr.mxu0 0.0
        %1381 = vmatpush1.msra.mxu0 0.0
        %1382 = vmatprep.subr.mxu0 0.0
        %1383 = vmatpush1.msra.mxu0 0.0
        %1384 = vmatprep.subr.mxu0 0.0
        %1385 = vmatpush1.msra.mxu0 0.0
        %1386 = vmatprep.subr.mxu0 0.0
        %1387 = vmatpush1.msra.mxu0 0.0
        %1388 = vmatprep.subr.mxu0 0.0
        %1389 = vmatpush1.msra.mxu0 0.0
        %1390 = vmatprep.subr.mxu0 0.0
        %1391 = vmatpush1.msra.mxu0 0.0
        %1392 = vmatprep.subr.mxu0 0.0
        %1393 = vmatpush1.msra.mxu0 0.0
        %1394 = vmatprep.subr.mxu0 0.0
        %1395 = vmatpush1.msra.mxu0 0.0
        %1396 = vmatprep.subr.mxu0 0.0
        %1397 = vmatpush1.msra.mxu0 0.0
        %1398 = vmatprep.subr.mxu0 0.0
        %1399 = vmatpush1.msra.mxu0 0.0
        %1400 = vmatprep.subr.mxu0 0.0
        %1401 = vmatpush1.msra.mxu0 0.0
        %1402 = vmatprep.subr.mxu0 0.0
        %1403 = vmatpush1.msra.mxu0 0.0
        %1404 = vmatprep.subr.mxu0 0.0
        %1405 = vmatpush1.msra.mxu0 0.0
        %1406 = vmatprep.subr.mxu0 0.0
        %1407 = vmatpush1.msra.mxu0 0.0
        %1408 = vmatprep.subr.mxu0 0.0
        %1409 = vmatpush1.msra.mxu0 0.0
        %1410 = vmatprep.mubr.f32.mxu0 0.0
        %1411 = vmatmul.mubr.f32.gmra.mrb[0].mxu0 %v1299
        %v1412 = vpop.f32.mrb[0].mxu0
        %v1413 = vadd.f32 0.0, %v1412
        %v1414 = vpop.f32.mrb[0].mxu0
        %1415 = vmatprep.mubr.f32.mxu0 0.0
        %1416 = vmatmul.mubr.f32.gmra.mrb[0].mxu0 %v1302
        %v1417 = vpop.f32.mrb[0].mxu0
        %v1418 = vadd.f32 0.0, %v1417
        %v1419 = vpop.f32.mrb[0].mxu0
        %1420 = vmatprep.mubr.f32.mxu0 0.0
        %1421 = vmatmul.mubr.f32.gmra.mrb[0].mxu0 %v1305
        %v1422 = vpop.f32.mrb[0].mxu0
        %v1423 = vadd.f32 0.0, %v1422
        %v1424 = vpop.f32.mrb[0].mxu0
        %1425 = vmatprep.mubr.f32.mxu0 0.0
        %1426 = vmatmul.mubr.f32.gmra.mrb[0].mxu0 %v1308
        %v1427 = vpop.f32.mrb[0].mxu0
        %v1428 = vadd.f32 0.0, %v1427
        %v1429 = vpop.f32.mrb[0].mxu0
        %1430 = vmatprep.mubr.f32.mxu0 0.0
        %1431 = vmatmul.mubr.f32.gmra.mrb[0].mxu0 %v1311
        %v1432 = vpop.f32.mrb[0].mxu0
        %v1433 = vadd.f32 0.0, %v1432
        %v1434 = vpop.f32.mrb[0].mxu0
        %1435 = vmatprep.mubr.f32.mxu0 0.0
        %1436 = vmatmul.mubr.f32.gmra.mrb[0].mxu0 %v1314
        %v1437 = vpop.f32.mrb[0].mxu0
        %v1438 = vadd.f32 0.0, %v1437
        %v1439 = vpop.f32.mrb[0].mxu0
        %1440 = vmatprep.mubr.f32.mxu0 0.0
        %1441 = vmatmul.mubr.f32.gmra.mrb[0].mxu0 %v1317
        %v1442 = vpop.f32.mrb[0].mxu0
        %v1443 = vadd.f32 0.0, %v1442
        %v1444 = vpop.f32.mrb[0].mxu0
        %1445 = vmatprep.mubr.f32.mxu0 0.0
        %1446 = vmatmul.mubr.f32.gmra.mrb[0].mxu0 %v1320
        %v1447 = vpop.f32.mrb[0].mxu0
        %v1448 = vadd.f32 0.0, %v1447
        %v1449 = vpop.f32.mrb[0].mxu0
        %1450 = vmatprep.mubr.f32.mxu0 0.0
        %1451 = vmatmul.mubr.f32.gmra.mrb[0].mxu0 %v1323
        %v1452 = vpop.f32.mrb[0].mxu0
        %v1453 = vadd.f32 0.0, %v1452
        %v1454 = vpop.f32.mrb[0].mxu0
        %1455 = vmatprep.mubr.f32.mxu0 0.0
        %1456 = vmatmul.mubr.f32.gmra.mrb[0].mxu0 %v1326
        %v1457 = vpop.f32.mrb[0].mxu0
        %v1458 = vadd.f32 0.0, %v1457
        %v1459 = vpop.f32.mrb[0].mxu0
        %1460 = vmatprep.mubr.f32.mxu0 0.0
        %1461 = vmatmul.mubr.f32.gmra.mrb[0].mxu0 %v1329
        %v1462 = vpop.f32.mrb[0].mxu0
        %v1463 = vadd.f32 0.0, %v1462
        %v1464 = vpop.f32.mrb[0].mxu0
        %1465 = vmatprep.mubr.f32.mxu0 0.0
        %1466 = vmatmul.mubr.f32.gmra.mrb[0].mxu0 %v1332
        %v1467 = vpop.f32.mrb[0].mxu0
        %v1468 = vadd.f32 0.0, %v1467
        %v1469 = vpop.f32.mrb[0].mxu0
        %1470 = vmatprep.mubr.f32.mxu0 0.0
        %1471 = vmatmul.mubr.f32.gmra.mrb[0].mxu0 %v1335
        %v1472 = vpop.f32.mrb[0].mxu0
        %v1473 = vadd.f32 0.0, %v1472
        %v1474 = vpop.f32.mrb[0].mxu0
        %1475 = vmatprep.mubr.f32.mxu0 0.0
        %1476 = vmatmul.mubr.f32.gmra.mrb[0].mxu0 %v1338
        %v1477 = vpop.f32.mrb[0].mxu0
        %v1478 = vadd.f32 0.0, %v1477
        %v1479 = vpop.f32.mrb[0].mxu0
        %1480 = vmatprep.mubr.f32.mxu0 0.0
        %1481 = vmatmul.mubr.f32.gmra.mrb[0].mxu0 %v1341
        %v1482 = vpop.f32.mrb[0].mxu0
        %v1483 = vadd.f32 0.0, %v1482
        %v1484 = vpop.f32.mrb[0].mxu0
        %1485 = vmatprep.mubr.f32.mxu0 0.0
        %1486 = vmatmul.mubr.f32.gmra.mrb[0].mxu0 %v1344
        %v1487 = vpop.f32.mrb[0].mxu0
        %v1488 = vadd.f32 0.0, %v1487
        %v1489 = vpop.f32.mrb[0].mxu0
        %1490 = vdwg.mxu0
        %v1491 = vadd.f32 %v1259, %v1413
        %v1492 = vadd.f32 %v1260, %v1418
        %v1493 = vadd.f32 %v1261, %v1423
        %v1494 = vadd.f32 %v1262, %v1428
        %v1495 = vadd.f32 %v1263, %v1433
        %v1496 = vadd.f32 %v1264, %v1438
        %v1497 = vadd.f32 %v1265, %v1443
        %v1498 = vadd.f32 %v1266, %v1448
        %v1499 = vadd.f32 %v1267, %v1453
        %v1500 = vadd.f32 %v1268, %v1458
        %v1501 = vadd.f32 %v1269, %v1463
        %v1502 = vadd.f32 %v1270, %v1468
        %v1503 = vadd.f32 %v1271, %v1473
        %v1504 = vadd.f32 %v1272, %v1478
        %v1505 = vadd.f32 %v1273, %v1483
        %v1506 = vadd.f32 %v1274, %v1488
        %s1507 = sadd.s32 %s571, 16
        %s1508 = scalar_lea.vmem %s519, %s1507
        %v1509 = vld [vmem:[%s1508] sm:$0xff]
        %v1510 = vld [vmem:[%s1508 + $0x8] sm:$0xff]
        %v1511 = vld [vmem:[%s1508 + $0x10] sm:$0xff]
        %v1512 = vld [vmem:[%s1508 + $0x18] sm:$0xff]
        %v1513 = vld [vmem:[%s1508 + $0x20] sm:$0xff]
        %v1514 = vld [vmem:[%s1508 + $0x28] sm:$0xff]
        %v1515 = vld [vmem:[%s1508 + $0x30] sm:$0xff]
        %v1516 = vld [vmem:[%s1508 + $0x38] sm:$0xff]
        %v1517 = vld [vmem:[%s1508 + $0x40] sm:$0xff]
        %v1518 = vld [vmem:[%s1508 + $0x48] sm:$0xff]
        %v1519 = vld [vmem:[%s1508 + $0x50] sm:$0xff]
        %v1520 = vld [vmem:[%s1508 + $0x58] sm:$0xff]
        %v1521 = vld [vmem:[%s1508 + $0x60] sm:$0xff]
        %v1522 = vld [vmem:[%s1508 + $0x68] sm:$0xff]
        %v1523 = vld [vmem:[%s1508 + $0x70] sm:$0xff]
        %v1524 = vld [vmem:[%s1508 + $0x78] sm:$0xff]
        %s1525 = scalar_lea.vmem %s4, 128
        %v1526 = vld [vmem:[%s1525] sm:$0xff]
        %v1527 = vld [vmem:[%s1525 + $0x8] sm:$0xff]
        %v1528 = vld [vmem:[%s1525 + $0x10] sm:$0xff]
        %v1529 = vld [vmem:[%s1525 + $0x18] sm:$0xff]
        %v1531 = vsel %vm602, %v1509, 0
        %v1534 = vsel %vm602, %v1510, 0
        %v1537 = vsel %vm602, %v1511, 0
        %v1540 = vsel %vm602, %v1512, 0
        %v1543 = vsel %vm602, %v1513, 0
        %v1546 = vsel %vm602, %v1514, 0
        %v1549 = vsel %vm602, %v1515, 0
        %v1552 = vsel %vm602, %v1516, 0
        %v1555 = vsel %vm602, %v1517, 0
        %v1558 = vsel %vm602, %v1518, 0
        %v1561 = vsel %vm602, %v1519, 0
        %v1564 = vsel %vm602, %v1520, 0
        %v1567 = vsel %vm602, %v1521, 0
        %v1570 = vsel %vm602, %v1522, 0
        %v1573 = vsel %vm602, %v1523, 0
        %v1576 = vsel %vm602, %v1524, 0
        %1578 = vmatprep.subr.mxu0 0.0
        %1579 = vmatpush1.msra.mxu0 %v1526
        %1580 = vmatprep.subr.mxu0 0.0
        %1581 = vmatpush1.msra.mxu0 %v1527
        %1582 = vmatprep.subr.mxu0 0.0
        %1583 = vmatpush1.msra.mxu0 %v1528
        %1584 = vmatprep.subr.mxu0 0.0
        %1585 = vmatpush1.msra.mxu0 %v1529
        %1586 = vmatprep.subr.mxu0 0.0
        %1587 = vmatpush1.msra.mxu0 0.0
        %1588 = vmatprep.subr.mxu0 0.0
        %1589 = vmatpush1.msra.mxu0 0.0
        %1590 = vmatprep.subr.mxu0 0.0
        %1591 = vmatpush1.msra.mxu0 0.0
        %1592 = vmatprep.subr.mxu0 0.0
        %1593 = vmatpush1.msra.mxu0 0.0
        %1594 = vmatprep.subr.mxu0 0.0
        %1595 = vmatpush1.msra.mxu0 0.0
        %1596 = vmatprep.subr.mxu0 0.0
        %1597 = vmatpush1.msra.mxu0 0.0
        %1598 = vmatprep.subr.mxu0 0.0
        %1599 = vmatpush1.msra.mxu0 0.0
        %1600 = vmatprep.subr.mxu0 0.0
        %1601 = vmatpush1.msra.mxu0 0.0
        %1602 = vmatprep.subr.mxu0 0.0
        %1603 = vmatpush1.msra.mxu0 0.0
        %1604 = vmatprep.subr.mxu0 0.0
        %1605 = vmatpush1.msra.mxu0 0.0
        %1606 = vmatprep.subr.mxu0 0.0
        %1607 = vmatpush1.msra.mxu0 0.0
        %1608 = vmatprep.subr.mxu0 0.0
        %1609 = vmatpush1.msra.mxu0 0.0
        %1610 = vmatprep.subr.mxu0 0.0
        %1611 = vmatpush1.msra.mxu0 0.0
        %1612 = vmatprep.subr.mxu0 0.0
        %1613 = vmatpush1.msra.mxu0 0.0
        %1614 = vmatprep.subr.mxu0 0.0
        %1615 = vmatpush1.msra.mxu0 0.0
        %1616 = vmatprep.subr.mxu0 0.0
        %1617 = vmatpush1.msra.mxu0 0.0
        %1618 = vmatprep.subr.mxu0 0.0
        %1619 = vmatpush1.msra.mxu0 0.0
        %1620 = vmatprep.subr.mxu0 0.0
        %1621 = vmatpush1.msra.mxu0 0.0
        %1622 = vmatprep.subr.mxu0 0.0
        %1623 = vmatpush1.msra.mxu0 0.0
        %1624 = vmatprep.subr.mxu0 0.0
        %1625 = vmatpush1.msra.mxu0 0.0
        %1626 = vmatprep.subr.mxu0 0.0
        %1627 = vmatpush1.msra.mxu0 0.0
        %1628 = vmatprep.subr.mxu0 0.0
        %1629 = vmatpush1.msra.mxu0 0.0
        %1630 = vmatprep.subr.mxu0 0.0
        %1631 = vmatpush1.msra.mxu0 0.0
        %1632 = vmatprep.subr.mxu0 0.0
        %1633 = vmatpush1.msra.mxu0 0.0
        %1634 = vmatprep.subr.mxu0 0.0
        %1635 = vmatpush1.msra.mxu0 0.0
        %1636 = vmatprep.subr.mxu0 0.0
        %1637 = vmatpush1.msra.mxu0 0.0
        %1638 = vmatprep.subr.mxu0 0.0
        %1639 = vmatpush1.msra.mxu0 0.0
        %1640 = vmatprep.subr.mxu0 0.0
        %1641 = vmatpush1.msra.mxu0 0.0
        %1642 = vmatprep.mubr.f32.mxu0 0.0
        %1643 = vmatmul.mubr.f32.gmra.mrb[0].mxu0 %v1531
        %v1644 = vpop.f32.mrb[0].mxu0
        %v1645 = vadd.f32 0.0, %v1644
        %v1646 = vpop.f32.mrb[0].mxu0
        %1647 = vmatprep.mubr.f32.mxu0 0.0
        %1648 = vmatmul.mubr.f32.gmra.mrb[0].mxu0 %v1534
        %v1649 = vpop.f32.mrb[0].mxu0
        %v1650 = vadd.f32 0.0, %v1649
        %v1651 = vpop.f32.mrb[0].mxu0
        %1652 = vmatprep.mubr.f32.mxu0 0.0
        %1653 = vmatmul.mubr.f32.gmra.mrb[0].mxu0 %v1537
        %v1654 = vpop.f32.mrb[0].mxu0
        %v1655 = vadd.f32 0.0, %v1654
        %v1656 = vpop.f32.mrb[0].mxu0
        %1657 = vmatprep.mubr.f32.mxu0 0.0
        %1658 = vmatmul.mubr.f32.gmra.mrb[0].mxu0 %v1540
        %v1659 = vpop.f32.mrb[0].mxu0
        %v1660 = vadd.f32 0.0, %v1659
        %v1661 = vpop.f32.mrb[0].mxu0
        %1662 = vmatprep.mubr.f32.mxu0 0.0
        %1663 = vmatmul.mubr.f32.gmra.mrb[0].mxu0 %v1543
        %v1664 = vpop.f32.mrb[0].mxu0
        %v1665 = vadd.f32 0.0, %v1664
        %v1666 = vpop.f32.mrb[0].mxu0
        %1667 = vmatprep.mubr.f32.mxu0 0.0
        %1668 = vmatmul.mubr.f32.gmra.mrb[0].mxu0 %v1546
        %v1669 = vpop.f32.mrb[0].mxu0
        %v1670 = vadd.f32 0.0, %v1669
        %v1671 = vpop.f32.mrb[0].mxu0
        %1672 = vmatprep.mubr.f32.mxu0 0.0
        %1673 = vmatmul.mubr.f32.gmra.mrb[0].mxu0 %v1549
        %v1674 = vpop.f32.mrb[0].mxu0
        %v1675 = vadd.f32 0.0, %v1674
        %v1676 = vpop.f32.mrb[0].mxu0
        %1677 = vmatprep.mubr.f32.mxu0 0.0
        %1678 = vmatmul.mubr.f32.gmra.mrb[0].mxu0 %v1552
        %v1679 = vpop.f32.mrb[0].mxu0
        %v1680 = vadd.f32 0.0, %v1679
        %v1681 = vpop.f32.mrb[0].mxu0
        %1682 = vmatprep.mubr.f32.mxu0 0.0
        %1683 = vmatmul.mubr.f32.gmra.mrb[0].mxu0 %v1555
        %v1684 = vpop.f32.mrb[0].mxu0
        %v1685 = vadd.f32 0.0, %v1684
        %v1686 = vpop.f32.mrb[0].mxu0
        %1687 = vmatprep.mubr.f32.mxu0 0.0
        %1688 = vmatmul.mubr.f32.gmra.mrb[0].mxu0 %v1558
        %v1689 = vpop.f32.mrb[0].mxu0
        %v1690 = vadd.f32 0.0, %v1689
        %v1691 = vpop.f32.mrb[0].mxu0
        %1692 = vmatprep.mubr.f32.mxu0 0.0
        %1693 = vmatmul.mubr.f32.gmra.mrb[0].mxu0 %v1561
        %v1694 = vpop.f32.mrb[0].mxu0
        %v1695 = vadd.f32 0.0, %v1694
        %v1696 = vpop.f32.mrb[0].mxu0
        %1697 = vmatprep.mubr.f32.mxu0 0.0
        %1698 = vmatmul.mubr.f32.gmra.mrb[0].mxu0 %v1564
        %v1699 = vpop.f32.mrb[0].mxu0
        %v1700 = vadd.f32 0.0, %v1699
        %v1701 = vpop.f32.mrb[0].mxu0
        %1702 = vmatprep.mubr.f32.mxu0 0.0
        %1703 = vmatmul.mubr.f32.gmra.mrb[0].mxu0 %v1567
        %v1704 = vpop.f32.mrb[0].mxu0
        %v1705 = vadd.f32 0.0, %v1704
        %v1706 = vpop.f32.mrb[0].mxu0
        %1707 = vmatprep.mubr.f32.mxu0 0.0
        %1708 = vmatmul.mubr.f32.gmra.mrb[0].mxu0 %v1570
        %v1709 = vpop.f32.mrb[0].mxu0
        %v1710 = vadd.f32 0.0, %v1709
        %v1711 = vpop.f32.mrb[0].mxu0
        %1712 = vmatprep.mubr.f32.mxu0 0.0
        %1713 = vmatmul.mubr.f32.gmra.mrb[0].mxu0 %v1573
        %v1714 = vpop.f32.mrb[0].mxu0
        %v1715 = vadd.f32 0.0, %v1714
        %v1716 = vpop.f32.mrb[0].mxu0
        %1717 = vmatprep.mubr.f32.mxu0 0.0
        %1718 = vmatmul.mubr.f32.gmra.mrb[0].mxu0 %v1576
        %v1719 = vpop.f32.mrb[0].mxu0
        %v1720 = vadd.f32 0.0, %v1719
        %v1721 = vpop.f32.mrb[0].mxu0
        %1722 = vdwg.mxu0
        %v1723 = vadd.f32 %v1491, %v1645
        %v1724 = vadd.f32 %v1492, %v1650
        %v1725 = vadd.f32 %v1493, %v1655
        %v1726 = vadd.f32 %v1494, %v1660
        %v1727 = vadd.f32 %v1495, %v1665
        %v1728 = vadd.f32 %v1496, %v1670
        %v1729 = vadd.f32 %v1497, %v1675
        %v1730 = vadd.f32 %v1498, %v1680
        %v1731 = vadd.f32 %v1499, %v1685
        %v1732 = vadd.f32 %v1500, %v1690
        %v1733 = vadd.f32 %v1501, %v1695
        %v1734 = vadd.f32 %v1502, %v1700
        %v1735 = vadd.f32 %v1503, %v1705
        %v1736 = vadd.f32 %v1504, %v1710
        %v1737 = vadd.f32 %v1505, %v1715
        %v1738 = vadd.f32 %v1506, %v1720
        %v1739 = vtanh.pop %v1723
        %v1740 = vtanh.pop %v1724
        %v1741 = vtanh.pop %v1725
        %v1742 = vtanh.pop %v1726
        %v1743 = vtanh.pop %v1727
        %v1744 = vtanh.pop %v1728
        %v1745 = vtanh.pop %v1729
        %v1746 = vtanh.pop %v1730
        %v1747 = vtanh.pop %v1731
        %v1748 = vtanh.pop %v1732
        %v1749 = vtanh.pop %v1733
        %v1750 = vtanh.pop %v1734
        %v1751 = vtanh.pop %v1735
        %v1752 = vtanh.pop %v1736
        %v1753 = vtanh.pop %v1737
        %v1754 = vtanh.pop %v1738
        %v1755 = vxor.u32 %v1723, 2147483648
        %v1756 = vxor.u32 %v1724, 2147483648
        %v1757 = vxor.u32 %v1725, 2147483648
        %v1758 = vxor.u32 %v1726, 2147483648
        %v1759 = vxor.u32 %v1727, 2147483648
        %v1760 = vxor.u32 %v1728, 2147483648
        %v1761 = vxor.u32 %v1729, 2147483648
        %v1762 = vxor.u32 %v1730, 2147483648
        %v1763 = vxor.u32 %v1731, 2147483648
        %v1764 = vxor.u32 %v1732, 2147483648
        %v1765 = vxor.u32 %v1733, 2147483648
        %v1766 = vxor.u32 %v1734, 2147483648
        %v1767 = vxor.u32 %v1735, 2147483648
        %v1768 = vxor.u32 %v1736, 2147483648
        %v1769 = vxor.u32 %v1737, 2147483648
        %v1770 = vxor.u32 %v1738, 2147483648
        %v1771 = vmul.f32 %v1755, 1.442695
        %v1772 = vpow.pop %v1771
        %v1773 = vmul.f32 %v1756, 1.442695
        %v1774 = vpow.pop %v1773
        %v1775 = vmul.f32 %v1757, 1.442695
        %v1776 = vpow.pop %v1775
        %v1777 = vmul.f32 %v1758, 1.442695
        %v1778 = vpow.pop %v1777
        %v1779 = vmul.f32 %v1759, 1.442695
        %v1780 = vpow.pop %v1779
        %v1781 = vmul.f32 %v1760, 1.442695
        %v1782 = vpow.pop %v1781
        %v1783 = vmul.f32 %v1761, 1.442695
        %v1784 = vpow.pop %v1783
        %v1785 = vmul.f32 %v1762, 1.442695
        %v1786 = vpow.pop %v1785
        %v1787 = vmul.f32 %v1763, 1.442695
        %v1788 = vpow.pop %v1787
        %v1789 = vmul.f32 %v1764, 1.442695
        %v1790 = vpow.pop %v1789
        %v1791 = vmul.f32 %v1765, 1.442695
        %v1792 = vpow.pop %v1791
        %v1793 = vmul.f32 %v1766, 1.442695
        %v1794 = vpow.pop %v1793
        %v1795 = vmul.f32 %v1767, 1.442695
        %v1796 = vpow.pop %v1795
        %v1797 = vmul.f32 %v1768, 1.442695
        %v1798 = vpow.pop %v1797
        %v1799 = vmul.f32 %v1769, 1.442695
        %v1800 = vpow.pop %v1799
        %v1801 = vmul.f32 %v1770, 1.442695
        %v1802 = vpow.pop %v1801
        %v1803 = vadd.f32 %v1772, 1.0
        %v1804 = vadd.f32 %v1774, 1.0
        %v1805 = vadd.f32 %v1776, 1.0
        %v1806 = vadd.f32 %v1778, 1.0
        %v1807 = vadd.f32 %v1780, 1.0
        %v1808 = vadd.f32 %v1782, 1.0
        %v1809 = vadd.f32 %v1784, 1.0
        %v1810 = vadd.f32 %v1786, 1.0
        %v1811 = vadd.f32 %v1788, 1.0
        %v1812 = vadd.f32 %v1790, 1.0
        %v1813 = vadd.f32 %v1792, 1.0
        %v1814 = vadd.f32 %v1794, 1.0
        %v1815 = vadd.f32 %v1796, 1.0
        %v1816 = vadd.f32 %v1798, 1.0
        %v1817 = vadd.f32 %v1800, 1.0
        %v1818 = vadd.f32 %v1802, 1.0
        %v1819 = vrcp.pop %v1803
        %v1820 = vmul.f32 1.0, %v1819
        %v1821 = vrcp.pop %v1804
        %v1822 = vmul.f32 1.0, %v1821
        %v1823 = vrcp.pop %v1805
        %v1824 = vmul.f32 1.0, %v1823
        %v1825 = vrcp.pop %v1806
        %v1826 = vmul.f32 1.0, %v1825
        %v1827 = vrcp.pop %v1807
        %v1828 = vmul.f32 1.0, %v1827
        %v1829 = vrcp.pop %v1808
        %v1830 = vmul.f32 1.0, %v1829
        %v1831 = vrcp.pop %v1809
        %v1832 = vmul.f32 1.0, %v1831
        %v1833 = vrcp.pop %v1810
        %v1834 = vmul.f32 1.0, %v1833
        %v1835 = vrcp.pop %v1811
        %v1836 = vmul.f32 1.0, %v1835
        %v1837 = vrcp.pop %v1812
        %v1838 = vmul.f32 1.0, %v1837
        %v1839 = vrcp.pop %v1813
        %v1840 = vmul.f32 1.0, %v1839
        %v1841 = vrcp.pop %v1814
        %v1842 = vmul.f32 1.0, %v1841
        %v1843 = vrcp.pop %v1815
        %v1844 = vmul.f32 1.0, %v1843
        %v1845 = vrcp.pop %v1816
        %v1846 = vmul.f32 1.0, %v1845
        %v1847 = vrcp.pop %v1817
        %v1848 = vmul.f32 1.0, %v1847
        %v1849 = vrcp.pop %v1818
        %v1850 = vmul.f32 1.0, %v1849
        %1867 = vrot.lane.b32.xlu0 %v1820, 96
        %v1868 = vpop.permute.xlu0 %1867
        %1869 = vrot.lane.b32.xlu0 %v1822, 96
        %v1870 = vpop.permute.xlu0 %1869
        %1871 = vrot.lane.b32.xlu0 %v1824, 96
        %v1872 = vpop.permute.xlu0 %1871
        %1873 = vrot.lane.b32.xlu0 %v1826, 96
        %v1874 = vpop.permute.xlu0 %1873
        %1875 = vrot.lane.b32.xlu0 %v1828, 96
        %v1876 = vpop.permute.xlu0 %1875
        %1877 = vrot.lane.b32.xlu0 %v1830, 96
        %v1878 = vpop.permute.xlu0 %1877
        %1879 = vrot.lane.b32.xlu0 %v1832, 96
        %v1880 = vpop.permute.xlu0 %1879
        %1881 = vrot.lane.b32.xlu0 %v1834, 96
        %v1882 = vpop.permute.xlu0 %1881
        %1883 = vrot.lane.b32.xlu0 %v1836, 96
        %v1884 = vpop.permute.xlu0 %1883
        %1885 = vrot.lane.b32.xlu0 %v1838, 96
        %v1886 = vpop.permute.xlu0 %1885
        %1887 = vrot.lane.b32.xlu0 %v1840, 96
        %v1888 = vpop.permute.xlu0 %1887
        %1889 = vrot.lane.b32.xlu0 %v1842, 96
        %v1890 = vpop.permute.xlu0 %1889
        %1891 = vrot.lane.b32.xlu0 %v1844, 96
        %v1892 = vpop.permute.xlu0 %1891
        %1893 = vrot.lane.b32.xlu0 %v1846, 96
        %v1894 = vpop.permute.xlu0 %1893
        %1895 = vrot.lane.b32.xlu0 %v1848, 96
        %v1896 = vpop.permute.xlu0 %1895
        %1897 = vrot.lane.b32.xlu0 %v1850, 96
        %v1898 = vpop.permute.xlu0 %1897
        %v1915 = vmul.f32 %v1739, %v1868
        %v1916 = vmul.f32 %v1740, %v1870
        %v1917 = vmul.f32 %v1741, %v1872
        %v1918 = vmul.f32 %v1742, %v1874
        %v1919 = vmul.f32 %v1743, %v1876
        %v1920 = vmul.f32 %v1744, %v1878
        %v1921 = vmul.f32 %v1745, %v1880
        %v1922 = vmul.f32 %v1746, %v1882
        %v1923 = vmul.f32 %v1747, %v1884
        %v1924 = vmul.f32 %v1748, %v1886
        %v1925 = vmul.f32 %v1749, %v1888
        %v1926 = vmul.f32 %v1750, %v1890
        %v1927 = vmul.f32 %v1751, %v1892
        %v1928 = vmul.f32 %v1752, %v1894
        %v1929 = vmul.f32 %v1753, %v1896
        %v1930 = vmul.f32 %v1754, %v1898
        %v1931 = vld [vmem:[%s6] sm:$0xff]
        %v1932 = vld [vmem:[%s6 + $0x8] sm:$0xff]
        %v1933 = vld [vmem:[%s6 + $0x10] sm:$0xff]
        %v1934 = vld [vmem:[%s6 + $0x18] sm:$0xff]
        %v1935 = vld [vmem:[%s7] sm:$0x1]
        %v1937 = vlaneseq
        %v1938 = vshrl.u32 %v1937, 7
        %v1939 = vsub.s32 0, %v1938
        %v1940 = vrot.slane %v1935, %v1939
        %v1943 = vsel %vm602, %v1915, 0
        %v1946 = vsel %vm602, %v1916, 0
        %v1949 = vsel %vm602, %v1917, 0
        %v1952 = vsel %vm602, %v1918, 0
        %v1955 = vsel %vm602, %v1919, 0
        %v1958 = vsel %vm602, %v1920, 0
        %v1961 = vsel %vm602, %v1921, 0
        %v1964 = vsel %vm602, %v1922, 0
        %v1967 = vsel %vm602, %v1923, 0
        %v1970 = vsel %vm602, %v1924, 0
        %v1973 = vsel %vm602, %v1925, 0
        %v1976 = vsel %vm602, %v1926, 0
        %v1979 = vsel %vm602, %v1927, 0
        %v1982 = vsel %vm602, %v1928, 0
        %v1985 = vsel %vm602, %v1929, 0
        %v1988 = vsel %vm602, %v1930, 0
        %1990 = vmatprep.subr.mxu0 0.0
        %1991 = vmatpush1.msra.mxu0 %v1931
        %1992 = vmatprep.subr.mxu0 0.0
        %1993 = vmatpush1.msra.mxu0 %v1932
        %1994 = vmatprep.subr.mxu0 0.0
        %1995 = vmatpush1.msra.mxu0 %v1933
        %1996 = vmatprep.subr.mxu0 0.0
        %1997 = vmatpush1.msra.mxu0 %v1934
        %1998 = vmatprep.subr.mxu0 0.0
        %1999 = vmatpush1.msra.mxu0 0.0
        %2000 = vmatprep.subr.mxu0 0.0
        %2001 = vmatpush1.msra.mxu0 0.0
        %2002 = vmatprep.subr.mxu0 0.0
        %2003 = vmatpush1.msra.mxu0 0.0
        %2004 = vmatprep.subr.mxu0 0.0
        %2005 = vmatpush1.msra.mxu0 0.0
        %2006 = vmatprep.subr.mxu0 0.0
        %2007 = vmatpush1.msra.mxu0 0.0
        %2008 = vmatprep.subr.mxu0 0.0
        %2009 = vmatpush1.msra.mxu0 0.0
        %2010 = vmatprep.subr.mxu0 0.0
        %2011 = vmatpush1.msra.mxu0 0.0
        %2012 = vmatprep.subr.mxu0 0.0
        %2013 = vmatpush1.msra.mxu0 0.0
        %2014 = vmatprep.subr.mxu0 0.0
        %2015 = vmatpush1.msra.mxu0 0.0
        %2016 = vmatprep.subr.mxu0 0.0
        %2017 = vmatpush1.msra.mxu0 0.0
        %2018 = vmatprep.subr.mxu0 0.0
        %2019 = vmatpush1.msra.mxu0 0.0
        %2020 = vmatprep.subr.mxu0 0.0
        %2021 = vmatpush1.msra.mxu0 0.0
        %2022 = vmatprep.subr.mxu0 0.0
        %2023 = vmatpush1.msra.mxu0 0.0
        %2024 = vmatprep.subr.mxu0 0.0
        %2025 = vmatpush1.msra.mxu0 0.0
        %2026 = vmatprep.subr.mxu0 0.0
        %2027 = vmatpush1.msra.mxu0 0.0
        %2028 = vmatprep.subr.mxu0 0.0
        %2029 = vmatpush1.msra.mxu0 0.0
        %2030 = vmatprep.subr.mxu0 0.0
        %2031 = vmatpush1.msra.mxu0 0.0
        %2032 = vmatprep.subr.mxu0 0.0
        %2033 = vmatpush1.msra.mxu0 0.0
        %2034 = vmatprep.subr.mxu0 0.0
        %2035 = vmatpush1.msra.mxu0 0.0
        %2036 = vmatprep.subr.mxu0 0.0
        %2037 = vmatpush1.msra.mxu0 0.0
        %2038 = vmatprep.subr.mxu0 0.0
        %2039 = vmatpush1.msra.mxu0 0.0
        %2040 = vmatprep.subr.mxu0 0.0
        %2041 = vmatpush1.msra.mxu0 0.0
        %2042 = vmatprep.subr.mxu0 0.0
        %2043 = vmatpush1.msra.mxu0 0.0
        %2044 = vmatprep.subr.mxu0 0.0
        %2045 = vmatpush1.msra.mxu0 0.0
        %2046 = vmatprep.subr.mxu0 0.0
        %2047 = vmatpush1.msra.mxu0 0.0
        %2048 = vmatprep.subr.mxu0 0.0
        %2049 = vmatpush1.msra.mxu0 0.0
        %2050 = vmatprep.subr.mxu0 0.0
        %2051 = vmatpush1.msra.mxu0 0.0
        %2052 = vmatprep.subr.mxu0 0.0
        %2053 = vmatpush1.msra.mxu0 0.0
        %2054 = vmatprep.mubr.f32.mxu0 0.0
        %2055 = vmatmul.mubr.f32.gmra.mrb[0].mxu0 %v1943
        %v2056 = vpop.f32.mrb[0].mxu0
        %v2057 = vadd.f32 %v1940, %v2056
        %v2058 = vpop.f32.mrb[0].mxu0
        %2059 = vmatprep.mubr.f32.mxu0 0.0
        %2060 = vmatmul.mubr.f32.gmra.mrb[0].mxu0 %v1946
        %v2061 = vpop.f32.mrb[0].mxu0
        %v2062 = vadd.f32 %v1940, %v2061
        %v2063 = vpop.f32.mrb[0].mxu0
        %2064 = vmatprep.mubr.f32.mxu0 0.0
        %2065 = vmatmul.mubr.f32.gmra.mrb[0].mxu0 %v1949
        %v2066 = vpop.f32.mrb[0].mxu0
        %v2067 = vadd.f32 %v1940, %v2066
        %v2068 = vpop.f32.mrb[0].mxu0
        %2069 = vmatprep.mubr.f32.mxu0 0.0
        %2070 = vmatmul.mubr.f32.gmra.mrb[0].mxu0 %v1952
        %v2071 = vpop.f32.mrb[0].mxu0
        %v2072 = vadd.f32 %v1940, %v2071
        %v2073 = vpop.f32.mrb[0].mxu0
        %2074 = vmatprep.mubr.f32.mxu0 0.0
        %2075 = vmatmul.mubr.f32.gmra.mrb[0].mxu0 %v1955
        %v2076 = vpop.f32.mrb[0].mxu0
        %v2077 = vadd.f32 %v1940, %v2076
        %v2078 = vpop.f32.mrb[0].mxu0
        %2079 = vmatprep.mubr.f32.mxu0 0.0
        %2080 = vmatmul.mubr.f32.gmra.mrb[0].mxu0 %v1958
        %v2081 = vpop.f32.mrb[0].mxu0
        %v2082 = vadd.f32 %v1940, %v2081
        %v2083 = vpop.f32.mrb[0].mxu0
        %2084 = vmatprep.mubr.f32.mxu0 0.0
        %2085 = vmatmul.mubr.f32.gmra.mrb[0].mxu0 %v1961
        %v2086 = vpop.f32.mrb[0].mxu0
        %v2087 = vadd.f32 %v1940, %v2086
        %v2088 = vpop.f32.mrb[0].mxu0
        %2089 = vmatprep.mubr.f32.mxu0 0.0
        %2090 = vmatmul.mubr.f32.gmra.mrb[0].mxu0 %v1964
        %v2091 = vpop.f32.mrb[0].mxu0
        %v2092 = vadd.f32 %v1940, %v2091
        %v2093 = vpop.f32.mrb[0].mxu0
        %2094 = vmatprep.mubr.f32.mxu0 0.0
        %2095 = vmatmul.mubr.f32.gmra.mrb[0].mxu0 %v1967
        %v2096 = vpop.f32.mrb[0].mxu0
        %v2097 = vadd.f32 %v1940, %v2096
        %v2098 = vpop.f32.mrb[0].mxu0
        %2099 = vmatprep.mubr.f32.mxu0 0.0
        %2100 = vmatmul.mubr.f32.gmra.mrb[0].mxu0 %v1970
        %v2101 = vpop.f32.mrb[0].mxu0
        %v2102 = vadd.f32 %v1940, %v2101
        %v2103 = vpop.f32.mrb[0].mxu0
        %2104 = vmatprep.mubr.f32.mxu0 0.0
        %2105 = vmatmul.mubr.f32.gmra.mrb[0].mxu0 %v1973
        %v2106 = vpop.f32.mrb[0].mxu0
        %v2107 = vadd.f32 %v1940, %v2106
        %v2108 = vpop.f32.mrb[0].mxu0
        %2109 = vmatprep.mubr.f32.mxu0 0.0
        %2110 = vmatmul.mubr.f32.gmra.mrb[0].mxu0 %v1976
        %v2111 = vpop.f32.mrb[0].mxu0
        %v2112 = vadd.f32 %v1940, %v2111
        %v2113 = vpop.f32.mrb[0].mxu0
        %2114 = vmatprep.mubr.f32.mxu0 0.0
        %2115 = vmatmul.mubr.f32.gmra.mrb[0].mxu0 %v1979
        %v2116 = vpop.f32.mrb[0].mxu0
        %v2117 = vadd.f32 %v1940, %v2116
        %v2118 = vpop.f32.mrb[0].mxu0
        %2119 = vmatprep.mubr.f32.mxu0 0.0
        %2120 = vmatmul.mubr.f32.gmra.mrb[0].mxu0 %v1982
        %v2121 = vpop.f32.mrb[0].mxu0
        %v2122 = vadd.f32 %v1940, %v2121
        %v2123 = vpop.f32.mrb[0].mxu0
        %2124 = vmatprep.mubr.f32.mxu0 0.0
        %2125 = vmatmul.mubr.f32.gmra.mrb[0].mxu0 %v1985
        %v2126 = vpop.f32.mrb[0].mxu0
        %v2127 = vadd.f32 %v1940, %v2126
        %v2128 = vpop.f32.mrb[0].mxu0
        %2129 = vmatprep.mubr.f32.mxu0 0.0
        %2130 = vmatmul.mubr.f32.gmra.mrb[0].mxu0 %v1988
        %v2131 = vpop.f32.mrb[0].mxu0
        %v2132 = vadd.f32 %v1940, %v2131
        %v2133 = vpop.f32.mrb[0].mxu0
        %2134 = vdwg.mxu0
        %v2135 = vld [vmem:[%s528] sm:$0xff]
        %v2136 = vld [vmem:[%s528 + $0x8] sm:$0xff]
        %v2137 = vld [vmem:[%s528 + $0x10] sm:$0xff]
        %v2138 = vld [vmem:[%s528 + $0x18] sm:$0xff]
        %v2139 = vld [vmem:[%s528 + $0x20] sm:$0xff]
        %v2140 = vld [vmem:[%s528 + $0x28] sm:$0xff]
        %v2141 = vld [vmem:[%s528 + $0x30] sm:$0xff]
        %v2142 = vld [vmem:[%s528 + $0x38] sm:$0xff]
        %v2143 = vld [vmem:[%s528 + $0x40] sm:$0xff]
        %v2144 = vld [vmem:[%s528 + $0x48] sm:$0xff]
        %v2145 = vld [vmem:[%s528 + $0x50] sm:$0xff]
        %v2146 = vld [vmem:[%s528 + $0x58] sm:$0xff]
        %v2147 = vld [vmem:[%s528 + $0x60] sm:$0xff]
        %v2148 = vld [vmem:[%s528 + $0x68] sm:$0xff]
        %v2149 = vld [vmem:[%s528 + $0x70] sm:$0xff]
        %v2150 = vld [vmem:[%s528 + $0x78] sm:$0xff]
        %v2151 = vadd.f32 %v2135, %v2057
        %v2152 = vadd.f32 %v2136, %v2062
        %v2153 = vadd.f32 %v2137, %v2067
        %v2154 = vadd.f32 %v2138, %v2072
        %v2155 = vadd.f32 %v2139, %v2077
        %v2156 = vadd.f32 %v2140, %v2082
        %v2157 = vadd.f32 %v2141, %v2087
        %v2158 = vadd.f32 %v2142, %v2092
        %v2159 = vadd.f32 %v2143, %v2097
        %v2160 = vadd.f32 %v2144, %v2102
        %v2161 = vadd.f32 %v2145, %v2107
        %v2162 = vadd.f32 %v2146, %v2112
        %v2163 = vadd.f32 %v2147, %v2117
        %v2164 = vadd.f32 %v2148, %v2122
        %v2165 = vadd.f32 %v2149, %v2127
        %v2166 = vadd.f32 %v2150, %v2132
        %s2167 = sld [smem:[#allocation2 + %s29]]
        %v2168 = vlaneseq
        %v2169 = vshrl.u32 %v2168, 7
        %v2170 = vadd.s32 %v2169, 8
        %v2171 = vadd.s32 %v2169, 16
        %v2172 = vadd.s32 %v2169, 24
        %v2173 = vadd.s32 %v2169, 32
        %v2174 = vadd.s32 %v2169, 40
        %v2175 = vadd.s32 %v2169, 48
        %v2176 = vadd.s32 %v2169, 56
        %v2177 = vadd.s32 %v2169, 64
        %v2178 = vadd.s32 %v2169, 72
        %v2179 = vadd.s32 %v2169, 80
        %v2180 = vadd.s32 %v2169, 88
        %v2181 = vadd.s32 %v2169, 96
        %v2182 = vadd.s32 %v2169, 104
        %v2183 = vadd.s32 %v2169, 112
        %v2184 = vadd.s32 %v2169, 120
        %v2185 = vstv %s570
        %v2186 = vadd.s32 %v2185, %v2169
        %v2187 = vadd.s32 %v2185, %v2170
        %v2188 = vadd.s32 %v2185, %v2171
        %v2189 = vadd.s32 %v2185, %v2172
        %v2190 = vadd.s32 %v2185, %v2173
        %v2191 = vadd.s32 %v2185, %v2174
        %v2192 = vadd.s32 %v2185, %v2175
        %v2193 = vadd.s32 %v2185, %v2176
        %v2194 = vadd.s32 %v2185, %v2177
        %v2195 = vadd.s32 %v2185, %v2178
        %v2196 = vadd.s32 %v2185, %v2179
        %v2197 = vadd.s32 %v2185, %v2180
        %v2198 = vadd.s32 %v2185, %v2181
        %v2199 = vadd.s32 %v2185, %v2182
        %v2200 = vadd.s32 %v2185, %v2183
        %v2201 = vadd.s32 %v2185, %v2184
        %vm2202 = vcmp.ge.s32.totalorder %v2186, 0
        %vm2203 = vcmp.ge.s32.totalorder %v2187, 0
        %vm2204 = vcmp.ge.s32.totalorder %v2188, 0
        %vm2205 = vcmp.ge.s32.totalorder %v2189, 0
        %vm2206 = vcmp.ge.s32.totalorder %v2190, 0
        %vm2207 = vcmp.ge.s32.totalorder %v2191, 0
        %vm2208 = vcmp.ge.s32.totalorder %v2192, 0
        %vm2209 = vcmp.ge.s32.totalorder %v2193, 0
        %vm2210 = vcmp.ge.s32.totalorder %v2194, 0
        %vm2211 = vcmp.ge.s32.totalorder %v2195, 0
        %vm2212 = vcmp.ge.s32.totalorder %v2196, 0
        %vm2213 = vcmp.ge.s32.totalorder %v2197, 0
        %vm2214 = vcmp.ge.s32.totalorder %v2198, 0
        %vm2215 = vcmp.ge.s32.totalorder %v2199, 0
        %vm2216 = vcmp.ge.s32.totalorder %v2200, 0
        %vm2217 = vcmp.ge.s32.totalorder %v2201, 0
        %v2218 = vstv %s2167
        %vm2219 = vcmp.lt.s32.totalorder %v2186, %v2218
        %vm2220 = vcmp.lt.s32.totalorder %v2187, %v2218
        %vm2221 = vcmp.lt.s32.totalorder %v2188, %v2218
        %vm2222 = vcmp.lt.s32.totalorder %v2189, %v2218
        %vm2223 = vcmp.lt.s32.totalorder %v2190, %v2218
        %vm2224 = vcmp.lt.s32.totalorder %v2191, %v2218
        %vm2225 = vcmp.lt.s32.totalorder %v2192, %v2218
        %vm2226 = vcmp.lt.s32.totalorder %v2193, %v2218
        %vm2227 = vcmp.lt.s32.totalorder %v2194, %v2218
        %vm2228 = vcmp.lt.s32.totalorder %v2195, %v2218
        %vm2229 = vcmp.lt.s32.totalorder %v2196, %v2218
        %vm2230 = vcmp.lt.s32.totalorder %v2197, %v2218
        %vm2231 = vcmp.lt.s32.totalorder %v2198, %v2218
        %vm2232 = vcmp.lt.s32.totalorder %v2199, %v2218
        %vm2233 = vcmp.lt.s32.totalorder %v2200, %v2218
        %vm2234 = vcmp.lt.s32.totalorder %v2201, %v2218
        %vm2235 = vmand %vm2202, %vm2219
        %vm2236 = vmand %vm2203, %vm2220
        %vm2237 = vmand %vm2204, %vm2221
        %vm2238 = vmand %vm2205, %vm2222
        %vm2239 = vmand %vm2206, %vm2223
        %vm2240 = vmand %vm2207, %vm2224
        %vm2241 = vmand %vm2208, %vm2225
        %vm2242 = vmand %vm2209, %vm2226
        %vm2243 = vmand %vm2210, %vm2227
        %vm2244 = vmand %vm2211, %vm2228
        %vm2245 = vmand %vm2212, %vm2229
        %vm2246 = vmand %vm2213, %vm2230
        %vm2247 = vmand %vm2214, %vm2231
        %vm2248 = vmand %vm2215, %vm2232
        %vm2249 = vmand %vm2216, %vm2233
        %vm2250 = vmand %vm2217, %vm2234
        %v2251 = vsel %vm2235, 1, 0
        %v2252 = vsel %vm2236, 1, 0
        %v2253 = vsel %vm2237, 1, 0
        %v2254 = vsel %vm2238, 1, 0
        %v2255 = vsel %vm2239, 1, 0
        %v2256 = vsel %vm2240, 1, 0
        %v2257 = vsel %vm2241, 1, 0
        %v2258 = vsel %vm2242, 1, 0
        %v2259 = vsel %vm2243, 1, 0
        %v2260 = vsel %vm2244, 1, 0
        %v2261 = vsel %vm2245, 1, 0
        %v2262 = vsel %vm2246, 1, 0
        %v2263 = vsel %vm2247, 1, 0
        %v2264 = vsel %vm2248, 1, 0
        %v2265 = vsel %vm2249, 1, 0
        %v2266 = vsel %vm2250, 1, 0
        %v2267 = vcvt.s32.f32 %v2251
        %v2268 = vcvt.s32.f32 %v2252
        %v2269 = vcvt.s32.f32 %v2253
        %v2270 = vcvt.s32.f32 %v2254
        %v2271 = vcvt.s32.f32 %v2255
        %v2272 = vcvt.s32.f32 %v2256
        %v2273 = vcvt.s32.f32 %v2257
        %v2274 = vcvt.s32.f32 %v2258
        %v2275 = vcvt.s32.f32 %v2259
        %v2276 = vcvt.s32.f32 %v2260
        %v2277 = vcvt.s32.f32 %v2261
        %v2278 = vcvt.s32.f32 %v2262
        %v2279 = vcvt.s32.f32 %v2263
        %v2280 = vcvt.s32.f32 %v2264
        %v2281 = vcvt.s32.f32 %v2265
        %v2282 = vcvt.s32.f32 %v2266
        %v2283 = vmul.f32 %v2151, %v2267
        %v2284 = vmul.f32 %v2152, %v2268
        %v2285 = vmul.f32 %v2153, %v2269
        %v2286 = vmul.f32 %v2154, %v2270
        %v2287 = vmul.f32 %v2155, %v2271
        %v2288 = vmul.f32 %v2156, %v2272
        %v2289 = vmul.f32 %v2157, %v2273
        %v2290 = vmul.f32 %v2158, %v2274
        %v2291 = vmul.f32 %v2159, %v2275
        %v2292 = vmul.f32 %v2160, %v2276
        %v2293 = vmul.f32 %v2161, %v2277
        %v2294 = vmul.f32 %v2162, %v2278
        %v2295 = vmul.f32 %v2163, %v2279
        %v2296 = vmul.f32 %v2164, %v2280
        %v2297 = vmul.f32 %v2165, %v2281
        %v2298 = vmul.f32 %v2166, %v2282
        %v2299 = vld [vmem:[%s8] sm:$0xff]
        %v2300 = vld [vmem:[%s8 + $0x8] sm:$0xff]
        %v2301 = vld [vmem:[%s8 + $0x10] sm:$0xff]
        %v2302 = vld [vmem:[%s8 + $0x18] sm:$0xff]
        %v2303 = vld [vmem:[%s9] sm:$0x1]
        %v2305 = vlaneseq
        %v2306 = vshrl.u32 %v2305, 7
        %v2307 = vsub.s32 0, %v2306
        %v2308 = vrot.slane %v2303, %v2307
        %v2311 = vsel %vm602, %v2283, 0
        %v2314 = vsel %vm602, %v2284, 0
        %v2317 = vsel %vm602, %v2285, 0
        %v2320 = vsel %vm602, %v2286, 0
        %v2323 = vsel %vm602, %v2287, 0
        %v2326 = vsel %vm602, %v2288, 0
        %v2329 = vsel %vm602, %v2289, 0
        %v2332 = vsel %vm602, %v2290, 0
        %v2335 = vsel %vm602, %v2291, 0
        %v2338 = vsel %vm602, %v2292, 0
        %v2341 = vsel %vm602, %v2293, 0
        %v2344 = vsel %vm602, %v2294, 0
        %v2347 = vsel %vm602, %v2295, 0
        %v2350 = vsel %vm602, %v2296, 0
        %v2353 = vsel %vm602, %v2297, 0
        %v2356 = vsel %vm602, %v2298, 0
        %2358 = vmatprep.subr.mxu0 0.0
        %2359 = vmatpush1.msra.mxu0 %v2299
        %2360 = vmatprep.subr.mxu0 0.0
        %2361 = vmatpush1.msra.mxu0 %v2300
        %2362 = vmatprep.subr.mxu0 0.0
        %2363 = vmatpush1.msra.mxu0 %v2301
        %2364 = vmatprep.subr.mxu0 0.0
        %2365 = vmatpush1.msra.mxu0 %v2302
        %2366 = vmatprep.subr.mxu0 0.0
        %2367 = vmatpush1.msra.mxu0 0.0
        %2368 = vmatprep.subr.mxu0 0.0
        %2369 = vmatpush1.msra.mxu0 0.0
        %2370 = vmatprep.subr.mxu0 0.0
        %2371 = vmatpush1.msra.mxu0 0.0
        %2372 = vmatprep.subr.mxu0 0.0
        %2373 = vmatpush1.msra.mxu0 0.0
        %2374 = vmatprep.subr.mxu0 0.0
        %2375 = vmatpush1.msra.mxu0 0.0
        %2376 = vmatprep.subr.mxu0 0.0
        %2377 = vmatpush1.msra.mxu0 0.0
        %2378 = vmatprep.subr.mxu0 0.0
        %2379 = vmatpush1.msra.mxu0 0.0
        %2380 = vmatprep.subr.mxu0 0.0
        %2381 = vmatpush1.msra.mxu0 0.0
        %2382 = vmatprep.subr.mxu0 0.0
        %2383 = vmatpush1.msra.mxu0 0.0
        %2384 = vmatprep.subr.mxu0 0.0
        %2385 = vmatpush1.msra.mxu0 0.0
        %2386 = vmatprep.subr.mxu0 0.0
        %2387 = vmatpush1.msra.mxu0 0.0
        %2388 = vmatprep.subr.mxu0 0.0
        %2389 = vmatpush1.msra.mxu0 0.0
        %2390 = vmatprep.subr.mxu0 0.0
        %2391 = vmatpush1.msra.mxu0 0.0
        %2392 = vmatprep.subr.mxu0 0.0
        %2393 = vmatpush1.msra.mxu0 0.0
        %2394 = vmatprep.subr.mxu0 0.0
        %2395 = vmatpush1.msra.mxu0 0.0
        %2396 = vmatprep.subr.mxu0 0.0
        %2397 = vmatpush1.msra.mxu0 0.0
        %2398 = vmatprep.subr.mxu0 0.0
        %2399 = vmatpush1.msra.mxu0 0.0
        %2400 = vmatprep.subr.mxu0 0.0
        %2401 = vmatpush1.msra.mxu0 0.0
        %2402 = vmatprep.subr.mxu0 0.0
        %2403 = vmatpush1.msra.mxu0 0.0
        %2404 = vmatprep.subr.mxu0 0.0
        %2405 = vmatpush1.msra.mxu0 0.0
        %2406 = vmatprep.subr.mxu0 0.0
        %2407 = vmatpush1.msra.mxu0 0.0
        %2408 = vmatprep.subr.mxu0 0.0
        %2409 = vmatpush1.msra.mxu0 0.0
        %2410 = vmatprep.subr.mxu0 0.0
        %2411 = vmatpush1.msra.mxu0 0.0
        %2412 = vmatprep.subr.mxu0 0.0
        %2413 = vmatpush1.msra.mxu0 0.0
        %2414 = vmatprep.subr.mxu0 0.0
        %2415 = vmatpush1.msra.mxu0 0.0
        %2416 = vmatprep.subr.mxu0 0.0
        %2417 = vmatpush1.msra.mxu0 0.0
        %2418 = vmatprep.subr.mxu0 0.0
        %2419 = vmatpush1.msra.mxu0 0.0
        %2420 = vmatprep.subr.mxu0 0.0
        %2421 = vmatpush1.msra.mxu0 0.0
        %2422 = vmatprep.mubr.f32.mxu0 0.0
        %2423 = vmatmul.mubr.f32.gmra.mrb[0].mxu0 %v2311
        %v2424 = vpop.f32.mrb[0].mxu0
        %v2425 = vadd.f32 %v2308, %v2424
        %v2426 = vpop.f32.mrb[0].mxu0
        %2427 = vmatprep.mubr.f32.mxu0 0.0
        %2428 = vmatmul.mubr.f32.gmra.mrb[0].mxu0 %v2314
        %v2429 = vpop.f32.mrb[0].mxu0
        %v2430 = vadd.f32 %v2308, %v2429
        %v2431 = vpop.f32.mrb[0].mxu0
        %2432 = vmatprep.mubr.f32.mxu0 0.0
        %2433 = vmatmul.mubr.f32.gmra.mrb[0].mxu0 %v2317
        %v2434 = vpop.f32.mrb[0].mxu0
        %v2435 = vadd.f32 %v2308, %v2434
        %v2436 = vpop.f32.mrb[0].mxu0
        %2437 = vmatprep.mubr.f32.mxu0 0.0
        %2438 = vmatmul.mubr.f32.gmra.mrb[0].mxu0 %v2320
        %v2439 = vpop.f32.mrb[0].mxu0
        %v2440 = vadd.f32 %v2308, %v2439
        %v2441 = vpop.f32.mrb[0].mxu0
        %2442 = vmatprep.mubr.f32.mxu0 0.0
        %2443 = vmatmul.mubr.f32.gmra.mrb[0].mxu0 %v2323
        %v2444 = vpop.f32.mrb[0].mxu0
        %v2445 = vadd.f32 %v2308, %v2444
        %v2446 = vpop.f32.mrb[0].mxu0
        %2447 = vmatprep.mubr.f32.mxu0 0.0
        %2448 = vmatmul.mubr.f32.gmra.mrb[0].mxu0 %v2326
        %v2449 = vpop.f32.mrb[0].mxu0
        %v2450 = vadd.f32 %v2308, %v2449
        %v2451 = vpop.f32.mrb[0].mxu0
        %2452 = vmatprep.mubr.f32.mxu0 0.0
        %2453 = vmatmul.mubr.f32.gmra.mrb[0].mxu0 %v2329
        %v2454 = vpop.f32.mrb[0].mxu0
        %v2455 = vadd.f32 %v2308, %v2454
        %v2456 = vpop.f32.mrb[0].mxu0
        %2457 = vmatprep.mubr.f32.mxu0 0.0
        %2458 = vmatmul.mubr.f32.gmra.mrb[0].mxu0 %v2332
        %v2459 = vpop.f32.mrb[0].mxu0
        %v2460 = vadd.f32 %v2308, %v2459
        %v2461 = vpop.f32.mrb[0].mxu0
        %2462 = vmatprep.mubr.f32.mxu0 0.0
        %2463 = vmatmul.mubr.f32.gmra.mrb[0].mxu0 %v2335
        %v2464 = vpop.f32.mrb[0].mxu0
        %v2465 = vadd.f32 %v2308, %v2464
        %v2466 = vpop.f32.mrb[0].mxu0
        %2467 = vmatprep.mubr.f32.mxu0 0.0
        %2468 = vmatmul.mubr.f32.gmra.mrb[0].mxu0 %v2338
        %v2469 = vpop.f32.mrb[0].mxu0
        %v2470 = vadd.f32 %v2308, %v2469
        %v2471 = vpop.f32.mrb[0].mxu0
        %2472 = vmatprep.mubr.f32.mxu0 0.0
        %2473 = vmatmul.mubr.f32.gmra.mrb[0].mxu0 %v2341
        %v2474 = vpop.f32.mrb[0].mxu0
        %v2475 = vadd.f32 %v2308, %v2474
        %v2476 = vpop.f32.mrb[0].mxu0
        %2477 = vmatprep.mubr.f32.mxu0 0.0
        %2478 = vmatmul.mubr.f32.gmra.mrb[0].mxu0 %v2344
        %v2479 = vpop.f32.mrb[0].mxu0
        %v2480 = vadd.f32 %v2308, %v2479
        %v2481 = vpop.f32.mrb[0].mxu0
        %2482 = vmatprep.mubr.f32.mxu0 0.0
        %2483 = vmatmul.mubr.f32.gmra.mrb[0].mxu0 %v2347
        %v2484 = vpop.f32.mrb[0].mxu0
        %v2485 = vadd.f32 %v2308, %v2484
        %v2486 = vpop.f32.mrb[0].mxu0
        %2487 = vmatprep.mubr.f32.mxu0 0.0
        %2488 = vmatmul.mubr.f32.gmra.mrb[0].mxu0 %v2350
        %v2489 = vpop.f32.mrb[0].mxu0
        %v2490 = vadd.f32 %v2308, %v2489
        %v2491 = vpop.f32.mrb[0].mxu0
        %2492 = vmatprep.mubr.f32.mxu0 0.0
        %2493 = vmatmul.mubr.f32.gmra.mrb[0].mxu0 %v2353
        %v2494 = vpop.f32.mrb[0].mxu0
        %v2495 = vadd.f32 %v2308, %v2494
        %v2496 = vpop.f32.mrb[0].mxu0
        %2497 = vmatprep.mubr.f32.mxu0 0.0
        %2498 = vmatmul.mubr.f32.gmra.mrb[0].mxu0 %v2356
        %v2499 = vpop.f32.mrb[0].mxu0
        %v2500 = vadd.f32 %v2308, %v2499
        %v2501 = vpop.f32.mrb[0].mxu0
        %2502 = vdwg.mxu0
        %v2503 = vmul.f32 %v2425, %v2267
        %v2504 = vmul.f32 %v2430, %v2268
        %v2505 = vmul.f32 %v2435, %v2269
        %v2506 = vmul.f32 %v2440, %v2270
        %v2507 = vmul.f32 %v2445, %v2271
        %v2508 = vmul.f32 %v2450, %v2272
        %v2509 = vmul.f32 %v2455, %v2273
        %v2510 = vmul.f32 %v2460, %v2274
        %v2511 = vmul.f32 %v2465, %v2275
        %v2512 = vmul.f32 %v2470, %v2276
        %v2513 = vmul.f32 %v2475, %v2277
        %v2514 = vmul.f32 %v2480, %v2278
        %v2515 = vmul.f32 %v2485, %v2279
        %v2516 = vmul.f32 %v2490, %v2280
        %v2517 = vmul.f32 %v2495, %v2281
        %v2518 = vmul.f32 %v2500, %v2282
        %v2519 = vld [vmem:[%s538] sm:$0xff]
        %v2520 = vld [vmem:[%s538 + $0x8] sm:$0xff]
        %v2521 = vld [vmem:[%s538 + $0x10] sm:$0xff]
        %v2522 = vld [vmem:[%s538 + $0x18] sm:$0xff]
        %v2523 = vld [vmem:[%s538 + $0x20] sm:$0xff]
        %v2524 = vld [vmem:[%s538 + $0x28] sm:$0xff]
        %v2525 = vld [vmem:[%s538 + $0x30] sm:$0xff]
        %v2526 = vld [vmem:[%s538 + $0x38] sm:$0xff]
        %v2527 = vld [vmem:[%s538 + $0x40] sm:$0xff]
        %v2528 = vld [vmem:[%s538 + $0x48] sm:$0xff]
        %v2529 = vld [vmem:[%s538 + $0x50] sm:$0xff]
        %v2530 = vld [vmem:[%s538 + $0x58] sm:$0xff]
        %v2531 = vld [vmem:[%s538 + $0x60] sm:$0xff]
        %v2532 = vld [vmem:[%s538 + $0x68] sm:$0xff]
        %v2533 = vld [vmem:[%s538 + $0x70] sm:$0xff]
        %v2534 = vld [vmem:[%s538 + $0x78] sm:$0xff]
        %v2535 = vmul.f32 %v2503, 1.442695
        %v2536 = vpow.pop %v2535
        %v2537 = vmul.f32 %v2504, 1.442695
        %v2538 = vpow.pop %v2537
        %v2539 = vmul.f32 %v2505, 1.442695
        %v2540 = vpow.pop %v2539
        %v2541 = vmul.f32 %v2506, 1.442695
        %v2542 = vpow.pop %v2541
        %v2543 = vmul.f32 %v2507, 1.442695
        %v2544 = vpow.pop %v2543
        %v2545 = vmul.f32 %v2508, 1.442695
        %v2546 = vpow.pop %v2545
        %v2547 = vmul.f32 %v2509, 1.442695
        %v2548 = vpow.pop %v2547
        %v2549 = vmul.f32 %v2510, 1.442695
        %v2550 = vpow.pop %v2549
        %v2551 = vmul.f32 %v2511, 1.442695
        %v2552 = vpow.pop %v2551
        %v2553 = vmul.f32 %v2512, 1.442695
        %v2554 = vpow.pop %v2553
        %v2555 = vmul.f32 %v2513, 1.442695
        %v2556 = vpow.pop %v2555
        %v2557 = vmul.f32 %v2514, 1.442695
        %v2558 = vpow.pop %v2557
        %v2559 = vmul.f32 %v2515, 1.442695
        %v2560 = vpow.pop %v2559
        %v2561 = vmul.f32 %v2516, 1.442695
        %v2562 = vpow.pop %v2561
        %v2563 = vmul.f32 %v2517, 1.442695
        %v2564 = vpow.pop %v2563
        %v2565 = vmul.f32 %v2518, 1.442695
        %v2566 = vpow.pop %v2565
        %2583 = vrot.lane.b32.xlu0 %v2536, 112
        %v2584 = vpop.permute.xlu0 %2583
        %2585 = vrot.lane.b32.xlu0 %v2538, 112
        %v2586 = vpop.permute.xlu0 %2585
        %2587 = vrot.lane.b32.xlu0 %v2540, 112
        %v2588 = vpop.permute.xlu0 %2587
        %2589 = vrot.lane.b32.xlu0 %v2542, 112
        %v2590 = vpop.permute.xlu0 %2589
        %2591 = vrot.lane.b32.xlu0 %v2544, 112
        %v2592 = vpop.permute.xlu0 %2591
        %2593 = vrot.lane.b32.xlu0 %v2546, 112
        %v2594 = vpop.permute.xlu0 %2593
        %2595 = vrot.lane.b32.xlu0 %v2548, 112
        %v2596 = vpop.permute.xlu0 %2595
        %2597 = vrot.lane.b32.xlu0 %v2550, 112
        %v2598 = vpop.permute.xlu0 %2597
        %2599 = vrot.lane.b32.xlu0 %v2552, 112
        %v2600 = vpop.permute.xlu0 %2599
        %2601 = vrot.lane.b32.xlu0 %v2554, 112
        %v2602 = vpop.permute.xlu0 %2601
        %2603 = vrot.lane.b32.xlu0 %v2556, 112
        %v2604 = vpop.permute.xlu0 %2603
        %2605 = vrot.lane.b32.xlu0 %v2558, 112
        %v2606 = vpop.permute.xlu0 %2605
        %2607 = vrot.lane.b32.xlu0 %v2560, 112
        %v2608 = vpop.permute.xlu0 %2607
        %2609 = vrot.lane.b32.xlu0 %v2562, 112
        %v2610 = vpop.permute.xlu0 %2609
        %2611 = vrot.lane.b32.xlu0 %v2564, 112
        %v2612 = vpop.permute.xlu0 %2611
        %2613 = vrot.lane.b32.xlu0 %v2566, 112
        %v2614 = vpop.permute.xlu0 %2613
        %v2631 = vmul.f32 %v2519, %v2584
        %v2632 = vmul.f32 %v2520, %v2586
        %v2633 = vmul.f32 %v2521, %v2588
        %v2634 = vmul.f32 %v2522, %v2590
        %v2635 = vmul.f32 %v2523, %v2592
        %v2636 = vmul.f32 %v2524, %v2594
        %v2637 = vmul.f32 %v2525, %v2596
        %v2638 = vmul.f32 %v2526, %v2598
        %v2639 = vmul.f32 %v2527, %v2600
        %v2640 = vmul.f32 %v2528, %v2602
        %v2641 = vmul.f32 %v2529, %v2604
        %v2642 = vmul.f32 %v2530, %v2606
        %v2643 = vmul.f32 %v2531, %v2608
        %v2644 = vmul.f32 %v2532, %v2610
        %v2645 = vmul.f32 %v2533, %v2612
        %v2646 = vmul.f32 %v2534, %v2614
        %v2647 = vadd.f32 %v2503, %v2631
        %v2648 = vadd.f32 %v2504, %v2632
        %v2649 = vadd.f32 %v2505, %v2633
        %v2650 = vadd.f32 %v2506, %v2634
        %v2651 = vadd.f32 %v2507, %v2635
        %v2652 = vadd.f32 %v2508, %v2636
        %v2653 = vadd.f32 %v2509, %v2637
        %v2654 = vadd.f32 %v2510, %v2638
        %v2655 = vadd.f32 %v2511, %v2639
        %v2656 = vadd.f32 %v2512, %v2640
        %v2657 = vadd.f32 %v2513, %v2641
        %v2658 = vadd.f32 %v2514, %v2642
        %v2659 = vadd.f32 %v2515, %v2643
        %v2660 = vadd.f32 %v2516, %v2644
        %v2661 = vadd.f32 %v2517, %v2645
        %v2662 = vadd.f32 %v2518, %v2646
        %v2663 = vmul.f32 %v2647, %v2267
        %v2664 = vmul.f32 %v2648, %v2268
        %v2665 = vmul.f32 %v2649, %v2269
        %v2666 = vmul.f32 %v2650, %v2270
        %v2667 = vmul.f32 %v2651, %v2271
        %v2668 = vmul.f32 %v2652, %v2272
        %v2669 = vmul.f32 %v2653, %v2273
        %v2670 = vmul.f32 %v2654, %v2274
        %v2671 = vmul.f32 %v2655, %v2275
        %v2672 = vmul.f32 %v2656, %v2276
        %v2673 = vmul.f32 %v2657, %v2277
        %v2674 = vmul.f32 %v2658, %v2278
        %v2675 = vmul.f32 %v2659, %v2279
        %v2676 = vmul.f32 %v2660, %v2280
        %v2677 = vmul.f32 %v2661, %v2281
        %v2678 = vmul.f32 %v2662, %v2282
        %vm2679 = vcmask 130048
        %2680 = vst.msk [vmem:[%s548] sm:$0xff] %vm2679, %v2663
        %2681 = vst.msk [vmem:[%s548 + $0x8] sm:$0xff] %vm2679, %v2664
        %2682 = vst.msk [vmem:[%s548 + $0x10] sm:$0xff] %vm2679, %v2665
        %2683 = vst.msk [vmem:[%s548 + $0x18] sm:$0xff] %vm2679, %v2666
        %2684 = vst.msk [vmem:[%s548 + $0x20] sm:$0xff] %vm2679, %v2667
        %2685 = vst.msk [vmem:[%s548 + $0x28] sm:$0xff] %vm2679, %v2668
        %2686 = vst.msk [vmem:[%s548 + $0x30] sm:$0xff] %vm2679, %v2669
        %2687 = vst.msk [vmem:[%s548 + $0x38] sm:$0xff] %vm2679, %v2670
        %2688 = vst.msk [vmem:[%s548 + $0x40] sm:$0xff] %vm2679, %v2671
        %2689 = vst.msk [vmem:[%s548 + $0x48] sm:$0xff] %vm2679, %v2672
        %2690 = vst.msk [vmem:[%s548 + $0x50] sm:$0xff] %vm2679, %v2673
        %2691 = vst.msk [vmem:[%s548 + $0x58] sm:$0xff] %vm2679, %v2674
        %2692 = vst.msk [vmem:[%s548 + $0x60] sm:$0xff] %vm2679, %v2675
        %2693 = vst.msk [vmem:[%s548 + $0x68] sm:$0xff] %vm2679, %v2676
        %2694 = vst.msk [vmem:[%s548 + $0x70] sm:$0xff] %vm2679, %v2677
        %2695 = vst.msk [vmem:[%s548 + $0x78] sm:$0xff] %vm2679, %v2678
        %2696 = vst.msk [vmem:[%s558] sm:$0xff] %vm2679, %v2503
        %2697 = vst.msk [vmem:[%s558 + $0x8] sm:$0xff] %vm2679, %v2504
        %2698 = vst.msk [vmem:[%s558 + $0x10] sm:$0xff] %vm2679, %v2505
        %2699 = vst.msk [vmem:[%s558 + $0x18] sm:$0xff] %vm2679, %v2506
        %2700 = vst.msk [vmem:[%s558 + $0x20] sm:$0xff] %vm2679, %v2507
        %2701 = vst.msk [vmem:[%s558 + $0x28] sm:$0xff] %vm2679, %v2508
        %2702 = vst.msk [vmem:[%s558 + $0x30] sm:$0xff] %vm2679, %v2509
        %2703 = vst.msk [vmem:[%s558 + $0x38] sm:$0xff] %vm2679, %v2510
        %2704 = vst.msk [vmem:[%s558 + $0x40] sm:$0xff] %vm2679, %v2511
        %2705 = vst.msk [vmem:[%s558 + $0x48] sm:$0xff] %vm2679, %v2512
        %2706 = vst.msk [vmem:[%s558 + $0x50] sm:$0xff] %vm2679, %v2513
        %2707 = vst.msk [vmem:[%s558 + $0x58] sm:$0xff] %vm2679, %v2514
        %2708 = vst.msk [vmem:[%s558 + $0x60] sm:$0xff] %vm2679, %v2515
        %2709 = vst.msk [vmem:[%s558 + $0x68] sm:$0xff] %vm2679, %v2516
        %2710 = vst.msk [vmem:[%s558 + $0x70] sm:$0xff] %vm2679, %v2517
        %2711 = vst.msk [vmem:[%s558 + $0x78] sm:$0xff] %vm2679, %v2518
        %2728 = vrot.lane.b32.xlu0 %v2503, 112
        %v2729 = vpop.permute.xlu0 %2728
        %2730 = vrot.lane.b32.xlu0 %v2504, 112
        %v2731 = vpop.permute.xlu0 %2730
        %2732 = vrot.lane.b32.xlu0 %v2505, 112
        %v2733 = vpop.permute.xlu0 %2732
        %2734 = vrot.lane.b32.xlu0 %v2506, 112
        %v2735 = vpop.permute.xlu0 %2734
        %2736 = vrot.lane.b32.xlu0 %v2507, 112
        %v2737 = vpop.permute.xlu0 %2736
        %2738 = vrot.lane.b32.xlu0 %v2508, 112
        %v2739 = vpop.permute.xlu0 %2738
        %2740 = vrot.lane.b32.xlu0 %v2509, 112
        %v2741 = vpop.permute.xlu0 %2740
        %2742 = vrot.lane.b32.xlu0 %v2510, 112
        %v2743 = vpop.permute.xlu0 %2742
        %2744 = vrot.lane.b32.xlu0 %v2511, 112
        %v2745 = vpop.permute.xlu0 %2744
        %2746 = vrot.lane.b32.xlu0 %v2512, 112
        %v2747 = vpop.permute.xlu0 %2746
        %2748 = vrot.lane.b32.xlu0 %v2513, 112
        %v2749 = vpop.permute.xlu0 %2748
        %2750 = vrot.lane.b32.xlu0 %v2514, 112
        %v2751 = vpop.permute.xlu0 %2750
        %2752 = vrot.lane.b32.xlu0 %v2515, 112
        %v2753 = vpop.permute.xlu0 %2752
        %2754 = vrot.lane.b32.xlu0 %v2516, 112
        %v2755 = vpop.permute.xlu0 %2754
        %2756 = vrot.lane.b32.xlu0 %v2517, 112
        %v2757 = vpop.permute.xlu0 %2756
        %2758 = vrot.lane.b32.xlu0 %v2518, 112
        %v2759 = vpop.permute.xlu0 %2758
        %2776 = vst.msk [vmem:[%s568] sm:$0xff] %vm2679, %v2729
        %2777 = vst.msk [vmem:[%s568 + $0x8] sm:$0xff] %vm2679, %v2731
        %2778 = vst.msk [vmem:[%s568 + $0x10] sm:$0xff] %vm2679, %v2733
        %2779 = vst.msk [vmem:[%s568 + $0x18] sm:$0xff] %vm2679, %v2735
        %2780 = vst.msk [vmem:[%s568 + $0x20] sm:$0xff] %vm2679, %v2737
        %2781 = vst.msk [vmem:[%s568 + $0x28] sm:$0xff] %vm2679, %v2739
        %2782 = vst.msk [vmem:[%s568 + $0x30] sm:$0xff] %vm2679, %v2741
        %2783 = vst.msk [vmem:[%s568 + $0x38] sm:$0xff] %vm2679, %v2743
        %2784 = vst.msk [vmem:[%s568 + $0x40] sm:$0xff] %vm2679, %v2745
        %2785 = vst.msk [vmem:[%s568 + $0x48] sm:$0xff] %vm2679, %v2747
        %2786 = vst.msk [vmem:[%s568 + $0x50] sm:$0xff] %vm2679, %v2749
        %2787 = vst.msk [vmem:[%s568 + $0x58] sm:$0xff] %vm2679, %v2751
        %2788 = vst.msk [vmem:[%s568 + $0x60] sm:$0xff] %vm2679, %v2753
        %2789 = vst.msk [vmem:[%s568 + $0x68] sm:$0xff] %vm2679, %v2755
        %2790 = vst.msk [vmem:[%s568 + $0x70] sm:$0xff] %vm2679, %v2757
        %2791 = vst.msk [vmem:[%s568 + $0x78] sm:$0xff] %vm2679, %v2759
        %s2792 = smul.u32 16, %s30
        %p2793 = scmp.lt.s32.totalorder %s29, 1
        %s2794 = scalar_select %p2793, %s29, 1
        %p2795 = scmp.lt.s32.totalorder %s2792, 15
        %s2796 = scalar_select %p2795, %s2792, 15
        %s2797 = smul.addr %s2794, 16
        %s2798 = sadd.s32 %s2796, %s2797
        %s2799 = smul.addr %s2798, 8
        %s2800 = scalar_lea.vmem %s10, %s2799
        %s2801 = smul.u32 16, %s30
        %p2802 = scmp.lt.s32.totalorder %s29, 1
        %s2803 = scalar_select %p2802, %s29, 1
        %p2804 = scmp.lt.s32.totalorder %s2801, 15
        %s2805 = scalar_select %p2804, %s2801, 15
        %s2806 = smul.addr %s2803, 16
        %s2807 = sadd.s32 %s2805, %s2806
        %s2808 = smul.addr %s2807, 8
        %s2809 = scalar_lea.vmem %s11, %s2808
        %s2810 = smul.u32 16, %s30
        %p2811 = scmp.lt.s32.totalorder %s29, 1
        %s2812 = scalar_select %p2811, %s29, 1
        %p2813 = scmp.lt.s32.totalorder %s2810, 15
        %s2814 = scalar_select %p2813, %s2810, 15
        %s2815 = smul.addr %s2812, 16
        %s2816 = sadd.s32 %s2814, %s2815
        %s2817 = smul.addr %s2816, 8
        %s2818 = scalar_lea.vmem %s12, %s2817
        // Predicated region
        $region65: #{posterior_encoder_forward.9} parent=59 // pred_check
          %p2819 = pneg %p286
        $region66: #{posterior_encoder_forward.9} parent=59 // pred_check_branch
          %2821 = sbr.rel (%p2819) target = $region68
        $region67: #{posterior_encoder_forward.9} parent=59 // pred_region
          %s2822 = smul.u32 16, %s30
        $region68: #{posterior_encoder_forward.9} parent=59 // pred_fallthru
          _
        // Predicated region
        $region69: #{posterior_encoder_forward.9} parent=59 // pred_check
          %p2823 = pneg %p314
        $region70: #{posterior_encoder_forward.9} parent=59 // pred_check_branch
          %2825 = sbr.rel (%p2823) target = $region72
        $region71: #{posterior_encoder_forward.9} parent=59 // pred_region
          %s2826 = smul.u32 16, %s30
        $region72: #{posterior_encoder_forward.9} parent=59 // pred_fallthru
          _
        // Predicated region
        $region73: #{posterior_encoder_forward.9} parent=59 // pred_check
          %p2827 = pneg %p342
        $region74: #{posterior_encoder_forward.9} parent=59 // pred_check_branch
          %2829 = sbr.rel (%p2827) target = $region76
        $region75: #{posterior_encoder_forward.9} parent=59 // pred_region
          %s2830 = smul.u32 16, %s30
        $region76: #{posterior_encoder_forward.9} parent=59 // pred_fallthru
          _
      $region60: #{posterior_encoder_forward.9} parent=5 // pred_fallthru
        _
      %p2831 = scmp.le.s32.totalorder 2, %s20
      // Predicated region
      $region77: #{posterior_encoder_forward.9} parent=5 // pred_check
        %p2832 = pneg %p2831
      $region78: #{posterior_encoder_forward.9} parent=5 // pred_check_branch
        %2834 = sbr.rel (%p2832) target = $region80
      $region79: #{posterior_encoder_forward.9} parent=5 // pred_region
        %s2835 = ssub.s32 %s20, 2
        // Predicated region
        $region81: #{posterior_encoder_forward.9} parent=79 // pred_check
          %p2836 = pneg %p292
        $region82: #{posterior_encoder_forward.9} parent=79 // pred_check_branch
          %2838 = sbr.rel (%p2836) target = $region84
        $region83: #{posterior_encoder_forward.9} parent=79 // pred_region
          %s2839 = smul.u32 16, %s32
          %p2840 = scmp.lt.s32.totalorder %s31, 1
          %s2841 = scalar_select %p2840, %s31, 1
          %p2842 = scmp.lt.s32.totalorder %s2839, 15
          %s2843 = scalar_select %p2842, %s2839, 15
          %s2844 = smul.addr %s2841, 16
          %s2845 = sadd.s32 %s2843, %s2844
          %s2846 = smul.addr %s2845, 8
          %s2847 = scalar_lea.vmem %s10, %s2846
        $region84: #{posterior_encoder_forward.9} parent=79 // pred_fallthru
          _
        // Predicated region
        $region85: #{posterior_encoder_forward.9} parent=79 // pred_check
          %p2848 = pneg %p320
        $region86: #{posterior_encoder_forward.9} parent=79 // pred_check_branch
          %2850 = sbr.rel (%p2848) target = $region88
        $region87: #{posterior_encoder_forward.9} parent=79 // pred_region
          %s2851 = smul.u32 16, %s32
          %p2852 = scmp.lt.s32.totalorder %s31, 1
          %s2853 = scalar_select %p2852, %s31, 1
          %p2854 = scmp.lt.s32.totalorder %s2851, 15
          %s2855 = scalar_select %p2854, %s2851, 15
          %s2856 = smul.addr %s2853, 16
          %s2857 = sadd.s32 %s2855, %s2856
          %s2858 = smul.addr %s2857, 8
          %s2859 = scalar_lea.vmem %s11, %s2858
        $region88: #{posterior_encoder_forward.9} parent=79 // pred_fallthru
          _
        // Predicated region
        $region89: #{posterior_encoder_forward.9} parent=79 // pred_check
          %p2860 = pneg %p348
        $region90: #{posterior_encoder_forward.9} parent=79 // pred_check_branch
          %2862 = sbr.rel (%p2860) target = $region92
        $region91: #{posterior_encoder_forward.9} parent=79 // pred_region
          %s2863 = smul.u32 16, %s32
          %p2864 = scmp.lt.s32.totalorder %s31, 1
          %s2865 = scalar_select %p2864, %s31, 1
          %p2866 = scmp.lt.s32.totalorder %s2863, 15
          %s2867 = scalar_select %p2866, %s2863, 15
          %s2868 = smul.addr %s2865, 16
          %s2869 = sadd.s32 %s2867, %s2868
          %s2870 = smul.addr %s2869, 8
          %s2871 = scalar_lea.vmem %s12, %s2870
        $region92: #{posterior_encoder_forward.9} parent=79 // pred_fallthru
          _
      $region80: #{posterior_encoder_forward.9} parent=5 // pred_fallthru
        _
    $region6: #{posterior_encoder_forward.9} parent=1 // loop_footer
      %s24 = sadd.s32 1, %s20
    $region7: #{posterior_encoder_forward.9} parent=1 // loop_footer_branch
      %19 = sbr.rel target = $region3
    $region8: #{posterior_encoder_forward.9} parent=1 // loop_exit
      _
    %2872 = vsyncpa [#allocation3], 1
    %s2873 = scalar_lea.sflag [#allocation3], 1
    %2874 = vsyncpa %s2873, 1

</llo_original>
